<compile_context>
chip_gen: v5e
topology: v5e:2x2
jax: 0.10.0
libtpu: 0.0.40
codegen_flags: <defaults>
</compile_context>

<pallas_src>
import functools

import numpy as np
import jax
import jax.numpy as jnp
from jax import lax
from jax.experimental import pallas as pl
from jax.experimental.pallas import tpu as pltpu


def _round_up(x, m):
    return ((x + m - 1) // m) * m


# ----------------------------------------------------------------------------
# Fused decoder kernel
# ----------------------------------------------------------------------------
def _decoder_kernel(*refs, n_res_block, stride, H, W, Cp, CPAD,
                    in_p, ch_p, rc_p, t1_p, out_p):
    # refs = (x_ref, <per-layer packed weights/biases...>, out_ref, pad_ref)
    x_ref = refs[0]
    out_ref = refs[-2]
    pad_ref = refs[-1]          # (H+2, Cp, CPAD) f32 halo buffer (scratch)
    wrefs = refs[1:-2]

    P = (H + 2) * Cp            # flattened halo-buffer rows (multiple of 8)
    M = H * Cp                  # flattened output rows (buffer rows 1..H)

    def store_pad(slab, c):
        """Store an (M, c) slab (valid cols 1..W) into the halo interior."""
        pad_ref[1:H + 1, :, 0:c] = slab.reshape(H, Cp, c)
        zc = jnp.zeros((H, 1, CPAD), jnp.float32)
        pad_ref[1:H + 1, 0:1, :] = zc                  # left halo column
        pad_ref[1:H + 1, W + 1:W + 2, :] = zc          # right halo column

    def conv3x3(cin, cout, w_ref, b_ref):
        """3x3 'same' conv of the halo buffer as 9 tap matmuls (no im2col).

        Returns an (M, cout) f32 slab in halo-buffer coordinates.  ky taps are
        aligned leading-dim row slices of the flattened buffer; kx taps are
        +/-1 circular sublane rolls (XLU).  Wrapped / out-of-window rows only
        feed discarded output columns (0 and >= W+1), which are re-zeroed by
        the next store.
        """
        xf = pad_ref[:, :, 0:cin].reshape(P, cin)
        acc = jnp.zeros((M, cout), jnp.float32)
        for kx in range(3):
            shift = (1 - kx) % P                      # {+1, 0, -1} circular
            xs = pltpu.roll(xf, shift=shift, axis=0) if shift else xf
            xs = xs.astype(jnp.bfloat16)              # bf16 MXU operand
            for ky in range(3):
                acc = acc + lax.dot_general(
                    xs[ky * Cp: ky * Cp + M, :], w_ref[ky * 3 + kx],
                    (((1,), (0,)), ((), ())),
                    preferred_element_type=jnp.float32)
        return acc + b_ref[...]

    # Zero only the top/bottom halo rows; done every grid step because a core
    # may start mid-grid (megacore) with a cold scratch.  The left/right halo
    # columns come pre-zeroed from the host-padded input / the per-conv store
    # epilogue above.
    zrow = jnp.zeros((1, Cp, CPAD), jnp.float32)
    pad_ref[0:1, :, :] = zrow
    pad_ref[H + 1:H + 2, :, :] = zrow

    idx = 0
    w, b = wrefs[idx], wrefs[idx + 1]
    idx += 2
    pad_ref[1:H + 1, :, 0:in_p] = x_ref[0]            # aligned, lane-dense store
    h = conv3x3(in_p, ch_p, w, b)                     # (M, ch_p) f32

    for _ in range(n_res_block):
        w1, b1, w2, b2 = wrefs[idx:idx + 4]
        idx += 4
        store_pad(jnp.maximum(h, 0.0), ch_p)
        t = conv3x3(ch_p, rc_p, w1, b1)
        t = jnp.maximum(t, 0.0).astype(jnp.bfloat16)
        t = lax.dot_general(t, w2[...], (((1,), (0,)), ((), ())),
                            preferred_element_type=jnp.float32) + b2[...]
        h = h + t                                     # residual (f32)

    h = jnp.maximum(h, 0.0)                           # trailing ReLU

    if stride == 4:
        wt1, bt1, wt2, bt2 = wrefs[idx:idx + 4]
        store_pad(h, ch_p)
        u = conv3x3(ch_p, t1_p, wt1, bt1)             # ConvT1 as phase conv
        store_pad(jnp.maximum(u, 0.0), t1_p)
        y = conv3x3(t1_p, out_p, wt2, bt2)            # fused ConvT2 (16 phases)
    else:
        wt, bt = wrefs[idx:idx + 2]
        store_pad(h, ch_p)
        y = conv3x3(ch_p, out_p, wt, bt)              # single ConvT (4 phases)

    out_ref[...] = y.reshape(1, H, Cp, out_p).astype(out_ref.dtype)


# ----------------------------------------------------------------------------
# Host-side weight packing (polyphase ConvTranspose algebra + per-layer pads)
# ----------------------------------------------------------------------------
def _phase_weight_np(wf):
    """ConvT(k4,s2,p1) as a 3x3 'same' conv over the input grid.

    wf: (4,4,Cin,Cout) flipped forward-conv HWIO weight.
    Returns (3,3,Cin,2,2,Cout) indexed [dr, dc, ci, pr, pc, co] so that
    y[2m+pr, 2n+pc] = sum_{dr,dc} W[dr,dc,:,pr,pc,:] . xpad[m+dr, n+dc].
    """
    Cin, Cout = wf.shape[2], wf.shape[3]
    wc = np.zeros((3, 3, Cin, 2, 2, Cout), np.float32)
    for dr in range(3):
        for pr in range(2):
            if not 0 <= dr - pr <= 1:
                continue
            for dc in range(3):
                for pc in range(2):
                    if not 0 <= dc - pc <= 1:
                        continue
                    wc[dr, dc, :, pr, pc, :] = wf[2 * dr - pr, 2 * dc - pc]
    return wc


def _composite_weight_np(wf2):
    """Second ConvT consuming the 4-phase layout of the first ConvT directly.

    wf2: (4,4,C2,Cout) flipped forward-conv HWIO weight of the second ConvT.
    Returns (3,3, 4*C2, 16*Cout): a 3x3 'same' conv over the phase tensor
    (channels ordered (pr', pc', c)) producing 16 phase channels ordered
    (er, ec, qr, qc, o); final pixel offset = (2*er+qr, 2*ec+qc).
    """
    C2, Cout = wf2.shape[2], wf2.shape[3]
    wc2 = _phase_weight_np(wf2)   # [d2r, d2c, c, qr, qc, o]
    w = np.zeros((3, 3, 2, 2, C2, 2, 2, 2, 2, Cout), np.float32)
    for dlr in range(3):
        for plr in range(2):
            for er in range(2):
                d2r = 2 * dlr + plr - er - 1
                if not 0 <= d2r <= 2:
                    continue
                for dlc in range(3):
                    for plc in range(2):
                        for ec in range(2):
                            d2c = 2 * dlc + plc - ec - 1
                            if not 0 <= d2c <= 2:
                                continue
                            w[dlr, dlc, plr, plc, :, er, ec, :, :, :] = (
                                wc2[d2r, d2c])
    return w.reshape(3, 3, 4 * C2, 16 * Cout)


def _pack_w9(w33, cin_p, cout_p):
    ci, co = w33.shape[2], w33.shape[3]
    m = np.zeros((3, 3, cin_p, cout_p), np.float32)
    m[:, :, :ci, :co] = np.asarray(w33, np.float32)
    return jnp.asarray(m.reshape(9, cin_p, cout_p), dtype=jnp.bfloat16)


def _pack_w1(w11, cin_p, cout_p):
    ci, co = w11.shape
    m = np.zeros((cin_p, cout_p), np.float32)
    m[:ci, :co] = np.asarray(w11, np.float32)
    return jnp.asarray(m, dtype=jnp.bfloat16)


def _pack_b(b, cout_p):
    v = np.zeros((1, cout_p), np.float32)
    v[0, :b.shape[0]] = np.asarray(b, np.float32)
    return jnp.asarray(v)


def _pack_decoder_params(params, stride):
    assert stride in (2, 4)
    p = jax.tree_util.tree_map(np.asarray, params)
    in_ch = p["conv_in_w"].shape[2]
    ch = p["conv_in_w"].shape[3]
    rc = p["res"][0][0].shape[3] if p["res"] else 1
    in_p, ch_p, rc_p = (_round_up(in_ch, 128), _round_up(ch, 128),
                        _round_up(rc, 128))
    if stride == 4:
        c2 = p["t1_w"].shape[3]                    # channel // 2
        out_ch = p["t2_w"].shape[3]
        t1_p = _round_up(4 * c2, 128)
        out_p = _round_up(16 * out_ch, 128)
        n_phase = 16
        pad_c = max(in_p, ch_p, t1_p)
    else:
        out_ch = p["t_w"].shape[3]
        t1_p = ch_p                                # unused
        out_p = _round_up(4 * out_ch, 128)
        n_phase = 4
        pad_c = max(in_p, ch_p)

    flat = [_pack_w9(p["conv_in_w"], in_p, ch_p), _pack_b(p["conv_in_b"], ch_p)]
    for (w1, b1, w2, b2) in p["res"]:
        flat += [_pack_w9(w1, ch_p, rc_p), _pack_b(b1, rc_p),
                 _pack_w1(w2[0, 0], rc_p, ch_p), _pack_b(b2, ch_p)]
    if stride == 4:
        wt1 = _phase_weight_np(p["t1_w"]).reshape(3, 3, ch, 4 * c2)
        flat += [_pack_w9(wt1, ch_p, t1_p), _pack_b(np.tile(p["t1_b"], 4), t1_p)]
        wt2 = _composite_weight_np(p["t2_w"])
        flat += [_pack_w9(wt2, t1_p, out_p), _pack_b(np.tile(p["t2_b"], 16), out_p)]
    else:
        wt = _phase_weight_np(p["t_w"]).reshape(3, 3, ch, 4 * out_ch)
        flat += [_pack_w9(wt, ch_p, out_p), _pack_b(np.tile(p["t_b"], 4), out_p)]

    dims = dict(in_ch=in_ch, in_p=in_p, ch_p=ch_p, rc_p=rc_p, t1_p=t1_p,
                out_p=out_p, pad_c=pad_c, n_phase=n_phase, out_channel=out_ch)
    return flat, dims


def _vmem_limit_bytes(H, Cp, dims, flat):
    f32 = 4
    pad = (H + 2) * Cp * dims["pad_c"] * f32
    blocks = H * Cp * (dims["in_p"] + dims["out_p"]) * f32 * 2   # 2x buffered
    weights = 2 * sum(int(np.prod(a.shape)) * a.dtype.itemsize for a in flat)
    live = 6 * (H + 2) * Cp * max(dims["ch_p"], dims["t1_p"], dims["out_p"]) * f32
    need = pad + blocks + weights + live
    return int(min(max(2 * need, 32 * 1024 * 1024), 100 * 1024 * 1024))


# ----------------------------------------------------------------------------
# Decoder forward (Pallas) and pure-JAX reference
# ----------------------------------------------------------------------------
def build_decoder(params, *, stride):
    """Packs weights ONCE and returns a jitted forward(x_nchw) function."""
    assert stride in (2, 4)
    flat, dims = _pack_decoder_params(params, stride)
    n_res = len(params["res"])
    n_phase, out_ch = dims["n_phase"], dims["out_channel"]

    def forward(x_nchw):
        x = jnp.transpose(x_nchw, (0, 2, 3, 1)).astype(jnp.float32)  # -> NHWC
        N, H, W, Cin = x.shape
        assert Cin == dims["in_ch"]
        Cp = _round_up(W + 2, 8)
        # Lane-dense input block that already carries its (zero) halo columns:
        # image column j lands at buffer column j+1.
        xp = jnp.pad(x, ((0, 0), (0, 0), (1, Cp - W - 1),
                         (0, dims["in_p"] - Cin)))

        kernel = functools.partial(
            _decoder_kernel, n_res_block=n_res, stride=stride, H=H, W=W,
            Cp=Cp, CPAD=dims["pad_c"], in_p=dims["in_p"], ch_p=dims["ch_p"],
            rc_p=dims["rc_p"], t1_p=dims["t1_p"], out_p=dims["out_p"])

        def _const_spec(a):
            zeros = (0,) * a.ndim
            return pl.BlockSpec(a.shape, lambda n, _z=zeros: _z)

        w_specs = [_const_spec(a) for a in flat]
        out = pl.pallas_call(
            kernel,
            out_shape=jax.ShapeDtypeStruct((N, H, Cp, dims["out_p"]),
                                           jnp.float32),
            grid=(N,),
            in_specs=[pl.BlockSpec((1, H, Cp, dims["in_p"]),
                                   lambda n: (n, 0, 0, 0))] + w_specs,
            out_specs=pl.BlockSpec((1, H, Cp, dims["out_p"]),
                                   lambda n: (n, 0, 0, 0)),
            scratch_shapes=[pltpu.VMEM((H + 2, Cp, dims["pad_c"]),
                                       jnp.float32)],
            compiler_params=pltpu.CompilerParams(
                dimension_semantics=("parallel",),
                vmem_limit_bytes=_vmem_limit_bytes(H, Cp, dims, flat)),
        )(xp, *flat)

        # Crop halo columns + pixel-shuffle the phase channels (XLA glue).
        y = out[:, :, 1:W + 1, :n_phase * out_ch]
        if stride == 4:
            y = y.reshape(N, H, W, 2, 2, 2, 2, out_ch)
            y = jnp.transpose(y, (0, 1, 3, 5, 2, 4, 6, 7))
            y = y.reshape(N, 4 * H, 4 * W, out_ch)
        else:
            y = y.reshape(N, H, W, 2, 2, out_ch)
            y = jnp.transpose(y, (0, 1, 3, 2, 4, 5))
            y = y.reshape(N, 2 * H, 2 * W, out_ch)
        return jnp.transpose(y, (0, 3, 1, 2))                       # -> NCHW

    return jax.jit(forward)


def decoder_reference(params, x_nchw, *, stride):
    dn = ("NHWC", "HWIO", "NHWC")

    def conv(x, w, b, pad):
        return lax.conv_general_dilated(
            x, w, (1, 1), [(pad, pad), (pad, pad)],
            dimension_numbers=dn) + b.reshape(1, 1, 1, -1)

    def convT(x, w, b):
        return lax.conv_general_dilated(
            x, w, (1, 1), [(2, 2), (2, 2)], lhs_dilation=(2, 2),
            dimension_numbers=dn) + b.reshape(1, 1, 1, -1)

    x = jnp.transpose(x_nchw, (0, 2, 3, 1))
    h = conv(x, params["conv_in_w"], params["conv_in_b"], 1)
    for (w1, b1, w2, b2) in params["res"]:
        t = conv(jax.nn.relu(h), w1, b1, 1)
        t = conv(jax.nn.relu(t), w2, b2, 0)
        h = h + t
    h = jax.nn.relu(h)
    if stride == 4:
        h = jax.nn.relu(convT(h, params["t1_w"], params["t1_b"]))
        h = convT(h, params["t2_w"], params["t2_b"])
    else:
        h = convT(h, params["t_w"], params["t_b"])
    return jnp.transpose(h, (0, 3, 1, 2))


# ----------------------------------------------------------------------------
# Parameters (deterministic synthetic init; shapes follow the nn.Module)
# ----------------------------------------------------------------------------
def _convT_weight_to_hwio(w_pt):
    # PyTorch ConvTranspose2d weight (Cin, Cout, KH, KW) -> equivalent
    # forward-conv weight (KH, KW, Cin, Cout), spatially flipped.
    return jnp.transpose(jnp.flip(w_pt, axis=(2, 3)), (2, 3, 0, 1))


def init_decoder_params(key, in_channel, out_channel, channel,
                        n_res_block, n_res_channel, stride):
    def nrm(k, shape, scale=0.1):
        return scale * jax.random.normal(k, shape, jnp.float32)

    keys = jax.random.split(key, 4 + 2 * n_res_block)
    p = {
        "conv_in_w": nrm(keys[0], (3, 3, in_channel, channel)),
        "conv_in_b": nrm(keys[1], (channel,), 0.05),
        "res": [],
    }
    for i in range(n_res_block):
        k1, k2, k3, k4 = jax.random.split(keys[2 + i], 4)
        p["res"].append((
            nrm(k1, (3, 3, channel, n_res_channel)),
            nrm(k2, (n_res_channel,), 0.05),
            nrm(k3, (1, 1, n_res_channel, channel)),
            nrm(k4, (channel,), 0.05),
        ))
    if stride == 4:
        k1, k2, k3, k4 = jax.random.split(keys[2 + n_res_block], 4)
        p["t1_w"] = _convT_weight_to_hwio(nrm(k1, (channel, channel // 2, 4, 4)))
        p["t1_b"] = nrm(k2, (channel // 2,), 0.05)
        p["t2_w"] = _convT_weight_to_hwio(nrm(k3, (channel // 2, out_channel, 4, 4)))
        p["t2_b"] = nrm(k4, (out_channel,), 0.05)
    elif stride == 2:
        k1, k2 = jax.random.split(keys[2 + n_res_block], 2)
        p["t_w"] = _convT_weight_to_hwio(nrm(k1, (channel, out_channel, 4, 4)))
        p["t_b"] = nrm(k2, (out_channel,), 0.05)
    return p


# ----------------------------------------------------------------------------
if __name__ == "__main__":
    # Decoder(in_channel=4, out_channel=3, channel=32, n_res_block=2,
    #         n_res_channel=8, stride=4), input NCHW (2, 4, 8, 8)
    batch, in_channel, out_channel = 2, 4, 3
    channel, n_res_block, n_res_channel, stride = 32, 2, 8, 4
    H = W = 8

    key = jax.random.PRNGKey(0)
    k_param, k_x = jax.random.split(key)
    params = init_decoder_params(k_param, in_channel, out_channel, channel,
                                 n_res_block, n_res_channel, stride)
    x = jax.random.normal(k_x, (batch, in_channel, H, W), jnp.float32)

    decoder = build_decoder(params, stride=stride)   # packs weights once
    out = jax.block_until_ready(decoder(x))

    ref = jax.block_until_ready(decoder_reference(params, x, stride=stride))
    assert out.shape == (batch, out_channel, 4 * H, 4 * W), out.shape
    max_err = float(jnp.max(jnp.abs(out - ref)))
    # bf16 MXU operands vs. the f32 reference -> tolerance ~5e-2 absolute.
    assert max_err < 5e-2, max_err

    print("KERNEL_OK")
</pallas_src>

<mosaic_0001>
module attributes {stable_mosaic.version = 11 : i64} {
  func.func @_decoder_kernel(%arg0: i32, %arg1: memref<1x8x16x128xf32, #tpu.memory_space<vmem>>, %arg2: memref<9x128x128xbf16, #tpu.memory_space<vmem>>, %arg3: memref<1x128xf32, #tpu.memory_space<vmem>>, %arg4: memref<9x128x128xbf16, #tpu.memory_space<vmem>>, %arg5: memref<1x128xf32, #tpu.memory_space<vmem>>, %arg6: memref<128x128xbf16, #tpu.memory_space<vmem>>, %arg7: memref<1x128xf32, #tpu.memory_space<vmem>>, %arg8: memref<9x128x128xbf16, #tpu.memory_space<vmem>>, %arg9: memref<1x128xf32, #tpu.memory_space<vmem>>, %arg10: memref<128x128xbf16, #tpu.memory_space<vmem>>, %arg11: memref<1x128xf32, #tpu.memory_space<vmem>>, %arg12: memref<9x128x128xbf16, #tpu.memory_space<vmem>>, %arg13: memref<1x128xf32, #tpu.memory_space<vmem>>, %arg14: memref<9x128x128xbf16, #tpu.memory_space<vmem>>, %arg15: memref<1x128xf32, #tpu.memory_space<vmem>>, %arg16: memref<1x8x16x128xf32, #tpu.memory_space<vmem>>, %arg17: memref<10x16x128xf32, #tpu.memory_space<vmem>>) attributes {dimension_semantics = [#tpu.dimension_semantics<parallel>], iteration_bounds = array<i64: 2>, scalar_prefetch = 0 : i64, scratch_operands = 1 : i64, tpu.core_type = #tpu.core_type<tc>, window_params = [{transform_indices = @transform_0, window_bounds = array<i64: 1, 8, 16, 128>}, {pipeline_mode = #tpu.pipeline_mode<synchronous>, transform_indices = @transform_1, window_bounds = array<i64: 9, 128, 128>}, {pipeline_mode = #tpu.pipeline_mode<synchronous>, transform_indices = @transform_2, window_bounds = array<i64: 1, 128>}, {pipeline_mode = #tpu.pipeline_mode<synchronous>, transform_indices = @transform_3, window_bounds = array<i64: 9, 128, 128>}, {pipeline_mode = #tpu.pipeline_mode<synchronous>, transform_indices = @transform_4, window_bounds = array<i64: 1, 128>}, {pipeline_mode = #tpu.pipeline_mode<synchronous>, transform_indices = @transform_5, window_bounds = array<i64: 128, 128>}, {pipeline_mode = #tpu.pipeline_mode<synchronous>, transform_indices = @transform_6, window_bounds = array<i64: 1, 128>}, {pipeline_mode = #tpu.pipeline_mode<synchronous>, transform_indices = @transform_7, window_bounds = array<i64: 9, 128, 128>}, {pipeline_mode = #tpu.pipeline_mode<synchronous>, transform_indices = @transform_8, window_bounds = array<i64: 1, 128>}, {pipeline_mode = #tpu.pipeline_mode<synchronous>, transform_indices = @transform_9, window_bounds = array<i64: 128, 128>}, {pipeline_mode = #tpu.pipeline_mode<synchronous>, transform_indices = @transform_10, window_bounds = array<i64: 1, 128>}, {pipeline_mode = #tpu.pipeline_mode<synchronous>, transform_indices = @transform_11, window_bounds = array<i64: 9, 128, 128>}, {pipeline_mode = #tpu.pipeline_mode<synchronous>, transform_indices = @transform_12, window_bounds = array<i64: 1, 128>}, {pipeline_mode = #tpu.pipeline_mode<synchronous>, transform_indices = @transform_13, window_bounds = array<i64: 9, 128, 128>}, {pipeline_mode = #tpu.pipeline_mode<synchronous>, transform_indices = @transform_14, window_bounds = array<i64: 1, 128>}, {transform_indices = @transform_15, window_bounds = array<i64: 1, 8, 16, 128>}]} {
    %cst = arith.constant 0.000000e+00 : f32
    %0 = vector.broadcast %cst : f32 to vector<1x16x128xf32>
    %c0 = arith.constant 0 : index
    %c0_0 = arith.constant 0 : index
    %c0_1 = arith.constant 0 : index
    %1 = vector.load %arg17[%c0, %c0_0, %c0_1] : memref<10x16x128xf32, #tpu.memory_space<vmem>>, vector<1x16x128xf32>
    tpu.vector_store %arg17[%c0, %c0_0, %c0_1], %0 {strides = array<i32>} : memref<10x16x128xf32, #tpu.memory_space<vmem>>, vector<1x16x128xf32>,
    %c9 = arith.constant 9 : index
    %c0_2 = arith.constant 0 : index
    %c0_3 = arith.constant 0 : index
    %2 = vector.load %arg17[%c9, %c0_2, %c0_3] : memref<10x16x128xf32, #tpu.memory_space<vmem>>, vector<1x16x128xf32>
    tpu.vector_store %arg17[%c9, %c0_2, %c0_3], %0 {strides = array<i32>} : memref<10x16x128xf32, #tpu.memory_space<vmem>>, vector<1x16x128xf32>,
    %c0_4 = arith.constant 0 : index
    %c0_5 = arith.constant 0 : index
    %c0_6 = arith.constant 0 : index
    %c0_7 = arith.constant 0 : index
    %3 = vector.load %arg1[%c0_4, %c0_5, %c0_6, %c0_7] : memref<1x8x16x128xf32, #tpu.memory_space<vmem>>, vector<1x8x16x128xf32>
    %4 = vector.shape_cast %3 : vector<1x8x16x128xf32> to vector<8x16x128xf32>
    %c1 = arith.constant 1 : index
    %c0_8 = arith.constant 0 : index
    %c0_9 = arith.constant 0 : index
    %5 = vector.load %arg17[%c1, %c0_8, %c0_9] : memref<10x16x128xf32, #tpu.memory_space<vmem>>, vector<8x16x128xf32>
    tpu.vector_store %arg17[%c1, %c0_8, %c0_9], %4 {strides = array<i32>} : memref<10x16x128xf32, #tpu.memory_space<vmem>>, vector<8x16x128xf32>,
    %c0_10 = arith.constant 0 : index
    %c0_11 = arith.constant 0 : index
    %c0_12 = arith.constant 0 : index
    %6 = vector.load %arg17[%c0_10, %c0_11, %c0_12] : memref<10x16x128xf32, #tpu.memory_space<vmem>>, vector<10x16x128xf32>
    %7 = vector.shape_cast %6 : vector<10x16x128xf32> to vector<160x128xf32>
    %cst_13 = arith.constant 0.000000e+00 : f32
    %8 = vector.broadcast %cst_13 : f32 to vector<128x128xf32>
    %c1_i32 = arith.constant 1 : i32
    %9 = tpu.dynamic_rotate %7 by %c1_i32 dim 0 : vector<160x128xf32>, i32 -> vector<160x128xf32>
    %10 = arith.truncf %9 : vector<160x128xf32> to vector<160x128xbf16>
    %11 = vector.extract_strided_slice %10 {offsets = [0, 0], sizes = [128, 128], strides = [1, 1]} : vector<160x128xbf16> to vector<128x128xbf16>
    %c0_14 = arith.constant 0 : index
    %c0_15 = arith.constant 0 : index
    %c0_16 = arith.constant 0 : index
    %12 = vector.load %arg2[%c0_14, %c0_15, %c0_16] : memref<9x128x128xbf16, #tpu.memory_space<vmem>>, vector<1x128x128xbf16>
    %13 = vector.shape_cast %12 : vector<1x128x128xbf16> to vector<128x128xbf16>
    %cst_17 = arith.constant dense<0.000000e+00> : vector<128x128xf32>
    %14 = tpu.matmul %11, %13, %cst_17 {dimension_numbers = #tpu.dot_dimension_numbers<[1], [0], [0], [1], [0, 0, 1, 1], [], []>} : vector<128x128xbf16>, vector<128x128xbf16>, vector<128x128xf32> -> vector<128x128xf32>
    %15 = arith.addf %8, %14 : vector<128x128xf32>
    %16 = vector.extract_strided_slice %10 {offsets = [16, 0], sizes = [128, 128], strides = [1, 1]} : vector<160x128xbf16> to vector<128x128xbf16>
    %c3 = arith.constant 3 : index
    %c0_18 = arith.constant 0 : index
    %c0_19 = arith.constant 0 : index
    %17 = vector.load %arg2[%c3, %c0_18, %c0_19] : memref<9x128x128xbf16, #tpu.memory_space<vmem>>, vector<1x128x128xbf16>
    %18 = vector.shape_cast %17 : vector<1x128x128xbf16> to vector<128x128xbf16>
    %cst_20 = arith.constant dense<0.000000e+00> : vector<128x128xf32>
    %19 = tpu.matmul %16, %18, %cst_20 {dimension_numbers = #tpu.dot_dimension_numbers<[1], [0], [0], [1], [0, 0, 1, 1], [], []>} : vector<128x128xbf16>, vector<128x128xbf16>, vector<128x128xf32> -> vector<128x128xf32>
    %20 = arith.addf %15, %19 : vector<128x128xf32>
    %21 = vector.extract_strided_slice %10 {offsets = [32, 0], sizes = [128, 128], strides = [1, 1]} : vector<160x128xbf16> to vector<128x128xbf16>
    %c6 = arith.constant 6 : index
    %c0_21 = arith.constant 0 : index
    %c0_22 = arith.constant 0 : index
    %22 = vector.load %arg2[%c6, %c0_21, %c0_22] : memref<9x128x128xbf16, #tpu.memory_space<vmem>>, vector<1x128x128xbf16>
    %23 = vector.shape_cast %22 : vector<1x128x128xbf16> to vector<128x128xbf16>
    %cst_23 = arith.constant dense<0.000000e+00> : vector<128x128xf32>
    %24 = tpu.matmul %21, %23, %cst_23 {dimension_numbers = #tpu.dot_dimension_numbers<[1], [0], [0], [1], [0, 0, 1, 1], [], []>} : vector<128x128xbf16>, vector<128x128xbf16>, vector<128x128xf32> -> vector<128x128xf32>
    %25 = arith.addf %20, %24 : vector<128x128xf32>
    %26 = arith.truncf %7 : vector<160x128xf32> to vector<160x128xbf16>
    %27 = vector.extract_strided_slice %26 {offsets = [0, 0], sizes = [128, 128], strides = [1, 1]} : vector<160x128xbf16> to vector<128x128xbf16>
    %c1_24 = arith.constant 1 : index
    %c0_25 = arith.constant 0 : index
    %c0_26 = arith.constant 0 : index
    %28 = vector.load %arg2[%c1_24, %c0_25, %c0_26] : memref<9x128x128xbf16, #tpu.memory_space<vmem>>, vector<1x128x128xbf16>
    %29 = vector.shape_cast %28 : vector<1x128x128xbf16> to vector<128x128xbf16>
    %cst_27 = arith.constant dense<0.000000e+00> : vector<128x128xf32>
    %30 = tpu.matmul %27, %29, %cst_27 {dimension_numbers = #tpu.dot_dimension_numbers<[1], [0], [0], [1], [0, 0, 1, 1], [], []>} : vector<128x128xbf16>, vector<128x128xbf16>, vector<128x128xf32> -> vector<128x128xf32>
    %31 = arith.addf %25, %30 : vector<128x128xf32>
    %32 = vector.extract_strided_slice %26 {offsets = [16, 0], sizes = [128, 128], strides = [1, 1]} : vector<160x128xbf16> to vector<128x128xbf16>
    %c4 = arith.constant 4 : index
    %c0_28 = arith.constant 0 : index
    %c0_29 = arith.constant 0 : index
    %33 = vector.load %arg2[%c4, %c0_28, %c0_29] : memref<9x128x128xbf16, #tpu.memory_space<vmem>>, vector<1x128x128xbf16>
    %34 = vector.shape_cast %33 : vector<1x128x128xbf16> to vector<128x128xbf16>
    %cst_30 = arith.constant dense<0.000000e+00> : vector<128x128xf32>
    %35 = tpu.matmul %32, %34, %cst_30 {dimension_numbers = #tpu.dot_dimension_numbers<[1], [0], [0], [1], [0, 0, 1, 1], [], []>} : vector<128x128xbf16>, vector<128x128xbf16>, vector<128x128xf32> -> vector<128x128xf32>
    %36 = arith.addf %31, %35 : vector<128x128xf32>
    %37 = vector.extract_strided_slice %26 {offsets = [32, 0], sizes = [128, 128], strides = [1, 1]} : vector<160x128xbf16> to vector<128x128xbf16>
    %c7 = arith.constant 7 : index
    %c0_31 = arith.constant 0 : index
    %c0_32 = arith.constant 0 : index
    %38 = vector.load %arg2[%c7, %c0_31, %c0_32] : memref<9x128x128xbf16, #tpu.memory_space<vmem>>, vector<1x128x128xbf16>
    %39 = vector.shape_cast %38 : vector<1x128x128xbf16> to vector<128x128xbf16>
    %cst_33 = arith.constant dense<0.000000e+00> : vector<128x128xf32>
    %40 = tpu.matmul %37, %39, %cst_33 {dimension_numbers = #tpu.dot_dimension_numbers<[1], [0], [0], [1], [0, 0, 1, 1], [], []>} : vector<128x128xbf16>, vector<128x128xbf16>, vector<128x128xf32> -> vector<128x128xf32>
    %41 = arith.addf %36, %40 : vector<128x128xf32>
    %c159_i32 = arith.constant 159 : i32
    %42 = tpu.dynamic_rotate %7 by %c159_i32 dim 0 : vector<160x128xf32>, i32 -> vector<160x128xf32>
    %43 = arith.truncf %42 : vector<160x128xf32> to vector<160x128xbf16>
    %44 = vector.extract_strided_slice %43 {offsets = [0, 0], sizes = [128, 128], strides = [1, 1]} : vector<160x128xbf16> to vector<128x128xbf16>
    %c2 = arith.constant 2 : index
    %c0_34 = arith.constant 0 : index
    %c0_35 = arith.constant 0 : index
    %45 = vector.load %arg2[%c2, %c0_34, %c0_35] : memref<9x128x128xbf16, #tpu.memory_space<vmem>>, vector<1x128x128xbf16>
    %46 = vector.shape_cast %45 : vector<1x128x128xbf16> to vector<128x128xbf16>
    %cst_36 = arith.constant dense<0.000000e+00> : vector<128x128xf32>
    %47 = tpu.matmul %44, %46, %cst_36 {dimension_numbers = #tpu.dot_dimension_numbers<[1], [0], [0], [1], [0, 0, 1, 1], [], []>} : vector<128x128xbf16>, vector<128x128xbf16>, vector<128x128xf32> -> vector<128x128xf32>
    %48 = arith.addf %41, %47 : vector<128x128xf32>
    %49 = vector.extract_strided_slice %43 {offsets = [16, 0], sizes = [128, 128], strides = [1, 1]} : vector<160x128xbf16> to vector<128x128xbf16>
    %c5 = arith.constant 5 : index
    %c0_37 = arith.constant 0 : index
    %c0_38 = arith.constant 0 : index
    %50 = vector.load %arg2[%c5, %c0_37, %c0_38] : memref<9x128x128xbf16, #tpu.memory_space<vmem>>, vector<1x128x128xbf16>
    %51 = vector.shape_cast %50 : vector<1x128x128xbf16> to vector<128x128xbf16>
    %cst_39 = arith.constant dense<0.000000e+00> : vector<128x128xf32>
    %52 = tpu.matmul %49, %51, %cst_39 {dimension_numbers = #tpu.dot_dimension_numbers<[1], [0], [0], [1], [0, 0, 1, 1], [], []>} : vector<128x128xbf16>, vector<128x128xbf16>, vector<128x128xf32> -> vector<128x128xf32>
    %53 = arith.addf %48, %52 : vector<128x128xf32>
    %54 = vector.extract_strided_slice %43 {offsets = [32, 0], sizes = [128, 128], strides = [1, 1]} : vector<160x128xbf16> to vector<128x128xbf16>
    %c8 = arith.constant 8 : index
    %c0_40 = arith.constant 0 : index
    %c0_41 = arith.constant 0 : index
    %55 = vector.load %arg2[%c8, %c0_40, %c0_41] : memref<9x128x128xbf16, #tpu.memory_space<vmem>>, vector<1x128x128xbf16>
    %56 = vector.shape_cast %55 : vector<1x128x128xbf16> to vector<128x128xbf16>
    %cst_42 = arith.constant dense<0.000000e+00> : vector<128x128xf32>
    %57 = tpu.matmul %54, %56, %cst_42 {dimension_numbers = #tpu.dot_dimension_numbers<[1], [0], [0], [1], [0, 0, 1, 1], [], []>} : vector<128x128xbf16>, vector<128x128xbf16>, vector<128x128xf32> -> vector<128x128xf32>
    %58 = arith.addf %53, %57 : vector<128x128xf32>
    %c0_43 = arith.constant 0 : index
    %c0_44 = arith.constant 0 : index
    %59 = vector.load %arg3[%c0_43, %c0_44] : memref<1x128xf32, #tpu.memory_space<vmem>>, vector<1x128xf32>
    %60 = vector.broadcast %59 : vector<1x128xf32> to vector<128x128xf32>
    %61 = arith.addf %58, %60 : vector<128x128xf32>
    %cst_45 = arith.constant 0.000000e+00 : f32
    %62 = vector.broadcast %cst_45 : f32 to vector<128x128xf32>
    %63 = arith.maximumf %61, %62 : vector<128x128xf32>
    %64 = vector.shape_cast %63 : vector<128x128xf32> to vector<8x16x128xf32>
    %c1_46 = arith.constant 1 : index
    %c0_47 = arith.constant 0 : index
    %c0_48 = arith.constant 0 : index
    %65 = vector.load %arg17[%c1_46, %c0_47, %c0_48] : memref<10x16x128xf32, #tpu.memory_space<vmem>>, vector<8x16x128xf32>
    tpu.vector_store %arg17[%c1_46, %c0_47, %c0_48], %64 {strides = array<i32>} : memref<10x16x128xf32, #tpu.memory_space<vmem>>, vector<8x16x128xf32>,
    %cst_49 = arith.constant 0.000000e+00 : f32
    %66 = vector.broadcast %cst_49 : f32 to vector<8x1x128xf32>
    %c1_50 = arith.constant 1 : index
    %c0_51 = arith.constant 0 : index
    %c0_52 = arith.constant 0 : index
    %67 = vector.load %arg17[%c1_50, %c0_51, %c0_52] : memref<10x16x128xf32, #tpu.memory_space<vmem>>, vector<8x1x128xf32>
    tpu.vector_store %arg17[%c1_50, %c0_51, %c0_52], %66 {strides = array<i32>} : memref<10x16x128xf32, #tpu.memory_space<vmem>>, vector<8x1x128xf32>,
    %c1_53 = arith.constant 1 : index
    %c9_54 = arith.constant 9 : index
    %c0_55 = arith.constant 0 : index
    %68 = vector.load %arg17[%c1_53, %c9_54, %c0_55] : memref<10x16x128xf32, #tpu.memory_space<vmem>>, vector<8x1x128xf32>
    tpu.vector_store %arg17[%c1_53, %c9_54, %c0_55], %66 {strides = array<i32>} : memref<10x16x128xf32, #tpu.memory_space<vmem>>, vector<8x1x128xf32>,
    %c0_56 = arith.constant 0 : index
    %c0_57 = arith.constant 0 : index
    %c0_58 = arith.constant 0 : index
    %69 = vector.load %arg17[%c0_56, %c0_57, %c0_58] : memref<10x16x128xf32, #tpu.memory_space<vmem>>, vector<10x16x128xf32>
    %70 = vector.shape_cast %69 : vector<10x16x128xf32> to vector<160x128xf32>
    %cst_59 = arith.constant 0.000000e+00 : f32
    %71 = vector.broadcast %cst_59 : f32 to vector<128x128xf32>
    %c1_i32_60 = arith.constant 1 : i32
    %72 = tpu.dynamic_rotate %70 by %c1_i32_60 dim 0 : vector<160x128xf32>, i32 -> vector<160x128xf32>
    %73 = arith.truncf %72 : vector<160x128xf32> to vector<160x128xbf16>
    %74 = vector.extract_strided_slice %73 {offsets = [0, 0], sizes = [128, 128], strides = [1, 1]} : vector<160x128xbf16> to vector<128x128xbf16>
    %c0_61 = arith.constant 0 : index
    %c0_62 = arith.constant 0 : index
    %c0_63 = arith.constant 0 : index
    %75 = vector.load %arg4[%c0_61, %c0_62, %c0_63] : memref<9x128x128xbf16, #tpu.memory_space<vmem>>, vector<1x128x128xbf16>
    %76 = vector.shape_cast %75 : vector<1x128x128xbf16> to vector<128x128xbf16>
    %cst_64 = arith.constant dense<0.000000e+00> : vector<128x128xf32>
    %77 = tpu.matmul %74, %76, %cst_64 {dimension_numbers = #tpu.dot_dimension_numbers<[1], [0], [0], [1], [0, 0, 1, 1], [], []>} : vector<128x128xbf16>, vector<128x128xbf16>, vector<128x128xf32> -> vector<128x128xf32>
    %78 = arith.addf %71, %77 : vector<128x128xf32>
    %79 = vector.extract_strided_slice %73 {offsets = [16, 0], sizes = [128, 128], strides = [1, 1]} : vector<160x128xbf16> to vector<128x128xbf16>
    %c3_65 = arith.constant 3 : index
    %c0_66 = arith.constant 0 : index
    %c0_67 = arith.constant 0 : index
    %80 = vector.load %arg4[%c3_65, %c0_66, %c0_67] : memref<9x128x128xbf16, #tpu.memory_space<vmem>>, vector<1x128x128xbf16>
    %81 = vector.shape_cast %80 : vector<1x128x128xbf16> to vector<128x128xbf16>
    %cst_68 = arith.constant dense<0.000000e+00> : vector<128x128xf32>
    %82 = tpu.matmul %79, %81, %cst_68 {dimension_numbers = #tpu.dot_dimension_numbers<[1], [0], [0], [1], [0, 0, 1, 1], [], []>} : vector<128x128xbf16>, vector<128x128xbf16>, vector<128x128xf32> -> vector<128x128xf32>
    %83 = arith.addf %78, %82 : vector<128x128xf32>
    %84 = vector.extract_strided_slice %73 {offsets = [32, 0], sizes = [128, 128], strides = [1, 1]} : vector<160x128xbf16> to vector<128x128xbf16>
    %c6_69 = arith.constant 6 : index
    %c0_70 = arith.constant 0 : index
    %c0_71 = arith.constant 0 : index
    %85 = vector.load %arg4[%c6_69, %c0_70, %c0_71] : memref<9x128x128xbf16, #tpu.memory_space<vmem>>, vector<1x128x128xbf16>
    %86 = vector.shape_cast %85 : vector<1x128x128xbf16> to vector<128x128xbf16>
    %cst_72 = arith.constant dense<0.000000e+00> : vector<128x128xf32>
    %87 = tpu.matmul %84, %86, %cst_72 {dimension_numbers = #tpu.dot_dimension_numbers<[1], [0], [0], [1], [0, 0, 1, 1], [], []>} : vector<128x128xbf16>, vector<128x128xbf16>, vector<128x128xf32> -> vector<128x128xf32>
    %88 = arith.addf %83, %87 : vector<128x128xf32>
    %89 = arith.truncf %70 : vector<160x128xf32> to vector<160x128xbf16>
    %90 = vector.extract_strided_slice %89 {offsets = [0, 0], sizes = [128, 128], strides = [1, 1]} : vector<160x128xbf16> to vector<128x128xbf16>
    %c1_73 = arith.constant 1 : index
    %c0_74 = arith.constant 0 : index
    %c0_75 = arith.constant 0 : index
    %91 = vector.load %arg4[%c1_73, %c0_74, %c0_75] : memref<9x128x128xbf16, #tpu.memory_space<vmem>>, vector<1x128x128xbf16>
    %92 = vector.shape_cast %91 : vector<1x128x128xbf16> to vector<128x128xbf16>
    %cst_76 = arith.constant dense<0.000000e+00> : vector<128x128xf32>
    %93 = tpu.matmul %90, %92, %cst_76 {dimension_numbers = #tpu.dot_dimension_numbers<[1], [0], [0], [1], [0, 0, 1, 1], [], []>} : vector<128x128xbf16>, vector<128x128xbf16>, vector<128x128xf32> -> vector<128x128xf32>
    %94 = arith.addf %88, %93 : vector<128x128xf32>
    %95 = vector.extract_strided_slice %89 {offsets = [16, 0], sizes = [128, 128], strides = [1, 1]} : vector<160x128xbf16> to vector<128x128xbf16>
    %c4_77 = arith.constant 4 : index
    %c0_78 = arith.constant 0 : index
    %c0_79 = arith.constant 0 : index
    %96 = vector.load %arg4[%c4_77, %c0_78, %c0_79] : memref<9x128x128xbf16, #tpu.memory_space<vmem>>, vector<1x128x128xbf16>
    %97 = vector.shape_cast %96 : vector<1x128x128xbf16> to vector<128x128xbf16>
    %cst_80 = arith.constant dense<0.000000e+00> : vector<128x128xf32>
    %98 = tpu.matmul %95, %97, %cst_80 {dimension_numbers = #tpu.dot_dimension_numbers<[1], [0], [0], [1], [0, 0, 1, 1], [], []>} : vector<128x128xbf16>, vector<128x128xbf16>, vector<128x128xf32> -> vector<128x128xf32>
    %99 = arith.addf %94, %98 : vector<128x128xf32>
    %100 = vector.extract_strided_slice %89 {offsets = [32, 0], sizes = [128, 128], strides = [1, 1]} : vector<160x128xbf16> to vector<128x128xbf16>
    %c7_81 = arith.constant 7 : index
    %c0_82 = arith.constant 0 : index
    %c0_83 = arith.constant 0 : index
    %101 = vector.load %arg4[%c7_81, %c0_82, %c0_83] : memref<9x128x128xbf16, #tpu.memory_space<vmem>>, vector<1x128x128xbf16>
    %102 = vector.shape_cast %101 : vector<1x128x128xbf16> to vector<128x128xbf16>
    %cst_84 = arith.constant dense<0.000000e+00> : vector<128x128xf32>
    %103 = tpu.matmul %100, %102, %cst_84 {dimension_numbers = #tpu.dot_dimension_numbers<[1], [0], [0], [1], [0, 0, 1, 1], [], []>} : vector<128x128xbf16>, vector<128x128xbf16>, vector<128x128xf32> -> vector<128x128xf32>
    %104 = arith.addf %99, %103 : vector<128x128xf32>
    %c159_i32_85 = arith.constant 159 : i32
    %105 = tpu.dynamic_rotate %70 by %c159_i32_85 dim 0 : vector<160x128xf32>, i32 -> vector<160x128xf32>
    %106 = arith.truncf %105 : vector<160x128xf32> to vector<160x128xbf16>
    %107 = vector.extract_strided_slice %106 {offsets = [0, 0], sizes = [128, 128], strides = [1, 1]} : vector<160x128xbf16> to vector<128x128xbf16>
    %c2_86 = arith.constant 2 : index
    %c0_87 = arith.constant 0 : index
    %c0_88 = arith.constant 0 : index
    %108 = vector.load %arg4[%c2_86, %c0_87, %c0_88] : memref<9x128x128xbf16, #tpu.memory_space<vmem>>, vector<1x128x128xbf16>
    %109 = vector.shape_cast %108 : vector<1x128x128xbf16> to vector<128x128xbf16>
    %cst_89 = arith.constant dense<0.000000e+00> : vector<128x128xf32>
    %110 = tpu.matmul %107, %109, %cst_89 {dimension_numbers = #tpu.dot_dimension_numbers<[1], [0], [0], [1], [0, 0, 1, 1], [], []>} : vector<128x128xbf16>, vector<128x128xbf16>, vector<128x128xf32> -> vector<128x128xf32>
    %111 = arith.addf %104, %110 : vector<128x128xf32>
    %112 = vector.extract_strided_slice %106 {offsets = [16, 0], sizes = [128, 128], strides = [1, 1]} : vector<160x128xbf16> to vector<128x128xbf16>
    %c5_90 = arith.constant 5 : index
    %c0_91 = arith.constant 0 : index
    %c0_92 = arith.constant 0 : index
    %113 = vector.load %arg4[%c5_90, %c0_91, %c0_92] : memref<9x128x128xbf16, #tpu.memory_space<vmem>>, vector<1x128x128xbf16>
    %114 = vector.shape_cast %113 : vector<1x128x128xbf16> to vector<128x128xbf16>
    %cst_93 = arith.constant dense<0.000000e+00> : vector<128x128xf32>
    %115 = tpu.matmul %112, %114, %cst_93 {dimension_numbers = #tpu.dot_dimension_numbers<[1], [0], [0], [1], [0, 0, 1, 1], [], []>} : vector<128x128xbf16>, vector<128x128xbf16>, vector<128x128xf32> -> vector<128x128xf32>
    %116 = arith.addf %111, %115 : vector<128x128xf32>
    %117 = vector.extract_strided_slice %106 {offsets = [32, 0], sizes = [128, 128], strides = [1, 1]} : vector<160x128xbf16> to vector<128x128xbf16>
    %c8_94 = arith.constant 8 : index
    %c0_95 = arith.constant 0 : index
    %c0_96 = arith.constant 0 : index
    %118 = vector.load %arg4[%c8_94, %c0_95, %c0_96] : memref<9x128x128xbf16, #tpu.memory_space<vmem>>, vector<1x128x128xbf16>
    %119 = vector.shape_cast %118 : vector<1x128x128xbf16> to vector<128x128xbf16>
    %cst_97 = arith.constant dense<0.000000e+00> : vector<128x128xf32>
    %120 = tpu.matmul %117, %119, %cst_97 {dimension_numbers = #tpu.dot_dimension_numbers<[1], [0], [0], [1], [0, 0, 1, 1], [], []>} : vector<128x128xbf16>, vector<128x128xbf16>, vector<128x128xf32> -> vector<128x128xf32>
    %121 = arith.addf %116, %120 : vector<128x128xf32>
    %c0_98 = arith.constant 0 : index
    %c0_99 = arith.constant 0 : index
    %122 = vector.load %arg5[%c0_98, %c0_99] : memref<1x128xf32, #tpu.memory_space<vmem>>, vector<1x128xf32>
    %123 = vector.broadcast %122 : vector<1x128xf32> to vector<128x128xf32>
    %124 = arith.addf %121, %123 : vector<128x128xf32>
    %cst_100 = arith.constant 0.000000e+00 : f32
    %125 = vector.broadcast %cst_100 : f32 to vector<128x128xf32>
    %126 = arith.maximumf %124, %125 : vector<128x128xf32>
    %127 = arith.truncf %126 : vector<128x128xf32> to vector<128x128xbf16>
    %c0_101 = arith.constant 0 : index
    %c0_102 = arith.constant 0 : index
    %128 = vector.load %arg6[%c0_101, %c0_102] : memref<128x128xbf16, #tpu.memory_space<vmem>>, vector<128x128xbf16>
    %cst_103 = arith.constant dense<0.000000e+00> : vector<128x128xf32>
    %129 = tpu.matmul %127, %128, %cst_103 {dimension_numbers = #tpu.dot_dimension_numbers<[1], [0], [0], [1], [0, 0, 1, 1], [], []>} : vector<128x128xbf16>, vector<128x128xbf16>, vector<128x128xf32> -> vector<128x128xf32>
    %c0_104 = arith.constant 0 : index
    %c0_105 = arith.constant 0 : index
    %130 = vector.load %arg7[%c0_104, %c0_105] : memref<1x128xf32, #tpu.memory_space<vmem>>, vector<1x128xf32>
    %131 = vector.broadcast %130 : vector<1x128xf32> to vector<128x128xf32>
    %132 = arith.addf %129, %131 : vector<128x128xf32>
    %133 = arith.addf %61, %132 : vector<128x128xf32>
    %cst_106 = arith.constant 0.000000e+00 : f32
    %134 = vector.broadcast %cst_106 : f32 to vector<128x128xf32>
    %135 = arith.maximumf %133, %134 : vector<128x128xf32>
    %136 = vector.shape_cast %135 : vector<128x128xf32> to vector<8x16x128xf32>
    %c1_107 = arith.constant 1 : index
    %c0_108 = arith.constant 0 : index
    %c0_109 = arith.constant 0 : index
    %137 = vector.load %arg17[%c1_107, %c0_108, %c0_109] : memref<10x16x128xf32, #tpu.memory_space<vmem>>, vector<8x16x128xf32>
    tpu.vector_store %arg17[%c1_107, %c0_108, %c0_109], %136 {strides = array<i32>} : memref<10x16x128xf32, #tpu.memory_space<vmem>>, vector<8x16x128xf32>,
    %cst_110 = arith.constant 0.000000e+00 : f32
    %138 = vector.broadcast %cst_110 : f32 to vector<8x1x128xf32>
    %c1_111 = arith.constant 1 : index
    %c0_112 = arith.constant 0 : index
    %c0_113 = arith.constant 0 : index
    %139 = vector.load %arg17[%c1_111, %c0_112, %c0_113] : memref<10x16x128xf32, #tpu.memory_space<vmem>>, vector<8x1x128xf32>
    tpu.vector_store %arg17[%c1_111, %c0_112, %c0_113], %138 {strides = array<i32>} : memref<10x16x128xf32, #tpu.memory_space<vmem>>, vector<8x1x128xf32>,
    %c1_114 = arith.constant 1 : index
    %c9_115 = arith.constant 9 : index
    %c0_116 = arith.constant 0 : index
    %140 = vector.load %arg17[%c1_114, %c9_115, %c0_116] : memref<10x16x128xf32, #tpu.memory_space<vmem>>, vector<8x1x128xf32>
    tpu.vector_store %arg17[%c1_114, %c9_115, %c0_116], %138 {strides = array<i32>} : memref<10x16x128xf32, #tpu.memory_space<vmem>>, vector<8x1x128xf32>,
    %c0_117 = arith.constant 0 : index
    %c0_118 = arith.constant 0 : index
    %c0_119 = arith.constant 0 : index
    %141 = vector.load %arg17[%c0_117, %c0_118, %c0_119] : memref<10x16x128xf32, #tpu.memory_space<vmem>>, vector<10x16x128xf32>
    %142 = vector.shape_cast %141 : vector<10x16x128xf32> to vector<160x128xf32>
    %cst_120 = arith.constant 0.000000e+00 : f32
    %143 = vector.broadcast %cst_120 : f32 to vector<128x128xf32>
    %c1_i32_121 = arith.constant 1 : i32
    %144 = tpu.dynamic_rotate %142 by %c1_i32_121 dim 0 : vector<160x128xf32>, i32 -> vector<160x128xf32>
    %145 = arith.truncf %144 : vector<160x128xf32> to vector<160x128xbf16>
    %146 = vector.extract_strided_slice %145 {offsets = [0, 0], sizes = [128, 128], strides = [1, 1]} : vector<160x128xbf16> to vector<128x128xbf16>
    %c0_122 = arith.constant 0 : index
    %c0_123 = arith.constant 0 : index
    %c0_124 = arith.constant 0 : index
    %147 = vector.load %arg8[%c0_122, %c0_123, %c0_124] : memref<9x128x128xbf16, #tpu.memory_space<vmem>>, vector<1x128x128xbf16>
    %148 = vector.shape_cast %147 : vector<1x128x128xbf16> to vector<128x128xbf16>
    %cst_125 = arith.constant dense<0.000000e+00> : vector<128x128xf32>
    %149 = tpu.matmul %146, %148, %cst_125 {dimension_numbers = #tpu.dot_dimension_numbers<[1], [0], [0], [1], [0, 0, 1, 1], [], []>} : vector<128x128xbf16>, vector<128x128xbf16>, vector<128x128xf32> -> vector<128x128xf32>
    %150 = arith.addf %143, %149 : vector<128x128xf32>
    %151 = vector.extract_strided_slice %145 {offsets = [16, 0], sizes = [128, 128], strides = [1, 1]} : vector<160x128xbf16> to vector<128x128xbf16>
    %c3_126 = arith.constant 3 : index
    %c0_127 = arith.constant 0 : index
    %c0_128 = arith.constant 0 : index
    %152 = vector.load %arg8[%c3_126, %c0_127, %c0_128] : memref<9x128x128xbf16, #tpu.memory_space<vmem>>, vector<1x128x128xbf16>
    %153 = vector.shape_cast %152 : vector<1x128x128xbf16> to vector<128x128xbf16>
    %cst_129 = arith.constant dense<0.000000e+00> : vector<128x128xf32>
    %154 = tpu.matmul %151, %153, %cst_129 {dimension_numbers = #tpu.dot_dimension_numbers<[1], [0], [0], [1], [0, 0, 1, 1], [], []>} : vector<128x128xbf16>, vector<128x128xbf16>, vector<128x128xf32> -> vector<128x128xf32>
    %155 = arith.addf %150, %154 : vector<128x128xf32>
    %156 = vector.extract_strided_slice %145 {offsets = [32, 0], sizes = [128, 128], strides = [1, 1]} : vector<160x128xbf16> to vector<128x128xbf16>
    %c6_130 = arith.constant 6 : index
    %c0_131 = arith.constant 0 : index
    %c0_132 = arith.constant 0 : index
    %157 = vector.load %arg8[%c6_130, %c0_131, %c0_132] : memref<9x128x128xbf16, #tpu.memory_space<vmem>>, vector<1x128x128xbf16>
    %158 = vector.shape_cast %157 : vector<1x128x128xbf16> to vector<128x128xbf16>
    %cst_133 = arith.constant dense<0.000000e+00> : vector<128x128xf32>
    %159 = tpu.matmul %156, %158, %cst_133 {dimension_numbers = #tpu.dot_dimension_numbers<[1], [0], [0], [1], [0, 0, 1, 1], [], []>} : vector<128x128xbf16>, vector<128x128xbf16>, vector<128x128xf32> -> vector<128x128xf32>
    %160 = arith.addf %155, %159 : vector<128x128xf32>
    %161 = arith.truncf %142 : vector<160x128xf32> to vector<160x128xbf16>
    %162 = vector.extract_strided_slice %161 {offsets = [0, 0], sizes = [128, 128], strides = [1, 1]} : vector<160x128xbf16> to vector<128x128xbf16>
    %c1_134 = arith.constant 1 : index
    %c0_135 = arith.constant 0 : index
    %c0_136 = arith.constant 0 : index
    %163 = vector.load %arg8[%c1_134, %c0_135, %c0_136] : memref<9x128x128xbf16, #tpu.memory_space<vmem>>, vector<1x128x128xbf16>
    %164 = vector.shape_cast %163 : vector<1x128x128xbf16> to vector<128x128xbf16>
    %cst_137 = arith.constant dense<0.000000e+00> : vector<128x128xf32>
    %165 = tpu.matmul %162, %164, %cst_137 {dimension_numbers = #tpu.dot_dimension_numbers<[1], [0], [0], [1], [0, 0, 1, 1], [], []>} : vector<128x128xbf16>, vector<128x128xbf16>, vector<128x128xf32> -> vector<128x128xf32>
    %166 = arith.addf %160, %165 : vector<128x128xf32>
    %167 = vector.extract_strided_slice %161 {offsets = [16, 0], sizes = [128, 128], strides = [1, 1]} : vector<160x128xbf16> to vector<128x128xbf16>
    %c4_138 = arith.constant 4 : index
    %c0_139 = arith.constant 0 : index
    %c0_140 = arith.constant 0 : index
    %168 = vector.load %arg8[%c4_138, %c0_139, %c0_140] : memref<9x128x128xbf16, #tpu.memory_space<vmem>>, vector<1x128x128xbf16>
    %169 = vector.shape_cast %168 : vector<1x128x128xbf16> to vector<128x128xbf16>
    %cst_141 = arith.constant dense<0.000000e+00> : vector<128x128xf32>
    %170 = tpu.matmul %167, %169, %cst_141 {dimension_numbers = #tpu.dot_dimension_numbers<[1], [0], [0], [1], [0, 0, 1, 1], [], []>} : vector<128x128xbf16>, vector<128x128xbf16>, vector<128x128xf32> -> vector<128x128xf32>
    %171 = arith.addf %166, %170 : vector<128x128xf32>
    %172 = vector.extract_strided_slice %161 {offsets = [32, 0], sizes = [128, 128], strides = [1, 1]} : vector<160x128xbf16> to vector<128x128xbf16>
    %c7_142 = arith.constant 7 : index
    %c0_143 = arith.constant 0 : index
    %c0_144 = arith.constant 0 : index
    %173 = vector.load %arg8[%c7_142, %c0_143, %c0_144] : memref<9x128x128xbf16, #tpu.memory_space<vmem>>, vector<1x128x128xbf16>
    %174 = vector.shape_cast %173 : vector<1x128x128xbf16> to vector<128x128xbf16>
    %cst_145 = arith.constant dense<0.000000e+00> : vector<128x128xf32>
    %175 = tpu.matmul %172, %174, %cst_145 {dimension_numbers = #tpu.dot_dimension_numbers<[1], [0], [0], [1], [0, 0, 1, 1], [], []>} : vector<128x128xbf16>, vector<128x128xbf16>, vector<128x128xf32> -> vector<128x128xf32>
    %176 = arith.addf %171, %175 : vector<128x128xf32>
    %c159_i32_146 = arith.constant 159 : i32
    %177 = tpu.dynamic_rotate %142 by %c159_i32_146 dim 0 : vector<160x128xf32>, i32 -> vector<160x128xf32>
    %178 = arith.truncf %177 : vector<160x128xf32> to vector<160x128xbf16>
    %179 = vector.extract_strided_slice %178 {offsets = [0, 0], sizes = [128, 128], strides = [1, 1]} : vector<160x128xbf16> to vector<128x128xbf16>
    %c2_147 = arith.constant 2 : index
    %c0_148 = arith.constant 0 : index
    %c0_149 = arith.constant 0 : index
    %180 = vector.load %arg8[%c2_147, %c0_148, %c0_149] : memref<9x128x128xbf16, #tpu.memory_space<vmem>>, vector<1x128x128xbf16>
    %181 = vector.shape_cast %180 : vector<1x128x128xbf16> to vector<128x128xbf16>
    %cst_150 = arith.constant dense<0.000000e+00> : vector<128x128xf32>
    %182 = tpu.matmul %179, %181, %cst_150 {dimension_numbers = #tpu.dot_dimension_numbers<[1], [0], [0], [1], [0, 0, 1, 1], [], []>} : vector<128x128xbf16>, vector<128x128xbf16>, vector<128x128xf32> -> vector<128x128xf32>
    %183 = arith.addf %176, %182 : vector<128x128xf32>
    %184 = vector.extract_strided_slice %178 {offsets = [16, 0], sizes = [128, 128], strides = [1, 1]} : vector<160x128xbf16> to vector<128x128xbf16>
    %c5_151 = arith.constant 5 : index
    %c0_152 = arith.constant 0 : index
    %c0_153 = arith.constant 0 : index
    %185 = vector.load %arg8[%c5_151, %c0_152, %c0_153] : memref<9x128x128xbf16, #tpu.memory_space<vmem>>, vector<1x128x128xbf16>
    %186 = vector.shape_cast %185 : vector<1x128x128xbf16> to vector<128x128xbf16>
    %cst_154 = arith.constant dense<0.000000e+00> : vector<128x128xf32>
    %187 = tpu.matmul %184, %186, %cst_154 {dimension_numbers = #tpu.dot_dimension_numbers<[1], [0], [0], [1], [0, 0, 1, 1], [], []>} : vector<128x128xbf16>, vector<128x128xbf16>, vector<128x128xf32> -> vector<128x128xf32>
    %188 = arith.addf %183, %187 : vector<128x128xf32>
    %189 = vector.extract_strided_slice %178 {offsets = [32, 0], sizes = [128, 128], strides = [1, 1]} : vector<160x128xbf16> to vector<128x128xbf16>
    %c8_155 = arith.constant 8 : index
    %c0_156 = arith.constant 0 : index
    %c0_157 = arith.constant 0 : index
    %190 = vector.load %arg8[%c8_155, %c0_156, %c0_157] : memref<9x128x128xbf16, #tpu.memory_space<vmem>>, vector<1x128x128xbf16>
    %191 = vector.shape_cast %190 : vector<1x128x128xbf16> to vector<128x128xbf16>
    %cst_158 = arith.constant dense<0.000000e+00> : vector<128x128xf32>
    %192 = tpu.matmul %189, %191, %cst_158 {dimension_numbers = #tpu.dot_dimension_numbers<[1], [0], [0], [1], [0, 0, 1, 1], [], []>} : vector<128x128xbf16>, vector<128x128xbf16>, vector<128x128xf32> -> vector<128x128xf32>
    %193 = arith.addf %188, %192 : vector<128x128xf32>
    %c0_159 = arith.constant 0 : index
    %c0_160 = arith.constant 0 : index
    %194 = vector.load %arg9[%c0_159, %c0_160] : memref<1x128xf32, #tpu.memory_space<vmem>>, vector<1x128xf32>
    %195 = vector.broadcast %194 : vector<1x128xf32> to vector<128x128xf32>
    %196 = arith.addf %193, %195 : vector<128x128xf32>
    %cst_161 = arith.constant 0.000000e+00 : f32
    %197 = vector.broadcast %cst_161 : f32 to vector<128x128xf32>
    %198 = arith.maximumf %196, %197 : vector<128x128xf32>
    %199 = arith.truncf %198 : vector<128x128xf32> to vector<128x128xbf16>
    %c0_162 = arith.constant 0 : index
    %c0_163 = arith.constant 0 : index
    %200 = vector.load %arg10[%c0_162, %c0_163] : memref<128x128xbf16, #tpu.memory_space<vmem>>, vector<128x128xbf16>
    %cst_164 = arith.constant dense<0.000000e+00> : vector<128x128xf32>
    %201 = tpu.matmul %199, %200, %cst_164 {dimension_numbers = #tpu.dot_dimension_numbers<[1], [0], [0], [1], [0, 0, 1, 1], [], []>} : vector<128x128xbf16>, vector<128x128xbf16>, vector<128x128xf32> -> vector<128x128xf32>
    %c0_165 = arith.constant 0 : index
    %c0_166 = arith.constant 0 : index
    %202 = vector.load %arg11[%c0_165, %c0_166] : memref<1x128xf32, #tpu.memory_space<vmem>>, vector<1x128xf32>
    %203 = vector.broadcast %202 : vector<1x128xf32> to vector<128x128xf32>
    %204 = arith.addf %201, %203 : vector<128x128xf32>
    %205 = arith.addf %133, %204 : vector<128x128xf32>
    %cst_167 = arith.constant 0.000000e+00 : f32
    %206 = vector.broadcast %cst_167 : f32 to vector<128x128xf32>
    %207 = arith.maximumf %205, %206 : vector<128x128xf32>
    %208 = vector.shape_cast %207 : vector<128x128xf32> to vector<8x16x128xf32>
    %c1_168 = arith.constant 1 : index
    %c0_169 = arith.constant 0 : index
    %c0_170 = arith.constant 0 : index
    %209 = vector.load %arg17[%c1_168, %c0_169, %c0_170] : memref<10x16x128xf32, #tpu.memory_space<vmem>>, vector<8x16x128xf32>
    tpu.vector_store %arg17[%c1_168, %c0_169, %c0_170], %208 {strides = array<i32>} : memref<10x16x128xf32, #tpu.memory_space<vmem>>, vector<8x16x128xf32>,
    %cst_171 = arith.constant 0.000000e+00 : f32
    %210 = vector.broadcast %cst_171 : f32 to vector<8x1x128xf32>
    %c1_172 = arith.constant 1 : index
    %c0_173 = arith.constant 0 : index
    %c0_174 = arith.constant 0 : index
    %211 = vector.load %arg17[%c1_172, %c0_173, %c0_174] : memref<10x16x128xf32, #tpu.memory_space<vmem>>, vector<8x1x128xf32>
    tpu.vector_store %arg17[%c1_172, %c0_173, %c0_174], %210 {strides = array<i32>} : memref<10x16x128xf32, #tpu.memory_space<vmem>>, vector<8x1x128xf32>,
    %c1_175 = arith.constant 1 : index
    %c9_176 = arith.constant 9 : index
    %c0_177 = arith.constant 0 : index
    %212 = vector.load %arg17[%c1_175, %c9_176, %c0_177] : memref<10x16x128xf32, #tpu.memory_space<vmem>>, vector<8x1x128xf32>
    tpu.vector_store %arg17[%c1_175, %c9_176, %c0_177], %210 {strides = array<i32>} : memref<10x16x128xf32, #tpu.memory_space<vmem>>, vector<8x1x128xf32>,
    %c0_178 = arith.constant 0 : index
    %c0_179 = arith.constant 0 : index
    %c0_180 = arith.constant 0 : index
    %213 = vector.load %arg17[%c0_178, %c0_179, %c0_180] : memref<10x16x128xf32, #tpu.memory_space<vmem>>, vector<10x16x128xf32>
    %214 = vector.shape_cast %213 : vector<10x16x128xf32> to vector<160x128xf32>
    %cst_181 = arith.constant 0.000000e+00 : f32
    %215 = vector.broadcast %cst_181 : f32 to vector<128x128xf32>
    %c1_i32_182 = arith.constant 1 : i32
    %216 = tpu.dynamic_rotate %214 by %c1_i32_182 dim 0 : vector<160x128xf32>, i32 -> vector<160x128xf32>
    %217 = arith.truncf %216 : vector<160x128xf32> to vector<160x128xbf16>
    %218 = vector.extract_strided_slice %217 {offsets = [0, 0], sizes = [128, 128], strides = [1, 1]} : vector<160x128xbf16> to vector<128x128xbf16>
    %c0_183 = arith.constant 0 : index
    %c0_184 = arith.constant 0 : index
    %c0_185 = arith.constant 0 : index
    %219 = vector.load %arg12[%c0_183, %c0_184, %c0_185] : memref<9x128x128xbf16, #tpu.memory_space<vmem>>, vector<1x128x128xbf16>
    %220 = vector.shape_cast %219 : vector<1x128x128xbf16> to vector<128x128xbf16>
    %cst_186 = arith.constant dense<0.000000e+00> : vector<128x128xf32>
    %221 = tpu.matmul %218, %220, %cst_186 {dimension_numbers = #tpu.dot_dimension_numbers<[1], [0], [0], [1], [0, 0, 1, 1], [], []>} : vector<128x128xbf16>, vector<128x128xbf16>, vector<128x128xf32> -> vector<128x128xf32>
    %222 = arith.addf %215, %221 : vector<128x128xf32>
    %223 = vector.extract_strided_slice %217 {offsets = [16, 0], sizes = [128, 128], strides = [1, 1]} : vector<160x128xbf16> to vector<128x128xbf16>
    %c3_187 = arith.constant 3 : index
    %c0_188 = arith.constant 0 : index
    %c0_189 = arith.constant 0 : index
    %224 = vector.load %arg12[%c3_187, %c0_188, %c0_189] : memref<9x128x128xbf16, #tpu.memory_space<vmem>>, vector<1x128x128xbf16>
    %225 = vector.shape_cast %224 : vector<1x128x128xbf16> to vector<128x128xbf16>
    %cst_190 = arith.constant dense<0.000000e+00> : vector<128x128xf32>
    %226 = tpu.matmul %223, %225, %cst_190 {dimension_numbers = #tpu.dot_dimension_numbers<[1], [0], [0], [1], [0, 0, 1, 1], [], []>} : vector<128x128xbf16>, vector<128x128xbf16>, vector<128x128xf32> -> vector<128x128xf32>
    %227 = arith.addf %222, %226 : vector<128x128xf32>
    %228 = vector.extract_strided_slice %217 {offsets = [32, 0], sizes = [128, 128], strides = [1, 1]} : vector<160x128xbf16> to vector<128x128xbf16>
    %c6_191 = arith.constant 6 : index
    %c0_192 = arith.constant 0 : index
    %c0_193 = arith.constant 0 : index
    %229 = vector.load %arg12[%c6_191, %c0_192, %c0_193] : memref<9x128x128xbf16, #tpu.memory_space<vmem>>, vector<1x128x128xbf16>
    %230 = vector.shape_cast %229 : vector<1x128x128xbf16> to vector<128x128xbf16>
    %cst_194 = arith.constant dense<0.000000e+00> : vector<128x128xf32>
    %231 = tpu.matmul %228, %230, %cst_194 {dimension_numbers = #tpu.dot_dimension_numbers<[1], [0], [0], [1], [0, 0, 1, 1], [], []>} : vector<128x128xbf16>, vector<128x128xbf16>, vector<128x128xf32> -> vector<128x128xf32>
    %232 = arith.addf %227, %231 : vector<128x128xf32>
    %233 = arith.truncf %214 : vector<160x128xf32> to vector<160x128xbf16>
    %234 = vector.extract_strided_slice %233 {offsets = [0, 0], sizes = [128, 128], strides = [1, 1]} : vector<160x128xbf16> to vector<128x128xbf16>
    %c1_195 = arith.constant 1 : index
    %c0_196 = arith.constant 0 : index
    %c0_197 = arith.constant 0 : index
    %235 = vector.load %arg12[%c1_195, %c0_196, %c0_197] : memref<9x128x128xbf16, #tpu.memory_space<vmem>>, vector<1x128x128xbf16>
    %236 = vector.shape_cast %235 : vector<1x128x128xbf16> to vector<128x128xbf16>
    %cst_198 = arith.constant dense<0.000000e+00> : vector<128x128xf32>
    %237 = tpu.matmul %234, %236, %cst_198 {dimension_numbers = #tpu.dot_dimension_numbers<[1], [0], [0], [1], [0, 0, 1, 1], [], []>} : vector<128x128xbf16>, vector<128x128xbf16>, vector<128x128xf32> -> vector<128x128xf32>
    %238 = arith.addf %232, %237 : vector<128x128xf32>
    %239 = vector.extract_strided_slice %233 {offsets = [16, 0], sizes = [128, 128], strides = [1, 1]} : vector<160x128xbf16> to vector<128x128xbf16>
    %c4_199 = arith.constant 4 : index
    %c0_200 = arith.constant 0 : index
    %c0_201 = arith.constant 0 : index
    %240 = vector.load %arg12[%c4_199, %c0_200, %c0_201] : memref<9x128x128xbf16, #tpu.memory_space<vmem>>, vector<1x128x128xbf16>
    %241 = vector.shape_cast %240 : vector<1x128x128xbf16> to vector<128x128xbf16>
    %cst_202 = arith.constant dense<0.000000e+00> : vector<128x128xf32>
    %242 = tpu.matmul %239, %241, %cst_202 {dimension_numbers = #tpu.dot_dimension_numbers<[1], [0], [0], [1], [0, 0, 1, 1], [], []>} : vector<128x128xbf16>, vector<128x128xbf16>, vector<128x128xf32> -> vector<128x128xf32>
    %243 = arith.addf %238, %242 : vector<128x128xf32>
    %244 = vector.extract_strided_slice %233 {offsets = [32, 0], sizes = [128, 128], strides = [1, 1]} : vector<160x128xbf16> to vector<128x128xbf16>
    %c7_203 = arith.constant 7 : index
    %c0_204 = arith.constant 0 : index
    %c0_205 = arith.constant 0 : index
    %245 = vector.load %arg12[%c7_203, %c0_204, %c0_205] : memref<9x128x128xbf16, #tpu.memory_space<vmem>>, vector<1x128x128xbf16>
    %246 = vector.shape_cast %245 : vector<1x128x128xbf16> to vector<128x128xbf16>
    %cst_206 = arith.constant dense<0.000000e+00> : vector<128x128xf32>
    %247 = tpu.matmul %244, %246, %cst_206 {dimension_numbers = #tpu.dot_dimension_numbers<[1], [0], [0], [1], [0, 0, 1, 1], [], []>} : vector<128x128xbf16>, vector<128x128xbf16>, vector<128x128xf32> -> vector<128x128xf32>
    %248 = arith.addf %243, %247 : vector<128x128xf32>
    %c159_i32_207 = arith.constant 159 : i32
    %249 = tpu.dynamic_rotate %214 by %c159_i32_207 dim 0 : vector<160x128xf32>, i32 -> vector<160x128xf32>
    %250 = arith.truncf %249 : vector<160x128xf32> to vector<160x128xbf16>
    %251 = vector.extract_strided_slice %250 {offsets = [0, 0], sizes = [128, 128], strides = [1, 1]} : vector<160x128xbf16> to vector<128x128xbf16>
    %c2_208 = arith.constant 2 : index
    %c0_209 = arith.constant 0 : index
    %c0_210 = arith.constant 0 : index
    %252 = vector.load %arg12[%c2_208, %c0_209, %c0_210] : memref<9x128x128xbf16, #tpu.memory_space<vmem>>, vector<1x128x128xbf16>
    %253 = vector.shape_cast %252 : vector<1x128x128xbf16> to vector<128x128xbf16>
    %cst_211 = arith.constant dense<0.000000e+00> : vector<128x128xf32>
    %254 = tpu.matmul %251, %253, %cst_211 {dimension_numbers = #tpu.dot_dimension_numbers<[1], [0], [0], [1], [0, 0, 1, 1], [], []>} : vector<128x128xbf16>, vector<128x128xbf16>, vector<128x128xf32> -> vector<128x128xf32>
    %255 = arith.addf %248, %254 : vector<128x128xf32>
    %256 = vector.extract_strided_slice %250 {offsets = [16, 0], sizes = [128, 128], strides = [1, 1]} : vector<160x128xbf16> to vector<128x128xbf16>
    %c5_212 = arith.constant 5 : index
    %c0_213 = arith.constant 0 : index
    %c0_214 = arith.constant 0 : index
    %257 = vector.load %arg12[%c5_212, %c0_213, %c0_214] : memref<9x128x128xbf16, #tpu.memory_space<vmem>>, vector<1x128x128xbf16>
    %258 = vector.shape_cast %257 : vector<1x128x128xbf16> to vector<128x128xbf16>
    %cst_215 = arith.constant dense<0.000000e+00> : vector<128x128xf32>
    %259 = tpu.matmul %256, %258, %cst_215 {dimension_numbers = #tpu.dot_dimension_numbers<[1], [0], [0], [1], [0, 0, 1, 1], [], []>} : vector<128x128xbf16>, vector<128x128xbf16>, vector<128x128xf32> -> vector<128x128xf32>
    %260 = arith.addf %255, %259 : vector<128x128xf32>
    %261 = vector.extract_strided_slice %250 {offsets = [32, 0], sizes = [128, 128], strides = [1, 1]} : vector<160x128xbf16> to vector<128x128xbf16>
    %c8_216 = arith.constant 8 : index
    %c0_217 = arith.constant 0 : index
    %c0_218 = arith.constant 0 : index
    %262 = vector.load %arg12[%c8_216, %c0_217, %c0_218] : memref<9x128x128xbf16, #tpu.memory_space<vmem>>, vector<1x128x128xbf16>
    %263 = vector.shape_cast %262 : vector<1x128x128xbf16> to vector<128x128xbf16>
    %cst_219 = arith.constant dense<0.000000e+00> : vector<128x128xf32>
    %264 = tpu.matmul %261, %263, %cst_219 {dimension_numbers = #tpu.dot_dimension_numbers<[1], [0], [0], [1], [0, 0, 1, 1], [], []>} : vector<128x128xbf16>, vector<128x128xbf16>, vector<128x128xf32> -> vector<128x128xf32>
    %265 = arith.addf %260, %264 : vector<128x128xf32>
    %c0_220 = arith.constant 0 : index
    %c0_221 = arith.constant 0 : index
    %266 = vector.load %arg13[%c0_220, %c0_221] : memref<1x128xf32, #tpu.memory_space<vmem>>, vector<1x128xf32>
    %267 = vector.broadcast %266 : vector<1x128xf32> to vector<128x128xf32>
    %268 = arith.addf %265, %267 : vector<128x128xf32>
    %cst_222 = arith.constant 0.000000e+00 : f32
    %269 = vector.broadcast %cst_222 : f32 to vector<128x128xf32>
    %270 = arith.maximumf %268, %269 : vector<128x128xf32>
    %271 = vector.shape_cast %270 : vector<128x128xf32> to vector<8x16x128xf32>
    %c1_223 = arith.constant 1 : index
    %c0_224 = arith.constant 0 : index
    %c0_225 = arith.constant 0 : index
    %272 = vector.load %arg17[%c1_223, %c0_224, %c0_225] : memref<10x16x128xf32, #tpu.memory_space<vmem>>, vector<8x16x128xf32>
    tpu.vector_store %arg17[%c1_223, %c0_224, %c0_225], %271 {strides = array<i32>} : memref<10x16x128xf32, #tpu.memory_space<vmem>>, vector<8x16x128xf32>,
    %cst_226 = arith.constant 0.000000e+00 : f32
    %273 = vector.broadcast %cst_226 : f32 to vector<8x1x128xf32>
    %c1_227 = arith.constant 1 : index
    %c0_228 = arith.constant 0 : index
    %c0_229 = arith.constant 0 : index
    %274 = vector.load %arg17[%c1_227, %c0_228, %c0_229] : memref<10x16x128xf32, #tpu.memory_space<vmem>>, vector<8x1x128xf32>
    tpu.vector_store %arg17[%c1_227, %c0_228, %c0_229], %273 {strides = array<i32>} : memref<10x16x128xf32, #tpu.memory_space<vmem>>, vector<8x1x128xf32>,
    %c1_230 = arith.constant 1 : index
    %c9_231 = arith.constant 9 : index
    %c0_232 = arith.constant 0 : index
    %275 = vector.load %arg17[%c1_230, %c9_231, %c0_232] : memref<10x16x128xf32, #tpu.memory_space<vmem>>, vector<8x1x128xf32>
    tpu.vector_store %arg17[%c1_230, %c9_231, %c0_232], %273 {strides = array<i32>} : memref<10x16x128xf32, #tpu.memory_space<vmem>>, vector<8x1x128xf32>,
    %c0_233 = arith.constant 0 : index
    %c0_234 = arith.constant 0 : index
    %c0_235 = arith.constant 0 : index
    %276 = vector.load %arg17[%c0_233, %c0_234, %c0_235] : memref<10x16x128xf32, #tpu.memory_space<vmem>>, vector<10x16x128xf32>
    %277 = vector.shape_cast %276 : vector<10x16x128xf32> to vector<160x128xf32>
    %cst_236 = arith.constant 0.000000e+00 : f32
    %278 = vector.broadcast %cst_236 : f32 to vector<128x128xf32>
    %c1_i32_237 = arith.constant 1 : i32
    %279 = tpu.dynamic_rotate %277 by %c1_i32_237 dim 0 : vector<160x128xf32>, i32 -> vector<160x128xf32>
    %280 = arith.truncf %279 : vector<160x128xf32> to vector<160x128xbf16>
    %281 = vector.extract_strided_slice %280 {offsets = [0, 0], sizes = [128, 128], strides = [1, 1]} : vector<160x128xbf16> to vector<128x128xbf16>
    %c0_238 = arith.constant 0 : index
    %c0_239 = arith.constant 0 : index
    %c0_240 = arith.constant 0 : index
    %282 = vector.load %arg14[%c0_238, %c0_239, %c0_240] : memref<9x128x128xbf16, #tpu.memory_space<vmem>>, vector<1x128x128xbf16>
    %283 = vector.shape_cast %282 : vector<1x128x128xbf16> to vector<128x128xbf16>
    %cst_241 = arith.constant dense<0.000000e+00> : vector<128x128xf32>
    %284 = tpu.matmul %281, %283, %cst_241 {dimension_numbers = #tpu.dot_dimension_numbers<[1], [0], [0], [1], [0, 0, 1, 1], [], []>} : vector<128x128xbf16>, vector<128x128xbf16>, vector<128x128xf32> -> vector<128x128xf32>
    %285 = arith.addf %278, %284 : vector<128x128xf32>
    %286 = vector.extract_strided_slice %280 {offsets = [16, 0], sizes = [128, 128], strides = [1, 1]} : vector<160x128xbf16> to vector<128x128xbf16>
    %c3_242 = arith.constant 3 : index
    %c0_243 = arith.constant 0 : index
    %c0_244 = arith.constant 0 : index
    %287 = vector.load %arg14[%c3_242, %c0_243, %c0_244] : memref<9x128x128xbf16, #tpu.memory_space<vmem>>, vector<1x128x128xbf16>
    %288 = vector.shape_cast %287 : vector<1x128x128xbf16> to vector<128x128xbf16>
    %cst_245 = arith.constant dense<0.000000e+00> : vector<128x128xf32>
    %289 = tpu.matmul %286, %288, %cst_245 {dimension_numbers = #tpu.dot_dimension_numbers<[1], [0], [0], [1], [0, 0, 1, 1], [], []>} : vector<128x128xbf16>, vector<128x128xbf16>, vector<128x128xf32> -> vector<128x128xf32>
    %290 = arith.addf %285, %289 : vector<128x128xf32>
    %291 = vector.extract_strided_slice %280 {offsets = [32, 0], sizes = [128, 128], strides = [1, 1]} : vector<160x128xbf16> to vector<128x128xbf16>
    %c6_246 = arith.constant 6 : index
    %c0_247 = arith.constant 0 : index
    %c0_248 = arith.constant 0 : index
    %292 = vector.load %arg14[%c6_246, %c0_247, %c0_248] : memref<9x128x128xbf16, #tpu.memory_space<vmem>>, vector<1x128x128xbf16>
    %293 = vector.shape_cast %292 : vector<1x128x128xbf16> to vector<128x128xbf16>
    %cst_249 = arith.constant dense<0.000000e+00> : vector<128x128xf32>
    %294 = tpu.matmul %291, %293, %cst_249 {dimension_numbers = #tpu.dot_dimension_numbers<[1], [0], [0], [1], [0, 0, 1, 1], [], []>} : vector<128x128xbf16>, vector<128x128xbf16>, vector<128x128xf32> -> vector<128x128xf32>
    %295 = arith.addf %290, %294 : vector<128x128xf32>
    %296 = arith.truncf %277 : vector<160x128xf32> to vector<160x128xbf16>
    %297 = vector.extract_strided_slice %296 {offsets = [0, 0], sizes = [128, 128], strides = [1, 1]} : vector<160x128xbf16> to vector<128x128xbf16>
    %c1_250 = arith.constant 1 : index
    %c0_251 = arith.constant 0 : index
    %c0_252 = arith.constant 0 : index
    %298 = vector.load %arg14[%c1_250, %c0_251, %c0_252] : memref<9x128x128xbf16, #tpu.memory_space<vmem>>, vector<1x128x128xbf16>
    %299 = vector.shape_cast %298 : vector<1x128x128xbf16> to vector<128x128xbf16>
    %cst_253 = arith.constant dense<0.000000e+00> : vector<128x128xf32>
    %300 = tpu.matmul %297, %299, %cst_253 {dimension_numbers = #tpu.dot_dimension_numbers<[1], [0], [0], [1], [0, 0, 1, 1], [], []>} : vector<128x128xbf16>, vector<128x128xbf16>, vector<128x128xf32> -> vector<128x128xf32>
    %301 = arith.addf %295, %300 : vector<128x128xf32>
    %302 = vector.extract_strided_slice %296 {offsets = [16, 0], sizes = [128, 128], strides = [1, 1]} : vector<160x128xbf16> to vector<128x128xbf16>
    %c4_254 = arith.constant 4 : index
    %c0_255 = arith.constant 0 : index
    %c0_256 = arith.constant 0 : index
    %303 = vector.load %arg14[%c4_254, %c0_255, %c0_256] : memref<9x128x128xbf16, #tpu.memory_space<vmem>>, vector<1x128x128xbf16>
    %304 = vector.shape_cast %303 : vector<1x128x128xbf16> to vector<128x128xbf16>
    %cst_257 = arith.constant dense<0.000000e+00> : vector<128x128xf32>
    %305 = tpu.matmul %302, %304, %cst_257 {dimension_numbers = #tpu.dot_dimension_numbers<[1], [0], [0], [1], [0, 0, 1, 1], [], []>} : vector<128x128xbf16>, vector<128x128xbf16>, vector<128x128xf32> -> vector<128x128xf32>
    %306 = arith.addf %301, %305 : vector<128x128xf32>
    %307 = vector.extract_strided_slice %296 {offsets = [32, 0], sizes = [128, 128], strides = [1, 1]} : vector<160x128xbf16> to vector<128x128xbf16>
    %c7_258 = arith.constant 7 : index
    %c0_259 = arith.constant 0 : index
    %c0_260 = arith.constant 0 : index
    %308 = vector.load %arg14[%c7_258, %c0_259, %c0_260] : memref<9x128x128xbf16, #tpu.memory_space<vmem>>, vector<1x128x128xbf16>
    %309 = vector.shape_cast %308 : vector<1x128x128xbf16> to vector<128x128xbf16>
    %cst_261 = arith.constant dense<0.000000e+00> : vector<128x128xf32>
    %310 = tpu.matmul %307, %309, %cst_261 {dimension_numbers = #tpu.dot_dimension_numbers<[1], [0], [0], [1], [0, 0, 1, 1], [], []>} : vector<128x128xbf16>, vector<128x128xbf16>, vector<128x128xf32> -> vector<128x128xf32>
    %311 = arith.addf %306, %310 : vector<128x128xf32>
    %c159_i32_262 = arith.constant 159 : i32
    %312 = tpu.dynamic_rotate %277 by %c159_i32_262 dim 0 : vector<160x128xf32>, i32 -> vector<160x128xf32>
    %313 = arith.truncf %312 : vector<160x128xf32> to vector<160x128xbf16>
    %314 = vector.extract_strided_slice %313 {offsets = [0, 0], sizes = [128, 128], strides = [1, 1]} : vector<160x128xbf16> to vector<128x128xbf16>
    %c2_263 = arith.constant 2 : index
    %c0_264 = arith.constant 0 : index
    %c0_265 = arith.constant 0 : index
    %315 = vector.load %arg14[%c2_263, %c0_264, %c0_265] : memref<9x128x128xbf16, #tpu.memory_space<vmem>>, vector<1x128x128xbf16>
    %316 = vector.shape_cast %315 : vector<1x128x128xbf16> to vector<128x128xbf16>
    %cst_266 = arith.constant dense<0.000000e+00> : vector<128x128xf32>
    %317 = tpu.matmul %314, %316, %cst_266 {dimension_numbers = #tpu.dot_dimension_numbers<[1], [0], [0], [1], [0, 0, 1, 1], [], []>} : vector<128x128xbf16>, vector<128x128xbf16>, vector<128x128xf32> -> vector<128x128xf32>
    %318 = arith.addf %311, %317 : vector<128x128xf32>
    %319 = vector.extract_strided_slice %313 {offsets = [16, 0], sizes = [128, 128], strides = [1, 1]} : vector<160x128xbf16> to vector<128x128xbf16>
    %c5_267 = arith.constant 5 : index
    %c0_268 = arith.constant 0 : index
    %c0_269 = arith.constant 0 : index
    %320 = vector.load %arg14[%c5_267, %c0_268, %c0_269] : memref<9x128x128xbf16, #tpu.memory_space<vmem>>, vector<1x128x128xbf16>
    %321 = vector.shape_cast %320 : vector<1x128x128xbf16> to vector<128x128xbf16>
    %cst_270 = arith.constant dense<0.000000e+00> : vector<128x128xf32>
    %322 = tpu.matmul %319, %321, %cst_270 {dimension_numbers = #tpu.dot_dimension_numbers<[1], [0], [0], [1], [0, 0, 1, 1], [], []>} : vector<128x128xbf16>, vector<128x128xbf16>, vector<128x128xf32> -> vector<128x128xf32>
    %323 = arith.addf %318, %322 : vector<128x128xf32>
    %324 = vector.extract_strided_slice %313 {offsets = [32, 0], sizes = [128, 128], strides = [1, 1]} : vector<160x128xbf16> to vector<128x128xbf16>
    %c8_271 = arith.constant 8 : index
    %c0_272 = arith.constant 0 : index
    %c0_273 = arith.constant 0 : index
    %325 = vector.load %arg14[%c8_271, %c0_272, %c0_273] : memref<9x128x128xbf16, #tpu.memory_space<vmem>>, vector<1x128x128xbf16>
    %326 = vector.shape_cast %325 : vector<1x128x128xbf16> to vector<128x128xbf16>
    %cst_274 = arith.constant dense<0.000000e+00> : vector<128x128xf32>
    %327 = tpu.matmul %324, %326, %cst_274 {dimension_numbers = #tpu.dot_dimension_numbers<[1], [0], [0], [1], [0, 0, 1, 1], [], []>} : vector<128x128xbf16>, vector<128x128xbf16>, vector<128x128xf32> -> vector<128x128xf32>
    %328 = arith.addf %323, %327 : vector<128x128xf32>
    %c0_275 = arith.constant 0 : index
    %c0_276 = arith.constant 0 : index
    %329 = vector.load %arg15[%c0_275, %c0_276] : memref<1x128xf32, #tpu.memory_space<vmem>>, vector<1x128xf32>
    %330 = vector.broadcast %329 : vector<1x128xf32> to vector<128x128xf32>
    %331 = arith.addf %328, %330 : vector<128x128xf32>
    %332 = vector.shape_cast %331 : vector<128x128xf32> to vector<1x8x16x128xf32>
    %c0_277 = arith.constant 0 : index
    %c0_278 = arith.constant 0 : index
    %c0_279 = arith.constant 0 : index
    %c0_280 = arith.constant 0 : index
    %333 = vector.load %arg16[%c0_277, %c0_278, %c0_279, %c0_280] : memref<1x8x16x128xf32, #tpu.memory_space<vmem>>, vector<1x8x16x128xf32>
    tpu.vector_store %arg16[%c0_277, %c0_278, %c0_279, %c0_280], %332 {strides = array<i32>} : memref<1x8x16x128xf32, #tpu.memory_space<vmem>>, vector<1x8x16x128xf32>,
    return
  }
  func.func @transform_0(%arg0: i32) -> (i32, i32, i32, i32) {
    %c0_i32 = arith.constant 0 : i32
    %c0_i32_0 = arith.constant 0 : i32
    %c0_i32_1 = arith.constant 0 : i32
    %c0_i32_2 = arith.constant 0 : i32
    return %arg0, %c0_i32, %c0_i32_0, %c0_i32_1 : i32, i32, i32, i32
  }
  func.func @transform_1(%arg0: i32) -> (i32, i32, i32) {
    %c0_i32 = arith.constant 0 : i32
    %c0_i32_0 = arith.constant 0 : i32
    %c0_i32_1 = arith.constant 0 : i32
    %c0_i32_2 = arith.constant 0 : i32
    return %c0_i32, %c0_i32_0, %c0_i32_1 : i32, i32, i32
  }
  func.func @transform_2(%arg0: i32) -> (i32, i32) {
    %c0_i32 = arith.constant 0 : i32
    %c0_i32_0 = arith.constant 0 : i32
    %c0_i32_1 = arith.constant 0 : i32
    return %c0_i32, %c0_i32_0 : i32, i32
  }
  func.func @transform_3(%arg0: i32) -> (i32, i32, i32) {
    %c0_i32 = arith.constant 0 : i32
    %c0_i32_0 = arith.constant 0 : i32
    %c0_i32_1 = arith.constant 0 : i32
    %c0_i32_2 = arith.constant 0 : i32
    return %c0_i32, %c0_i32_0, %c0_i32_1 : i32, i32, i32
  }
  func.func @transform_4(%arg0: i32) -> (i32, i32) {
    %c0_i32 = arith.constant 0 : i32
    %c0_i32_0 = arith.constant 0 : i32
    %c0_i32_1 = arith.constant 0 : i32
    return %c0_i32, %c0_i32_0 : i32, i32
  }
  func.func @transform_5(%arg0: i32) -> (i32, i32) {
    %c0_i32 = arith.constant 0 : i32
    %c0_i32_0 = arith.constant 0 : i32
    %c0_i32_1 = arith.constant 0 : i32
    return %c0_i32, %c0_i32_0 : i32, i32
  }
  func.func @transform_6(%arg0: i32) -> (i32, i32) {
    %c0_i32 = arith.constant 0 : i32
    %c0_i32_0 = arith.constant 0 : i32
    %c0_i32_1 = arith.constant 0 : i32
    return %c0_i32, %c0_i32_0 : i32, i32
  }
  func.func @transform_7(%arg0: i32) -> (i32, i32, i32) {
    %c0_i32 = arith.constant 0 : i32
    %c0_i32_0 = arith.constant 0 : i32
    %c0_i32_1 = arith.constant 0 : i32
    %c0_i32_2 = arith.constant 0 : i32
    return %c0_i32, %c0_i32_0, %c0_i32_1 : i32, i32, i32
  }
  func.func @transform_8(%arg0: i32) -> (i32, i32) {
    %c0_i32 = arith.constant 0 : i32
    %c0_i32_0 = arith.constant 0 : i32
    %c0_i32_1 = arith.constant 0 : i32
    return %c0_i32, %c0_i32_0 : i32, i32
  }
  func.func @transform_9(%arg0: i32) -> (i32, i32) {
    %c0_i32 = arith.constant 0 : i32
    %c0_i32_0 = arith.constant 0 : i32
    %c0_i32_1 = arith.constant 0 : i32
    return %c0_i32, %c0_i32_0 : i32, i32
  }
  func.func @transform_10(%arg0: i32) -> (i32, i32) {
    %c0_i32 = arith.constant 0 : i32
    %c0_i32_0 = arith.constant 0 : i32
    %c0_i32_1 = arith.constant 0 : i32
    return %c0_i32, %c0_i32_0 : i32, i32
  }
  func.func @transform_11(%arg0: i32) -> (i32, i32, i32) {
    %c0_i32 = arith.constant 0 : i32
    %c0_i32_0 = arith.constant 0 : i32
    %c0_i32_1 = arith.constant 0 : i32
    %c0_i32_2 = arith.constant 0 : i32
    return %c0_i32, %c0_i32_0, %c0_i32_1 : i32, i32, i32
  }
  func.func @transform_12(%arg0: i32) -> (i32, i32) {
    %c0_i32 = arith.constant 0 : i32
    %c0_i32_0 = arith.constant 0 : i32
    %c0_i32_1 = arith.constant 0 : i32
    return %c0_i32, %c0_i32_0 : i32, i32
  }
  func.func @transform_13(%arg0: i32) -> (i32, i32, i32) {
    %c0_i32 = arith.constant 0 : i32
    %c0_i32_0 = arith.constant 0 : i32
    %c0_i32_1 = arith.constant 0 : i32
    %c0_i32_2 = arith.constant 0 : i32
    return %c0_i32, %c0_i32_0, %c0_i32_1 : i32, i32, i32
  }
  func.func @transform_14(%arg0: i32) -> (i32, i32) {
    %c0_i32 = arith.constant 0 : i32
    %c0_i32_0 = arith.constant 0 : i32
    %c0_i32_1 = arith.constant 0 : i32
    return %c0_i32, %c0_i32_0 : i32, i32
  }
  func.func @transform_15(%arg0: i32) -> (i32, i32, i32, i32) {
    %c0_i32 = arith.constant 0 : i32
    %c0_i32_0 = arith.constant 0 : i32
    %c0_i32_1 = arith.constant 0 : i32
    %c0_i32_2 = arith.constant 0 : i32
    return %arg0, %c0_i32, %c0_i32_0, %c0_i32_1 : i32, i32, i32, i32
  }
}

</mosaic_0001>

<llo_original>
// kernel: forward.1
$region0: #{forward.1}
  #allocation0 [shape = 'u32[]', space=smem, size = 0x4, offset = 0x4, fixed_abs, tag = 'smem constant byte address 0x4 - core index']
  #allocation1 [shape = 'u32[72,128]{1,0:T(1,128)}', space=vmem, size = 0x9000, scoped, tag = 'internal scratch']
  #allocation2 [shape = 'f32[10,16,128]{2,1,0:T(8,128)}', space=vmem, size = 0x14000, scoped, tag = 'scratch operand']
  %s0 = inlined_call_operand.vmem [shape: f32[2,8,16,128], index: 0, kind: input, shape index: {}]
  %s1 = inlined_call_operand.hbm [shape: bf16[9,128,128], index: 1, kind: input, shape index: {}]
  %s2 = inlined_call_operand.hbm [shape: f32[1,128], index: 2, kind: input, shape index: {}]
  %s3 = inlined_call_operand.hbm [shape: bf16[9,128,128], index: 3, kind: input, shape index: {}]
  %s4 = inlined_call_operand.hbm [shape: f32[1,128], index: 4, kind: input, shape index: {}]
  %s5 = inlined_call_operand.hbm [shape: bf16[128,128], index: 5, kind: input, shape index: {}]
  %s6 = inlined_call_operand.hbm [shape: f32[1,128], index: 6, kind: input, shape index: {}]
  %s7 = inlined_call_operand.hbm [shape: bf16[9,128,128], index: 7, kind: input, shape index: {}]
  %s8 = inlined_call_operand.hbm [shape: f32[1,128], index: 8, kind: input, shape index: {}]
  %s9 = inlined_call_operand.hbm [shape: bf16[128,128], index: 9, kind: input, shape index: {}]
  %s10 = inlined_call_operand.hbm [shape: f32[1,128], index: 10, kind: input, shape index: {}]
  %s11 = inlined_call_operand.hbm [shape: bf16[9,128,128], index: 11, kind: input, shape index: {}]
  %s12 = inlined_call_operand.hbm [shape: f32[1,128], index: 12, kind: input, shape index: {}]
  %s13 = inlined_call_operand.hbm [shape: bf16[9,128,128], index: 13, kind: input, shape index: {}]
  %s14 = inlined_call_operand.hbm [shape: f32[1,128], index: 14, kind: input, shape index: {}]
  %s15 = inlined_call_operand.vmem [shape: f32[2,8,16,128], index: 15, kind: output, shape index: {}]
  %s16 = sld [smem:[#allocation0]]
  $region149: #{forward.1} parent=0
    _
  %s18 = ssub.s32 1, %s16
  %s19 = scalar_select 0, %s18, %s16
  $region1: #{forward.1} parent=0
    #allocation3 [shape = 'u8[294912]{0}', space=vmem, size = 0x48000, scoped, tag = 'input window, operand 1, single buffered']
    #allocation4 [shape = 's32[2]{0}', space=sflag, size = 0x8, scoped, tag = 'scoped memory for forward.1']
    #allocation5 [shape = 'u8[512]{0}', space=vmem, size = 0x400, scoped, tag = 'input window, operand 2, single buffered']
    #allocation6 [shape = 's32[1]{0}', space=sflag, size = 0x4, scoped, tag = 'scoped memory for forward.1']
    #allocation7 [shape = 'u8[294912]{0}', space=vmem, size = 0x48000, scoped, tag = 'input window, operand 3, single buffered']
    #allocation8 [shape = 'u8[512]{0}', space=vmem, size = 0x400, scoped, tag = 'input window, operand 4, single buffered']
    #allocation9 [shape = 's32[1]{0}', space=sflag, size = 0x4, scoped, tag = 'scoped memory for forward.1']
    #allocation10 [shape = 'u8[32768]{0}', space=vmem, size = 0x8000, scoped, tag = 'input window, operand 5, single buffered']
    #allocation11 [shape = 'u8[512]{0}', space=vmem, size = 0x400, scoped, tag = 'input window, operand 6, single buffered']
    #allocation12 [shape = 's32[1]{0}', space=sflag, size = 0x4, scoped, tag = 'scoped memory for forward.1']
    #allocation13 [shape = 'u8[294912]{0}', space=vmem, size = 0x48000, scoped, tag = 'input window, operand 7, single buffered']
    #allocation14 [shape = 'u8[512]{0}', space=vmem, size = 0x400, scoped, tag = 'input window, operand 8, single buffered']
    #allocation15 [shape = 's32[1]{0}', space=sflag, size = 0x4, scoped, tag = 'scoped memory for forward.1']
    #allocation16 [shape = 'u8[32768]{0}', space=vmem, size = 0x8000, scoped, tag = 'input window, operand 9, single buffered']
    #allocation17 [shape = 'u8[512]{0}', space=vmem, size = 0x400, scoped, tag = 'input window, operand 10, single buffered']
    #allocation18 [shape = 's32[1]{0}', space=sflag, size = 0x4, scoped, tag = 'scoped memory for forward.1']
    #allocation19 [shape = 'u8[294912]{0}', space=vmem, size = 0x48000, scoped, tag = 'input window, operand 11, single buffered']
    #allocation20 [shape = 'u8[512]{0}', space=vmem, size = 0x400, scoped, tag = 'input window, operand 12, single buffered']
    #allocation21 [shape = 's32[1]{0}', space=sflag, size = 0x4, scoped, tag = 'scoped memory for forward.1']
    #allocation22 [shape = 'u8[294912]{0}', space=vmem, size = 0x48000, scoped, tag = 'input window, operand 13, single buffered']
    #allocation23 [shape = 'u8[512]{0}', space=vmem, size = 0x400, scoped, tag = 'input window, operand 14, single buffered']
    #allocation24 [shape = 's32[1]{0}', space=sflag, size = 0x4, scoped, tag = 'scoped memory for forward.1']
    %20 = vsyncpa [#allocation4], 0
    %21 = vsyncpa [#allocation6], 0
    %22 = vsyncpa [#allocation9], 0
    %23 = vsyncpa [#allocation12], 0
    %24 = vsyncpa [#allocation15], 0
    %25 = vsyncpa [#allocation18], 0
    %26 = vsyncpa [#allocation21], 0
    %27 = vsyncpa [#allocation24], 0
    loop: start=0, step=1, limit=4
    $region2: #{forward.1} parent=1 // loop_pre_header
      _
    $region3: #{forward.1} parent=1 // loop_header
      %s29 = sphi 0, %s33
      %p30 = scmp.ge.s32.totalorder %s29, 4
      %s39 = sphi 0, %s41
      %s42 = sphi 0, %s39
      %s43 = sphi 0, %s42
      %s59 = sphi 0, %s43
      %s63 = sphi 0, %s63
      %s65 = sphi 0, %s63
      %s66 = sphi 0, %s65
      %s80 = sphi 0, %s66
      %s84 = sphi 0, %s84
      %s86 = sphi 0, %s84
      %s87 = sphi 0, %s86
      %s101 = sphi 0, %s87
      %s105 = sphi 0, %s105
      %s107 = sphi 0, %s105
      %s108 = sphi 0, %s107
      %s122 = sphi 0, %s108
      %s126 = sphi 0, %s126
      %s128 = sphi 0, %s126
      %s129 = sphi 0, %s128
      %s143 = sphi 0, %s129
      %s147 = sphi 0, %s147
      %s149 = sphi 0, %s147
      %s150 = sphi 0, %s149
      %s164 = sphi 0, %s150
      %s168 = sphi 0, %s168
      %s170 = sphi 0, %s168
      %s171 = sphi 0, %s170
      %s185 = sphi 0, %s171
      %s189 = sphi 0, %s189
      %s191 = sphi 0, %s189
      %s192 = sphi 0, %s191
      %s206 = sphi 0, %s192
      %s210 = sphi 0, %s210
      %s212 = sphi 0, %s210
      %s213 = sphi 0, %s212
      %s227 = sphi 0, %s213
      %s231 = sphi 0, %s231
      %s233 = sphi 0, %s231
      %s234 = sphi 0, %s233
      %s248 = sphi 0, %s234
      %s252 = sphi 0, %s252
      %s254 = sphi 0, %s252
      %s255 = sphi 0, %s254
      %s269 = sphi 0, %s255
      %s273 = sphi 0, %s273
      %s275 = sphi 0, %s273
      %s276 = sphi 0, %s275
      %s290 = sphi 0, %s276
      %s294 = sphi 0, %s294
      %s296 = sphi 0, %s294
      %s297 = sphi 0, %s296
      %s311 = sphi 0, %s297
      %s315 = sphi 0, %s315
      %s317 = sphi 0, %s315
      %s318 = sphi 0, %s317
      %s332 = sphi 0, %s318
      %s336 = sphi 0, %s336
      %s338 = sphi 0, %s336
      %s339 = sphi 0, %s338
      %s353 = sphi 0, %s339
      %s359 = sphi 0, %s361
      %s362 = sphi 0, %s359
      %s363 = sphi 0, %s362
      %s379 = sphi 0, %s363
    $region4: #{forward.1} parent=1 // loop_header_branch
      %32 = sbr.rel (%p30) target = $region8
    $region5: #{forward.1} parent=1 // loop_body
      %s34 = ssub.s32 %s29, 1
      %s35 = ssub.s32 %s29, 2
      %s36 = sadd.s32 %s29, 1
      %s37 = ssub.s32 %s29, %s36
      %p38 = scmp.eq.s32.totalorder %s37, 0
      %s40 = sadd.s32 %s39, 1
      %s41 = scalar_select %p38, %s39, %s40
      %p44 = pneg %p38
      %p45 = scmp.eq.s32.totalorder %s29, 1
      %p46 = por %p44, %p45
      %p47 = scmp.ne.s32.totalorder %s39, %s42
      %p48 = scmp.eq.s32.totalorder %s29, 0
      %p49 = por %p47, %p48
      %p50 = scmp.ne.s32.totalorder %s39, %s42
      %p51 = scmp.eq.s32.totalorder %s34, 1
      %p52 = por %p50, %p51
      %p53 = scmp.ne.s32.totalorder %s42, %s43
      %p54 = scmp.eq.s32.totalorder %s34, 0
      %p55 = por %p53, %p54
      %p56 = scmp.ne.s32.totalorder %s42, %s43
      %p57 = scmp.eq.s32.totalorder %s35, 1
      %p58 = por %p56, %p57
      %p60 = scmp.ne.s32.totalorder %s43, %s59
      %p61 = scmp.eq.s32.totalorder %s35, 0
      %p62 = por %p60, %p61
      %s64 = sadd.s32 %s63, 1
      %p67 = scmp.eq.s32.totalorder %s29, 1
      %p68 = scmp.ne.s32.totalorder %s63, %s65
      %p69 = scmp.eq.s32.totalorder %s29, 0
      %p70 = por %p68, %p69
      %p71 = scmp.ne.s32.totalorder %s63, %s65
      %p72 = scmp.eq.s32.totalorder %s34, 1
      %p73 = por %p71, %p72
      %p74 = scmp.ne.s32.totalorder %s65, %s66
      %p75 = scmp.eq.s32.totalorder %s34, 0
      %p76 = por %p74, %p75
      %p77 = scmp.ne.s32.totalorder %s65, %s66
      %p78 = scmp.eq.s32.totalorder %s35, 1
      %p79 = por %p77, %p78
      %p81 = scmp.ne.s32.totalorder %s66, %s80
      %p82 = scmp.eq.s32.totalorder %s35, 0
      %p83 = por %p81, %p82
      %s85 = sadd.s32 %s84, 1
      %p88 = scmp.eq.s32.totalorder %s29, 1
      %p89 = scmp.ne.s32.totalorder %s84, %s86
      %p90 = scmp.eq.s32.totalorder %s29, 0
      %p91 = por %p89, %p90
      %p92 = scmp.ne.s32.totalorder %s84, %s86
      %p93 = scmp.eq.s32.totalorder %s34, 1
      %p94 = por %p92, %p93
      %p95 = scmp.ne.s32.totalorder %s86, %s87
      %p96 = scmp.eq.s32.totalorder %s34, 0
      %p97 = por %p95, %p96
      %p98 = scmp.ne.s32.totalorder %s86, %s87
      %p99 = scmp.eq.s32.totalorder %s35, 1
      %p100 = por %p98, %p99
      %p102 = scmp.ne.s32.totalorder %s87, %s101
      %p103 = scmp.eq.s32.totalorder %s35, 0
      %p104 = por %p102, %p103
      %s106 = sadd.s32 %s105, 1
      %p109 = scmp.eq.s32.totalorder %s29, 1
      %p110 = scmp.ne.s32.totalorder %s105, %s107
      %p111 = scmp.eq.s32.totalorder %s29, 0
      %p112 = por %p110, %p111
      %p113 = scmp.ne.s32.totalorder %s105, %s107
      %p114 = scmp.eq.s32.totalorder %s34, 1
      %p115 = por %p113, %p114
      %p116 = scmp.ne.s32.totalorder %s107, %s108
      %p117 = scmp.eq.s32.totalorder %s34, 0
      %p118 = por %p116, %p117
      %p119 = scmp.ne.s32.totalorder %s107, %s108
      %p120 = scmp.eq.s32.totalorder %s35, 1
      %p121 = por %p119, %p120
      %p123 = scmp.ne.s32.totalorder %s108, %s122
      %p124 = scmp.eq.s32.totalorder %s35, 0
      %p125 = por %p123, %p124
      %s127 = sadd.s32 %s126, 1
      %p130 = scmp.eq.s32.totalorder %s29, 1
      %p131 = scmp.ne.s32.totalorder %s126, %s128
      %p132 = scmp.eq.s32.totalorder %s29, 0
      %p133 = por %p131, %p132
      %p134 = scmp.ne.s32.totalorder %s126, %s128
      %p135 = scmp.eq.s32.totalorder %s34, 1
      %p136 = por %p134, %p135
      %p137 = scmp.ne.s32.totalorder %s128, %s129
      %p138 = scmp.eq.s32.totalorder %s34, 0
      %p139 = por %p137, %p138
      %p140 = scmp.ne.s32.totalorder %s128, %s129
      %p141 = scmp.eq.s32.totalorder %s35, 1
      %p142 = por %p140, %p141
      %p144 = scmp.ne.s32.totalorder %s129, %s143
      %p145 = scmp.eq.s32.totalorder %s35, 0
      %p146 = por %p144, %p145
      %s148 = sadd.s32 %s147, 1
      %p151 = scmp.eq.s32.totalorder %s29, 1
      %p152 = scmp.ne.s32.totalorder %s147, %s149
      %p153 = scmp.eq.s32.totalorder %s29, 0
      %p154 = por %p152, %p153
      %p155 = scmp.ne.s32.totalorder %s147, %s149
      %p156 = scmp.eq.s32.totalorder %s34, 1
      %p157 = por %p155, %p156
      %p158 = scmp.ne.s32.totalorder %s149, %s150
      %p159 = scmp.eq.s32.totalorder %s34, 0
      %p160 = por %p158, %p159
      %p161 = scmp.ne.s32.totalorder %s149, %s150
      %p162 = scmp.eq.s32.totalorder %s35, 1
      %p163 = por %p161, %p162
      %p165 = scmp.ne.s32.totalorder %s150, %s164
      %p166 = scmp.eq.s32.totalorder %s35, 0
      %p167 = por %p165, %p166
      %s169 = sadd.s32 %s168, 1
      %p172 = scmp.eq.s32.totalorder %s29, 1
      %p173 = scmp.ne.s32.totalorder %s168, %s170
      %p174 = scmp.eq.s32.totalorder %s29, 0
      %p175 = por %p173, %p174
      %p176 = scmp.ne.s32.totalorder %s168, %s170
      %p177 = scmp.eq.s32.totalorder %s34, 1
      %p178 = por %p176, %p177
      %p179 = scmp.ne.s32.totalorder %s170, %s171
      %p180 = scmp.eq.s32.totalorder %s34, 0
      %p181 = por %p179, %p180
      %p182 = scmp.ne.s32.totalorder %s170, %s171
      %p183 = scmp.eq.s32.totalorder %s35, 1
      %p184 = por %p182, %p183
      %p186 = scmp.ne.s32.totalorder %s171, %s185
      %p187 = scmp.eq.s32.totalorder %s35, 0
      %p188 = por %p186, %p187
      %s190 = sadd.s32 %s189, 1
      %p193 = scmp.eq.s32.totalorder %s29, 1
      %p194 = scmp.ne.s32.totalorder %s189, %s191
      %p195 = scmp.eq.s32.totalorder %s29, 0
      %p196 = por %p194, %p195
      %p197 = scmp.ne.s32.totalorder %s189, %s191
      %p198 = scmp.eq.s32.totalorder %s34, 1
      %p199 = por %p197, %p198
      %p200 = scmp.ne.s32.totalorder %s191, %s192
      %p201 = scmp.eq.s32.totalorder %s34, 0
      %p202 = por %p200, %p201
      %p203 = scmp.ne.s32.totalorder %s191, %s192
      %p204 = scmp.eq.s32.totalorder %s35, 1
      %p205 = por %p203, %p204
      %p207 = scmp.ne.s32.totalorder %s192, %s206
      %p208 = scmp.eq.s32.totalorder %s35, 0
      %p209 = por %p207, %p208
      %s211 = sadd.s32 %s210, 1
      %p214 = scmp.eq.s32.totalorder %s29, 1
      %p215 = scmp.ne.s32.totalorder %s210, %s212
      %p216 = scmp.eq.s32.totalorder %s29, 0
      %p217 = por %p215, %p216
      %p218 = scmp.ne.s32.totalorder %s210, %s212
      %p219 = scmp.eq.s32.totalorder %s34, 1
      %p220 = por %p218, %p219
      %p221 = scmp.ne.s32.totalorder %s212, %s213
      %p222 = scmp.eq.s32.totalorder %s34, 0
      %p223 = por %p221, %p222
      %p224 = scmp.ne.s32.totalorder %s212, %s213
      %p225 = scmp.eq.s32.totalorder %s35, 1
      %p226 = por %p224, %p225
      %p228 = scmp.ne.s32.totalorder %s213, %s227
      %p229 = scmp.eq.s32.totalorder %s35, 0
      %p230 = por %p228, %p229
      %s232 = sadd.s32 %s231, 1
      %p235 = scmp.eq.s32.totalorder %s29, 1
      %p236 = scmp.ne.s32.totalorder %s231, %s233
      %p237 = scmp.eq.s32.totalorder %s29, 0
      %p238 = por %p236, %p237
      %p239 = scmp.ne.s32.totalorder %s231, %s233
      %p240 = scmp.eq.s32.totalorder %s34, 1
      %p241 = por %p239, %p240
      %p242 = scmp.ne.s32.totalorder %s233, %s234
      %p243 = scmp.eq.s32.totalorder %s34, 0
      %p244 = por %p242, %p243
      %p245 = scmp.ne.s32.totalorder %s233, %s234
      %p246 = scmp.eq.s32.totalorder %s35, 1
      %p247 = por %p245, %p246
      %p249 = scmp.ne.s32.totalorder %s234, %s248
      %p250 = scmp.eq.s32.totalorder %s35, 0
      %p251 = por %p249, %p250
      %s253 = sadd.s32 %s252, 1
      %p256 = scmp.eq.s32.totalorder %s29, 1
      %p257 = scmp.ne.s32.totalorder %s252, %s254
      %p258 = scmp.eq.s32.totalorder %s29, 0
      %p259 = por %p257, %p258
      %p260 = scmp.ne.s32.totalorder %s252, %s254
      %p261 = scmp.eq.s32.totalorder %s34, 1
      %p262 = por %p260, %p261
      %p263 = scmp.ne.s32.totalorder %s254, %s255
      %p264 = scmp.eq.s32.totalorder %s34, 0
      %p265 = por %p263, %p264
      %p266 = scmp.ne.s32.totalorder %s254, %s255
      %p267 = scmp.eq.s32.totalorder %s35, 1
      %p268 = por %p266, %p267
      %p270 = scmp.ne.s32.totalorder %s255, %s269
      %p271 = scmp.eq.s32.totalorder %s35, 0
      %p272 = por %p270, %p271
      %s274 = sadd.s32 %s273, 1
      %p277 = scmp.eq.s32.totalorder %s29, 1
      %p278 = scmp.ne.s32.totalorder %s273, %s275
      %p279 = scmp.eq.s32.totalorder %s29, 0
      %p280 = por %p278, %p279
      %p281 = scmp.ne.s32.totalorder %s273, %s275
      %p282 = scmp.eq.s32.totalorder %s34, 1
      %p283 = por %p281, %p282
      %p284 = scmp.ne.s32.totalorder %s275, %s276
      %p285 = scmp.eq.s32.totalorder %s34, 0
      %p286 = por %p284, %p285
      %p287 = scmp.ne.s32.totalorder %s275, %s276
      %p288 = scmp.eq.s32.totalorder %s35, 1
      %p289 = por %p287, %p288
      %p291 = scmp.ne.s32.totalorder %s276, %s290
      %p292 = scmp.eq.s32.totalorder %s35, 0
      %p293 = por %p291, %p292
      %s295 = sadd.s32 %s294, 1
      %p298 = scmp.eq.s32.totalorder %s29, 1
      %p299 = scmp.ne.s32.totalorder %s294, %s296
      %p300 = scmp.eq.s32.totalorder %s29, 0
      %p301 = por %p299, %p300
      %p302 = scmp.ne.s32.totalorder %s294, %s296
      %p303 = scmp.eq.s32.totalorder %s34, 1
      %p304 = por %p302, %p303
      %p305 = scmp.ne.s32.totalorder %s296, %s297
      %p306 = scmp.eq.s32.totalorder %s34, 0
      %p307 = por %p305, %p306
      %p308 = scmp.ne.s32.totalorder %s296, %s297
      %p309 = scmp.eq.s32.totalorder %s35, 1
      %p310 = por %p308, %p309
      %p312 = scmp.ne.s32.totalorder %s297, %s311
      %p313 = scmp.eq.s32.totalorder %s35, 0
      %p314 = por %p312, %p313
      %s316 = sadd.s32 %s315, 1
      %p319 = scmp.eq.s32.totalorder %s29, 1
      %p320 = scmp.ne.s32.totalorder %s315, %s317
      %p321 = scmp.eq.s32.totalorder %s29, 0
      %p322 = por %p320, %p321
      %p323 = scmp.ne.s32.totalorder %s315, %s317
      %p324 = scmp.eq.s32.totalorder %s34, 1
      %p325 = por %p323, %p324
      %p326 = scmp.ne.s32.totalorder %s317, %s318
      %p327 = scmp.eq.s32.totalorder %s34, 0
      %p328 = por %p326, %p327
      %p329 = scmp.ne.s32.totalorder %s317, %s318
      %p330 = scmp.eq.s32.totalorder %s35, 1
      %p331 = por %p329, %p330
      %p333 = scmp.ne.s32.totalorder %s318, %s332
      %p334 = scmp.eq.s32.totalorder %s35, 0
      %p335 = por %p333, %p334
      %s337 = sadd.s32 %s336, 1
      %p340 = scmp.eq.s32.totalorder %s29, 1
      %p341 = scmp.ne.s32.totalorder %s336, %s338
      %p342 = scmp.eq.s32.totalorder %s29, 0
      %p343 = por %p341, %p342
      %p344 = scmp.ne.s32.totalorder %s336, %s338
      %p345 = scmp.eq.s32.totalorder %s34, 1
      %p346 = por %p344, %p345
      %p347 = scmp.ne.s32.totalorder %s338, %s339
      %p348 = scmp.eq.s32.totalorder %s34, 0
      %p349 = por %p347, %p348
      %p350 = scmp.ne.s32.totalorder %s338, %s339
      %p351 = scmp.eq.s32.totalorder %s35, 1
      %p352 = por %p350, %p351
      %p354 = scmp.ne.s32.totalorder %s339, %s353
      %p355 = scmp.eq.s32.totalorder %s35, 0
      %p356 = por %p354, %p355
      %s357 = ssub.s32 %s29, %s36
      %p358 = scmp.eq.s32.totalorder %s357, 0
      %s360 = sadd.s32 %s359, 1
      %s361 = scalar_select %p358, %s359, %s360
      %p364 = pneg %p358
      %p365 = scmp.eq.s32.totalorder %s29, 1
      %p366 = por %p364, %p365
      %p367 = scmp.ne.s32.totalorder %s359, %s362
      %p368 = scmp.eq.s32.totalorder %s29, 0
      %p369 = por %p367, %p368
      %p370 = scmp.ne.s32.totalorder %s359, %s362
      %p371 = scmp.eq.s32.totalorder %s34, 1
      %p372 = por %p370, %p371
      %p373 = scmp.ne.s32.totalorder %s362, %s363
      %p374 = scmp.eq.s32.totalorder %s34, 0
      %p375 = por %p373, %p374
      %p376 = scmp.ne.s32.totalorder %s362, %s363
      %p377 = scmp.eq.s32.totalorder %s35, 1
      %p378 = por %p376, %p377
      %p380 = scmp.ne.s32.totalorder %s363, %s379
      %p381 = scmp.eq.s32.totalorder %s35, 0
      %p382 = por %p380, %p381
      %p383 = scmp.le.s32.totalorder 1, %s29
      %p384 = scmp.lt.s32.totalorder %s29, 3
      %p385 = pnand %p383, %p384
      %p386 = pneg %p385
      // Predicated region
      $region9: #{forward.1} parent=5 // pred_check
        _
      $region10: #{forward.1} parent=5 // pred_check_branch
        %388 = sbr.rel (%p385) target = $region12
      $region11: #{forward.1} parent=5 // pred_region
        %s389 = ssub.s32 %s29, 1
        // Predicated region
        $region13: #{forward.1} parent=11 // pred_check
          %p390 = pneg %p76
        $region14: #{forward.1} parent=11 // pred_check_branch
          %392 = sbr.rel (%p390) target = $region16
        $region15: #{forward.1} parent=11 // pred_region
          %394 = vsyncadd [#allocation4], 0
          %s395 = sshll.u32 %s1, 4
          %s396 = int_to_ptr.hbm [resolvable:$true] %s395
          %s397 = sshll.u32 [#allocation3], 4
          %s398 = int_to_ptr.vmem [resolvable:$true] %s397
          %403 = dma.hbm_to_vmem [thread:$0]  %s396, 9216, %s398, [#allocation4], 64, 64, 4
        $region16: #{forward.1} parent=11 // pred_fallthru
          _
        // Predicated region
        $region17: #{forward.1} parent=11 // pred_check
          %p404 = pneg %p97
        $region18: #{forward.1} parent=11 // pred_check_branch
          %406 = sbr.rel (%p404) target = $region20
        $region19: #{forward.1} parent=11 // pred_region
          %408 = vsyncadd [#allocation6], 0
          %s410 = sshll.u32 %s2, 4
          %s411 = int_to_ptr.hbm [resolvable:$true] %s410
          %s412 = sshll.u32 [#allocation5], 4
          %s413 = int_to_ptr.vmem [resolvable:$true] %s412
          %415 = dma.hbm_to_vmem [thread:$0]  %s411, 16, %s413, [#allocation6]
        $region20: #{forward.1} parent=11 // pred_fallthru
          _
        // Predicated region
        $region21: #{forward.1} parent=11 // pred_check
          %p416 = pneg %p118
        $region22: #{forward.1} parent=11 // pred_check_branch
          %418 = sbr.rel (%p416) target = $region24
        $region23: #{forward.1} parent=11 // pred_region
          %420 = vsyncadd [#allocation6], 0
          %s421 = sshll.u32 %s3, 4
          %s422 = int_to_ptr.hbm [resolvable:$true] %s421
          %s423 = sshll.u32 [#allocation7], 4
          %s424 = int_to_ptr.vmem [resolvable:$true] %s423
          %429 = dma.hbm_to_vmem [thread:$0]  %s422, 9216, %s424, [#allocation6], 64, 64, 4
        $region24: #{forward.1} parent=11 // pred_fallthru
          _
        // Predicated region
        $region25: #{forward.1} parent=11 // pred_check
          %p430 = pneg %p139
        $region26: #{forward.1} parent=11 // pred_check_branch
          %432 = sbr.rel (%p430) target = $region28
        $region27: #{forward.1} parent=11 // pred_region
          %434 = vsyncadd [#allocation9], 0
          %s436 = sshll.u32 %s4, 4
          %s437 = int_to_ptr.hbm [resolvable:$true] %s436
          %s438 = sshll.u32 [#allocation8], 4
          %s439 = int_to_ptr.vmem [resolvable:$true] %s438
          %441 = dma.hbm_to_vmem [thread:$0]  %s437, 16, %s439, [#allocation9]
        $region28: #{forward.1} parent=11 // pred_fallthru
          _
        // Predicated region
        $region29: #{forward.1} parent=11 // pred_check
          %p442 = pneg %p160
        $region30: #{forward.1} parent=11 // pred_check_branch
          %444 = sbr.rel (%p442) target = $region32
        $region31: #{forward.1} parent=11 // pred_region
          %446 = vsyncadd [#allocation9], 0
          %s447 = sshll.u32 %s5, 4
          %s448 = int_to_ptr.hbm [resolvable:$true] %s447
          %s449 = sshll.u32 [#allocation10], 4
          %s450 = int_to_ptr.vmem [resolvable:$true] %s449
          %455 = dma.hbm_to_vmem [thread:$0]  %s448, 1024, %s450, [#allocation9], 64, 64, 4
        $region32: #{forward.1} parent=11 // pred_fallthru
          _
        // Predicated region
        $region33: #{forward.1} parent=11 // pred_check
          %p456 = pneg %p181
        $region34: #{forward.1} parent=11 // pred_check_branch
          %458 = sbr.rel (%p456) target = $region36
        $region35: #{forward.1} parent=11 // pred_region
          %460 = vsyncadd [#allocation12], 0
          %s462 = sshll.u32 %s6, 4
          %s463 = int_to_ptr.hbm [resolvable:$true] %s462
          %s464 = sshll.u32 [#allocation11], 4
          %s465 = int_to_ptr.vmem [resolvable:$true] %s464
          %467 = dma.hbm_to_vmem [thread:$0]  %s463, 16, %s465, [#allocation12]
        $region36: #{forward.1} parent=11 // pred_fallthru
          _
        // Predicated region
        $region37: #{forward.1} parent=11 // pred_check
          %p468 = pneg %p202
        $region38: #{forward.1} parent=11 // pred_check_branch
          %470 = sbr.rel (%p468) target = $region40
        $region39: #{forward.1} parent=11 // pred_region
          %472 = vsyncadd [#allocation12], 0
          %s473 = sshll.u32 %s7, 4
          %s474 = int_to_ptr.hbm [resolvable:$true] %s473
          %s475 = sshll.u32 [#allocation13], 4
          %s476 = int_to_ptr.vmem [resolvable:$true] %s475
          %481 = dma.hbm_to_vmem [thread:$0]  %s474, 9216, %s476, [#allocation12], 64, 64, 4
        $region40: #{forward.1} parent=11 // pred_fallthru
          _
        // Predicated region
        $region41: #{forward.1} parent=11 // pred_check
          %p482 = pneg %p223
        $region42: #{forward.1} parent=11 // pred_check_branch
          %484 = sbr.rel (%p482) target = $region44
        $region43: #{forward.1} parent=11 // pred_region
          %486 = vsyncadd [#allocation15], 0
          %s488 = sshll.u32 %s8, 4
          %s489 = int_to_ptr.hbm [resolvable:$true] %s488
          %s490 = sshll.u32 [#allocation14], 4
          %s491 = int_to_ptr.vmem [resolvable:$true] %s490
          %493 = dma.hbm_to_vmem [thread:$0]  %s489, 16, %s491, [#allocation15]
        $region44: #{forward.1} parent=11 // pred_fallthru
          _
        // Predicated region
        $region45: #{forward.1} parent=11 // pred_check
          %p494 = pneg %p244
        $region46: #{forward.1} parent=11 // pred_check_branch
          %496 = sbr.rel (%p494) target = $region48
        $region47: #{forward.1} parent=11 // pred_region
          %498 = vsyncadd [#allocation15], 0
          %s499 = sshll.u32 %s9, 4
          %s500 = int_to_ptr.hbm [resolvable:$true] %s499
          %s501 = sshll.u32 [#allocation16], 4
          %s502 = int_to_ptr.vmem [resolvable:$true] %s501
          %507 = dma.hbm_to_vmem [thread:$0]  %s500, 1024, %s502, [#allocation15], 64, 64, 4
        $region48: #{forward.1} parent=11 // pred_fallthru
          _
        // Predicated region
        $region49: #{forward.1} parent=11 // pred_check
          %p508 = pneg %p265
        $region50: #{forward.1} parent=11 // pred_check_branch
          %510 = sbr.rel (%p508) target = $region52
        $region51: #{forward.1} parent=11 // pred_region
          %512 = vsyncadd [#allocation18], 0
          %s514 = sshll.u32 %s10, 4
          %s515 = int_to_ptr.hbm [resolvable:$true] %s514
          %s516 = sshll.u32 [#allocation17], 4
          %s517 = int_to_ptr.vmem [resolvable:$true] %s516
          %519 = dma.hbm_to_vmem [thread:$0]  %s515, 16, %s517, [#allocation18]
        $region52: #{forward.1} parent=11 // pred_fallthru
          _
        // Predicated region
        $region53: #{forward.1} parent=11 // pred_check
          %p520 = pneg %p286
        $region54: #{forward.1} parent=11 // pred_check_branch
          %522 = sbr.rel (%p520) target = $region56
        $region55: #{forward.1} parent=11 // pred_region
          %524 = vsyncadd [#allocation18], 0
          %s525 = sshll.u32 %s11, 4
          %s526 = int_to_ptr.hbm [resolvable:$true] %s525
          %s527 = sshll.u32 [#allocation19], 4
          %s528 = int_to_ptr.vmem [resolvable:$true] %s527
          %533 = dma.hbm_to_vmem [thread:$0]  %s526, 9216, %s528, [#allocation18], 64, 64, 4
        $region56: #{forward.1} parent=11 // pred_fallthru
          _
        // Predicated region
        $region57: #{forward.1} parent=11 // pred_check
          %p534 = pneg %p307
        $region58: #{forward.1} parent=11 // pred_check_branch
          %536 = sbr.rel (%p534) target = $region60
        $region59: #{forward.1} parent=11 // pred_region
          %538 = vsyncadd [#allocation21], 0
          %s540 = sshll.u32 %s12, 4
          %s541 = int_to_ptr.hbm [resolvable:$true] %s540
          %s542 = sshll.u32 [#allocation20], 4
          %s543 = int_to_ptr.vmem [resolvable:$true] %s542
          %545 = dma.hbm_to_vmem [thread:$0]  %s541, 16, %s543, [#allocation21]
        $region60: #{forward.1} parent=11 // pred_fallthru
          _
        // Predicated region
        $region61: #{forward.1} parent=11 // pred_check
          %p546 = pneg %p328
        $region62: #{forward.1} parent=11 // pred_check_branch
          %548 = sbr.rel (%p546) target = $region64
        $region63: #{forward.1} parent=11 // pred_region
          %550 = vsyncadd [#allocation21], 0
          %s551 = sshll.u32 %s13, 4
          %s552 = int_to_ptr.hbm [resolvable:$true] %s551
          %s553 = sshll.u32 [#allocation22], 4
          %s554 = int_to_ptr.vmem [resolvable:$true] %s553
          %559 = dma.hbm_to_vmem [thread:$0]  %s552, 9216, %s554, [#allocation21], 64, 64, 4
        $region64: #{forward.1} parent=11 // pred_fallthru
          _
        // Predicated region
        $region65: #{forward.1} parent=11 // pred_check
          %p560 = pneg %p349
        $region66: #{forward.1} parent=11 // pred_check_branch
          %562 = sbr.rel (%p560) target = $region68
        $region67: #{forward.1} parent=11 // pred_region
          %564 = vsyncadd [#allocation24], 0
          %s566 = sshll.u32 %s14, 4
          %s567 = int_to_ptr.hbm [resolvable:$true] %s566
          %s568 = sshll.u32 [#allocation23], 4
          %s569 = int_to_ptr.vmem [resolvable:$true] %s568
          %571 = dma.hbm_to_vmem [thread:$0]  %s567, 16, %s569, [#allocation24]
        $region68: #{forward.1} parent=11 // pred_fallthru
          _
      $region12: #{forward.1} parent=5 // pred_fallthru
        _
      %p572 = scmp.lt.s32.totalorder %s29, 2
      // Predicated region
      $region69: #{forward.1} parent=5 // pred_check
        %p573 = pneg %p572
      $region70: #{forward.1} parent=5 // pred_check_branch
        %575 = sbr.rel (%p573) target = $region72
      $region71: #{forward.1} parent=5 // pred_region
        // Predicated region
        $region73: #{forward.1} parent=71 // pred_check
          %p576 = pneg %p49
        $region74: #{forward.1} parent=71 // pred_check_branch
          %578 = sbr.rel (%p576) target = $region76
        $region75: #{forward.1} parent=71 // pred_region
          %p579 = scmp.lt.s32.totalorder %s29, 1
          %s580 = scalar_select %p579, %s29, 1
          %s581 = smul.addr %s580, 16
          %s582 = smul.addr %s581, 8
          %s583 = scalar_lea.vmem %s0, %s582
        $region76: #{forward.1} parent=71 // pred_fallthru
          _
      $region72: #{forward.1} parent=5 // pred_fallthru
        _
      %p584 = scmp.le.s32.totalorder 1, %s29
      %p585 = scmp.lt.s32.totalorder %s29, 3
      %p586 = pnand %p584, %p585
      %p587 = pneg %p586
      // Predicated region
      $region77: #{forward.1} parent=5 // pred_check
        _
      $region78: #{forward.1} parent=5 // pred_check_branch
        %589 = sbr.rel (%p586) target = $region80
      $region79: #{forward.1} parent=5 // pred_region
        %s590 = ssub.s32 %s29, 1
        // Predicated region
        $region81: #{forward.1} parent=79 // pred_check
          %p591 = pneg %p76
        $region82: #{forward.1} parent=79 // pred_check_branch
          %593 = sbr.rel (%p591) target = $region84
        $region83: #{forward.1} parent=79 // pred_region
          %595 = dma.done [#allocation4], 9216
        $region84: #{forward.1} parent=79 // pred_fallthru
          _
        // Predicated region
        $region85: #{forward.1} parent=79 // pred_check
          %p596 = pneg %p97
        $region86: #{forward.1} parent=79 // pred_check_branch
          %598 = sbr.rel (%p596) target = $region88
        $region87: #{forward.1} parent=79 // pred_region
          %600 = dma.done [#allocation6], 16
        $region88: #{forward.1} parent=79 // pred_fallthru
          _
        // Predicated region
        $region89: #{forward.1} parent=79 // pred_check
          %p601 = pneg %p118
        $region90: #{forward.1} parent=79 // pred_check_branch
          %603 = sbr.rel (%p601) target = $region92
        $region91: #{forward.1} parent=79 // pred_region
          %605 = dma.done [#allocation6], 9216
        $region92: #{forward.1} parent=79 // pred_fallthru
          _
        // Predicated region
        $region93: #{forward.1} parent=79 // pred_check
          %p606 = pneg %p139
        $region94: #{forward.1} parent=79 // pred_check_branch
          %608 = sbr.rel (%p606) target = $region96
        $region95: #{forward.1} parent=79 // pred_region
          %610 = dma.done [#allocation9], 16
        $region96: #{forward.1} parent=79 // pred_fallthru
          _
        // Predicated region
        $region97: #{forward.1} parent=79 // pred_check
          %p611 = pneg %p160
        $region98: #{forward.1} parent=79 // pred_check_branch
          %613 = sbr.rel (%p611) target = $region100
        $region99: #{forward.1} parent=79 // pred_region
          %615 = dma.done [#allocation9], 1024
        $region100: #{forward.1} parent=79 // pred_fallthru
          _
        // Predicated region
        $region101: #{forward.1} parent=79 // pred_check
          %p616 = pneg %p181
        $region102: #{forward.1} parent=79 // pred_check_branch
          %618 = sbr.rel (%p616) target = $region104
        $region103: #{forward.1} parent=79 // pred_region
          %620 = dma.done [#allocation12], 16
        $region104: #{forward.1} parent=79 // pred_fallthru
          _
        // Predicated region
        $region105: #{forward.1} parent=79 // pred_check
          %p621 = pneg %p202
        $region106: #{forward.1} parent=79 // pred_check_branch
          %623 = sbr.rel (%p621) target = $region108
        $region107: #{forward.1} parent=79 // pred_region
          %625 = dma.done [#allocation12], 9216
        $region108: #{forward.1} parent=79 // pred_fallthru
          _
        // Predicated region
        $region109: #{forward.1} parent=79 // pred_check
          %p626 = pneg %p223
        $region110: #{forward.1} parent=79 // pred_check_branch
          %628 = sbr.rel (%p626) target = $region112
        $region111: #{forward.1} parent=79 // pred_region
          %630 = dma.done [#allocation15], 16
        $region112: #{forward.1} parent=79 // pred_fallthru
          _
        // Predicated region
        $region113: #{forward.1} parent=79 // pred_check
          %p631 = pneg %p244
        $region114: #{forward.1} parent=79 // pred_check_branch
          %633 = sbr.rel (%p631) target = $region116
        $region115: #{forward.1} parent=79 // pred_region
          %635 = dma.done [#allocation15], 1024
        $region116: #{forward.1} parent=79 // pred_fallthru
          _
        // Predicated region
        $region117: #{forward.1} parent=79 // pred_check
          %p636 = pneg %p265
        $region118: #{forward.1} parent=79 // pred_check_branch
          %638 = sbr.rel (%p636) target = $region120
        $region119: #{forward.1} parent=79 // pred_region
          %640 = dma.done [#allocation18], 16
        $region120: #{forward.1} parent=79 // pred_fallthru
          _
        // Predicated region
        $region121: #{forward.1} parent=79 // pred_check
          %p641 = pneg %p286
        $region122: #{forward.1} parent=79 // pred_check_branch
          %643 = sbr.rel (%p641) target = $region124
        $region123: #{forward.1} parent=79 // pred_region
          %645 = dma.done [#allocation18], 9216
        $region124: #{forward.1} parent=79 // pred_fallthru
          _
        // Predicated region
        $region125: #{forward.1} parent=79 // pred_check
          %p646 = pneg %p307
        $region126: #{forward.1} parent=79 // pred_check_branch
          %648 = sbr.rel (%p646) target = $region128
        $region127: #{forward.1} parent=79 // pred_region
          %650 = dma.done [#allocation21], 16
        $region128: #{forward.1} parent=79 // pred_fallthru
          _
        // Predicated region
        $region129: #{forward.1} parent=79 // pred_check
          %p651 = pneg %p328
        $region130: #{forward.1} parent=79 // pred_check_branch
          %653 = sbr.rel (%p651) target = $region132
        $region131: #{forward.1} parent=79 // pred_region
          %655 = dma.done [#allocation21], 9216
        $region132: #{forward.1} parent=79 // pred_fallthru
          _
        // Predicated region
        $region133: #{forward.1} parent=79 // pred_check
          %p656 = pneg %p349
        $region134: #{forward.1} parent=79 // pred_check_branch
          %658 = sbr.rel (%p656) target = $region136
        $region135: #{forward.1} parent=79 // pred_region
          %660 = dma.done [#allocation24], 16
        $region136: #{forward.1} parent=79 // pred_fallthru
          _
        %p661 = scmp.lt.s32.totalorder %s34, 1
        %s662 = scalar_select %p661, %s34, 1
        %s663 = smul.addr %s662, 16
        %s664 = smul.addr %s663, 8
        %s665 = scalar_lea.vmem %s0, %s664
        %p666 = pneg %p55
        %p667 = pneg %p52
        %p668 = pneg %p76
        %p669 = pneg %p73
        %p670 = pneg %p97
        %p671 = pneg %p94
        %p672 = pneg %p118
        %p673 = pneg %p115
        %p674 = pneg %p139
        %p675 = pneg %p136
        %p676 = pneg %p160
        %p677 = pneg %p157
        %p678 = pneg %p181
        %p679 = pneg %p178
        %p680 = pneg %p202
        %p681 = pneg %p199
        %p682 = pneg %p223
        %p683 = pneg %p220
        %p684 = pneg %p244
        %p685 = pneg %p241
        %p686 = pneg %p265
        %p687 = pneg %p262
        %p688 = pneg %p286
        %p689 = pneg %p283
        %p690 = pneg %p307
        %p691 = pneg %p304
        %p692 = pneg %p328
        %p693 = pneg %p325
        %p694 = pneg %p349
        %p695 = pneg %p346
        %p696 = pneg %p375
        %p697 = pneg %p372
        %p698 = scmp.lt.s32.totalorder %s34, 1
        %s699 = scalar_select %p698, %s34, 1
        %s700 = smul.addr %s699, 16
        %s701 = smul.addr %s700, 8
        %s702 = scalar_lea.vmem %s15, %s701
        %p703 = scmp.lt.s32.totalorder %s34, 1
        %s704 = scalar_select %p703, %s34, 1
        %s705 = smul.addr %s704, 16
        %s706 = smul.addr %s705, 8
        %s707 = scalar_lea.vmem %s0, %s706
        %p708 = scmp.lt.s32.totalorder %s34, 1
        %s709 = scalar_select %p708, %s34, 1
        %s710 = smul.addr %s709, 16
        %s711 = smul.addr %s710, 8
        %s712 = scalar_lea.vmem %s15, %s711
        %713 = vst [vmem:[#allocation2] sm:$0xff] 0.0
        %714 = vst [vmem:[#allocation2 + $0x8] sm:$0xff] 0.0
        %s715 = scalar_lea.vmem [#allocation2], 144
        %716 = vst [vmem:[%s715] sm:$0xff] 0.0
        %717 = vst [vmem:[%s715 + $0x8] sm:$0xff] 0.0
        %v718 = vld [vmem:[%s707] sm:$0xff]
        %v719 = vld [vmem:[%s707 + $0x8] sm:$0xff]
        %v720 = vld [vmem:[%s707 + $0x10] sm:$0xff]
        %v721 = vld [vmem:[%s707 + $0x18] sm:$0xff]
        %v722 = vld [vmem:[%s707 + $0x20] sm:$0xff]
        %v723 = vld [vmem:[%s707 + $0x28] sm:$0xff]
        %v724 = vld [vmem:[%s707 + $0x30] sm:$0xff]
        %v725 = vld [vmem:[%s707 + $0x38] sm:$0xff]
        %v726 = vld [vmem:[%s707 + $0x40] sm:$0xff]
        %v727 = vld [vmem:[%s707 + $0x48] sm:$0xff]
        %v728 = vld [vmem:[%s707 + $0x50] sm:$0xff]
        %v729 = vld [vmem:[%s707 + $0x58] sm:$0xff]
        %v730 = vld [vmem:[%s707 + $0x60] sm:$0xff]
        %v731 = vld [vmem:[%s707 + $0x68] sm:$0xff]
        %v732 = vld [vmem:[%s707 + $0x70] sm:$0xff]
        %v733 = vld [vmem:[%s707 + $0x78] sm:$0xff]
        %s734 = scalar_lea.vmem [#allocation2], 16
        %735 = vst [vmem:[%s734] sm:$0xff] %v718
        %736 = vst [vmem:[%s734 + $0x8] sm:$0xff] %v719
        %737 = vst [vmem:[%s734 + $0x10] sm:$0xff] %v720
        %738 = vst [vmem:[%s734 + $0x18] sm:$0xff] %v721
        %739 = vst [vmem:[%s734 + $0x20] sm:$0xff] %v722
        %740 = vst [vmem:[%s734 + $0x28] sm:$0xff] %v723
        %741 = vst [vmem:[%s734 + $0x30] sm:$0xff] %v724
        %742 = vst [vmem:[%s734 + $0x38] sm:$0xff] %v725
        %743 = vst [vmem:[%s734 + $0x40] sm:$0xff] %v726
        %744 = vst [vmem:[%s734 + $0x48] sm:$0xff] %v727
        %745 = vst [vmem:[%s734 + $0x50] sm:$0xff] %v728
        %746 = vst [vmem:[%s734 + $0x58] sm:$0xff] %v729
        %747 = vst [vmem:[%s734 + $0x60] sm:$0xff] %v730
        %748 = vst [vmem:[%s734 + $0x68] sm:$0xff] %v731
        %749 = vst [vmem:[%s734 + $0x70] sm:$0xff] %v732
        %750 = vst [vmem:[%s734 + $0x78] sm:$0xff] %v733
        %v751 = vld [vmem:[#allocation2] sm:$0xff]
        %v752 = vld [vmem:[#allocation2 + $0x8] sm:$0xff]
        %v753 = vld [vmem:[#allocation2 + $0x10] sm:$0xff]
        %v754 = vld [vmem:[#allocation2 + $0x18] sm:$0xff]
        %v755 = vld [vmem:[#allocation2 + $0x20] sm:$0xff]
        %v756 = vld [vmem:[#allocation2 + $0x28] sm:$0xff]
        %v757 = vld [vmem:[#allocation2 + $0x30] sm:$0xff]
        %v758 = vld [vmem:[#allocation2 + $0x38] sm:$0xff]
        %v759 = vld [vmem:[#allocation2 + $0x40] sm:$0xff]
        %v760 = vld [vmem:[#allocation2 + $0x48] sm:$0xff]
        %v761 = vld [vmem:[#allocation2 + $0x50] sm:$0xff]
        %v762 = vld [vmem:[#allocation2 + $0x58] sm:$0xff]
        %v763 = vld [vmem:[#allocation2 + $0x60] sm:$0xff]
        %v764 = vld [vmem:[#allocation2 + $0x68] sm:$0xff]
        %v765 = vld [vmem:[#allocation2 + $0x70] sm:$0xff]
        %v766 = vld [vmem:[#allocation2 + $0x78] sm:$0xff]
        %v767 = vld [vmem:[#allocation2 + $0x80] sm:$0xff]
        %v768 = vld [vmem:[#allocation2 + $0x88] sm:$0xff]
        %v769 = vld [vmem:[#allocation2 + $0x90] sm:$0xff]
        %v770 = vld [vmem:[#allocation2 + $0x98] sm:$0xff]
        %v771 = vrot.slane %v751, 7
        %v772 = vrot.slane %v752, 7
        %v773 = vrot.slane %v753, 7
        %v774 = vrot.slane %v754, 7
        %v775 = vrot.slane %v755, 7
        %v776 = vrot.slane %v756, 7
        %v777 = vrot.slane %v757, 7
        %v778 = vrot.slane %v758, 7
        %v779 = vrot.slane %v759, 7
        %v780 = vrot.slane %v760, 7
        %v781 = vrot.slane %v761, 7
        %v782 = vrot.slane %v762, 7
        %v783 = vrot.slane %v763, 7
        %v784 = vrot.slane %v764, 7
        %v785 = vrot.slane %v765, 7
        %v786 = vrot.slane %v766, 7
        %v787 = vrot.slane %v767, 7
        %v788 = vrot.slane %v768, 7
        %v789 = vrot.slane %v769, 7
        %v790 = vrot.slane %v770, 7
        %v791 = vlaneseq
        %v792 = vshrl.u32 %v791, 7
        %vm793 = vcmp.lt.s32.totalorder %v792, 1
        %v794 = vsel %vm793, %v789, %v790
        %v795 = vsel %vm793, %v788, %v789
        %v796 = vsel %vm793, %v787, %v788
        %v797 = vsel %vm793, %v786, %v787
        %v798 = vsel %vm793, %v785, %v786
        %v799 = vsel %vm793, %v784, %v785
        %v800 = vsel %vm793, %v783, %v784
        %v801 = vsel %vm793, %v782, %v783
        %v802 = vsel %vm793, %v781, %v782
        %v803 = vsel %vm793, %v780, %v781
        %v804 = vsel %vm793, %v779, %v780
        %v805 = vsel %vm793, %v778, %v779
        %v806 = vsel %vm793, %v777, %v778
        %v807 = vsel %vm793, %v776, %v777
        %v808 = vsel %vm793, %v775, %v776
        %v809 = vsel %vm793, %v774, %v775
        %v810 = vsel %vm793, %v773, %v774
        %v811 = vsel %vm793, %v772, %v773
        %v812 = vsel %vm793, %v771, %v772
        %v813 = vsel %vm793, %v790, %v771
        %v814 = vpack.c.bf16 %v813, %v813
        %v815 = vpack.c.bf16 %v812, %v812
        %v816 = vpack.c.bf16 %v811, %v811
        %v817 = vpack.c.bf16 %v810, %v810
        %v818 = vpack.c.bf16 %v809, %v809
        %v819 = vpack.c.bf16 %v808, %v808
        %v820 = vpack.c.bf16 %v807, %v807
        %v821 = vpack.c.bf16 %v806, %v806
        %v822 = vpack.c.bf16 %v805, %v805
        %v823 = vpack.c.bf16 %v804, %v804
        %v824 = vpack.c.bf16 %v803, %v803
        %v825 = vpack.c.bf16 %v802, %v802
        %v826 = vpack.c.bf16 %v801, %v801
        %v827 = vpack.c.bf16 %v800, %v800
        %v828 = vpack.c.bf16 %v799, %v799
        %v829 = vpack.c.bf16 %v798, %v798
        %v830 = vpack.c.bf16 %v797, %v797
        %v831 = vpack.c.bf16 %v796, %v796
        %v832 = vpack.c.bf16 %v795, %v795
        %v833 = vpack.c.bf16 %v794, %v794
        %v834 = vld [vmem:[#allocation3] sm:$0xf]
        %v835 = vld [vmem:[#allocation3 + $0x4] sm:$0xf]
        %v836 = vld [vmem:[#allocation3 + $0x8] sm:$0xf]
        %v837 = vld [vmem:[#allocation3 + $0xc] sm:$0xf]
        %v838 = vld [vmem:[#allocation3 + $0x10] sm:$0xf]
        %v839 = vld [vmem:[#allocation3 + $0x14] sm:$0xf]
        %v840 = vld [vmem:[#allocation3 + $0x18] sm:$0xf]
        %v841 = vld [vmem:[#allocation3 + $0x1c] sm:$0xf]
        %v842 = vld [vmem:[#allocation3 + $0x20] sm:$0xf]
        %v843 = vld [vmem:[#allocation3 + $0x24] sm:$0xf]
        %v844 = vld [vmem:[#allocation3 + $0x28] sm:$0xf]
        %v845 = vld [vmem:[#allocation3 + $0x2c] sm:$0xf]
        %v846 = vld [vmem:[#allocation3 + $0x30] sm:$0xf]
        %v847 = vld [vmem:[#allocation3 + $0x34] sm:$0xf]
        %v848 = vld [vmem:[#allocation3 + $0x38] sm:$0xf]
        %v849 = vld [vmem:[#allocation3 + $0x3c] sm:$0xf]
        %s850 = scalar_lea.vmem [#allocation3], 192
        %v851 = vld [vmem:[%s850] sm:$0xf]
        %v852 = vld [vmem:[%s850 + $0x4] sm:$0xf]
        %v853 = vld [vmem:[%s850 + $0x8] sm:$0xf]
        %v854 = vld [vmem:[%s850 + $0xc] sm:$0xf]
        %v855 = vld [vmem:[%s850 + $0x10] sm:$0xf]
        %v856 = vld [vmem:[%s850 + $0x14] sm:$0xf]
        %v857 = vld [vmem:[%s850 + $0x18] sm:$0xf]
        %v858 = vld [vmem:[%s850 + $0x1c] sm:$0xf]
        %v859 = vld [vmem:[%s850 + $0x20] sm:$0xf]
        %v860 = vld [vmem:[%s850 + $0x24] sm:$0xf]
        %v861 = vld [vmem:[%s850 + $0x28] sm:$0xf]
        %v862 = vld [vmem:[%s850 + $0x2c] sm:$0xf]
        %v863 = vld [vmem:[%s850 + $0x30] sm:$0xf]
        %v864 = vld [vmem:[%s850 + $0x34] sm:$0xf]
        %v865 = vld [vmem:[%s850 + $0x38] sm:$0xf]
        %v866 = vld [vmem:[%s850 + $0x3c] sm:$0xf]
        %v883 = vunpack.c.l.b16 %v816
        %v884 = vunpack.c.l.b16 %v817
        %v885 = vunpack.c.l.b16 %v818
        %v886 = vunpack.c.l.b16 %v819
        %v887 = vunpack.c.l.b16 %v820
        %v888 = vunpack.c.l.b16 %v821
        %v889 = vunpack.c.l.b16 %v822
        %v890 = vunpack.c.l.b16 %v823
        %v891 = vunpack.c.l.b16 %v824
        %v892 = vunpack.c.l.b16 %v825
        %v893 = vunpack.c.l.b16 %v826
        %v894 = vunpack.c.l.b16 %v827
        %v895 = vunpack.c.l.b16 %v828
        %v896 = vunpack.c.l.b16 %v829
        %v897 = vunpack.c.l.b16 %v830
        %v898 = vunpack.c.l.b16 %v831
        %v899 = vpack.c.b16 %v884, %v883
        %v900 = vpack.c.b16 %v886, %v885
        %v901 = vpack.c.b16 %v888, %v887
        %v902 = vpack.c.b16 %v890, %v889
        %v903 = vpack.c.b16 %v892, %v891
        %v904 = vpack.c.b16 %v894, %v893
        %v905 = vpack.c.b16 %v896, %v895
        %v906 = vpack.c.b16 %v898, %v897
        %v931 = vunpack.c.l.b16 %v851
        %v932 = vunpack.c.l.b16 %v852
        %v933 = vunpack.c.l.b16 %v853
        %v934 = vunpack.c.l.b16 %v854
        %v935 = vunpack.c.l.b16 %v855
        %v936 = vunpack.c.l.b16 %v856
        %v937 = vunpack.c.l.b16 %v857
        %v938 = vunpack.c.l.b16 %v858
        %v939 = vunpack.c.l.b16 %v859
        %v940 = vunpack.c.l.b16 %v860
        %v941 = vunpack.c.l.b16 %v861
        %v942 = vunpack.c.l.b16 %v862
        %v943 = vunpack.c.l.b16 %v863
        %v944 = vunpack.c.l.b16 %v864
        %v945 = vunpack.c.l.b16 %v865
        %v946 = vunpack.c.l.b16 %v866
        %v947 = vpack.c.b16 %v932, %v931
        %v948 = vpack.c.b16 %v934, %v933
        %v949 = vpack.c.b16 %v936, %v935
        %v950 = vpack.c.b16 %v938, %v937
        %v951 = vpack.c.b16 %v940, %v939
        %v952 = vpack.c.b16 %v942, %v941
        %v953 = vpack.c.b16 %v944, %v943
        %v954 = vpack.c.b16 %v946, %v945
        %963 = vmatpush.bf16.msra.mxu0 %v954
        %964 = vmatpush.bf16.msra.mxu0 %v953
        %965 = vmatpush.bf16.msra.mxu0 %v952
        %966 = vmatpush.bf16.msra.mxu0 %v951
        %967 = vmatpush.bf16.msra.mxu0 %v950
        %968 = vmatpush.bf16.msra.mxu0 %v949
        %969 = vmatpush.bf16.msra.mxu0 %v948
        %970 = vmatpush.bf16.msra.mxu0 %v947
        %971 = vmatmul.bf16.gmra.mxu0 %v899
        %v972 = vpop.f32.mrf.mxu0
        %v973 = vadd.f32 0.0, %v972
        %v974 = vpop.f32.mrf.mxu0
        %v975 = vadd.f32 0.0, %v974
        %976 = vmatmul.bf16.gmra.mxu0 %v900
        %v977 = vpop.f32.mrf.mxu0
        %v978 = vadd.f32 0.0, %v977
        %v979 = vpop.f32.mrf.mxu0
        %v980 = vadd.f32 0.0, %v979
        %981 = vmatmul.bf16.gmra.mxu0 %v901
        %v982 = vpop.f32.mrf.mxu0
        %v983 = vadd.f32 0.0, %v982
        %v984 = vpop.f32.mrf.mxu0
        %v985 = vadd.f32 0.0, %v984
        %986 = vmatmul.bf16.gmra.mxu0 %v902
        %v987 = vpop.f32.mrf.mxu0
        %v988 = vadd.f32 0.0, %v987
        %v989 = vpop.f32.mrf.mxu0
        %v990 = vadd.f32 0.0, %v989
        %991 = vmatmul.bf16.gmra.mxu0 %v903
        %v992 = vpop.f32.mrf.mxu0
        %v993 = vadd.f32 0.0, %v992
        %v994 = vpop.f32.mrf.mxu0
        %v995 = vadd.f32 0.0, %v994
        %996 = vmatmul.bf16.gmra.mxu0 %v904
        %v997 = vpop.f32.mrf.mxu0
        %v998 = vadd.f32 0.0, %v997
        %v999 = vpop.f32.mrf.mxu0
        %v1000 = vadd.f32 0.0, %v999
        %1001 = vmatmul.bf16.gmra.mxu0 %v905
        %v1002 = vpop.f32.mrf.mxu0
        %v1003 = vadd.f32 0.0, %v1002
        %v1004 = vpop.f32.mrf.mxu0
        %v1005 = vadd.f32 0.0, %v1004
        %1006 = vmatmul.bf16.gmra.mxu0 %v906
        %v1007 = vpop.f32.mrf.mxu0
        %v1008 = vadd.f32 0.0, %v1007
        %v1009 = vpop.f32.mrf.mxu0
        %v1010 = vadd.f32 0.0, %v1009
        %1011 = vdwg.mxu0
        %v1014 = vunpack.c.l.b16 %v814
        %v1015 = vunpack.c.l.b16 %v815
        %v1016 = vpack.c.b16 %v1015, %v1014
        %v1034 = vunpack.c.l.b16 %v834
        %v1035 = vunpack.c.l.b16 %v835
        %v1036 = vunpack.c.l.b16 %v836
        %v1037 = vunpack.c.l.b16 %v837
        %v1038 = vunpack.c.l.b16 %v838
        %v1039 = vunpack.c.l.b16 %v839
        %v1040 = vunpack.c.l.b16 %v840
        %v1041 = vunpack.c.l.b16 %v841
        %v1042 = vunpack.c.l.b16 %v842
        %v1043 = vunpack.c.l.b16 %v843
        %v1044 = vunpack.c.l.b16 %v844
        %v1045 = vunpack.c.l.b16 %v845
        %v1046 = vunpack.c.l.b16 %v846
        %v1047 = vunpack.c.l.b16 %v847
        %v1048 = vunpack.c.l.b16 %v848
        %v1049 = vunpack.c.l.b16 %v849
        %v1050 = vpack.c.b16 %v1035, %v1034
        %v1051 = vpack.c.b16 %v1037, %v1036
        %v1052 = vpack.c.b16 %v1039, %v1038
        %v1053 = vpack.c.b16 %v1041, %v1040
        %v1054 = vpack.c.b16 %v1043, %v1042
        %v1055 = vpack.c.b16 %v1045, %v1044
        %v1056 = vpack.c.b16 %v1047, %v1046
        %v1057 = vpack.c.b16 %v1049, %v1048
        %1066 = vmatpush.bf16.msra.mxu0 %v1057
        %1067 = vmatpush.bf16.msra.mxu0 %v1056
        %1068 = vmatpush.bf16.msra.mxu0 %v1055
        %1069 = vmatpush.bf16.msra.mxu0 %v1054
        %1070 = vmatpush.bf16.msra.mxu0 %v1053
        %1071 = vmatpush.bf16.msra.mxu0 %v1052
        %1072 = vmatpush.bf16.msra.mxu0 %v1051
        %1073 = vmatpush.bf16.msra.mxu0 %v1050
        %1074 = vmatmul.bf16.gmra.mxu0 %v1016
        %v1075 = vpop.f32.mrf.mxu0
        %v1076 = vadd.f32 %v973, %v1075
        %v1077 = vpop.f32.mrf.mxu0
        %v1078 = vadd.f32 %v975, %v1077
        %1079 = vmatmul.bf16.gmra.mxu0 %v899
        %v1080 = vpop.f32.mrf.mxu0
        %v1081 = vadd.f32 %v978, %v1080
        %v1082 = vpop.f32.mrf.mxu0
        %v1083 = vadd.f32 %v980, %v1082
        %1084 = vmatmul.bf16.gmra.mxu0 %v900
        %v1085 = vpop.f32.mrf.mxu0
        %v1086 = vadd.f32 %v983, %v1085
        %v1087 = vpop.f32.mrf.mxu0
        %v1088 = vadd.f32 %v985, %v1087
        %1089 = vmatmul.bf16.gmra.mxu0 %v901
        %v1090 = vpop.f32.mrf.mxu0
        %v1091 = vadd.f32 %v988, %v1090
        %v1092 = vpop.f32.mrf.mxu0
        %v1093 = vadd.f32 %v990, %v1092
        %1094 = vmatmul.bf16.gmra.mxu0 %v902
        %v1095 = vpop.f32.mrf.mxu0
        %v1096 = vadd.f32 %v993, %v1095
        %v1097 = vpop.f32.mrf.mxu0
        %v1098 = vadd.f32 %v995, %v1097
        %1099 = vmatmul.bf16.gmra.mxu0 %v903
        %v1100 = vpop.f32.mrf.mxu0
        %v1101 = vadd.f32 %v998, %v1100
        %v1102 = vpop.f32.mrf.mxu0
        %v1103 = vadd.f32 %v1000, %v1102
        %1104 = vmatmul.bf16.gmra.mxu0 %v904
        %v1105 = vpop.f32.mrf.mxu0
        %v1106 = vadd.f32 %v1003, %v1105
        %v1107 = vpop.f32.mrf.mxu0
        %v1108 = vadd.f32 %v1005, %v1107
        %1109 = vmatmul.bf16.gmra.mxu0 %v905
        %v1110 = vpop.f32.mrf.mxu0
        %v1111 = vadd.f32 %v1008, %v1110
        %v1112 = vpop.f32.mrf.mxu0
        %v1113 = vadd.f32 %v1010, %v1112
        %1114 = vdwg.mxu0
        %s1115 = scalar_lea.vmem [#allocation3], 384
        %v1116 = vld [vmem:[%s1115] sm:$0xf]
        %v1117 = vld [vmem:[%s1115 + $0x4] sm:$0xf]
        %v1118 = vld [vmem:[%s1115 + $0x8] sm:$0xf]
        %v1119 = vld [vmem:[%s1115 + $0xc] sm:$0xf]
        %v1120 = vld [vmem:[%s1115 + $0x10] sm:$0xf]
        %v1121 = vld [vmem:[%s1115 + $0x14] sm:$0xf]
        %v1122 = vld [vmem:[%s1115 + $0x18] sm:$0xf]
        %v1123 = vld [vmem:[%s1115 + $0x1c] sm:$0xf]
        %v1124 = vld [vmem:[%s1115 + $0x20] sm:$0xf]
        %v1125 = vld [vmem:[%s1115 + $0x24] sm:$0xf]
        %v1126 = vld [vmem:[%s1115 + $0x28] sm:$0xf]
        %v1127 = vld [vmem:[%s1115 + $0x2c] sm:$0xf]
        %v1128 = vld [vmem:[%s1115 + $0x30] sm:$0xf]
        %v1129 = vld [vmem:[%s1115 + $0x34] sm:$0xf]
        %v1130 = vld [vmem:[%s1115 + $0x38] sm:$0xf]
        %v1131 = vld [vmem:[%s1115 + $0x3c] sm:$0xf]
        %v1134 = vunpack.c.l.b16 %v832
        %v1135 = vunpack.c.l.b16 %v833
        %v1136 = vpack.c.b16 %v1135, %v1134
        %v1154 = vunpack.c.l.b16 %v1116
        %v1155 = vunpack.c.l.b16 %v1117
        %v1156 = vunpack.c.l.b16 %v1118
        %v1157 = vunpack.c.l.b16 %v1119
        %v1158 = vunpack.c.l.b16 %v1120
        %v1159 = vunpack.c.l.b16 %v1121
        %v1160 = vunpack.c.l.b16 %v1122
        %v1161 = vunpack.c.l.b16 %v1123
        %v1162 = vunpack.c.l.b16 %v1124
        %v1163 = vunpack.c.l.b16 %v1125
        %v1164 = vunpack.c.l.b16 %v1126
        %v1165 = vunpack.c.l.b16 %v1127
        %v1166 = vunpack.c.l.b16 %v1128
        %v1167 = vunpack.c.l.b16 %v1129
        %v1168 = vunpack.c.l.b16 %v1130
        %v1169 = vunpack.c.l.b16 %v1131
        %v1170 = vpack.c.b16 %v1155, %v1154
        %v1171 = vpack.c.b16 %v1157, %v1156
        %v1172 = vpack.c.b16 %v1159, %v1158
        %v1173 = vpack.c.b16 %v1161, %v1160
        %v1174 = vpack.c.b16 %v1163, %v1162
        %v1175 = vpack.c.b16 %v1165, %v1164
        %v1176 = vpack.c.b16 %v1167, %v1166
        %v1177 = vpack.c.b16 %v1169, %v1168
        %1186 = vmatpush.bf16.msra.mxu0 %v1177
        %1187 = vmatpush.bf16.msra.mxu0 %v1176
        %1188 = vmatpush.bf16.msra.mxu0 %v1175
        %1189 = vmatpush.bf16.msra.mxu0 %v1174
        %1190 = vmatpush.bf16.msra.mxu0 %v1173
        %1191 = vmatpush.bf16.msra.mxu0 %v1172
        %1192 = vmatpush.bf16.msra.mxu0 %v1171
        %1193 = vmatpush.bf16.msra.mxu0 %v1170
        %1194 = vmatmul.bf16.gmra.mxu0 %v900
        %v1195 = vpop.f32.mrf.mxu0
        %v1196 = vadd.f32 0.0, %v1195
        %v1197 = vpop.f32.mrf.mxu0
        %v1198 = vadd.f32 0.0, %v1197
        %1199 = vmatmul.bf16.gmra.mxu0 %v901
        %v1200 = vpop.f32.mrf.mxu0
        %v1201 = vadd.f32 0.0, %v1200
        %v1202 = vpop.f32.mrf.mxu0
        %v1203 = vadd.f32 0.0, %v1202
        %1204 = vmatmul.bf16.gmra.mxu0 %v902
        %v1205 = vpop.f32.mrf.mxu0
        %v1206 = vadd.f32 0.0, %v1205
        %v1207 = vpop.f32.mrf.mxu0
        %v1208 = vadd.f32 0.0, %v1207
        %1209 = vmatmul.bf16.gmra.mxu0 %v903
        %v1210 = vpop.f32.mrf.mxu0
        %v1211 = vadd.f32 0.0, %v1210
        %v1212 = vpop.f32.mrf.mxu0
        %v1213 = vadd.f32 0.0, %v1212
        %1214 = vmatmul.bf16.gmra.mxu0 %v904
        %v1215 = vpop.f32.mrf.mxu0
        %v1216 = vadd.f32 0.0, %v1215
        %v1217 = vpop.f32.mrf.mxu0
        %v1218 = vadd.f32 0.0, %v1217
        %1219 = vmatmul.bf16.gmra.mxu0 %v905
        %v1220 = vpop.f32.mrf.mxu0
        %v1221 = vadd.f32 0.0, %v1220
        %v1222 = vpop.f32.mrf.mxu0
        %v1223 = vadd.f32 0.0, %v1222
        %1224 = vmatmul.bf16.gmra.mxu0 %v906
        %v1225 = vpop.f32.mrf.mxu0
        %v1226 = vadd.f32 0.0, %v1225
        %v1227 = vpop.f32.mrf.mxu0
        %v1228 = vadd.f32 0.0, %v1227
        %1229 = vmatmul.bf16.gmra.mxu0 %v1136
        %v1230 = vpop.f32.mrf.mxu0
        %v1231 = vadd.f32 0.0, %v1230
        %v1232 = vpop.f32.mrf.mxu0
        %v1233 = vadd.f32 0.0, %v1232
        %1234 = vdwg.mxu0
        %v1235 = vadd.f32 %v1076, %v1196
        %v1236 = vadd.f32 %v1078, %v1198
        %v1237 = vadd.f32 %v1081, %v1201
        %v1238 = vadd.f32 %v1083, %v1203
        %v1239 = vadd.f32 %v1086, %v1206
        %v1240 = vadd.f32 %v1088, %v1208
        %v1241 = vadd.f32 %v1091, %v1211
        %v1242 = vadd.f32 %v1093, %v1213
        %v1243 = vadd.f32 %v1096, %v1216
        %v1244 = vadd.f32 %v1098, %v1218
        %v1245 = vadd.f32 %v1101, %v1221
        %v1246 = vadd.f32 %v1103, %v1223
        %v1247 = vadd.f32 %v1106, %v1226
        %v1248 = vadd.f32 %v1108, %v1228
        %v1249 = vadd.f32 %v1111, %v1231
        %v1250 = vadd.f32 %v1113, %v1233
        %v1251 = vpack.c.bf16 %v751, %v751
        %v1252 = vpack.c.bf16 %v752, %v752
        %v1253 = vpack.c.bf16 %v753, %v753
        %v1254 = vpack.c.bf16 %v754, %v754
        %v1255 = vpack.c.bf16 %v755, %v755
        %v1256 = vpack.c.bf16 %v756, %v756
        %v1257 = vpack.c.bf16 %v757, %v757
        %v1258 = vpack.c.bf16 %v758, %v758
        %v1259 = vpack.c.bf16 %v759, %v759
        %v1260 = vpack.c.bf16 %v760, %v760
        %v1261 = vpack.c.bf16 %v761, %v761
        %v1262 = vpack.c.bf16 %v762, %v762
        %v1263 = vpack.c.bf16 %v763, %v763
        %v1264 = vpack.c.bf16 %v764, %v764
        %v1265 = vpack.c.bf16 %v765, %v765
        %v1266 = vpack.c.bf16 %v766, %v766
        %v1267 = vpack.c.bf16 %v767, %v767
        %v1268 = vpack.c.bf16 %v768, %v768
        %v1269 = vpack.c.bf16 %v769, %v769
        %v1270 = vpack.c.bf16 %v770, %v770
        %s1271 = scalar_lea.vmem [#allocation3], 64
        %v1272 = vld [vmem:[%s1271] sm:$0xf]
        %v1273 = vld [vmem:[%s1271 + $0x4] sm:$0xf]
        %v1274 = vld [vmem:[%s1271 + $0x8] sm:$0xf]
        %v1275 = vld [vmem:[%s1271 + $0xc] sm:$0xf]
        %v1276 = vld [vmem:[%s1271 + $0x10] sm:$0xf]
        %v1277 = vld [vmem:[%s1271 + $0x14] sm:$0xf]
        %v1278 = vld [vmem:[%s1271 + $0x18] sm:$0xf]
        %v1279 = vld [vmem:[%s1271 + $0x1c] sm:$0xf]
        %v1280 = vld [vmem:[%s1271 + $0x20] sm:$0xf]
        %v1281 = vld [vmem:[%s1271 + $0x24] sm:$0xf]
        %v1282 = vld [vmem:[%s1271 + $0x28] sm:$0xf]
        %v1283 = vld [vmem:[%s1271 + $0x2c] sm:$0xf]
        %v1284 = vld [vmem:[%s1271 + $0x30] sm:$0xf]
        %v1285 = vld [vmem:[%s1271 + $0x34] sm:$0xf]
        %v1286 = vld [vmem:[%s1271 + $0x38] sm:$0xf]
        %v1287 = vld [vmem:[%s1271 + $0x3c] sm:$0xf]
        %v1304 = vunpack.c.l.b16 %v1251
        %v1305 = vunpack.c.l.b16 %v1252
        %v1306 = vunpack.c.l.b16 %v1253
        %v1307 = vunpack.c.l.b16 %v1254
        %v1308 = vunpack.c.l.b16 %v1255
        %v1309 = vunpack.c.l.b16 %v1256
        %v1310 = vunpack.c.l.b16 %v1257
        %v1311 = vunpack.c.l.b16 %v1258
        %v1312 = vunpack.c.l.b16 %v1259
        %v1313 = vunpack.c.l.b16 %v1260
        %v1314 = vunpack.c.l.b16 %v1261
        %v1315 = vunpack.c.l.b16 %v1262
        %v1316 = vunpack.c.l.b16 %v1263
        %v1317 = vunpack.c.l.b16 %v1264
        %v1318 = vunpack.c.l.b16 %v1265
        %v1319 = vunpack.c.l.b16 %v1266
        %v1320 = vpack.c.b16 %v1305, %v1304
        %v1321 = vpack.c.b16 %v1307, %v1306
        %v1322 = vpack.c.b16 %v1309, %v1308
        %v1323 = vpack.c.b16 %v1311, %v1310
        %v1324 = vpack.c.b16 %v1313, %v1312
        %v1325 = vpack.c.b16 %v1315, %v1314
        %v1326 = vpack.c.b16 %v1317, %v1316
        %v1327 = vpack.c.b16 %v1319, %v1318
        %v1352 = vunpack.c.l.b16 %v1272
        %v1353 = vunpack.c.l.b16 %v1273
        %v1354 = vunpack.c.l.b16 %v1274
        %v1355 = vunpack.c.l.b16 %v1275
        %v1356 = vunpack.c.l.b16 %v1276
        %v1357 = vunpack.c.l.b16 %v1277
        %v1358 = vunpack.c.l.b16 %v1278
        %v1359 = vunpack.c.l.b16 %v1279
        %v1360 = vunpack.c.l.b16 %v1280
        %v1361 = vunpack.c.l.b16 %v1281
        %v1362 = vunpack.c.l.b16 %v1282
        %v1363 = vunpack.c.l.b16 %v1283
        %v1364 = vunpack.c.l.b16 %v1284
        %v1365 = vunpack.c.l.b16 %v1285
        %v1366 = vunpack.c.l.b16 %v1286
        %v1367 = vunpack.c.l.b16 %v1287
        %v1368 = vpack.c.b16 %v1353, %v1352
        %v1369 = vpack.c.b16 %v1355, %v1354
        %v1370 = vpack.c.b16 %v1357, %v1356
        %v1371 = vpack.c.b16 %v1359, %v1358
        %v1372 = vpack.c.b16 %v1361, %v1360
        %v1373 = vpack.c.b16 %v1363, %v1362
        %v1374 = vpack.c.b16 %v1365, %v1364
        %v1375 = vpack.c.b16 %v1367, %v1366
        %1384 = vmatpush.bf16.msra.mxu0 %v1375
        %1385 = vmatpush.bf16.msra.mxu0 %v1374
        %1386 = vmatpush.bf16.msra.mxu0 %v1373
        %1387 = vmatpush.bf16.msra.mxu0 %v1372
        %1388 = vmatpush.bf16.msra.mxu0 %v1371
        %1389 = vmatpush.bf16.msra.mxu0 %v1370
        %1390 = vmatpush.bf16.msra.mxu0 %v1369
        %1391 = vmatpush.bf16.msra.mxu0 %v1368
        %1392 = vmatmul.bf16.gmra.mxu0 %v1320
        %v1393 = vpop.f32.mrf.mxu0
        %v1394 = vadd.f32 0.0, %v1393
        %v1395 = vpop.f32.mrf.mxu0
        %v1396 = vadd.f32 0.0, %v1395
        %1397 = vmatmul.bf16.gmra.mxu0 %v1321
        %v1398 = vpop.f32.mrf.mxu0
        %v1399 = vadd.f32 0.0, %v1398
        %v1400 = vpop.f32.mrf.mxu0
        %v1401 = vadd.f32 0.0, %v1400
        %1402 = vmatmul.bf16.gmra.mxu0 %v1322
        %v1403 = vpop.f32.mrf.mxu0
        %v1404 = vadd.f32 0.0, %v1403
        %v1405 = vpop.f32.mrf.mxu0
        %v1406 = vadd.f32 0.0, %v1405
        %1407 = vmatmul.bf16.gmra.mxu0 %v1323
        %v1408 = vpop.f32.mrf.mxu0
        %v1409 = vadd.f32 0.0, %v1408
        %v1410 = vpop.f32.mrf.mxu0
        %v1411 = vadd.f32 0.0, %v1410
        %1412 = vmatmul.bf16.gmra.mxu0 %v1324
        %v1413 = vpop.f32.mrf.mxu0
        %v1414 = vadd.f32 0.0, %v1413
        %v1415 = vpop.f32.mrf.mxu0
        %v1416 = vadd.f32 0.0, %v1415
        %1417 = vmatmul.bf16.gmra.mxu0 %v1325
        %v1418 = vpop.f32.mrf.mxu0
        %v1419 = vadd.f32 0.0, %v1418
        %v1420 = vpop.f32.mrf.mxu0
        %v1421 = vadd.f32 0.0, %v1420
        %1422 = vmatmul.bf16.gmra.mxu0 %v1326
        %v1423 = vpop.f32.mrf.mxu0
        %v1424 = vadd.f32 0.0, %v1423
        %v1425 = vpop.f32.mrf.mxu0
        %v1426 = vadd.f32 0.0, %v1425
        %1427 = vmatmul.bf16.gmra.mxu0 %v1327
        %v1428 = vpop.f32.mrf.mxu0
        %v1429 = vadd.f32 0.0, %v1428
        %v1430 = vpop.f32.mrf.mxu0
        %v1431 = vadd.f32 0.0, %v1430
        %1432 = vdwg.mxu0
        %v1433 = vadd.f32 %v1235, %v1394
        %v1434 = vadd.f32 %v1236, %v1396
        %v1435 = vadd.f32 %v1237, %v1399
        %v1436 = vadd.f32 %v1238, %v1401
        %v1437 = vadd.f32 %v1239, %v1404
        %v1438 = vadd.f32 %v1240, %v1406
        %v1439 = vadd.f32 %v1241, %v1409
        %v1440 = vadd.f32 %v1242, %v1411
        %v1441 = vadd.f32 %v1243, %v1414
        %v1442 = vadd.f32 %v1244, %v1416
        %v1443 = vadd.f32 %v1245, %v1419
        %v1444 = vadd.f32 %v1246, %v1421
        %v1445 = vadd.f32 %v1247, %v1424
        %v1446 = vadd.f32 %v1248, %v1426
        %v1447 = vadd.f32 %v1249, %v1429
        %v1448 = vadd.f32 %v1250, %v1431
        %s1449 = scalar_lea.vmem [#allocation3], 256
        %v1450 = vld [vmem:[%s1449] sm:$0xf]
        %v1451 = vld [vmem:[%s1449 + $0x4] sm:$0xf]
        %v1452 = vld [vmem:[%s1449 + $0x8] sm:$0xf]
        %v1453 = vld [vmem:[%s1449 + $0xc] sm:$0xf]
        %v1454 = vld [vmem:[%s1449 + $0x10] sm:$0xf]
        %v1455 = vld [vmem:[%s1449 + $0x14] sm:$0xf]
        %v1456 = vld [vmem:[%s1449 + $0x18] sm:$0xf]
        %v1457 = vld [vmem:[%s1449 + $0x1c] sm:$0xf]
        %v1458 = vld [vmem:[%s1449 + $0x20] sm:$0xf]
        %v1459 = vld [vmem:[%s1449 + $0x24] sm:$0xf]
        %v1460 = vld [vmem:[%s1449 + $0x28] sm:$0xf]
        %v1461 = vld [vmem:[%s1449 + $0x2c] sm:$0xf]
        %v1462 = vld [vmem:[%s1449 + $0x30] sm:$0xf]
        %v1463 = vld [vmem:[%s1449 + $0x34] sm:$0xf]
        %v1464 = vld [vmem:[%s1449 + $0x38] sm:$0xf]
        %v1465 = vld [vmem:[%s1449 + $0x3c] sm:$0xf]
        %v1468 = vunpack.c.l.b16 %v1267
        %v1469 = vunpack.c.l.b16 %v1268
        %v1470 = vpack.c.b16 %v1469, %v1468
        %v1488 = vunpack.c.l.b16 %v1450
        %v1489 = vunpack.c.l.b16 %v1451
        %v1490 = vunpack.c.l.b16 %v1452
        %v1491 = vunpack.c.l.b16 %v1453
        %v1492 = vunpack.c.l.b16 %v1454
        %v1493 = vunpack.c.l.b16 %v1455
        %v1494 = vunpack.c.l.b16 %v1456
        %v1495 = vunpack.c.l.b16 %v1457
        %v1496 = vunpack.c.l.b16 %v1458
        %v1497 = vunpack.c.l.b16 %v1459
        %v1498 = vunpack.c.l.b16 %v1460
        %v1499 = vunpack.c.l.b16 %v1461
        %v1500 = vunpack.c.l.b16 %v1462
        %v1501 = vunpack.c.l.b16 %v1463
        %v1502 = vunpack.c.l.b16 %v1464
        %v1503 = vunpack.c.l.b16 %v1465
        %v1504 = vpack.c.b16 %v1489, %v1488
        %v1505 = vpack.c.b16 %v1491, %v1490
        %v1506 = vpack.c.b16 %v1493, %v1492
        %v1507 = vpack.c.b16 %v1495, %v1494
        %v1508 = vpack.c.b16 %v1497, %v1496
        %v1509 = vpack.c.b16 %v1499, %v1498
        %v1510 = vpack.c.b16 %v1501, %v1500
        %v1511 = vpack.c.b16 %v1503, %v1502
        %1520 = vmatpush.bf16.msra.mxu0 %v1511
        %1521 = vmatpush.bf16.msra.mxu0 %v1510
        %1522 = vmatpush.bf16.msra.mxu0 %v1509
        %1523 = vmatpush.bf16.msra.mxu0 %v1508
        %1524 = vmatpush.bf16.msra.mxu0 %v1507
        %1525 = vmatpush.bf16.msra.mxu0 %v1506
        %1526 = vmatpush.bf16.msra.mxu0 %v1505
        %1527 = vmatpush.bf16.msra.mxu0 %v1504
        %1528 = vmatmul.bf16.gmra.mxu0 %v1321
        %v1529 = vpop.f32.mrf.mxu0
        %v1530 = vadd.f32 0.0, %v1529
        %v1531 = vpop.f32.mrf.mxu0
        %v1532 = vadd.f32 0.0, %v1531
        %1533 = vmatmul.bf16.gmra.mxu0 %v1322
        %v1534 = vpop.f32.mrf.mxu0
        %v1535 = vadd.f32 0.0, %v1534
        %v1536 = vpop.f32.mrf.mxu0
        %v1537 = vadd.f32 0.0, %v1536
        %1538 = vmatmul.bf16.gmra.mxu0 %v1323
        %v1539 = vpop.f32.mrf.mxu0
        %v1540 = vadd.f32 0.0, %v1539
        %v1541 = vpop.f32.mrf.mxu0
        %v1542 = vadd.f32 0.0, %v1541
        %1543 = vmatmul.bf16.gmra.mxu0 %v1324
        %v1544 = vpop.f32.mrf.mxu0
        %v1545 = vadd.f32 0.0, %v1544
        %v1546 = vpop.f32.mrf.mxu0
        %v1547 = vadd.f32 0.0, %v1546
        %1548 = vmatmul.bf16.gmra.mxu0 %v1325
        %v1549 = vpop.f32.mrf.mxu0
        %v1550 = vadd.f32 0.0, %v1549
        %v1551 = vpop.f32.mrf.mxu0
        %v1552 = vadd.f32 0.0, %v1551
        %1553 = vmatmul.bf16.gmra.mxu0 %v1326
        %v1554 = vpop.f32.mrf.mxu0
        %v1555 = vadd.f32 0.0, %v1554
        %v1556 = vpop.f32.mrf.mxu0
        %v1557 = vadd.f32 0.0, %v1556
        %1558 = vmatmul.bf16.gmra.mxu0 %v1327
        %v1559 = vpop.f32.mrf.mxu0
        %v1560 = vadd.f32 0.0, %v1559
        %v1561 = vpop.f32.mrf.mxu0
        %v1562 = vadd.f32 0.0, %v1561
        %1563 = vmatmul.bf16.gmra.mxu0 %v1470
        %v1564 = vpop.f32.mrf.mxu0
        %v1565 = vadd.f32 0.0, %v1564
        %v1566 = vpop.f32.mrf.mxu0
        %v1567 = vadd.f32 0.0, %v1566
        %1568 = vdwg.mxu0
        %v1569 = vadd.f32 %v1433, %v1530
        %v1570 = vadd.f32 %v1434, %v1532
        %v1571 = vadd.f32 %v1435, %v1535
        %v1572 = vadd.f32 %v1436, %v1537
        %v1573 = vadd.f32 %v1437, %v1540
        %v1574 = vadd.f32 %v1438, %v1542
        %v1575 = vadd.f32 %v1439, %v1545
        %v1576 = vadd.f32 %v1440, %v1547
        %v1577 = vadd.f32 %v1441, %v1550
        %v1578 = vadd.f32 %v1442, %v1552
        %v1579 = vadd.f32 %v1443, %v1555
        %v1580 = vadd.f32 %v1444, %v1557
        %v1581 = vadd.f32 %v1445, %v1560
        %v1582 = vadd.f32 %v1446, %v1562
        %v1583 = vadd.f32 %v1447, %v1565
        %v1584 = vadd.f32 %v1448, %v1567
        %s1585 = scalar_lea.vmem [#allocation3], 448
        %v1586 = vld [vmem:[%s1585] sm:$0xf]
        %v1587 = vld [vmem:[%s1585 + $0x4] sm:$0xf]
        %v1588 = vld [vmem:[%s1585 + $0x8] sm:$0xf]
        %v1589 = vld [vmem:[%s1585 + $0xc] sm:$0xf]
        %v1590 = vld [vmem:[%s1585 + $0x10] sm:$0xf]
        %v1591 = vld [vmem:[%s1585 + $0x14] sm:$0xf]
        %v1592 = vld [vmem:[%s1585 + $0x18] sm:$0xf]
        %v1593 = vld [vmem:[%s1585 + $0x1c] sm:$0xf]
        %v1594 = vld [vmem:[%s1585 + $0x20] sm:$0xf]
        %v1595 = vld [vmem:[%s1585 + $0x24] sm:$0xf]
        %v1596 = vld [vmem:[%s1585 + $0x28] sm:$0xf]
        %v1597 = vld [vmem:[%s1585 + $0x2c] sm:$0xf]
        %v1598 = vld [vmem:[%s1585 + $0x30] sm:$0xf]
        %v1599 = vld [vmem:[%s1585 + $0x34] sm:$0xf]
        %v1600 = vld [vmem:[%s1585 + $0x38] sm:$0xf]
        %v1601 = vld [vmem:[%s1585 + $0x3c] sm:$0xf]
        %v1604 = vunpack.c.l.b16 %v1269
        %v1605 = vunpack.c.l.b16 %v1270
        %v1606 = vpack.c.b16 %v1605, %v1604
        %v1624 = vunpack.c.l.b16 %v1586
        %v1625 = vunpack.c.l.b16 %v1587
        %v1626 = vunpack.c.l.b16 %v1588
        %v1627 = vunpack.c.l.b16 %v1589
        %v1628 = vunpack.c.l.b16 %v1590
        %v1629 = vunpack.c.l.b16 %v1591
        %v1630 = vunpack.c.l.b16 %v1592
        %v1631 = vunpack.c.l.b16 %v1593
        %v1632 = vunpack.c.l.b16 %v1594
        %v1633 = vunpack.c.l.b16 %v1595
        %v1634 = vunpack.c.l.b16 %v1596
        %v1635 = vunpack.c.l.b16 %v1597
        %v1636 = vunpack.c.l.b16 %v1598
        %v1637 = vunpack.c.l.b16 %v1599
        %v1638 = vunpack.c.l.b16 %v1600
        %v1639 = vunpack.c.l.b16 %v1601
        %v1640 = vpack.c.b16 %v1625, %v1624
        %v1641 = vpack.c.b16 %v1627, %v1626
        %v1642 = vpack.c.b16 %v1629, %v1628
        %v1643 = vpack.c.b16 %v1631, %v1630
        %v1644 = vpack.c.b16 %v1633, %v1632
        %v1645 = vpack.c.b16 %v1635, %v1634
        %v1646 = vpack.c.b16 %v1637, %v1636
        %v1647 = vpack.c.b16 %v1639, %v1638
        %1656 = vmatpush.bf16.msra.mxu0 %v1647
        %1657 = vmatpush.bf16.msra.mxu0 %v1646
        %1658 = vmatpush.bf16.msra.mxu0 %v1645
        %1659 = vmatpush.bf16.msra.mxu0 %v1644
        %1660 = vmatpush.bf16.msra.mxu0 %v1643
        %1661 = vmatpush.bf16.msra.mxu0 %v1642
        %1662 = vmatpush.bf16.msra.mxu0 %v1641
        %1663 = vmatpush.bf16.msra.mxu0 %v1640
        %1664 = vmatmul.bf16.gmra.mxu0 %v1322
        %v1665 = vpop.f32.mrf.mxu0
        %v1666 = vadd.f32 0.0, %v1665
        %v1667 = vpop.f32.mrf.mxu0
        %v1668 = vadd.f32 0.0, %v1667
        %1669 = vmatmul.bf16.gmra.mxu0 %v1323
        %v1670 = vpop.f32.mrf.mxu0
        %v1671 = vadd.f32 0.0, %v1670
        %v1672 = vpop.f32.mrf.mxu0
        %v1673 = vadd.f32 0.0, %v1672
        %1674 = vmatmul.bf16.gmra.mxu0 %v1324
        %v1675 = vpop.f32.mrf.mxu0
        %v1676 = vadd.f32 0.0, %v1675
        %v1677 = vpop.f32.mrf.mxu0
        %v1678 = vadd.f32 0.0, %v1677
        %1679 = vmatmul.bf16.gmra.mxu0 %v1325
        %v1680 = vpop.f32.mrf.mxu0
        %v1681 = vadd.f32 0.0, %v1680
        %v1682 = vpop.f32.mrf.mxu0
        %v1683 = vadd.f32 0.0, %v1682
        %1684 = vmatmul.bf16.gmra.mxu0 %v1326
        %v1685 = vpop.f32.mrf.mxu0
        %v1686 = vadd.f32 0.0, %v1685
        %v1687 = vpop.f32.mrf.mxu0
        %v1688 = vadd.f32 0.0, %v1687
        %1689 = vmatmul.bf16.gmra.mxu0 %v1327
        %v1690 = vpop.f32.mrf.mxu0
        %v1691 = vadd.f32 0.0, %v1690
        %v1692 = vpop.f32.mrf.mxu0
        %v1693 = vadd.f32 0.0, %v1692
        %1694 = vmatmul.bf16.gmra.mxu0 %v1470
        %v1695 = vpop.f32.mrf.mxu0
        %v1696 = vadd.f32 0.0, %v1695
        %v1697 = vpop.f32.mrf.mxu0
        %v1698 = vadd.f32 0.0, %v1697
        %1699 = vmatmul.bf16.gmra.mxu0 %v1606
        %v1700 = vpop.f32.mrf.mxu0
        %v1701 = vadd.f32 0.0, %v1700
        %v1702 = vpop.f32.mrf.mxu0
        %v1703 = vadd.f32 0.0, %v1702
        %1704 = vdwg.mxu0
        %v1705 = vadd.f32 %v1569, %v1666
        %v1706 = vadd.f32 %v1570, %v1668
        %v1707 = vadd.f32 %v1571, %v1671
        %v1708 = vadd.f32 %v1572, %v1673
        %v1709 = vadd.f32 %v1573, %v1676
        %v1710 = vadd.f32 %v1574, %v1678
        %v1711 = vadd.f32 %v1575, %v1681
        %v1712 = vadd.f32 %v1576, %v1683
        %v1713 = vadd.f32 %v1577, %v1686
        %v1714 = vadd.f32 %v1578, %v1688
        %v1715 = vadd.f32 %v1579, %v1691
        %v1716 = vadd.f32 %v1580, %v1693
        %v1717 = vadd.f32 %v1581, %v1696
        %v1718 = vadd.f32 %v1582, %v1698
        %v1719 = vadd.f32 %v1583, %v1701
        %v1720 = vadd.f32 %v1584, %v1703
        %v1721 = vrot.slane %v751, 1
        %v1722 = vrot.slane %v752, 1
        %v1723 = vrot.slane %v753, 1
        %v1724 = vrot.slane %v754, 1
        %v1725 = vrot.slane %v755, 1
        %v1726 = vrot.slane %v756, 1
        %v1727 = vrot.slane %v757, 1
        %v1728 = vrot.slane %v758, 1
        %v1729 = vrot.slane %v759, 1
        %v1730 = vrot.slane %v760, 1
        %v1731 = vrot.slane %v761, 1
        %v1732 = vrot.slane %v762, 1
        %v1733 = vrot.slane %v763, 1
        %v1734 = vrot.slane %v764, 1
        %v1735 = vrot.slane %v765, 1
        %v1736 = vrot.slane %v766, 1
        %v1737 = vrot.slane %v767, 1
        %v1738 = vrot.slane %v768, 1
        %v1739 = vrot.slane %v769, 1
        %v1740 = vrot.slane %v770, 1
        %vm1741 = vcmp.lt.s32.totalorder %v792, 7
        %v1742 = vsel %vm1741, %v1739, %v1740
        %v1743 = vsel %vm1741, %v1738, %v1739
        %v1744 = vsel %vm1741, %v1737, %v1738
        %v1745 = vsel %vm1741, %v1736, %v1737
        %v1746 = vsel %vm1741, %v1735, %v1736
        %v1747 = vsel %vm1741, %v1734, %v1735
        %v1748 = vsel %vm1741, %v1733, %v1734
        %v1749 = vsel %vm1741, %v1732, %v1733
        %v1750 = vsel %vm1741, %v1731, %v1732
        %v1751 = vsel %vm1741, %v1730, %v1731
        %v1752 = vsel %vm1741, %v1729, %v1730
        %v1753 = vsel %vm1741, %v1728, %v1729
        %v1754 = vsel %vm1741, %v1727, %v1728
        %v1755 = vsel %vm1741, %v1726, %v1727
        %v1756 = vsel %vm1741, %v1725, %v1726
        %v1757 = vsel %vm1741, %v1724, %v1725
        %v1758 = vsel %vm1741, %v1723, %v1724
        %v1759 = vsel %vm1741, %v1722, %v1723
        %v1760 = vsel %vm1741, %v1721, %v1722
        %v1761 = vsel %vm1741, %v1740, %v1721
        %v1762 = vpack.c.bf16 %v1760, %v1760
        %v1763 = vpack.c.bf16 %v1759, %v1759
        %v1764 = vpack.c.bf16 %v1758, %v1758
        %v1765 = vpack.c.bf16 %v1757, %v1757
        %v1766 = vpack.c.bf16 %v1756, %v1756
        %v1767 = vpack.c.bf16 %v1755, %v1755
        %v1768 = vpack.c.bf16 %v1754, %v1754
        %v1769 = vpack.c.bf16 %v1753, %v1753
        %v1770 = vpack.c.bf16 %v1752, %v1752
        %v1771 = vpack.c.bf16 %v1751, %v1751
        %v1772 = vpack.c.bf16 %v1750, %v1750
        %v1773 = vpack.c.bf16 %v1749, %v1749
        %v1774 = vpack.c.bf16 %v1748, %v1748
        %v1775 = vpack.c.bf16 %v1747, %v1747
        %v1776 = vpack.c.bf16 %v1746, %v1746
        %v1777 = vpack.c.bf16 %v1745, %v1745
        %v1778 = vpack.c.bf16 %v1744, %v1744
        %v1779 = vpack.c.bf16 %v1743, %v1743
        %v1780 = vpack.c.bf16 %v1742, %v1742
        %v1781 = vpack.c.bf16 %v1761, %v1761
        %s1782 = scalar_lea.vmem [#allocation3], 128
        %v1783 = vld [vmem:[%s1782] sm:$0xf]
        %v1784 = vld [vmem:[%s1782 + $0x4] sm:$0xf]
        %v1785 = vld [vmem:[%s1782 + $0x8] sm:$0xf]
        %v1786 = vld [vmem:[%s1782 + $0xc] sm:$0xf]
        %v1787 = vld [vmem:[%s1782 + $0x10] sm:$0xf]
        %v1788 = vld [vmem:[%s1782 + $0x14] sm:$0xf]
        %v1789 = vld [vmem:[%s1782 + $0x18] sm:$0xf]
        %v1790 = vld [vmem:[%s1782 + $0x1c] sm:$0xf]
        %v1791 = vld [vmem:[%s1782 + $0x20] sm:$0xf]
        %v1792 = vld [vmem:[%s1782 + $0x24] sm:$0xf]
        %v1793 = vld [vmem:[%s1782 + $0x28] sm:$0xf]
        %v1794 = vld [vmem:[%s1782 + $0x2c] sm:$0xf]
        %v1795 = vld [vmem:[%s1782 + $0x30] sm:$0xf]
        %v1796 = vld [vmem:[%s1782 + $0x34] sm:$0xf]
        %v1797 = vld [vmem:[%s1782 + $0x38] sm:$0xf]
        %v1798 = vld [vmem:[%s1782 + $0x3c] sm:$0xf]
        %v1815 = vunpack.c.l.b16 %v1762
        %v1816 = vunpack.c.l.b16 %v1763
        %v1817 = vunpack.c.l.b16 %v1764
        %v1818 = vunpack.c.l.b16 %v1765
        %v1819 = vunpack.c.l.b16 %v1766
        %v1820 = vunpack.c.l.b16 %v1767
        %v1821 = vunpack.c.l.b16 %v1768
        %v1822 = vunpack.c.l.b16 %v1769
        %v1823 = vunpack.c.l.b16 %v1770
        %v1824 = vunpack.c.l.b16 %v1771
        %v1825 = vunpack.c.l.b16 %v1772
        %v1826 = vunpack.c.l.b16 %v1773
        %v1827 = vunpack.c.l.b16 %v1774
        %v1828 = vunpack.c.l.b16 %v1775
        %v1829 = vunpack.c.l.b16 %v1776
        %v1830 = vunpack.c.l.b16 %v1777
        %v1831 = vpack.c.b16 %v1816, %v1815
        %v1832 = vpack.c.b16 %v1818, %v1817
        %v1833 = vpack.c.b16 %v1820, %v1819
        %v1834 = vpack.c.b16 %v1822, %v1821
        %v1835 = vpack.c.b16 %v1824, %v1823
        %v1836 = vpack.c.b16 %v1826, %v1825
        %v1837 = vpack.c.b16 %v1828, %v1827
        %v1838 = vpack.c.b16 %v1830, %v1829
        %v1863 = vunpack.c.l.b16 %v1783
        %v1864 = vunpack.c.l.b16 %v1784
        %v1865 = vunpack.c.l.b16 %v1785
        %v1866 = vunpack.c.l.b16 %v1786
        %v1867 = vunpack.c.l.b16 %v1787
        %v1868 = vunpack.c.l.b16 %v1788
        %v1869 = vunpack.c.l.b16 %v1789
        %v1870 = vunpack.c.l.b16 %v1790
        %v1871 = vunpack.c.l.b16 %v1791
        %v1872 = vunpack.c.l.b16 %v1792
        %v1873 = vunpack.c.l.b16 %v1793
        %v1874 = vunpack.c.l.b16 %v1794
        %v1875 = vunpack.c.l.b16 %v1795
        %v1876 = vunpack.c.l.b16 %v1796
        %v1877 = vunpack.c.l.b16 %v1797
        %v1878 = vunpack.c.l.b16 %v1798
        %v1879 = vpack.c.b16 %v1864, %v1863
        %v1880 = vpack.c.b16 %v1866, %v1865
        %v1881 = vpack.c.b16 %v1868, %v1867
        %v1882 = vpack.c.b16 %v1870, %v1869
        %v1883 = vpack.c.b16 %v1872, %v1871
        %v1884 = vpack.c.b16 %v1874, %v1873
        %v1885 = vpack.c.b16 %v1876, %v1875
        %v1886 = vpack.c.b16 %v1878, %v1877
        %1895 = vmatpush.bf16.msra.mxu0 %v1886
        %1896 = vmatpush.bf16.msra.mxu0 %v1885
        %1897 = vmatpush.bf16.msra.mxu0 %v1884
        %1898 = vmatpush.bf16.msra.mxu0 %v1883
        %1899 = vmatpush.bf16.msra.mxu0 %v1882
        %1900 = vmatpush.bf16.msra.mxu0 %v1881
        %1901 = vmatpush.bf16.msra.mxu0 %v1880
        %1902 = vmatpush.bf16.msra.mxu0 %v1879
        %1903 = vmatmul.bf16.gmra.mxu0 %v1831
        %v1904 = vpop.f32.mrf.mxu0
        %v1905 = vadd.f32 0.0, %v1904
        %v1906 = vpop.f32.mrf.mxu0
        %v1907 = vadd.f32 0.0, %v1906
        %1908 = vmatmul.bf16.gmra.mxu0 %v1832
        %v1909 = vpop.f32.mrf.mxu0
        %v1910 = vadd.f32 0.0, %v1909
        %v1911 = vpop.f32.mrf.mxu0
        %v1912 = vadd.f32 0.0, %v1911
        %1913 = vmatmul.bf16.gmra.mxu0 %v1833
        %v1914 = vpop.f32.mrf.mxu0
        %v1915 = vadd.f32 0.0, %v1914
        %v1916 = vpop.f32.mrf.mxu0
        %v1917 = vadd.f32 0.0, %v1916
        %1918 = vmatmul.bf16.gmra.mxu0 %v1834
        %v1919 = vpop.f32.mrf.mxu0
        %v1920 = vadd.f32 0.0, %v1919
        %v1921 = vpop.f32.mrf.mxu0
        %v1922 = vadd.f32 0.0, %v1921
        %1923 = vmatmul.bf16.gmra.mxu0 %v1835
        %v1924 = vpop.f32.mrf.mxu0
        %v1925 = vadd.f32 0.0, %v1924
        %v1926 = vpop.f32.mrf.mxu0
        %v1927 = vadd.f32 0.0, %v1926
        %1928 = vmatmul.bf16.gmra.mxu0 %v1836
        %v1929 = vpop.f32.mrf.mxu0
        %v1930 = vadd.f32 0.0, %v1929
        %v1931 = vpop.f32.mrf.mxu0
        %v1932 = vadd.f32 0.0, %v1931
        %1933 = vmatmul.bf16.gmra.mxu0 %v1837
        %v1934 = vpop.f32.mrf.mxu0
        %v1935 = vadd.f32 0.0, %v1934
        %v1936 = vpop.f32.mrf.mxu0
        %v1937 = vadd.f32 0.0, %v1936
        %1938 = vmatmul.bf16.gmra.mxu0 %v1838
        %v1939 = vpop.f32.mrf.mxu0
        %v1940 = vadd.f32 0.0, %v1939
        %v1941 = vpop.f32.mrf.mxu0
        %v1942 = vadd.f32 0.0, %v1941
        %1943 = vdwg.mxu0
        %v1944 = vadd.f32 %v1705, %v1905
        %v1945 = vadd.f32 %v1706, %v1907
        %v1946 = vadd.f32 %v1707, %v1910
        %v1947 = vadd.f32 %v1708, %v1912
        %v1948 = vadd.f32 %v1709, %v1915
        %v1949 = vadd.f32 %v1710, %v1917
        %v1950 = vadd.f32 %v1711, %v1920
        %v1951 = vadd.f32 %v1712, %v1922
        %v1952 = vadd.f32 %v1713, %v1925
        %v1953 = vadd.f32 %v1714, %v1927
        %v1954 = vadd.f32 %v1715, %v1930
        %v1955 = vadd.f32 %v1716, %v1932
        %v1956 = vadd.f32 %v1717, %v1935
        %v1957 = vadd.f32 %v1718, %v1937
        %v1958 = vadd.f32 %v1719, %v1940
        %v1959 = vadd.f32 %v1720, %v1942
        %s1960 = scalar_lea.vmem [#allocation3], 320
        %v1961 = vld [vmem:[%s1960] sm:$0xf]
        %v1962 = vld [vmem:[%s1960 + $0x4] sm:$0xf]
        %v1963 = vld [vmem:[%s1960 + $0x8] sm:$0xf]
        %v1964 = vld [vmem:[%s1960 + $0xc] sm:$0xf]
        %v1965 = vld [vmem:[%s1960 + $0x10] sm:$0xf]
        %v1966 = vld [vmem:[%s1960 + $0x14] sm:$0xf]
        %v1967 = vld [vmem:[%s1960 + $0x18] sm:$0xf]
        %v1968 = vld [vmem:[%s1960 + $0x1c] sm:$0xf]
        %v1969 = vld [vmem:[%s1960 + $0x20] sm:$0xf]
        %v1970 = vld [vmem:[%s1960 + $0x24] sm:$0xf]
        %v1971 = vld [vmem:[%s1960 + $0x28] sm:$0xf]
        %v1972 = vld [vmem:[%s1960 + $0x2c] sm:$0xf]
        %v1973 = vld [vmem:[%s1960 + $0x30] sm:$0xf]
        %v1974 = vld [vmem:[%s1960 + $0x34] sm:$0xf]
        %v1975 = vld [vmem:[%s1960 + $0x38] sm:$0xf]
        %v1976 = vld [vmem:[%s1960 + $0x3c] sm:$0xf]
        %v1979 = vunpack.c.l.b16 %v1778
        %v1980 = vunpack.c.l.b16 %v1779
        %v1981 = vpack.c.b16 %v1980, %v1979
        %v1999 = vunpack.c.l.b16 %v1961
        %v2000 = vunpack.c.l.b16 %v1962
        %v2001 = vunpack.c.l.b16 %v1963
        %v2002 = vunpack.c.l.b16 %v1964
        %v2003 = vunpack.c.l.b16 %v1965
        %v2004 = vunpack.c.l.b16 %v1966
        %v2005 = vunpack.c.l.b16 %v1967
        %v2006 = vunpack.c.l.b16 %v1968
        %v2007 = vunpack.c.l.b16 %v1969
        %v2008 = vunpack.c.l.b16 %v1970
        %v2009 = vunpack.c.l.b16 %v1971
        %v2010 = vunpack.c.l.b16 %v1972
        %v2011 = vunpack.c.l.b16 %v1973
        %v2012 = vunpack.c.l.b16 %v1974
        %v2013 = vunpack.c.l.b16 %v1975
        %v2014 = vunpack.c.l.b16 %v1976
        %v2015 = vpack.c.b16 %v2000, %v1999
        %v2016 = vpack.c.b16 %v2002, %v2001
        %v2017 = vpack.c.b16 %v2004, %v2003
        %v2018 = vpack.c.b16 %v2006, %v2005
        %v2019 = vpack.c.b16 %v2008, %v2007
        %v2020 = vpack.c.b16 %v2010, %v2009
        %v2021 = vpack.c.b16 %v2012, %v2011
        %v2022 = vpack.c.b16 %v2014, %v2013
        %2031 = vmatpush.bf16.msra.mxu0 %v2022
        %2032 = vmatpush.bf16.msra.mxu0 %v2021
        %2033 = vmatpush.bf16.msra.mxu0 %v2020
        %2034 = vmatpush.bf16.msra.mxu0 %v2019
        %2035 = vmatpush.bf16.msra.mxu0 %v2018
        %2036 = vmatpush.bf16.msra.mxu0 %v2017
        %2037 = vmatpush.bf16.msra.mxu0 %v2016
        %2038 = vmatpush.bf16.msra.mxu0 %v2015
        %2039 = vmatmul.bf16.gmra.mxu0 %v1832
        %v2040 = vpop.f32.mrf.mxu0
        %v2041 = vadd.f32 0.0, %v2040
        %v2042 = vpop.f32.mrf.mxu0
        %v2043 = vadd.f32 0.0, %v2042
        %2044 = vmatmul.bf16.gmra.mxu0 %v1833
        %v2045 = vpop.f32.mrf.mxu0
        %v2046 = vadd.f32 0.0, %v2045
        %v2047 = vpop.f32.mrf.mxu0
        %v2048 = vadd.f32 0.0, %v2047
        %2049 = vmatmul.bf16.gmra.mxu0 %v1834
        %v2050 = vpop.f32.mrf.mxu0
        %v2051 = vadd.f32 0.0, %v2050
        %v2052 = vpop.f32.mrf.mxu0
        %v2053 = vadd.f32 0.0, %v2052
        %2054 = vmatmul.bf16.gmra.mxu0 %v1835
        %v2055 = vpop.f32.mrf.mxu0
        %v2056 = vadd.f32 0.0, %v2055
        %v2057 = vpop.f32.mrf.mxu0
        %v2058 = vadd.f32 0.0, %v2057
        %2059 = vmatmul.bf16.gmra.mxu0 %v1836
        %v2060 = vpop.f32.mrf.mxu0
        %v2061 = vadd.f32 0.0, %v2060
        %v2062 = vpop.f32.mrf.mxu0
        %v2063 = vadd.f32 0.0, %v2062
        %2064 = vmatmul.bf16.gmra.mxu0 %v1837
        %v2065 = vpop.f32.mrf.mxu0
        %v2066 = vadd.f32 0.0, %v2065
        %v2067 = vpop.f32.mrf.mxu0
        %v2068 = vadd.f32 0.0, %v2067
        %2069 = vmatmul.bf16.gmra.mxu0 %v1838
        %v2070 = vpop.f32.mrf.mxu0
        %v2071 = vadd.f32 0.0, %v2070
        %v2072 = vpop.f32.mrf.mxu0
        %v2073 = vadd.f32 0.0, %v2072
        %2074 = vmatmul.bf16.gmra.mxu0 %v1981
        %v2075 = vpop.f32.mrf.mxu0
        %v2076 = vadd.f32 0.0, %v2075
        %v2077 = vpop.f32.mrf.mxu0
        %v2078 = vadd.f32 0.0, %v2077
        %2079 = vdwg.mxu0
        %v2080 = vadd.f32 %v1944, %v2041
        %v2081 = vadd.f32 %v1945, %v2043
        %v2082 = vadd.f32 %v1946, %v2046
        %v2083 = vadd.f32 %v1947, %v2048
        %v2084 = vadd.f32 %v1948, %v2051
        %v2085 = vadd.f32 %v1949, %v2053
        %v2086 = vadd.f32 %v1950, %v2056
        %v2087 = vadd.f32 %v1951, %v2058
        %v2088 = vadd.f32 %v1952, %v2061
        %v2089 = vadd.f32 %v1953, %v2063
        %v2090 = vadd.f32 %v1954, %v2066
        %v2091 = vadd.f32 %v1955, %v2068
        %v2092 = vadd.f32 %v1956, %v2071
        %v2093 = vadd.f32 %v1957, %v2073
        %v2094 = vadd.f32 %v1958, %v2076
        %v2095 = vadd.f32 %v1959, %v2078
        %s2096 = scalar_lea.vmem [#allocation3], 512
        %v2097 = vld [vmem:[%s2096] sm:$0xf]
        %v2098 = vld [vmem:[%s2096 + $0x4] sm:$0xf]
        %v2099 = vld [vmem:[%s2096 + $0x8] sm:$0xf]
        %v2100 = vld [vmem:[%s2096 + $0xc] sm:$0xf]
        %v2101 = vld [vmem:[%s2096 + $0x10] sm:$0xf]
        %v2102 = vld [vmem:[%s2096 + $0x14] sm:$0xf]
        %v2103 = vld [vmem:[%s2096 + $0x18] sm:$0xf]
        %v2104 = vld [vmem:[%s2096 + $0x1c] sm:$0xf]
        %v2105 = vld [vmem:[%s2096 + $0x20] sm:$0xf]
        %v2106 = vld [vmem:[%s2096 + $0x24] sm:$0xf]
        %v2107 = vld [vmem:[%s2096 + $0x28] sm:$0xf]
        %v2108 = vld [vmem:[%s2096 + $0x2c] sm:$0xf]
        %v2109 = vld [vmem:[%s2096 + $0x30] sm:$0xf]
        %v2110 = vld [vmem:[%s2096 + $0x34] sm:$0xf]
        %v2111 = vld [vmem:[%s2096 + $0x38] sm:$0xf]
        %v2112 = vld [vmem:[%s2096 + $0x3c] sm:$0xf]
        %v2115 = vunpack.c.l.b16 %v1780
        %v2116 = vunpack.c.l.b16 %v1781
        %v2117 = vpack.c.b16 %v2116, %v2115
        %v2135 = vunpack.c.l.b16 %v2097
        %v2136 = vunpack.c.l.b16 %v2098
        %v2137 = vunpack.c.l.b16 %v2099
        %v2138 = vunpack.c.l.b16 %v2100
        %v2139 = vunpack.c.l.b16 %v2101
        %v2140 = vunpack.c.l.b16 %v2102
        %v2141 = vunpack.c.l.b16 %v2103
        %v2142 = vunpack.c.l.b16 %v2104
        %v2143 = vunpack.c.l.b16 %v2105
        %v2144 = vunpack.c.l.b16 %v2106
        %v2145 = vunpack.c.l.b16 %v2107
        %v2146 = vunpack.c.l.b16 %v2108
        %v2147 = vunpack.c.l.b16 %v2109
        %v2148 = vunpack.c.l.b16 %v2110
        %v2149 = vunpack.c.l.b16 %v2111
        %v2150 = vunpack.c.l.b16 %v2112
        %v2151 = vpack.c.b16 %v2136, %v2135
        %v2152 = vpack.c.b16 %v2138, %v2137
        %v2153 = vpack.c.b16 %v2140, %v2139
        %v2154 = vpack.c.b16 %v2142, %v2141
        %v2155 = vpack.c.b16 %v2144, %v2143
        %v2156 = vpack.c.b16 %v2146, %v2145
        %v2157 = vpack.c.b16 %v2148, %v2147
        %v2158 = vpack.c.b16 %v2150, %v2149
        %2167 = vmatpush.bf16.msra.mxu0 %v2158
        %2168 = vmatpush.bf16.msra.mxu0 %v2157
        %2169 = vmatpush.bf16.msra.mxu0 %v2156
        %2170 = vmatpush.bf16.msra.mxu0 %v2155
        %2171 = vmatpush.bf16.msra.mxu0 %v2154
        %2172 = vmatpush.bf16.msra.mxu0 %v2153
        %2173 = vmatpush.bf16.msra.mxu0 %v2152
        %2174 = vmatpush.bf16.msra.mxu0 %v2151
        %2175 = vmatmul.bf16.gmra.mxu0 %v1833
        %v2176 = vpop.f32.mrf.mxu0
        %v2177 = vadd.f32 0.0, %v2176
        %v2178 = vpop.f32.mrf.mxu0
        %v2179 = vadd.f32 0.0, %v2178
        %2180 = vmatmul.bf16.gmra.mxu0 %v1834
        %v2181 = vpop.f32.mrf.mxu0
        %v2182 = vadd.f32 0.0, %v2181
        %v2183 = vpop.f32.mrf.mxu0
        %v2184 = vadd.f32 0.0, %v2183
        %2185 = vmatmul.bf16.gmra.mxu0 %v1835
        %v2186 = vpop.f32.mrf.mxu0
        %v2187 = vadd.f32 0.0, %v2186
        %v2188 = vpop.f32.mrf.mxu0
        %v2189 = vadd.f32 0.0, %v2188
        %2190 = vmatmul.bf16.gmra.mxu0 %v1836
        %v2191 = vpop.f32.mrf.mxu0
        %v2192 = vadd.f32 0.0, %v2191
        %v2193 = vpop.f32.mrf.mxu0
        %v2194 = vadd.f32 0.0, %v2193
        %2195 = vmatmul.bf16.gmra.mxu0 %v1837
        %v2196 = vpop.f32.mrf.mxu0
        %v2197 = vadd.f32 0.0, %v2196
        %v2198 = vpop.f32.mrf.mxu0
        %v2199 = vadd.f32 0.0, %v2198
        %2200 = vmatmul.bf16.gmra.mxu0 %v1838
        %v2201 = vpop.f32.mrf.mxu0
        %v2202 = vadd.f32 0.0, %v2201
        %v2203 = vpop.f32.mrf.mxu0
        %v2204 = vadd.f32 0.0, %v2203
        %2205 = vmatmul.bf16.gmra.mxu0 %v1981
        %v2206 = vpop.f32.mrf.mxu0
        %v2207 = vadd.f32 0.0, %v2206
        %v2208 = vpop.f32.mrf.mxu0
        %v2209 = vadd.f32 0.0, %v2208
        %2210 = vmatmul.bf16.gmra.mxu0 %v2117
        %v2211 = vpop.f32.mrf.mxu0
        %v2212 = vadd.f32 0.0, %v2211
        %v2213 = vpop.f32.mrf.mxu0
        %v2214 = vadd.f32 0.0, %v2213
        %2215 = vdwg.mxu0
        %v2216 = vadd.f32 %v2080, %v2177
        %v2217 = vadd.f32 %v2081, %v2179
        %v2218 = vadd.f32 %v2082, %v2182
        %v2219 = vadd.f32 %v2083, %v2184
        %v2220 = vadd.f32 %v2084, %v2187
        %v2221 = vadd.f32 %v2085, %v2189
        %v2222 = vadd.f32 %v2086, %v2192
        %v2223 = vadd.f32 %v2087, %v2194
        %v2224 = vadd.f32 %v2088, %v2197
        %v2225 = vadd.f32 %v2089, %v2199
        %v2226 = vadd.f32 %v2090, %v2202
        %v2227 = vadd.f32 %v2091, %v2204
        %v2228 = vadd.f32 %v2092, %v2207
        %v2229 = vadd.f32 %v2093, %v2209
        %v2230 = vadd.f32 %v2094, %v2212
        %v2231 = vadd.f32 %v2095, %v2214
        %v2232 = vld [vmem:[#allocation5] sm:$0x1]
        %v2234 = vperm.slane %v2232, 0
        %v2236 = vadd.f32 %v2216, %v2234
        %v2237 = vadd.f32 %v2217, %v2234
        %v2238 = vadd.f32 %v2218, %v2234
        %v2239 = vadd.f32 %v2219, %v2234
        %v2240 = vadd.f32 %v2220, %v2234
        %v2241 = vadd.f32 %v2221, %v2234
        %v2242 = vadd.f32 %v2222, %v2234
        %v2243 = vadd.f32 %v2223, %v2234
        %v2244 = vadd.f32 %v2224, %v2234
        %v2245 = vadd.f32 %v2225, %v2234
        %v2246 = vadd.f32 %v2226, %v2234
        %v2247 = vadd.f32 %v2227, %v2234
        %v2248 = vadd.f32 %v2228, %v2234
        %v2249 = vadd.f32 %v2229, %v2234
        %v2250 = vadd.f32 %v2230, %v2234
        %v2251 = vadd.f32 %v2231, %v2234
        %v2252 = vmax.f32 %v2236, 0.0
        %v2253 = vmax.f32 %v2237, 0.0
        %v2254 = vmax.f32 %v2238, 0.0
        %v2255 = vmax.f32 %v2239, 0.0
        %v2256 = vmax.f32 %v2240, 0.0
        %v2257 = vmax.f32 %v2241, 0.0
        %v2258 = vmax.f32 %v2242, 0.0
        %v2259 = vmax.f32 %v2243, 0.0
        %v2260 = vmax.f32 %v2244, 0.0
        %v2261 = vmax.f32 %v2245, 0.0
        %v2262 = vmax.f32 %v2246, 0.0
        %v2263 = vmax.f32 %v2247, 0.0
        %v2264 = vmax.f32 %v2248, 0.0
        %v2265 = vmax.f32 %v2249, 0.0
        %v2266 = vmax.f32 %v2250, 0.0
        %v2267 = vmax.f32 %v2251, 0.0
        %2268 = vst [vmem:[%s734] sm:$0xff] %v2252
        %2269 = vst [vmem:[%s734 + $0x8] sm:$0xff] %v2253
        %2270 = vst [vmem:[%s734 + $0x10] sm:$0xff] %v2254
        %2271 = vst [vmem:[%s734 + $0x18] sm:$0xff] %v2255
        %2272 = vst [vmem:[%s734 + $0x20] sm:$0xff] %v2256
        %2273 = vst [vmem:[%s734 + $0x28] sm:$0xff] %v2257
        %2274 = vst [vmem:[%s734 + $0x30] sm:$0xff] %v2258
        %2275 = vst [vmem:[%s734 + $0x38] sm:$0xff] %v2259
        %2276 = vst [vmem:[%s734 + $0x40] sm:$0xff] %v2260
        %2277 = vst [vmem:[%s734 + $0x48] sm:$0xff] %v2261
        %2278 = vst [vmem:[%s734 + $0x50] sm:$0xff] %v2262
        %2279 = vst [vmem:[%s734 + $0x58] sm:$0xff] %v2263
        %2280 = vst [vmem:[%s734 + $0x60] sm:$0xff] %v2264
        %2281 = vst [vmem:[%s734 + $0x68] sm:$0xff] %v2265
        %2282 = vst [vmem:[%s734 + $0x70] sm:$0xff] %v2266
        %2283 = vst [vmem:[%s734 + $0x78] sm:$0xff] %v2267
        %2284 = vst [vmem:[%s734] sm:$0x1] 0.0
        %2285 = vst [vmem:[%s734 + $0x10] sm:$0x1] 0.0
        %2286 = vst [vmem:[%s734 + $0x20] sm:$0x1] 0.0
        %2287 = vst [vmem:[%s734 + $0x30] sm:$0x1] 0.0
        %2288 = vst [vmem:[%s734 + $0x40] sm:$0x1] 0.0
        %2289 = vst [vmem:[%s734 + $0x50] sm:$0x1] 0.0
        %2290 = vst [vmem:[%s734 + $0x60] sm:$0x1] 0.0
        %2291 = vst [vmem:[%s734 + $0x70] sm:$0x1] 0.0
        %2292 = vst [vmem:[%s734 + $0x9] sm:$0x1] 0.0
        %2293 = vst [vmem:[%s734 + $0x19] sm:$0x1] 0.0
        %2294 = vst [vmem:[%s734 + $0x29] sm:$0x1] 0.0
        %2295 = vst [vmem:[%s734 + $0x39] sm:$0x1] 0.0
        %2296 = vst [vmem:[%s734 + $0x49] sm:$0x1] 0.0
        %2297 = vst [vmem:[%s734 + $0x59] sm:$0x1] 0.0
        %2298 = vst [vmem:[%s734 + $0x69] sm:$0x1] 0.0
        %2299 = vst [vmem:[%s734 + $0x79] sm:$0x1] 0.0
        %v2300 = vld [vmem:[#allocation2] sm:$0xff]
        %v2301 = vld [vmem:[#allocation2 + $0x8] sm:$0xff]
        %v2302 = vld [vmem:[#allocation2 + $0x10] sm:$0xff]
        %v2303 = vld [vmem:[#allocation2 + $0x18] sm:$0xff]
        %v2304 = vld [vmem:[#allocation2 + $0x20] sm:$0xff]
        %v2305 = vld [vmem:[#allocation2 + $0x28] sm:$0xff]
        %v2306 = vld [vmem:[#allocation2 + $0x30] sm:$0xff]
        %v2307 = vld [vmem:[#allocation2 + $0x38] sm:$0xff]
        %v2308 = vld [vmem:[#allocation2 + $0x40] sm:$0xff]
        %v2309 = vld [vmem:[#allocation2 + $0x48] sm:$0xff]
        %v2310 = vld [vmem:[#allocation2 + $0x50] sm:$0xff]
        %v2311 = vld [vmem:[#allocation2 + $0x58] sm:$0xff]
        %v2312 = vld [vmem:[#allocation2 + $0x60] sm:$0xff]
        %v2313 = vld [vmem:[#allocation2 + $0x68] sm:$0xff]
        %v2314 = vld [vmem:[#allocation2 + $0x70] sm:$0xff]
        %v2315 = vld [vmem:[#allocation2 + $0x78] sm:$0xff]
        %v2316 = vld [vmem:[#allocation2 + $0x80] sm:$0xff]
        %v2317 = vld [vmem:[#allocation2 + $0x88] sm:$0xff]
        %v2318 = vld [vmem:[#allocation2 + $0x90] sm:$0xff]
        %v2319 = vld [vmem:[#allocation2 + $0x98] sm:$0xff]
        %v2320 = vrot.slane %v2300, 7
        %v2321 = vrot.slane %v2301, 7
        %v2322 = vrot.slane %v2302, 7
        %v2323 = vrot.slane %v2303, 7
        %v2324 = vrot.slane %v2304, 7
        %v2325 = vrot.slane %v2305, 7
        %v2326 = vrot.slane %v2306, 7
        %v2327 = vrot.slane %v2307, 7
        %v2328 = vrot.slane %v2308, 7
        %v2329 = vrot.slane %v2309, 7
        %v2330 = vrot.slane %v2310, 7
        %v2331 = vrot.slane %v2311, 7
        %v2332 = vrot.slane %v2312, 7
        %v2333 = vrot.slane %v2313, 7
        %v2334 = vrot.slane %v2314, 7
        %v2335 = vrot.slane %v2315, 7
        %v2336 = vrot.slane %v2316, 7
        %v2337 = vrot.slane %v2317, 7
        %v2338 = vrot.slane %v2318, 7
        %v2339 = vrot.slane %v2319, 7
        %v2340 = vsel %vm793, %v2338, %v2339
        %v2341 = vsel %vm793, %v2337, %v2338
        %v2342 = vsel %vm793, %v2336, %v2337
        %v2343 = vsel %vm793, %v2335, %v2336
        %v2344 = vsel %vm793, %v2334, %v2335
        %v2345 = vsel %vm793, %v2333, %v2334
        %v2346 = vsel %vm793, %v2332, %v2333
        %v2347 = vsel %vm793, %v2331, %v2332
        %v2348 = vsel %vm793, %v2330, %v2331
        %v2349 = vsel %vm793, %v2329, %v2330
        %v2350 = vsel %vm793, %v2328, %v2329
        %v2351 = vsel %vm793, %v2327, %v2328
        %v2352 = vsel %vm793, %v2326, %v2327
        %v2353 = vsel %vm793, %v2325, %v2326
        %v2354 = vsel %vm793, %v2324, %v2325
        %v2355 = vsel %vm793, %v2323, %v2324
        %v2356 = vsel %vm793, %v2322, %v2323
        %v2357 = vsel %vm793, %v2321, %v2322
        %v2358 = vsel %vm793, %v2320, %v2321
        %v2359 = vsel %vm793, %v2339, %v2320
        %v2360 = vpack.c.bf16 %v2359, %v2359
        %v2361 = vpack.c.bf16 %v2358, %v2358
        %v2362 = vpack.c.bf16 %v2357, %v2357
        %v2363 = vpack.c.bf16 %v2356, %v2356
        %v2364 = vpack.c.bf16 %v2355, %v2355
        %v2365 = vpack.c.bf16 %v2354, %v2354
        %v2366 = vpack.c.bf16 %v2353, %v2353
        %v2367 = vpack.c.bf16 %v2352, %v2352
        %v2368 = vpack.c.bf16 %v2351, %v2351
        %v2369 = vpack.c.bf16 %v2350, %v2350
        %v2370 = vpack.c.bf16 %v2349, %v2349
        %v2371 = vpack.c.bf16 %v2348, %v2348
        %v2372 = vpack.c.bf16 %v2347, %v2347
        %v2373 = vpack.c.bf16 %v2346, %v2346
        %v2374 = vpack.c.bf16 %v2345, %v2345
        %v2375 = vpack.c.bf16 %v2344, %v2344
        %v2376 = vpack.c.bf16 %v2343, %v2343
        %v2377 = vpack.c.bf16 %v2342, %v2342
        %v2378 = vpack.c.bf16 %v2341, %v2341
        %v2379 = vpack.c.bf16 %v2340, %v2340
        %v2380 = vld [vmem:[#allocation7] sm:$0xf]
        %v2381 = vld [vmem:[#allocation7 + $0x4] sm:$0xf]
        %v2382 = vld [vmem:[#allocation7 + $0x8] sm:$0xf]
        %v2383 = vld [vmem:[#allocation7 + $0xc] sm:$0xf]
        %v2384 = vld [vmem:[#allocation7 + $0x10] sm:$0xf]
        %v2385 = vld [vmem:[#allocation7 + $0x14] sm:$0xf]
        %v2386 = vld [vmem:[#allocation7 + $0x18] sm:$0xf]
        %v2387 = vld [vmem:[#allocation7 + $0x1c] sm:$0xf]
        %v2388 = vld [vmem:[#allocation7 + $0x20] sm:$0xf]
        %v2389 = vld [vmem:[#allocation7 + $0x24] sm:$0xf]
        %v2390 = vld [vmem:[#allocation7 + $0x28] sm:$0xf]
        %v2391 = vld [vmem:[#allocation7 + $0x2c] sm:$0xf]
        %v2392 = vld [vmem:[#allocation7 + $0x30] sm:$0xf]
        %v2393 = vld [vmem:[#allocation7 + $0x34] sm:$0xf]
        %v2394 = vld [vmem:[#allocation7 + $0x38] sm:$0xf]
        %v2395 = vld [vmem:[#allocation7 + $0x3c] sm:$0xf]
        %s2396 = scalar_lea.vmem [#allocation7], 192
        %v2397 = vld [vmem:[%s2396] sm:$0xf]
        %v2398 = vld [vmem:[%s2396 + $0x4] sm:$0xf]
        %v2399 = vld [vmem:[%s2396 + $0x8] sm:$0xf]
        %v2400 = vld [vmem:[%s2396 + $0xc] sm:$0xf]
        %v2401 = vld [vmem:[%s2396 + $0x10] sm:$0xf]
        %v2402 = vld [vmem:[%s2396 + $0x14] sm:$0xf]
        %v2403 = vld [vmem:[%s2396 + $0x18] sm:$0xf]
        %v2404 = vld [vmem:[%s2396 + $0x1c] sm:$0xf]
        %v2405 = vld [vmem:[%s2396 + $0x20] sm:$0xf]
        %v2406 = vld [vmem:[%s2396 + $0x24] sm:$0xf]
        %v2407 = vld [vmem:[%s2396 + $0x28] sm:$0xf]
        %v2408 = vld [vmem:[%s2396 + $0x2c] sm:$0xf]
        %v2409 = vld [vmem:[%s2396 + $0x30] sm:$0xf]
        %v2410 = vld [vmem:[%s2396 + $0x34] sm:$0xf]
        %v2411 = vld [vmem:[%s2396 + $0x38] sm:$0xf]
        %v2412 = vld [vmem:[%s2396 + $0x3c] sm:$0xf]
        %v2429 = vunpack.c.l.b16 %v2362
        %v2430 = vunpack.c.l.b16 %v2363
        %v2431 = vunpack.c.l.b16 %v2364
        %v2432 = vunpack.c.l.b16 %v2365
        %v2433 = vunpack.c.l.b16 %v2366
        %v2434 = vunpack.c.l.b16 %v2367
        %v2435 = vunpack.c.l.b16 %v2368
        %v2436 = vunpack.c.l.b16 %v2369
        %v2437 = vunpack.c.l.b16 %v2370
        %v2438 = vunpack.c.l.b16 %v2371
        %v2439 = vunpack.c.l.b16 %v2372
        %v2440 = vunpack.c.l.b16 %v2373
        %v2441 = vunpack.c.l.b16 %v2374
        %v2442 = vunpack.c.l.b16 %v2375
        %v2443 = vunpack.c.l.b16 %v2376
        %v2444 = vunpack.c.l.b16 %v2377
        %v2445 = vpack.c.b16 %v2430, %v2429
        %v2446 = vpack.c.b16 %v2432, %v2431
        %v2447 = vpack.c.b16 %v2434, %v2433
        %v2448 = vpack.c.b16 %v2436, %v2435
        %v2449 = vpack.c.b16 %v2438, %v2437
        %v2450 = vpack.c.b16 %v2440, %v2439
        %v2451 = vpack.c.b16 %v2442, %v2441
        %v2452 = vpack.c.b16 %v2444, %v2443
        %v2477 = vunpack.c.l.b16 %v2397
        %v2478 = vunpack.c.l.b16 %v2398
        %v2479 = vunpack.c.l.b16 %v2399
        %v2480 = vunpack.c.l.b16 %v2400
        %v2481 = vunpack.c.l.b16 %v2401
        %v2482 = vunpack.c.l.b16 %v2402
        %v2483 = vunpack.c.l.b16 %v2403
        %v2484 = vunpack.c.l.b16 %v2404
        %v2485 = vunpack.c.l.b16 %v2405
        %v2486 = vunpack.c.l.b16 %v2406
        %v2487 = vunpack.c.l.b16 %v2407
        %v2488 = vunpack.c.l.b16 %v2408
        %v2489 = vunpack.c.l.b16 %v2409
        %v2490 = vunpack.c.l.b16 %v2410
        %v2491 = vunpack.c.l.b16 %v2411
        %v2492 = vunpack.c.l.b16 %v2412
        %v2493 = vpack.c.b16 %v2478, %v2477
        %v2494 = vpack.c.b16 %v2480, %v2479
        %v2495 = vpack.c.b16 %v2482, %v2481
        %v2496 = vpack.c.b16 %v2484, %v2483
        %v2497 = vpack.c.b16 %v2486, %v2485
        %v2498 = vpack.c.b16 %v2488, %v2487
        %v2499 = vpack.c.b16 %v2490, %v2489
        %v2500 = vpack.c.b16 %v2492, %v2491
        %2509 = vmatpush.bf16.msra.mxu0 %v2500
        %2510 = vmatpush.bf16.msra.mxu0 %v2499
        %2511 = vmatpush.bf16.msra.mxu0 %v2498
        %2512 = vmatpush.bf16.msra.mxu0 %v2497
        %2513 = vmatpush.bf16.msra.mxu0 %v2496
        %2514 = vmatpush.bf16.msra.mxu0 %v2495
        %2515 = vmatpush.bf16.msra.mxu0 %v2494
        %2516 = vmatpush.bf16.msra.mxu0 %v2493
        %2517 = vmatmul.bf16.gmra.mxu0 %v2445
        %v2518 = vpop.f32.mrf.mxu0
        %v2519 = vadd.f32 0.0, %v2518
        %v2520 = vpop.f32.mrf.mxu0
        %v2521 = vadd.f32 0.0, %v2520
        %2522 = vmatmul.bf16.gmra.mxu0 %v2446
        %v2523 = vpop.f32.mrf.mxu0
        %v2524 = vadd.f32 0.0, %v2523
        %v2525 = vpop.f32.mrf.mxu0
        %v2526 = vadd.f32 0.0, %v2525
        %2527 = vmatmul.bf16.gmra.mxu0 %v2447
        %v2528 = vpop.f32.mrf.mxu0
        %v2529 = vadd.f32 0.0, %v2528
        %v2530 = vpop.f32.mrf.mxu0
        %v2531 = vadd.f32 0.0, %v2530
        %2532 = vmatmul.bf16.gmra.mxu0 %v2448
        %v2533 = vpop.f32.mrf.mxu0
        %v2534 = vadd.f32 0.0, %v2533
        %v2535 = vpop.f32.mrf.mxu0
        %v2536 = vadd.f32 0.0, %v2535
        %2537 = vmatmul.bf16.gmra.mxu0 %v2449
        %v2538 = vpop.f32.mrf.mxu0
        %v2539 = vadd.f32 0.0, %v2538
        %v2540 = vpop.f32.mrf.mxu0
        %v2541 = vadd.f32 0.0, %v2540
        %2542 = vmatmul.bf16.gmra.mxu0 %v2450
        %v2543 = vpop.f32.mrf.mxu0
        %v2544 = vadd.f32 0.0, %v2543
        %v2545 = vpop.f32.mrf.mxu0
        %v2546 = vadd.f32 0.0, %v2545
        %2547 = vmatmul.bf16.gmra.mxu0 %v2451
        %v2548 = vpop.f32.mrf.mxu0
        %v2549 = vadd.f32 0.0, %v2548
        %v2550 = vpop.f32.mrf.mxu0
        %v2551 = vadd.f32 0.0, %v2550
        %2552 = vmatmul.bf16.gmra.mxu0 %v2452
        %v2553 = vpop.f32.mrf.mxu0
        %v2554 = vadd.f32 0.0, %v2553
        %v2555 = vpop.f32.mrf.mxu0
        %v2556 = vadd.f32 0.0, %v2555
        %2557 = vdwg.mxu0
        %v2560 = vunpack.c.l.b16 %v2360
        %v2561 = vunpack.c.l.b16 %v2361
        %v2562 = vpack.c.b16 %v2561, %v2560
        %v2580 = vunpack.c.l.b16 %v2380
        %v2581 = vunpack.c.l.b16 %v2381
        %v2582 = vunpack.c.l.b16 %v2382
        %v2583 = vunpack.c.l.b16 %v2383
        %v2584 = vunpack.c.l.b16 %v2384
        %v2585 = vunpack.c.l.b16 %v2385
        %v2586 = vunpack.c.l.b16 %v2386
        %v2587 = vunpack.c.l.b16 %v2387
        %v2588 = vunpack.c.l.b16 %v2388
        %v2589 = vunpack.c.l.b16 %v2389
        %v2590 = vunpack.c.l.b16 %v2390
        %v2591 = vunpack.c.l.b16 %v2391
        %v2592 = vunpack.c.l.b16 %v2392
        %v2593 = vunpack.c.l.b16 %v2393
        %v2594 = vunpack.c.l.b16 %v2394
        %v2595 = vunpack.c.l.b16 %v2395
        %v2596 = vpack.c.b16 %v2581, %v2580
        %v2597 = vpack.c.b16 %v2583, %v2582
        %v2598 = vpack.c.b16 %v2585, %v2584
        %v2599 = vpack.c.b16 %v2587, %v2586
        %v2600 = vpack.c.b16 %v2589, %v2588
        %v2601 = vpack.c.b16 %v2591, %v2590
        %v2602 = vpack.c.b16 %v2593, %v2592
        %v2603 = vpack.c.b16 %v2595, %v2594
        %2612 = vmatpush.bf16.msra.mxu0 %v2603
        %2613 = vmatpush.bf16.msra.mxu0 %v2602
        %2614 = vmatpush.bf16.msra.mxu0 %v2601
        %2615 = vmatpush.bf16.msra.mxu0 %v2600
        %2616 = vmatpush.bf16.msra.mxu0 %v2599
        %2617 = vmatpush.bf16.msra.mxu0 %v2598
        %2618 = vmatpush.bf16.msra.mxu0 %v2597
        %2619 = vmatpush.bf16.msra.mxu0 %v2596
        %2620 = vmatmul.bf16.gmra.mxu0 %v2562
        %v2621 = vpop.f32.mrf.mxu0
        %v2622 = vadd.f32 %v2519, %v2621
        %v2623 = vpop.f32.mrf.mxu0
        %v2624 = vadd.f32 %v2521, %v2623
        %2625 = vmatmul.bf16.gmra.mxu0 %v2445
        %v2626 = vpop.f32.mrf.mxu0
        %v2627 = vadd.f32 %v2524, %v2626
        %v2628 = vpop.f32.mrf.mxu0
        %v2629 = vadd.f32 %v2526, %v2628
        %2630 = vmatmul.bf16.gmra.mxu0 %v2446
        %v2631 = vpop.f32.mrf.mxu0
        %v2632 = vadd.f32 %v2529, %v2631
        %v2633 = vpop.f32.mrf.mxu0
        %v2634 = vadd.f32 %v2531, %v2633
        %2635 = vmatmul.bf16.gmra.mxu0 %v2447
        %v2636 = vpop.f32.mrf.mxu0
        %v2637 = vadd.f32 %v2534, %v2636
        %v2638 = vpop.f32.mrf.mxu0
        %v2639 = vadd.f32 %v2536, %v2638
        %2640 = vmatmul.bf16.gmra.mxu0 %v2448
        %v2641 = vpop.f32.mrf.mxu0
        %v2642 = vadd.f32 %v2539, %v2641
        %v2643 = vpop.f32.mrf.mxu0
        %v2644 = vadd.f32 %v2541, %v2643
        %2645 = vmatmul.bf16.gmra.mxu0 %v2449
        %v2646 = vpop.f32.mrf.mxu0
        %v2647 = vadd.f32 %v2544, %v2646
        %v2648 = vpop.f32.mrf.mxu0
        %v2649 = vadd.f32 %v2546, %v2648
        %2650 = vmatmul.bf16.gmra.mxu0 %v2450
        %v2651 = vpop.f32.mrf.mxu0
        %v2652 = vadd.f32 %v2549, %v2651
        %v2653 = vpop.f32.mrf.mxu0
        %v2654 = vadd.f32 %v2551, %v2653
        %2655 = vmatmul.bf16.gmra.mxu0 %v2451
        %v2656 = vpop.f32.mrf.mxu0
        %v2657 = vadd.f32 %v2554, %v2656
        %v2658 = vpop.f32.mrf.mxu0
        %v2659 = vadd.f32 %v2556, %v2658
        %2660 = vdwg.mxu0
        %s2661 = scalar_lea.vmem [#allocation7], 384
        %v2662 = vld [vmem:[%s2661] sm:$0xf]
        %v2663 = vld [vmem:[%s2661 + $0x4] sm:$0xf]
        %v2664 = vld [vmem:[%s2661 + $0x8] sm:$0xf]
        %v2665 = vld [vmem:[%s2661 + $0xc] sm:$0xf]
        %v2666 = vld [vmem:[%s2661 + $0x10] sm:$0xf]
        %v2667 = vld [vmem:[%s2661 + $0x14] sm:$0xf]
        %v2668 = vld [vmem:[%s2661 + $0x18] sm:$0xf]
        %v2669 = vld [vmem:[%s2661 + $0x1c] sm:$0xf]
        %v2670 = vld [vmem:[%s2661 + $0x20] sm:$0xf]
        %v2671 = vld [vmem:[%s2661 + $0x24] sm:$0xf]
        %v2672 = vld [vmem:[%s2661 + $0x28] sm:$0xf]
        %v2673 = vld [vmem:[%s2661 + $0x2c] sm:$0xf]
        %v2674 = vld [vmem:[%s2661 + $0x30] sm:$0xf]
        %v2675 = vld [vmem:[%s2661 + $0x34] sm:$0xf]
        %v2676 = vld [vmem:[%s2661 + $0x38] sm:$0xf]
        %v2677 = vld [vmem:[%s2661 + $0x3c] sm:$0xf]
        %v2680 = vunpack.c.l.b16 %v2378
        %v2681 = vunpack.c.l.b16 %v2379
        %v2682 = vpack.c.b16 %v2681, %v2680
        %v2700 = vunpack.c.l.b16 %v2662
        %v2701 = vunpack.c.l.b16 %v2663
        %v2702 = vunpack.c.l.b16 %v2664
        %v2703 = vunpack.c.l.b16 %v2665
        %v2704 = vunpack.c.l.b16 %v2666
        %v2705 = vunpack.c.l.b16 %v2667
        %v2706 = vunpack.c.l.b16 %v2668
        %v2707 = vunpack.c.l.b16 %v2669
        %v2708 = vunpack.c.l.b16 %v2670
        %v2709 = vunpack.c.l.b16 %v2671
        %v2710 = vunpack.c.l.b16 %v2672
        %v2711 = vunpack.c.l.b16 %v2673
        %v2712 = vunpack.c.l.b16 %v2674
        %v2713 = vunpack.c.l.b16 %v2675
        %v2714 = vunpack.c.l.b16 %v2676
        %v2715 = vunpack.c.l.b16 %v2677
        %v2716 = vpack.c.b16 %v2701, %v2700
        %v2717 = vpack.c.b16 %v2703, %v2702
        %v2718 = vpack.c.b16 %v2705, %v2704
        %v2719 = vpack.c.b16 %v2707, %v2706
        %v2720 = vpack.c.b16 %v2709, %v2708
        %v2721 = vpack.c.b16 %v2711, %v2710
        %v2722 = vpack.c.b16 %v2713, %v2712
        %v2723 = vpack.c.b16 %v2715, %v2714
        %2732 = vmatpush.bf16.msra.mxu0 %v2723
        %2733 = vmatpush.bf16.msra.mxu0 %v2722
        %2734 = vmatpush.bf16.msra.mxu0 %v2721
        %2735 = vmatpush.bf16.msra.mxu0 %v2720
        %2736 = vmatpush.bf16.msra.mxu0 %v2719
        %2737 = vmatpush.bf16.msra.mxu0 %v2718
        %2738 = vmatpush.bf16.msra.mxu0 %v2717
        %2739 = vmatpush.bf16.msra.mxu0 %v2716
        %2740 = vmatmul.bf16.gmra.mxu0 %v2446
        %v2741 = vpop.f32.mrf.mxu0
        %v2742 = vadd.f32 0.0, %v2741
        %v2743 = vpop.f32.mrf.mxu0
        %v2744 = vadd.f32 0.0, %v2743
        %2745 = vmatmul.bf16.gmra.mxu0 %v2447
        %v2746 = vpop.f32.mrf.mxu0
        %v2747 = vadd.f32 0.0, %v2746
        %v2748 = vpop.f32.mrf.mxu0
        %v2749 = vadd.f32 0.0, %v2748
        %2750 = vmatmul.bf16.gmra.mxu0 %v2448
        %v2751 = vpop.f32.mrf.mxu0
        %v2752 = vadd.f32 0.0, %v2751
        %v2753 = vpop.f32.mrf.mxu0
        %v2754 = vadd.f32 0.0, %v2753
        %2755 = vmatmul.bf16.gmra.mxu0 %v2449
        %v2756 = vpop.f32.mrf.mxu0
        %v2757 = vadd.f32 0.0, %v2756
        %v2758 = vpop.f32.mrf.mxu0
        %v2759 = vadd.f32 0.0, %v2758
        %2760 = vmatmul.bf16.gmra.mxu0 %v2450
        %v2761 = vpop.f32.mrf.mxu0
        %v2762 = vadd.f32 0.0, %v2761
        %v2763 = vpop.f32.mrf.mxu0
        %v2764 = vadd.f32 0.0, %v2763
        %2765 = vmatmul.bf16.gmra.mxu0 %v2451
        %v2766 = vpop.f32.mrf.mxu0
        %v2767 = vadd.f32 0.0, %v2766
        %v2768 = vpop.f32.mrf.mxu0
        %v2769 = vadd.f32 0.0, %v2768
        %2770 = vmatmul.bf16.gmra.mxu0 %v2452
        %v2771 = vpop.f32.mrf.mxu0
        %v2772 = vadd.f32 0.0, %v2771
        %v2773 = vpop.f32.mrf.mxu0
        %v2774 = vadd.f32 0.0, %v2773
        %2775 = vmatmul.bf16.gmra.mxu0 %v2682
        %v2776 = vpop.f32.mrf.mxu0
        %v2777 = vadd.f32 0.0, %v2776
        %v2778 = vpop.f32.mrf.mxu0
        %v2779 = vadd.f32 0.0, %v2778
        %2780 = vdwg.mxu0
        %v2781 = vadd.f32 %v2622, %v2742
        %v2782 = vadd.f32 %v2624, %v2744
        %v2783 = vadd.f32 %v2627, %v2747
        %v2784 = vadd.f32 %v2629, %v2749
        %v2785 = vadd.f32 %v2632, %v2752
        %v2786 = vadd.f32 %v2634, %v2754
        %v2787 = vadd.f32 %v2637, %v2757
        %v2788 = vadd.f32 %v2639, %v2759
        %v2789 = vadd.f32 %v2642, %v2762
        %v2790 = vadd.f32 %v2644, %v2764
        %v2791 = vadd.f32 %v2647, %v2767
        %v2792 = vadd.f32 %v2649, %v2769
        %v2793 = vadd.f32 %v2652, %v2772
        %v2794 = vadd.f32 %v2654, %v2774
        %v2795 = vadd.f32 %v2657, %v2777
        %v2796 = vadd.f32 %v2659, %v2779
        %v2797 = vpack.c.bf16 %v2300, %v2300
        %v2798 = vpack.c.bf16 %v2301, %v2301
        %v2799 = vpack.c.bf16 %v2302, %v2302
        %v2800 = vpack.c.bf16 %v2303, %v2303
        %v2801 = vpack.c.bf16 %v2304, %v2304
        %v2802 = vpack.c.bf16 %v2305, %v2305
        %v2803 = vpack.c.bf16 %v2306, %v2306
        %v2804 = vpack.c.bf16 %v2307, %v2307
        %v2805 = vpack.c.bf16 %v2308, %v2308
        %v2806 = vpack.c.bf16 %v2309, %v2309
        %v2807 = vpack.c.bf16 %v2310, %v2310
        %v2808 = vpack.c.bf16 %v2311, %v2311
        %v2809 = vpack.c.bf16 %v2312, %v2312
        %v2810 = vpack.c.bf16 %v2313, %v2313
        %v2811 = vpack.c.bf16 %v2314, %v2314
        %v2812 = vpack.c.bf16 %v2315, %v2315
        %v2813 = vpack.c.bf16 %v2316, %v2316
        %v2814 = vpack.c.bf16 %v2317, %v2317
        %v2815 = vpack.c.bf16 %v2318, %v2318
        %v2816 = vpack.c.bf16 %v2319, %v2319
        %s2817 = scalar_lea.vmem [#allocation7], 64
        %v2818 = vld [vmem:[%s2817] sm:$0xf]
        %v2819 = vld [vmem:[%s2817 + $0x4] sm:$0xf]
        %v2820 = vld [vmem:[%s2817 + $0x8] sm:$0xf]
        %v2821 = vld [vmem:[%s2817 + $0xc] sm:$0xf]
        %v2822 = vld [vmem:[%s2817 + $0x10] sm:$0xf]
        %v2823 = vld [vmem:[%s2817 + $0x14] sm:$0xf]
        %v2824 = vld [vmem:[%s2817 + $0x18] sm:$0xf]
        %v2825 = vld [vmem:[%s2817 + $0x1c] sm:$0xf]
        %v2826 = vld [vmem:[%s2817 + $0x20] sm:$0xf]
        %v2827 = vld [vmem:[%s2817 + $0x24] sm:$0xf]
        %v2828 = vld [vmem:[%s2817 + $0x28] sm:$0xf]
        %v2829 = vld [vmem:[%s2817 + $0x2c] sm:$0xf]
        %v2830 = vld [vmem:[%s2817 + $0x30] sm:$0xf]
        %v2831 = vld [vmem:[%s2817 + $0x34] sm:$0xf]
        %v2832 = vld [vmem:[%s2817 + $0x38] sm:$0xf]
        %v2833 = vld [vmem:[%s2817 + $0x3c] sm:$0xf]
        %v2850 = vunpack.c.l.b16 %v2797
        %v2851 = vunpack.c.l.b16 %v2798
        %v2852 = vunpack.c.l.b16 %v2799
        %v2853 = vunpack.c.l.b16 %v2800
        %v2854 = vunpack.c.l.b16 %v2801
        %v2855 = vunpack.c.l.b16 %v2802
        %v2856 = vunpack.c.l.b16 %v2803
        %v2857 = vunpack.c.l.b16 %v2804
        %v2858 = vunpack.c.l.b16 %v2805
        %v2859 = vunpack.c.l.b16 %v2806
        %v2860 = vunpack.c.l.b16 %v2807
        %v2861 = vunpack.c.l.b16 %v2808
        %v2862 = vunpack.c.l.b16 %v2809
        %v2863 = vunpack.c.l.b16 %v2810
        %v2864 = vunpack.c.l.b16 %v2811
        %v2865 = vunpack.c.l.b16 %v2812
        %v2866 = vpack.c.b16 %v2851, %v2850
        %v2867 = vpack.c.b16 %v2853, %v2852
        %v2868 = vpack.c.b16 %v2855, %v2854
        %v2869 = vpack.c.b16 %v2857, %v2856
        %v2870 = vpack.c.b16 %v2859, %v2858
        %v2871 = vpack.c.b16 %v2861, %v2860
        %v2872 = vpack.c.b16 %v2863, %v2862
        %v2873 = vpack.c.b16 %v2865, %v2864
        %v2898 = vunpack.c.l.b16 %v2818
        %v2899 = vunpack.c.l.b16 %v2819
        %v2900 = vunpack.c.l.b16 %v2820
        %v2901 = vunpack.c.l.b16 %v2821
        %v2902 = vunpack.c.l.b16 %v2822
        %v2903 = vunpack.c.l.b16 %v2823
        %v2904 = vunpack.c.l.b16 %v2824
        %v2905 = vunpack.c.l.b16 %v2825
        %v2906 = vunpack.c.l.b16 %v2826
        %v2907 = vunpack.c.l.b16 %v2827
        %v2908 = vunpack.c.l.b16 %v2828
        %v2909 = vunpack.c.l.b16 %v2829
        %v2910 = vunpack.c.l.b16 %v2830
        %v2911 = vunpack.c.l.b16 %v2831
        %v2912 = vunpack.c.l.b16 %v2832
        %v2913 = vunpack.c.l.b16 %v2833
        %v2914 = vpack.c.b16 %v2899, %v2898
        %v2915 = vpack.c.b16 %v2901, %v2900
        %v2916 = vpack.c.b16 %v2903, %v2902
        %v2917 = vpack.c.b16 %v2905, %v2904
        %v2918 = vpack.c.b16 %v2907, %v2906
        %v2919 = vpack.c.b16 %v2909, %v2908
        %v2920 = vpack.c.b16 %v2911, %v2910
        %v2921 = vpack.c.b16 %v2913, %v2912
        %2930 = vmatpush.bf16.msra.mxu0 %v2921
        %2931 = vmatpush.bf16.msra.mxu0 %v2920
        %2932 = vmatpush.bf16.msra.mxu0 %v2919
        %2933 = vmatpush.bf16.msra.mxu0 %v2918
        %2934 = vmatpush.bf16.msra.mxu0 %v2917
        %2935 = vmatpush.bf16.msra.mxu0 %v2916
        %2936 = vmatpush.bf16.msra.mxu0 %v2915
        %2937 = vmatpush.bf16.msra.mxu0 %v2914
        %2938 = vmatmul.bf16.gmra.mxu0 %v2866
        %v2939 = vpop.f32.mrf.mxu0
        %v2940 = vadd.f32 0.0, %v2939
        %v2941 = vpop.f32.mrf.mxu0
        %v2942 = vadd.f32 0.0, %v2941
        %2943 = vmatmul.bf16.gmra.mxu0 %v2867
        %v2944 = vpop.f32.mrf.mxu0
        %v2945 = vadd.f32 0.0, %v2944
        %v2946 = vpop.f32.mrf.mxu0
        %v2947 = vadd.f32 0.0, %v2946
        %2948 = vmatmul.bf16.gmra.mxu0 %v2868
        %v2949 = vpop.f32.mrf.mxu0
        %v2950 = vadd.f32 0.0, %v2949
        %v2951 = vpop.f32.mrf.mxu0
        %v2952 = vadd.f32 0.0, %v2951
        %2953 = vmatmul.bf16.gmra.mxu0 %v2869
        %v2954 = vpop.f32.mrf.mxu0
        %v2955 = vadd.f32 0.0, %v2954
        %v2956 = vpop.f32.mrf.mxu0
        %v2957 = vadd.f32 0.0, %v2956
        %2958 = vmatmul.bf16.gmra.mxu0 %v2870
        %v2959 = vpop.f32.mrf.mxu0
        %v2960 = vadd.f32 0.0, %v2959
        %v2961 = vpop.f32.mrf.mxu0
        %v2962 = vadd.f32 0.0, %v2961
        %2963 = vmatmul.bf16.gmra.mxu0 %v2871
        %v2964 = vpop.f32.mrf.mxu0
        %v2965 = vadd.f32 0.0, %v2964
        %v2966 = vpop.f32.mrf.mxu0
        %v2967 = vadd.f32 0.0, %v2966
        %2968 = vmatmul.bf16.gmra.mxu0 %v2872
        %v2969 = vpop.f32.mrf.mxu0
        %v2970 = vadd.f32 0.0, %v2969
        %v2971 = vpop.f32.mrf.mxu0
        %v2972 = vadd.f32 0.0, %v2971
        %2973 = vmatmul.bf16.gmra.mxu0 %v2873
        %v2974 = vpop.f32.mrf.mxu0
        %v2975 = vadd.f32 0.0, %v2974
        %v2976 = vpop.f32.mrf.mxu0
        %v2977 = vadd.f32 0.0, %v2976
        %2978 = vdwg.mxu0
        %v2979 = vadd.f32 %v2781, %v2940
        %v2980 = vadd.f32 %v2782, %v2942
        %v2981 = vadd.f32 %v2783, %v2945
        %v2982 = vadd.f32 %v2784, %v2947
        %v2983 = vadd.f32 %v2785, %v2950
        %v2984 = vadd.f32 %v2786, %v2952
        %v2985 = vadd.f32 %v2787, %v2955
        %v2986 = vadd.f32 %v2788, %v2957
        %v2987 = vadd.f32 %v2789, %v2960
        %v2988 = vadd.f32 %v2790, %v2962
        %v2989 = vadd.f32 %v2791, %v2965
        %v2990 = vadd.f32 %v2792, %v2967
        %v2991 = vadd.f32 %v2793, %v2970
        %v2992 = vadd.f32 %v2794, %v2972
        %v2993 = vadd.f32 %v2795, %v2975
        %v2994 = vadd.f32 %v2796, %v2977
        %s2995 = scalar_lea.vmem [#allocation7], 256
        %v2996 = vld [vmem:[%s2995] sm:$0xf]
        %v2997 = vld [vmem:[%s2995 + $0x4] sm:$0xf]
        %v2998 = vld [vmem:[%s2995 + $0x8] sm:$0xf]
        %v2999 = vld [vmem:[%s2995 + $0xc] sm:$0xf]
        %v3000 = vld [vmem:[%s2995 + $0x10] sm:$0xf]
        %v3001 = vld [vmem:[%s2995 + $0x14] sm:$0xf]
        %v3002 = vld [vmem:[%s2995 + $0x18] sm:$0xf]
        %v3003 = vld [vmem:[%s2995 + $0x1c] sm:$0xf]
        %v3004 = vld [vmem:[%s2995 + $0x20] sm:$0xf]
        %v3005 = vld [vmem:[%s2995 + $0x24] sm:$0xf]
        %v3006 = vld [vmem:[%s2995 + $0x28] sm:$0xf]
        %v3007 = vld [vmem:[%s2995 + $0x2c] sm:$0xf]
        %v3008 = vld [vmem:[%s2995 + $0x30] sm:$0xf]
        %v3009 = vld [vmem:[%s2995 + $0x34] sm:$0xf]
        %v3010 = vld [vmem:[%s2995 + $0x38] sm:$0xf]
        %v3011 = vld [vmem:[%s2995 + $0x3c] sm:$0xf]
        %v3014 = vunpack.c.l.b16 %v2813
        %v3015 = vunpack.c.l.b16 %v2814
        %v3016 = vpack.c.b16 %v3015, %v3014
        %v3034 = vunpack.c.l.b16 %v2996
        %v3035 = vunpack.c.l.b16 %v2997
        %v3036 = vunpack.c.l.b16 %v2998
        %v3037 = vunpack.c.l.b16 %v2999
        %v3038 = vunpack.c.l.b16 %v3000
        %v3039 = vunpack.c.l.b16 %v3001
        %v3040 = vunpack.c.l.b16 %v3002
        %v3041 = vunpack.c.l.b16 %v3003
        %v3042 = vunpack.c.l.b16 %v3004
        %v3043 = vunpack.c.l.b16 %v3005
        %v3044 = vunpack.c.l.b16 %v3006
        %v3045 = vunpack.c.l.b16 %v3007
        %v3046 = vunpack.c.l.b16 %v3008
        %v3047 = vunpack.c.l.b16 %v3009
        %v3048 = vunpack.c.l.b16 %v3010
        %v3049 = vunpack.c.l.b16 %v3011
        %v3050 = vpack.c.b16 %v3035, %v3034
        %v3051 = vpack.c.b16 %v3037, %v3036
        %v3052 = vpack.c.b16 %v3039, %v3038
        %v3053 = vpack.c.b16 %v3041, %v3040
        %v3054 = vpack.c.b16 %v3043, %v3042
        %v3055 = vpack.c.b16 %v3045, %v3044
        %v3056 = vpack.c.b16 %v3047, %v3046
        %v3057 = vpack.c.b16 %v3049, %v3048
        %3066 = vmatpush.bf16.msra.mxu0 %v3057
        %3067 = vmatpush.bf16.msra.mxu0 %v3056
        %3068 = vmatpush.bf16.msra.mxu0 %v3055
        %3069 = vmatpush.bf16.msra.mxu0 %v3054
        %3070 = vmatpush.bf16.msra.mxu0 %v3053
        %3071 = vmatpush.bf16.msra.mxu0 %v3052
        %3072 = vmatpush.bf16.msra.mxu0 %v3051
        %3073 = vmatpush.bf16.msra.mxu0 %v3050
        %3074 = vmatmul.bf16.gmra.mxu0 %v2867
        %v3075 = vpop.f32.mrf.mxu0
        %v3076 = vadd.f32 0.0, %v3075
        %v3077 = vpop.f32.mrf.mxu0
        %v3078 = vadd.f32 0.0, %v3077
        %3079 = vmatmul.bf16.gmra.mxu0 %v2868
        %v3080 = vpop.f32.mrf.mxu0
        %v3081 = vadd.f32 0.0, %v3080
        %v3082 = vpop.f32.mrf.mxu0
        %v3083 = vadd.f32 0.0, %v3082
        %3084 = vmatmul.bf16.gmra.mxu0 %v2869
        %v3085 = vpop.f32.mrf.mxu0
        %v3086 = vadd.f32 0.0, %v3085
        %v3087 = vpop.f32.mrf.mxu0
        %v3088 = vadd.f32 0.0, %v3087
        %3089 = vmatmul.bf16.gmra.mxu0 %v2870
        %v3090 = vpop.f32.mrf.mxu0
        %v3091 = vadd.f32 0.0, %v3090
        %v3092 = vpop.f32.mrf.mxu0
        %v3093 = vadd.f32 0.0, %v3092
        %3094 = vmatmul.bf16.gmra.mxu0 %v2871
        %v3095 = vpop.f32.mrf.mxu0
        %v3096 = vadd.f32 0.0, %v3095
        %v3097 = vpop.f32.mrf.mxu0
        %v3098 = vadd.f32 0.0, %v3097
        %3099 = vmatmul.bf16.gmra.mxu0 %v2872
        %v3100 = vpop.f32.mrf.mxu0
        %v3101 = vadd.f32 0.0, %v3100
        %v3102 = vpop.f32.mrf.mxu0
        %v3103 = vadd.f32 0.0, %v3102
        %3104 = vmatmul.bf16.gmra.mxu0 %v2873
        %v3105 = vpop.f32.mrf.mxu0
        %v3106 = vadd.f32 0.0, %v3105
        %v3107 = vpop.f32.mrf.mxu0
        %v3108 = vadd.f32 0.0, %v3107
        %3109 = vmatmul.bf16.gmra.mxu0 %v3016
        %v3110 = vpop.f32.mrf.mxu0
        %v3111 = vadd.f32 0.0, %v3110
        %v3112 = vpop.f32.mrf.mxu0
        %v3113 = vadd.f32 0.0, %v3112
        %3114 = vdwg.mxu0
        %v3115 = vadd.f32 %v2979, %v3076
        %v3116 = vadd.f32 %v2980, %v3078
        %v3117 = vadd.f32 %v2981, %v3081
        %v3118 = vadd.f32 %v2982, %v3083
        %v3119 = vadd.f32 %v2983, %v3086
        %v3120 = vadd.f32 %v2984, %v3088
        %v3121 = vadd.f32 %v2985, %v3091
        %v3122 = vadd.f32 %v2986, %v3093
        %v3123 = vadd.f32 %v2987, %v3096
        %v3124 = vadd.f32 %v2988, %v3098
        %v3125 = vadd.f32 %v2989, %v3101
        %v3126 = vadd.f32 %v2990, %v3103
        %v3127 = vadd.f32 %v2991, %v3106
        %v3128 = vadd.f32 %v2992, %v3108
        %v3129 = vadd.f32 %v2993, %v3111
        %v3130 = vadd.f32 %v2994, %v3113
        %s3131 = scalar_lea.vmem [#allocation7], 448
        %v3132 = vld [vmem:[%s3131] sm:$0xf]
        %v3133 = vld [vmem:[%s3131 + $0x4] sm:$0xf]
        %v3134 = vld [vmem:[%s3131 + $0x8] sm:$0xf]
        %v3135 = vld [vmem:[%s3131 + $0xc] sm:$0xf]
        %v3136 = vld [vmem:[%s3131 + $0x10] sm:$0xf]
        %v3137 = vld [vmem:[%s3131 + $0x14] sm:$0xf]
        %v3138 = vld [vmem:[%s3131 + $0x18] sm:$0xf]
        %v3139 = vld [vmem:[%s3131 + $0x1c] sm:$0xf]
        %v3140 = vld [vmem:[%s3131 + $0x20] sm:$0xf]
        %v3141 = vld [vmem:[%s3131 + $0x24] sm:$0xf]
        %v3142 = vld [vmem:[%s3131 + $0x28] sm:$0xf]
        %v3143 = vld [vmem:[%s3131 + $0x2c] sm:$0xf]
        %v3144 = vld [vmem:[%s3131 + $0x30] sm:$0xf]
        %v3145 = vld [vmem:[%s3131 + $0x34] sm:$0xf]
        %v3146 = vld [vmem:[%s3131 + $0x38] sm:$0xf]
        %v3147 = vld [vmem:[%s3131 + $0x3c] sm:$0xf]
        %v3150 = vunpack.c.l.b16 %v2815
        %v3151 = vunpack.c.l.b16 %v2816
        %v3152 = vpack.c.b16 %v3151, %v3150
        %v3170 = vunpack.c.l.b16 %v3132
        %v3171 = vunpack.c.l.b16 %v3133
        %v3172 = vunpack.c.l.b16 %v3134
        %v3173 = vunpack.c.l.b16 %v3135
        %v3174 = vunpack.c.l.b16 %v3136
        %v3175 = vunpack.c.l.b16 %v3137
        %v3176 = vunpack.c.l.b16 %v3138
        %v3177 = vunpack.c.l.b16 %v3139
        %v3178 = vunpack.c.l.b16 %v3140
        %v3179 = vunpack.c.l.b16 %v3141
        %v3180 = vunpack.c.l.b16 %v3142
        %v3181 = vunpack.c.l.b16 %v3143
        %v3182 = vunpack.c.l.b16 %v3144
        %v3183 = vunpack.c.l.b16 %v3145
        %v3184 = vunpack.c.l.b16 %v3146
        %v3185 = vunpack.c.l.b16 %v3147
        %v3186 = vpack.c.b16 %v3171, %v3170
        %v3187 = vpack.c.b16 %v3173, %v3172
        %v3188 = vpack.c.b16 %v3175, %v3174
        %v3189 = vpack.c.b16 %v3177, %v3176
        %v3190 = vpack.c.b16 %v3179, %v3178
        %v3191 = vpack.c.b16 %v3181, %v3180
        %v3192 = vpack.c.b16 %v3183, %v3182
        %v3193 = vpack.c.b16 %v3185, %v3184
        %3202 = vmatpush.bf16.msra.mxu0 %v3193
        %3203 = vmatpush.bf16.msra.mxu0 %v3192
        %3204 = vmatpush.bf16.msra.mxu0 %v3191
        %3205 = vmatpush.bf16.msra.mxu0 %v3190
        %3206 = vmatpush.bf16.msra.mxu0 %v3189
        %3207 = vmatpush.bf16.msra.mxu0 %v3188
        %3208 = vmatpush.bf16.msra.mxu0 %v3187
        %3209 = vmatpush.bf16.msra.mxu0 %v3186
        %3210 = vmatmul.bf16.gmra.mxu0 %v2868
        %v3211 = vpop.f32.mrf.mxu0
        %v3212 = vadd.f32 0.0, %v3211
        %v3213 = vpop.f32.mrf.mxu0
        %v3214 = vadd.f32 0.0, %v3213
        %3215 = vmatmul.bf16.gmra.mxu0 %v2869
        %v3216 = vpop.f32.mrf.mxu0
        %v3217 = vadd.f32 0.0, %v3216
        %v3218 = vpop.f32.mrf.mxu0
        %v3219 = vadd.f32 0.0, %v3218
        %3220 = vmatmul.bf16.gmra.mxu0 %v2870
        %v3221 = vpop.f32.mrf.mxu0
        %v3222 = vadd.f32 0.0, %v3221
        %v3223 = vpop.f32.mrf.mxu0
        %v3224 = vadd.f32 0.0, %v3223
        %3225 = vmatmul.bf16.gmra.mxu0 %v2871
        %v3226 = vpop.f32.mrf.mxu0
        %v3227 = vadd.f32 0.0, %v3226
        %v3228 = vpop.f32.mrf.mxu0
        %v3229 = vadd.f32 0.0, %v3228
        %3230 = vmatmul.bf16.gmra.mxu0 %v2872
        %v3231 = vpop.f32.mrf.mxu0
        %v3232 = vadd.f32 0.0, %v3231
        %v3233 = vpop.f32.mrf.mxu0
        %v3234 = vadd.f32 0.0, %v3233
        %3235 = vmatmul.bf16.gmra.mxu0 %v2873
        %v3236 = vpop.f32.mrf.mxu0
        %v3237 = vadd.f32 0.0, %v3236
        %v3238 = vpop.f32.mrf.mxu0
        %v3239 = vadd.f32 0.0, %v3238
        %3240 = vmatmul.bf16.gmra.mxu0 %v3016
        %v3241 = vpop.f32.mrf.mxu0
        %v3242 = vadd.f32 0.0, %v3241
        %v3243 = vpop.f32.mrf.mxu0
        %v3244 = vadd.f32 0.0, %v3243
        %3245 = vmatmul.bf16.gmra.mxu0 %v3152
        %v3246 = vpop.f32.mrf.mxu0
        %v3247 = vadd.f32 0.0, %v3246
        %v3248 = vpop.f32.mrf.mxu0
        %v3249 = vadd.f32 0.0, %v3248
        %3250 = vdwg.mxu0
        %v3251 = vadd.f32 %v3115, %v3212
        %v3252 = vadd.f32 %v3116, %v3214
        %v3253 = vadd.f32 %v3117, %v3217
        %v3254 = vadd.f32 %v3118, %v3219
        %v3255 = vadd.f32 %v3119, %v3222
        %v3256 = vadd.f32 %v3120, %v3224
        %v3257 = vadd.f32 %v3121, %v3227
        %v3258 = vadd.f32 %v3122, %v3229
        %v3259 = vadd.f32 %v3123, %v3232
        %v3260 = vadd.f32 %v3124, %v3234
        %v3261 = vadd.f32 %v3125, %v3237
        %v3262 = vadd.f32 %v3126, %v3239
        %v3263 = vadd.f32 %v3127, %v3242
        %v3264 = vadd.f32 %v3128, %v3244
        %v3265 = vadd.f32 %v3129, %v3247
        %v3266 = vadd.f32 %v3130, %v3249
        %v3267 = vrot.slane %v2300, 1
        %v3268 = vrot.slane %v2301, 1
        %v3269 = vrot.slane %v2302, 1
        %v3270 = vrot.slane %v2303, 1
        %v3271 = vrot.slane %v2304, 1
        %v3272 = vrot.slane %v2305, 1
        %v3273 = vrot.slane %v2306, 1
        %v3274 = vrot.slane %v2307, 1
        %v3275 = vrot.slane %v2308, 1
        %v3276 = vrot.slane %v2309, 1
        %v3277 = vrot.slane %v2310, 1
        %v3278 = vrot.slane %v2311, 1
        %v3279 = vrot.slane %v2312, 1
        %v3280 = vrot.slane %v2313, 1
        %v3281 = vrot.slane %v2314, 1
        %v3282 = vrot.slane %v2315, 1
        %v3283 = vrot.slane %v2316, 1
        %v3284 = vrot.slane %v2317, 1
        %v3285 = vrot.slane %v2318, 1
        %v3286 = vrot.slane %v2319, 1
        %v3287 = vsel %vm1741, %v3285, %v3286
        %v3288 = vsel %vm1741, %v3284, %v3285
        %v3289 = vsel %vm1741, %v3283, %v3284
        %v3290 = vsel %vm1741, %v3282, %v3283
        %v3291 = vsel %vm1741, %v3281, %v3282
        %v3292 = vsel %vm1741, %v3280, %v3281
        %v3293 = vsel %vm1741, %v3279, %v3280
        %v3294 = vsel %vm1741, %v3278, %v3279
        %v3295 = vsel %vm1741, %v3277, %v3278
        %v3296 = vsel %vm1741, %v3276, %v3277
        %v3297 = vsel %vm1741, %v3275, %v3276
        %v3298 = vsel %vm1741, %v3274, %v3275
        %v3299 = vsel %vm1741, %v3273, %v3274
        %v3300 = vsel %vm1741, %v3272, %v3273
        %v3301 = vsel %vm1741, %v3271, %v3272
        %v3302 = vsel %vm1741, %v3270, %v3271
        %v3303 = vsel %vm1741, %v3269, %v3270
        %v3304 = vsel %vm1741, %v3268, %v3269
        %v3305 = vsel %vm1741, %v3267, %v3268
        %v3306 = vsel %vm1741, %v3286, %v3267
        %v3307 = vpack.c.bf16 %v3305, %v3305
        %v3308 = vpack.c.bf16 %v3304, %v3304
        %v3309 = vpack.c.bf16 %v3303, %v3303
        %v3310 = vpack.c.bf16 %v3302, %v3302
        %v3311 = vpack.c.bf16 %v3301, %v3301
        %v3312 = vpack.c.bf16 %v3300, %v3300
        %v3313 = vpack.c.bf16 %v3299, %v3299
        %v3314 = vpack.c.bf16 %v3298, %v3298
        %v3315 = vpack.c.bf16 %v3297, %v3297
        %v3316 = vpack.c.bf16 %v3296, %v3296
        %v3317 = vpack.c.bf16 %v3295, %v3295
        %v3318 = vpack.c.bf16 %v3294, %v3294
        %v3319 = vpack.c.bf16 %v3293, %v3293
        %v3320 = vpack.c.bf16 %v3292, %v3292
        %v3321 = vpack.c.bf16 %v3291, %v3291
        %v3322 = vpack.c.bf16 %v3290, %v3290
        %v3323 = vpack.c.bf16 %v3289, %v3289
        %v3324 = vpack.c.bf16 %v3288, %v3288
        %v3325 = vpack.c.bf16 %v3287, %v3287
        %v3326 = vpack.c.bf16 %v3306, %v3306
        %s3327 = scalar_lea.vmem [#allocation7], 128
        %v3328 = vld [vmem:[%s3327] sm:$0xf]
        %v3329 = vld [vmem:[%s3327 + $0x4] sm:$0xf]
        %v3330 = vld [vmem:[%s3327 + $0x8] sm:$0xf]
        %v3331 = vld [vmem:[%s3327 + $0xc] sm:$0xf]
        %v3332 = vld [vmem:[%s3327 + $0x10] sm:$0xf]
        %v3333 = vld [vmem:[%s3327 + $0x14] sm:$0xf]
        %v3334 = vld [vmem:[%s3327 + $0x18] sm:$0xf]
        %v3335 = vld [vmem:[%s3327 + $0x1c] sm:$0xf]
        %v3336 = vld [vmem:[%s3327 + $0x20] sm:$0xf]
        %v3337 = vld [vmem:[%s3327 + $0x24] sm:$0xf]
        %v3338 = vld [vmem:[%s3327 + $0x28] sm:$0xf]
        %v3339 = vld [vmem:[%s3327 + $0x2c] sm:$0xf]
        %v3340 = vld [vmem:[%s3327 + $0x30] sm:$0xf]
        %v3341 = vld [vmem:[%s3327 + $0x34] sm:$0xf]
        %v3342 = vld [vmem:[%s3327 + $0x38] sm:$0xf]
        %v3343 = vld [vmem:[%s3327 + $0x3c] sm:$0xf]
        %v3360 = vunpack.c.l.b16 %v3307
        %v3361 = vunpack.c.l.b16 %v3308
        %v3362 = vunpack.c.l.b16 %v3309
        %v3363 = vunpack.c.l.b16 %v3310
        %v3364 = vunpack.c.l.b16 %v3311
        %v3365 = vunpack.c.l.b16 %v3312
        %v3366 = vunpack.c.l.b16 %v3313
        %v3367 = vunpack.c.l.b16 %v3314
        %v3368 = vunpack.c.l.b16 %v3315
        %v3369 = vunpack.c.l.b16 %v3316
        %v3370 = vunpack.c.l.b16 %v3317
        %v3371 = vunpack.c.l.b16 %v3318
        %v3372 = vunpack.c.l.b16 %v3319
        %v3373 = vunpack.c.l.b16 %v3320
        %v3374 = vunpack.c.l.b16 %v3321
        %v3375 = vunpack.c.l.b16 %v3322
        %v3376 = vpack.c.b16 %v3361, %v3360
        %v3377 = vpack.c.b16 %v3363, %v3362
        %v3378 = vpack.c.b16 %v3365, %v3364
        %v3379 = vpack.c.b16 %v3367, %v3366
        %v3380 = vpack.c.b16 %v3369, %v3368
        %v3381 = vpack.c.b16 %v3371, %v3370
        %v3382 = vpack.c.b16 %v3373, %v3372
        %v3383 = vpack.c.b16 %v3375, %v3374
        %v3408 = vunpack.c.l.b16 %v3328
        %v3409 = vunpack.c.l.b16 %v3329
        %v3410 = vunpack.c.l.b16 %v3330
        %v3411 = vunpack.c.l.b16 %v3331
        %v3412 = vunpack.c.l.b16 %v3332
        %v3413 = vunpack.c.l.b16 %v3333
        %v3414 = vunpack.c.l.b16 %v3334
        %v3415 = vunpack.c.l.b16 %v3335
        %v3416 = vunpack.c.l.b16 %v3336
        %v3417 = vunpack.c.l.b16 %v3337
        %v3418 = vunpack.c.l.b16 %v3338
        %v3419 = vunpack.c.l.b16 %v3339
        %v3420 = vunpack.c.l.b16 %v3340
        %v3421 = vunpack.c.l.b16 %v3341
        %v3422 = vunpack.c.l.b16 %v3342
        %v3423 = vunpack.c.l.b16 %v3343
        %v3424 = vpack.c.b16 %v3409, %v3408
        %v3425 = vpack.c.b16 %v3411, %v3410
        %v3426 = vpack.c.b16 %v3413, %v3412
        %v3427 = vpack.c.b16 %v3415, %v3414
        %v3428 = vpack.c.b16 %v3417, %v3416
        %v3429 = vpack.c.b16 %v3419, %v3418
        %v3430 = vpack.c.b16 %v3421, %v3420
        %v3431 = vpack.c.b16 %v3423, %v3422
        %3440 = vmatpush.bf16.msra.mxu0 %v3431
        %3441 = vmatpush.bf16.msra.mxu0 %v3430
        %3442 = vmatpush.bf16.msra.mxu0 %v3429
        %3443 = vmatpush.bf16.msra.mxu0 %v3428
        %3444 = vmatpush.bf16.msra.mxu0 %v3427
        %3445 = vmatpush.bf16.msra.mxu0 %v3426
        %3446 = vmatpush.bf16.msra.mxu0 %v3425
        %3447 = vmatpush.bf16.msra.mxu0 %v3424
        %3448 = vmatmul.bf16.gmra.mxu0 %v3376
        %v3449 = vpop.f32.mrf.mxu0
        %v3450 = vadd.f32 0.0, %v3449
        %v3451 = vpop.f32.mrf.mxu0
        %v3452 = vadd.f32 0.0, %v3451
        %3453 = vmatmul.bf16.gmra.mxu0 %v3377
        %v3454 = vpop.f32.mrf.mxu0
        %v3455 = vadd.f32 0.0, %v3454
        %v3456 = vpop.f32.mrf.mxu0
        %v3457 = vadd.f32 0.0, %v3456
        %3458 = vmatmul.bf16.gmra.mxu0 %v3378
        %v3459 = vpop.f32.mrf.mxu0
        %v3460 = vadd.f32 0.0, %v3459
        %v3461 = vpop.f32.mrf.mxu0
        %v3462 = vadd.f32 0.0, %v3461
        %3463 = vmatmul.bf16.gmra.mxu0 %v3379
        %v3464 = vpop.f32.mrf.mxu0
        %v3465 = vadd.f32 0.0, %v3464
        %v3466 = vpop.f32.mrf.mxu0
        %v3467 = vadd.f32 0.0, %v3466
        %3468 = vmatmul.bf16.gmra.mxu0 %v3380
        %v3469 = vpop.f32.mrf.mxu0
        %v3470 = vadd.f32 0.0, %v3469
        %v3471 = vpop.f32.mrf.mxu0
        %v3472 = vadd.f32 0.0, %v3471
        %3473 = vmatmul.bf16.gmra.mxu0 %v3381
        %v3474 = vpop.f32.mrf.mxu0
        %v3475 = vadd.f32 0.0, %v3474
        %v3476 = vpop.f32.mrf.mxu0
        %v3477 = vadd.f32 0.0, %v3476
        %3478 = vmatmul.bf16.gmra.mxu0 %v3382
        %v3479 = vpop.f32.mrf.mxu0
        %v3480 = vadd.f32 0.0, %v3479
        %v3481 = vpop.f32.mrf.mxu0
        %v3482 = vadd.f32 0.0, %v3481
        %3483 = vmatmul.bf16.gmra.mxu0 %v3383
        %v3484 = vpop.f32.mrf.mxu0
        %v3485 = vadd.f32 0.0, %v3484
        %v3486 = vpop.f32.mrf.mxu0
        %v3487 = vadd.f32 0.0, %v3486
        %3488 = vdwg.mxu0
        %v3489 = vadd.f32 %v3251, %v3450
        %v3490 = vadd.f32 %v3252, %v3452
        %v3491 = vadd.f32 %v3253, %v3455
        %v3492 = vadd.f32 %v3254, %v3457
        %v3493 = vadd.f32 %v3255, %v3460
        %v3494 = vadd.f32 %v3256, %v3462
        %v3495 = vadd.f32 %v3257, %v3465
        %v3496 = vadd.f32 %v3258, %v3467
        %v3497 = vadd.f32 %v3259, %v3470
        %v3498 = vadd.f32 %v3260, %v3472
        %v3499 = vadd.f32 %v3261, %v3475
        %v3500 = vadd.f32 %v3262, %v3477
        %v3501 = vadd.f32 %v3263, %v3480
        %v3502 = vadd.f32 %v3264, %v3482
        %v3503 = vadd.f32 %v3265, %v3485
        %v3504 = vadd.f32 %v3266, %v3487
        %s3505 = scalar_lea.vmem [#allocation7], 320
        %v3506 = vld [vmem:[%s3505] sm:$0xf]
        %v3507 = vld [vmem:[%s3505 + $0x4] sm:$0xf]
        %v3508 = vld [vmem:[%s3505 + $0x8] sm:$0xf]
        %v3509 = vld [vmem:[%s3505 + $0xc] sm:$0xf]
        %v3510 = vld [vmem:[%s3505 + $0x10] sm:$0xf]
        %v3511 = vld [vmem:[%s3505 + $0x14] sm:$0xf]
        %v3512 = vld [vmem:[%s3505 + $0x18] sm:$0xf]
        %v3513 = vld [vmem:[%s3505 + $0x1c] sm:$0xf]
        %v3514 = vld [vmem:[%s3505 + $0x20] sm:$0xf]
        %v3515 = vld [vmem:[%s3505 + $0x24] sm:$0xf]
        %v3516 = vld [vmem:[%s3505 + $0x28] sm:$0xf]
        %v3517 = vld [vmem:[%s3505 + $0x2c] sm:$0xf]
        %v3518 = vld [vmem:[%s3505 + $0x30] sm:$0xf]
        %v3519 = vld [vmem:[%s3505 + $0x34] sm:$0xf]
        %v3520 = vld [vmem:[%s3505 + $0x38] sm:$0xf]
        %v3521 = vld [vmem:[%s3505 + $0x3c] sm:$0xf]
        %v3524 = vunpack.c.l.b16 %v3323
        %v3525 = vunpack.c.l.b16 %v3324
        %v3526 = vpack.c.b16 %v3525, %v3524
        %v3544 = vunpack.c.l.b16 %v3506
        %v3545 = vunpack.c.l.b16 %v3507
        %v3546 = vunpack.c.l.b16 %v3508
        %v3547 = vunpack.c.l.b16 %v3509
        %v3548 = vunpack.c.l.b16 %v3510
        %v3549 = vunpack.c.l.b16 %v3511
        %v3550 = vunpack.c.l.b16 %v3512
        %v3551 = vunpack.c.l.b16 %v3513
        %v3552 = vunpack.c.l.b16 %v3514
        %v3553 = vunpack.c.l.b16 %v3515
        %v3554 = vunpack.c.l.b16 %v3516
        %v3555 = vunpack.c.l.b16 %v3517
        %v3556 = vunpack.c.l.b16 %v3518
        %v3557 = vunpack.c.l.b16 %v3519
        %v3558 = vunpack.c.l.b16 %v3520
        %v3559 = vunpack.c.l.b16 %v3521
        %v3560 = vpack.c.b16 %v3545, %v3544
        %v3561 = vpack.c.b16 %v3547, %v3546
        %v3562 = vpack.c.b16 %v3549, %v3548
        %v3563 = vpack.c.b16 %v3551, %v3550
        %v3564 = vpack.c.b16 %v3553, %v3552
        %v3565 = vpack.c.b16 %v3555, %v3554
        %v3566 = vpack.c.b16 %v3557, %v3556
        %v3567 = vpack.c.b16 %v3559, %v3558
        %3576 = vmatpush.bf16.msra.mxu0 %v3567
        %3577 = vmatpush.bf16.msra.mxu0 %v3566
        %3578 = vmatpush.bf16.msra.mxu0 %v3565
        %3579 = vmatpush.bf16.msra.mxu0 %v3564
        %3580 = vmatpush.bf16.msra.mxu0 %v3563
        %3581 = vmatpush.bf16.msra.mxu0 %v3562
        %3582 = vmatpush.bf16.msra.mxu0 %v3561
        %3583 = vmatpush.bf16.msra.mxu0 %v3560
        %3584 = vmatmul.bf16.gmra.mxu0 %v3377
        %v3585 = vpop.f32.mrf.mxu0
        %v3586 = vadd.f32 0.0, %v3585
        %v3587 = vpop.f32.mrf.mxu0
        %v3588 = vadd.f32 0.0, %v3587
        %3589 = vmatmul.bf16.gmra.mxu0 %v3378
        %v3590 = vpop.f32.mrf.mxu0
        %v3591 = vadd.f32 0.0, %v3590
        %v3592 = vpop.f32.mrf.mxu0
        %v3593 = vadd.f32 0.0, %v3592
        %3594 = vmatmul.bf16.gmra.mxu0 %v3379
        %v3595 = vpop.f32.mrf.mxu0
        %v3596 = vadd.f32 0.0, %v3595
        %v3597 = vpop.f32.mrf.mxu0
        %v3598 = vadd.f32 0.0, %v3597
        %3599 = vmatmul.bf16.gmra.mxu0 %v3380
        %v3600 = vpop.f32.mrf.mxu0
        %v3601 = vadd.f32 0.0, %v3600
        %v3602 = vpop.f32.mrf.mxu0
        %v3603 = vadd.f32 0.0, %v3602
        %3604 = vmatmul.bf16.gmra.mxu0 %v3381
        %v3605 = vpop.f32.mrf.mxu0
        %v3606 = vadd.f32 0.0, %v3605
        %v3607 = vpop.f32.mrf.mxu0
        %v3608 = vadd.f32 0.0, %v3607
        %3609 = vmatmul.bf16.gmra.mxu0 %v3382
        %v3610 = vpop.f32.mrf.mxu0
        %v3611 = vadd.f32 0.0, %v3610
        %v3612 = vpop.f32.mrf.mxu0
        %v3613 = vadd.f32 0.0, %v3612
        %3614 = vmatmul.bf16.gmra.mxu0 %v3383
        %v3615 = vpop.f32.mrf.mxu0
        %v3616 = vadd.f32 0.0, %v3615
        %v3617 = vpop.f32.mrf.mxu0
        %v3618 = vadd.f32 0.0, %v3617
        %3619 = vmatmul.bf16.gmra.mxu0 %v3526
        %v3620 = vpop.f32.mrf.mxu0
        %v3621 = vadd.f32 0.0, %v3620
        %v3622 = vpop.f32.mrf.mxu0
        %v3623 = vadd.f32 0.0, %v3622
        %3624 = vdwg.mxu0
        %v3625 = vadd.f32 %v3489, %v3586
        %v3626 = vadd.f32 %v3490, %v3588
        %v3627 = vadd.f32 %v3491, %v3591
        %v3628 = vadd.f32 %v3492, %v3593
        %v3629 = vadd.f32 %v3493, %v3596
        %v3630 = vadd.f32 %v3494, %v3598
        %v3631 = vadd.f32 %v3495, %v3601
        %v3632 = vadd.f32 %v3496, %v3603
        %v3633 = vadd.f32 %v3497, %v3606
        %v3634 = vadd.f32 %v3498, %v3608
        %v3635 = vadd.f32 %v3499, %v3611
        %v3636 = vadd.f32 %v3500, %v3613
        %v3637 = vadd.f32 %v3501, %v3616
        %v3638 = vadd.f32 %v3502, %v3618
        %v3639 = vadd.f32 %v3503, %v3621
        %v3640 = vadd.f32 %v3504, %v3623
        %s3641 = scalar_lea.vmem [#allocation7], 512
        %v3642 = vld [vmem:[%s3641] sm:$0xf]
        %v3643 = vld [vmem:[%s3641 + $0x4] sm:$0xf]
        %v3644 = vld [vmem:[%s3641 + $0x8] sm:$0xf]
        %v3645 = vld [vmem:[%s3641 + $0xc] sm:$0xf]
        %v3646 = vld [vmem:[%s3641 + $0x10] sm:$0xf]
        %v3647 = vld [vmem:[%s3641 + $0x14] sm:$0xf]
        %v3648 = vld [vmem:[%s3641 + $0x18] sm:$0xf]
        %v3649 = vld [vmem:[%s3641 + $0x1c] sm:$0xf]
        %v3650 = vld [vmem:[%s3641 + $0x20] sm:$0xf]
        %v3651 = vld [vmem:[%s3641 + $0x24] sm:$0xf]
        %v3652 = vld [vmem:[%s3641 + $0x28] sm:$0xf]
        %v3653 = vld [vmem:[%s3641 + $0x2c] sm:$0xf]
        %v3654 = vld [vmem:[%s3641 + $0x30] sm:$0xf]
        %v3655 = vld [vmem:[%s3641 + $0x34] sm:$0xf]
        %v3656 = vld [vmem:[%s3641 + $0x38] sm:$0xf]
        %v3657 = vld [vmem:[%s3641 + $0x3c] sm:$0xf]
        %v3660 = vunpack.c.l.b16 %v3325
        %v3661 = vunpack.c.l.b16 %v3326
        %v3662 = vpack.c.b16 %v3661, %v3660
        %v3680 = vunpack.c.l.b16 %v3642
        %v3681 = vunpack.c.l.b16 %v3643
        %v3682 = vunpack.c.l.b16 %v3644
        %v3683 = vunpack.c.l.b16 %v3645
        %v3684 = vunpack.c.l.b16 %v3646
        %v3685 = vunpack.c.l.b16 %v3647
        %v3686 = vunpack.c.l.b16 %v3648
        %v3687 = vunpack.c.l.b16 %v3649
        %v3688 = vunpack.c.l.b16 %v3650
        %v3689 = vunpack.c.l.b16 %v3651
        %v3690 = vunpack.c.l.b16 %v3652
        %v3691 = vunpack.c.l.b16 %v3653
        %v3692 = vunpack.c.l.b16 %v3654
        %v3693 = vunpack.c.l.b16 %v3655
        %v3694 = vunpack.c.l.b16 %v3656
        %v3695 = vunpack.c.l.b16 %v3657
        %v3696 = vpack.c.b16 %v3681, %v3680
        %v3697 = vpack.c.b16 %v3683, %v3682
        %v3698 = vpack.c.b16 %v3685, %v3684
        %v3699 = vpack.c.b16 %v3687, %v3686
        %v3700 = vpack.c.b16 %v3689, %v3688
        %v3701 = vpack.c.b16 %v3691, %v3690
        %v3702 = vpack.c.b16 %v3693, %v3692
        %v3703 = vpack.c.b16 %v3695, %v3694
        %3712 = vmatpush.bf16.msra.mxu0 %v3703
        %3713 = vmatpush.bf16.msra.mxu0 %v3702
        %3714 = vmatpush.bf16.msra.mxu0 %v3701
        %3715 = vmatpush.bf16.msra.mxu0 %v3700
        %3716 = vmatpush.bf16.msra.mxu0 %v3699
        %3717 = vmatpush.bf16.msra.mxu0 %v3698
        %3718 = vmatpush.bf16.msra.mxu0 %v3697
        %3719 = vmatpush.bf16.msra.mxu0 %v3696
        %3720 = vmatmul.bf16.gmra.mxu0 %v3378
        %v3721 = vpop.f32.mrf.mxu0
        %v3722 = vadd.f32 0.0, %v3721
        %v3723 = vpop.f32.mrf.mxu0
        %v3724 = vadd.f32 0.0, %v3723
        %3725 = vmatmul.bf16.gmra.mxu0 %v3379
        %v3726 = vpop.f32.mrf.mxu0
        %v3727 = vadd.f32 0.0, %v3726
        %v3728 = vpop.f32.mrf.mxu0
        %v3729 = vadd.f32 0.0, %v3728
        %3730 = vmatmul.bf16.gmra.mxu0 %v3380
        %v3731 = vpop.f32.mrf.mxu0
        %v3732 = vadd.f32 0.0, %v3731
        %v3733 = vpop.f32.mrf.mxu0
        %v3734 = vadd.f32 0.0, %v3733
        %3735 = vmatmul.bf16.gmra.mxu0 %v3381
        %v3736 = vpop.f32.mrf.mxu0
        %v3737 = vadd.f32 0.0, %v3736
        %v3738 = vpop.f32.mrf.mxu0
        %v3739 = vadd.f32 0.0, %v3738
        %3740 = vmatmul.bf16.gmra.mxu0 %v3382
        %v3741 = vpop.f32.mrf.mxu0
        %v3742 = vadd.f32 0.0, %v3741
        %v3743 = vpop.f32.mrf.mxu0
        %v3744 = vadd.f32 0.0, %v3743
        %3745 = vmatmul.bf16.gmra.mxu0 %v3383
        %v3746 = vpop.f32.mrf.mxu0
        %v3747 = vadd.f32 0.0, %v3746
        %v3748 = vpop.f32.mrf.mxu0
        %v3749 = vadd.f32 0.0, %v3748
        %3750 = vmatmul.bf16.gmra.mxu0 %v3526
        %v3751 = vpop.f32.mrf.mxu0
        %v3752 = vadd.f32 0.0, %v3751
        %v3753 = vpop.f32.mrf.mxu0
        %v3754 = vadd.f32 0.0, %v3753
        %3755 = vmatmul.bf16.gmra.mxu0 %v3662
        %v3756 = vpop.f32.mrf.mxu0
        %v3757 = vadd.f32 0.0, %v3756
        %v3758 = vpop.f32.mrf.mxu0
        %v3759 = vadd.f32 0.0, %v3758
        %3760 = vdwg.mxu0
        %v3761 = vadd.f32 %v3625, %v3722
        %v3762 = vadd.f32 %v3626, %v3724
        %v3763 = vadd.f32 %v3627, %v3727
        %v3764 = vadd.f32 %v3628, %v3729
        %v3765 = vadd.f32 %v3629, %v3732
        %v3766 = vadd.f32 %v3630, %v3734
        %v3767 = vadd.f32 %v3631, %v3737
        %v3768 = vadd.f32 %v3632, %v3739
        %v3769 = vadd.f32 %v3633, %v3742
        %v3770 = vadd.f32 %v3634, %v3744
        %v3771 = vadd.f32 %v3635, %v3747
        %v3772 = vadd.f32 %v3636, %v3749
        %v3773 = vadd.f32 %v3637, %v3752
        %v3774 = vadd.f32 %v3638, %v3754
        %v3775 = vadd.f32 %v3639, %v3757
        %v3776 = vadd.f32 %v3640, %v3759
        %v3777 = vld [vmem:[#allocation8] sm:$0x1]
        %v3779 = vperm.slane %v3777, 0
        %v3781 = vadd.f32 %v3761, %v3779
        %v3782 = vadd.f32 %v3762, %v3779
        %v3783 = vadd.f32 %v3763, %v3779
        %v3784 = vadd.f32 %v3764, %v3779
        %v3785 = vadd.f32 %v3765, %v3779
        %v3786 = vadd.f32 %v3766, %v3779
        %v3787 = vadd.f32 %v3767, %v3779
        %v3788 = vadd.f32 %v3768, %v3779
        %v3789 = vadd.f32 %v3769, %v3779
        %v3790 = vadd.f32 %v3770, %v3779
        %v3791 = vadd.f32 %v3771, %v3779
        %v3792 = vadd.f32 %v3772, %v3779
        %v3793 = vadd.f32 %v3773, %v3779
        %v3794 = vadd.f32 %v3774, %v3779
        %v3795 = vadd.f32 %v3775, %v3779
        %v3796 = vadd.f32 %v3776, %v3779
        %v3797 = vmax.f32 %v3781, 0.0
        %v3798 = vmax.f32 %v3782, 0.0
        %v3799 = vmax.f32 %v3783, 0.0
        %v3800 = vmax.f32 %v3784, 0.0
        %v3801 = vmax.f32 %v3785, 0.0
        %v3802 = vmax.f32 %v3786, 0.0
        %v3803 = vmax.f32 %v3787, 0.0
        %v3804 = vmax.f32 %v3788, 0.0
        %v3805 = vmax.f32 %v3789, 0.0
        %v3806 = vmax.f32 %v3790, 0.0
        %v3807 = vmax.f32 %v3791, 0.0
        %v3808 = vmax.f32 %v3792, 0.0
        %v3809 = vmax.f32 %v3793, 0.0
        %v3810 = vmax.f32 %v3794, 0.0
        %v3811 = vmax.f32 %v3795, 0.0
        %v3812 = vmax.f32 %v3796, 0.0
        %v3813 = vpack.c.bf16 %v3798, %v3797
        %v3814 = vpack.c.bf16 %v3800, %v3799
        %v3815 = vpack.c.bf16 %v3802, %v3801
        %v3816 = vpack.c.bf16 %v3804, %v3803
        %v3817 = vpack.c.bf16 %v3806, %v3805
        %v3818 = vpack.c.bf16 %v3808, %v3807
        %v3819 = vpack.c.bf16 %v3810, %v3809
        %v3820 = vpack.c.bf16 %v3812, %v3811
        %v3821 = vld [vmem:[#allocation10] sm:$0xf]
        %v3822 = vld [vmem:[#allocation10 + $0x4] sm:$0xf]
        %v3823 = vld [vmem:[#allocation10 + $0x8] sm:$0xf]
        %v3824 = vld [vmem:[#allocation10 + $0xc] sm:$0xf]
        %v3825 = vld [vmem:[#allocation10 + $0x10] sm:$0xf]
        %v3826 = vld [vmem:[#allocation10 + $0x14] sm:$0xf]
        %v3827 = vld [vmem:[#allocation10 + $0x18] sm:$0xf]
        %v3828 = vld [vmem:[#allocation10 + $0x1c] sm:$0xf]
        %v3829 = vld [vmem:[#allocation10 + $0x20] sm:$0xf]
        %v3830 = vld [vmem:[#allocation10 + $0x24] sm:$0xf]
        %v3831 = vld [vmem:[#allocation10 + $0x28] sm:$0xf]
        %v3832 = vld [vmem:[#allocation10 + $0x2c] sm:$0xf]
        %v3833 = vld [vmem:[#allocation10 + $0x30] sm:$0xf]
        %v3834 = vld [vmem:[#allocation10 + $0x34] sm:$0xf]
        %v3835 = vld [vmem:[#allocation10 + $0x38] sm:$0xf]
        %v3836 = vld [vmem:[#allocation10 + $0x3c] sm:$0xf]
        %v3837 = vld [vmem:[#allocation11] sm:$0x1]
        %v3839 = vperm.slane %v3837, 0
        %v3857 = vunpack.c.l.b16 %v3821
        %v3858 = vunpack.c.l.b16 %v3822
        %v3859 = vunpack.c.l.b16 %v3823
        %v3860 = vunpack.c.l.b16 %v3824
        %v3861 = vunpack.c.l.b16 %v3825
        %v3862 = vunpack.c.l.b16 %v3826
        %v3863 = vunpack.c.l.b16 %v3827
        %v3864 = vunpack.c.l.b16 %v3828
        %v3865 = vunpack.c.l.b16 %v3829
        %v3866 = vunpack.c.l.b16 %v3830
        %v3867 = vunpack.c.l.b16 %v3831
        %v3868 = vunpack.c.l.b16 %v3832
        %v3869 = vunpack.c.l.b16 %v3833
        %v3870 = vunpack.c.l.b16 %v3834
        %v3871 = vunpack.c.l.b16 %v3835
        %v3872 = vunpack.c.l.b16 %v3836
        %v3873 = vpack.c.b16 %v3858, %v3857
        %v3874 = vpack.c.b16 %v3860, %v3859
        %v3875 = vpack.c.b16 %v3862, %v3861
        %v3876 = vpack.c.b16 %v3864, %v3863
        %v3877 = vpack.c.b16 %v3866, %v3865
        %v3878 = vpack.c.b16 %v3868, %v3867
        %v3879 = vpack.c.b16 %v3870, %v3869
        %v3880 = vpack.c.b16 %v3872, %v3871
        %3889 = vmatpush.bf16.msra.mxu0 %v3880
        %3890 = vmatpush.bf16.msra.mxu0 %v3879
        %3891 = vmatpush.bf16.msra.mxu0 %v3878
        %3892 = vmatpush.bf16.msra.mxu0 %v3877
        %3893 = vmatpush.bf16.msra.mxu0 %v3876
        %3894 = vmatpush.bf16.msra.mxu0 %v3875
        %3895 = vmatpush.bf16.msra.mxu0 %v3874
        %3896 = vmatpush.bf16.msra.mxu0 %v3873
        %3897 = vmatmul.bf16.gmra.mxu0 %v3813
        %v3898 = vpop.f32.mrf.mxu0
        %v3899 = vadd.f32 %v3839, %v3898
        %v3900 = vpop.f32.mrf.mxu0
        %v3901 = vadd.f32 %v3839, %v3900
        %3902 = vmatmul.bf16.gmra.mxu0 %v3814
        %v3903 = vpop.f32.mrf.mxu0
        %v3904 = vadd.f32 %v3839, %v3903
        %v3905 = vpop.f32.mrf.mxu0
        %v3906 = vadd.f32 %v3839, %v3905
        %3907 = vmatmul.bf16.gmra.mxu0 %v3815
        %v3908 = vpop.f32.mrf.mxu0
        %v3909 = vadd.f32 %v3839, %v3908
        %v3910 = vpop.f32.mrf.mxu0
        %v3911 = vadd.f32 %v3839, %v3910
        %3912 = vmatmul.bf16.gmra.mxu0 %v3816
        %v3913 = vpop.f32.mrf.mxu0
        %v3914 = vadd.f32 %v3839, %v3913
        %v3915 = vpop.f32.mrf.mxu0
        %v3916 = vadd.f32 %v3839, %v3915
        %3917 = vmatmul.bf16.gmra.mxu0 %v3817
        %v3918 = vpop.f32.mrf.mxu0
        %v3919 = vadd.f32 %v3839, %v3918
        %v3920 = vpop.f32.mrf.mxu0
        %v3921 = vadd.f32 %v3839, %v3920
        %3922 = vmatmul.bf16.gmra.mxu0 %v3818
        %v3923 = vpop.f32.mrf.mxu0
        %v3924 = vadd.f32 %v3839, %v3923
        %v3925 = vpop.f32.mrf.mxu0
        %v3926 = vadd.f32 %v3839, %v3925
        %3927 = vmatmul.bf16.gmra.mxu0 %v3819
        %v3928 = vpop.f32.mrf.mxu0
        %v3929 = vadd.f32 %v3839, %v3928
        %v3930 = vpop.f32.mrf.mxu0
        %v3931 = vadd.f32 %v3839, %v3930
        %3932 = vmatmul.bf16.gmra.mxu0 %v3820
        %v3933 = vpop.f32.mrf.mxu0
        %v3934 = vadd.f32 %v3839, %v3933
        %v3935 = vpop.f32.mrf.mxu0
        %v3936 = vadd.f32 %v3839, %v3935
        %3937 = vdwg.mxu0
        %v3938 = vadd.f32 %v2236, %v3899
        %v3939 = vadd.f32 %v2237, %v3901
        %v3940 = vadd.f32 %v2238, %v3904
        %v3941 = vadd.f32 %v2239, %v3906
        %v3942 = vadd.f32 %v2240, %v3909
        %v3943 = vadd.f32 %v2241, %v3911
        %v3944 = vadd.f32 %v2242, %v3914
        %v3945 = vadd.f32 %v2243, %v3916
        %v3946 = vadd.f32 %v2244, %v3919
        %v3947 = vadd.f32 %v2245, %v3921
        %v3948 = vadd.f32 %v2246, %v3924
        %v3949 = vadd.f32 %v2247, %v3926
        %v3950 = vadd.f32 %v2248, %v3929
        %v3951 = vadd.f32 %v2249, %v3931
        %v3952 = vadd.f32 %v2250, %v3934
        %v3953 = vadd.f32 %v2251, %v3936
        %v3954 = vmax.f32 %v3938, 0.0
        %v3955 = vmax.f32 %v3939, 0.0
        %v3956 = vmax.f32 %v3940, 0.0
        %v3957 = vmax.f32 %v3941, 0.0
        %v3958 = vmax.f32 %v3942, 0.0
        %v3959 = vmax.f32 %v3943, 0.0
        %v3960 = vmax.f32 %v3944, 0.0
        %v3961 = vmax.f32 %v3945, 0.0
        %v3962 = vmax.f32 %v3946, 0.0
        %v3963 = vmax.f32 %v3947, 0.0
        %v3964 = vmax.f32 %v3948, 0.0
        %v3965 = vmax.f32 %v3949, 0.0
        %v3966 = vmax.f32 %v3950, 0.0
        %v3967 = vmax.f32 %v3951, 0.0
        %v3968 = vmax.f32 %v3952, 0.0
        %v3969 = vmax.f32 %v3953, 0.0
        %3970 = vst [vmem:[%s734] sm:$0xff] %v3954
        %3971 = vst [vmem:[%s734 + $0x8] sm:$0xff] %v3955
        %3972 = vst [vmem:[%s734 + $0x10] sm:$0xff] %v3956
        %3973 = vst [vmem:[%s734 + $0x18] sm:$0xff] %v3957
        %3974 = vst [vmem:[%s734 + $0x20] sm:$0xff] %v3958
        %3975 = vst [vmem:[%s734 + $0x28] sm:$0xff] %v3959
        %3976 = vst [vmem:[%s734 + $0x30] sm:$0xff] %v3960
        %3977 = vst [vmem:[%s734 + $0x38] sm:$0xff] %v3961
        %3978 = vst [vmem:[%s734 + $0x40] sm:$0xff] %v3962
        %3979 = vst [vmem:[%s734 + $0x48] sm:$0xff] %v3963
        %3980 = vst [vmem:[%s734 + $0x50] sm:$0xff] %v3964
        %3981 = vst [vmem:[%s734 + $0x58] sm:$0xff] %v3965
        %3982 = vst [vmem:[%s734 + $0x60] sm:$0xff] %v3966
        %3983 = vst [vmem:[%s734 + $0x68] sm:$0xff] %v3967
        %3984 = vst [vmem:[%s734 + $0x70] sm:$0xff] %v3968
        %3985 = vst [vmem:[%s734 + $0x78] sm:$0xff] %v3969
        %3986 = vst [vmem:[%s734] sm:$0x1] 0.0
        %3987 = vst [vmem:[%s734 + $0x10] sm:$0x1] 0.0
        %3988 = vst [vmem:[%s734 + $0x20] sm:$0x1] 0.0
        %3989 = vst [vmem:[%s734 + $0x30] sm:$0x1] 0.0
        %3990 = vst [vmem:[%s734 + $0x40] sm:$0x1] 0.0
        %3991 = vst [vmem:[%s734 + $0x50] sm:$0x1] 0.0
        %3992 = vst [vmem:[%s734 + $0x60] sm:$0x1] 0.0
        %3993 = vst [vmem:[%s734 + $0x70] sm:$0x1] 0.0
        %3994 = vst [vmem:[%s734 + $0x9] sm:$0x1] 0.0
        %3995 = vst [vmem:[%s734 + $0x19] sm:$0x1] 0.0
        %3996 = vst [vmem:[%s734 + $0x29] sm:$0x1] 0.0
        %3997 = vst [vmem:[%s734 + $0x39] sm:$0x1] 0.0
        %3998 = vst [vmem:[%s734 + $0x49] sm:$0x1] 0.0
        %3999 = vst [vmem:[%s734 + $0x59] sm:$0x1] 0.0
        %4000 = vst [vmem:[%s734 + $0x69] sm:$0x1] 0.0
        %4001 = vst [vmem:[%s734 + $0x79] sm:$0x1] 0.0
        %v4002 = vld [vmem:[#allocation2] sm:$0xff]
        %v4003 = vld [vmem:[#allocation2 + $0x8] sm:$0xff]
        %v4004 = vld [vmem:[#allocation2 + $0x10] sm:$0xff]
        %v4005 = vld [vmem:[#allocation2 + $0x18] sm:$0xff]
        %v4006 = vld [vmem:[#allocation2 + $0x20] sm:$0xff]
        %v4007 = vld [vmem:[#allocation2 + $0x28] sm:$0xff]
        %v4008 = vld [vmem:[#allocation2 + $0x30] sm:$0xff]
        %v4009 = vld [vmem:[#allocation2 + $0x38] sm:$0xff]
        %v4010 = vld [vmem:[#allocation2 + $0x40] sm:$0xff]
        %v4011 = vld [vmem:[#allocation2 + $0x48] sm:$0xff]
        %v4012 = vld [vmem:[#allocation2 + $0x50] sm:$0xff]
        %v4013 = vld [vmem:[#allocation2 + $0x58] sm:$0xff]
        %v4014 = vld [vmem:[#allocation2 + $0x60] sm:$0xff]
        %v4015 = vld [vmem:[#allocation2 + $0x68] sm:$0xff]
        %v4016 = vld [vmem:[#allocation2 + $0x70] sm:$0xff]
        %v4017 = vld [vmem:[#allocation2 + $0x78] sm:$0xff]
        %v4018 = vld [vmem:[#allocation2 + $0x80] sm:$0xff]
        %v4019 = vld [vmem:[#allocation2 + $0x88] sm:$0xff]
        %v4020 = vld [vmem:[#allocation2 + $0x90] sm:$0xff]
        %v4021 = vld [vmem:[#allocation2 + $0x98] sm:$0xff]
        %v4022 = vrot.slane %v4002, 7
        %v4023 = vrot.slane %v4003, 7
        %v4024 = vrot.slane %v4004, 7
        %v4025 = vrot.slane %v4005, 7
        %v4026 = vrot.slane %v4006, 7
        %v4027 = vrot.slane %v4007, 7
        %v4028 = vrot.slane %v4008, 7
        %v4029 = vrot.slane %v4009, 7
        %v4030 = vrot.slane %v4010, 7
        %v4031 = vrot.slane %v4011, 7
        %v4032 = vrot.slane %v4012, 7
        %v4033 = vrot.slane %v4013, 7
        %v4034 = vrot.slane %v4014, 7
        %v4035 = vrot.slane %v4015, 7
        %v4036 = vrot.slane %v4016, 7
        %v4037 = vrot.slane %v4017, 7
        %v4038 = vrot.slane %v4018, 7
        %v4039 = vrot.slane %v4019, 7
        %v4040 = vrot.slane %v4020, 7
        %v4041 = vrot.slane %v4021, 7
        %v4042 = vsel %vm793, %v4040, %v4041
        %v4043 = vsel %vm793, %v4039, %v4040
        %v4044 = vsel %vm793, %v4038, %v4039
        %v4045 = vsel %vm793, %v4037, %v4038
        %v4046 = vsel %vm793, %v4036, %v4037
        %v4047 = vsel %vm793, %v4035, %v4036
        %v4048 = vsel %vm793, %v4034, %v4035
        %v4049 = vsel %vm793, %v4033, %v4034
        %v4050 = vsel %vm793, %v4032, %v4033
        %v4051 = vsel %vm793, %v4031, %v4032
        %v4052 = vsel %vm793, %v4030, %v4031
        %v4053 = vsel %vm793, %v4029, %v4030
        %v4054 = vsel %vm793, %v4028, %v4029
        %v4055 = vsel %vm793, %v4027, %v4028
        %v4056 = vsel %vm793, %v4026, %v4027
        %v4057 = vsel %vm793, %v4025, %v4026
        %v4058 = vsel %vm793, %v4024, %v4025
        %v4059 = vsel %vm793, %v4023, %v4024
        %v4060 = vsel %vm793, %v4022, %v4023
        %v4061 = vsel %vm793, %v4041, %v4022
        %v4062 = vpack.c.bf16 %v4061, %v4061
        %v4063 = vpack.c.bf16 %v4060, %v4060
        %v4064 = vpack.c.bf16 %v4059, %v4059
        %v4065 = vpack.c.bf16 %v4058, %v4058
        %v4066 = vpack.c.bf16 %v4057, %v4057
        %v4067 = vpack.c.bf16 %v4056, %v4056
        %v4068 = vpack.c.bf16 %v4055, %v4055
        %v4069 = vpack.c.bf16 %v4054, %v4054
        %v4070 = vpack.c.bf16 %v4053, %v4053
        %v4071 = vpack.c.bf16 %v4052, %v4052
        %v4072 = vpack.c.bf16 %v4051, %v4051
        %v4073 = vpack.c.bf16 %v4050, %v4050
        %v4074 = vpack.c.bf16 %v4049, %v4049
        %v4075 = vpack.c.bf16 %v4048, %v4048
        %v4076 = vpack.c.bf16 %v4047, %v4047
        %v4077 = vpack.c.bf16 %v4046, %v4046
        %v4078 = vpack.c.bf16 %v4045, %v4045
        %v4079 = vpack.c.bf16 %v4044, %v4044
        %v4080 = vpack.c.bf16 %v4043, %v4043
        %v4081 = vpack.c.bf16 %v4042, %v4042
        %v4082 = vld [vmem:[#allocation13] sm:$0xf]
        %v4083 = vld [vmem:[#allocation13 + $0x4] sm:$0xf]
        %v4084 = vld [vmem:[#allocation13 + $0x8] sm:$0xf]
        %v4085 = vld [vmem:[#allocation13 + $0xc] sm:$0xf]
        %v4086 = vld [vmem:[#allocation13 + $0x10] sm:$0xf]
        %v4087 = vld [vmem:[#allocation13 + $0x14] sm:$0xf]
        %v4088 = vld [vmem:[#allocation13 + $0x18] sm:$0xf]
        %v4089 = vld [vmem:[#allocation13 + $0x1c] sm:$0xf]
        %v4090 = vld [vmem:[#allocation13 + $0x20] sm:$0xf]
        %v4091 = vld [vmem:[#allocation13 + $0x24] sm:$0xf]
        %v4092 = vld [vmem:[#allocation13 + $0x28] sm:$0xf]
        %v4093 = vld [vmem:[#allocation13 + $0x2c] sm:$0xf]
        %v4094 = vld [vmem:[#allocation13 + $0x30] sm:$0xf]
        %v4095 = vld [vmem:[#allocation13 + $0x34] sm:$0xf]
        %v4096 = vld [vmem:[#allocation13 + $0x38] sm:$0xf]
        %v4097 = vld [vmem:[#allocation13 + $0x3c] sm:$0xf]
        %s4098 = scalar_lea.vmem [#allocation13], 192
        %v4099 = vld [vmem:[%s4098] sm:$0xf]
        %v4100 = vld [vmem:[%s4098 + $0x4] sm:$0xf]
        %v4101 = vld [vmem:[%s4098 + $0x8] sm:$0xf]
        %v4102 = vld [vmem:[%s4098 + $0xc] sm:$0xf]
        %v4103 = vld [vmem:[%s4098 + $0x10] sm:$0xf]
        %v4104 = vld [vmem:[%s4098 + $0x14] sm:$0xf]
        %v4105 = vld [vmem:[%s4098 + $0x18] sm:$0xf]
        %v4106 = vld [vmem:[%s4098 + $0x1c] sm:$0xf]
        %v4107 = vld [vmem:[%s4098 + $0x20] sm:$0xf]
        %v4108 = vld [vmem:[%s4098 + $0x24] sm:$0xf]
        %v4109 = vld [vmem:[%s4098 + $0x28] sm:$0xf]
        %v4110 = vld [vmem:[%s4098 + $0x2c] sm:$0xf]
        %v4111 = vld [vmem:[%s4098 + $0x30] sm:$0xf]
        %v4112 = vld [vmem:[%s4098 + $0x34] sm:$0xf]
        %v4113 = vld [vmem:[%s4098 + $0x38] sm:$0xf]
        %v4114 = vld [vmem:[%s4098 + $0x3c] sm:$0xf]
        %v4131 = vunpack.c.l.b16 %v4064
        %v4132 = vunpack.c.l.b16 %v4065
        %v4133 = vunpack.c.l.b16 %v4066
        %v4134 = vunpack.c.l.b16 %v4067
        %v4135 = vunpack.c.l.b16 %v4068
        %v4136 = vunpack.c.l.b16 %v4069
        %v4137 = vunpack.c.l.b16 %v4070
        %v4138 = vunpack.c.l.b16 %v4071
        %v4139 = vunpack.c.l.b16 %v4072
        %v4140 = vunpack.c.l.b16 %v4073
        %v4141 = vunpack.c.l.b16 %v4074
        %v4142 = vunpack.c.l.b16 %v4075
        %v4143 = vunpack.c.l.b16 %v4076
        %v4144 = vunpack.c.l.b16 %v4077
        %v4145 = vunpack.c.l.b16 %v4078
        %v4146 = vunpack.c.l.b16 %v4079
        %v4147 = vpack.c.b16 %v4132, %v4131
        %v4148 = vpack.c.b16 %v4134, %v4133
        %v4149 = vpack.c.b16 %v4136, %v4135
        %v4150 = vpack.c.b16 %v4138, %v4137
        %v4151 = vpack.c.b16 %v4140, %v4139
        %v4152 = vpack.c.b16 %v4142, %v4141
        %v4153 = vpack.c.b16 %v4144, %v4143
        %v4154 = vpack.c.b16 %v4146, %v4145
        %v4179 = vunpack.c.l.b16 %v4099
        %v4180 = vunpack.c.l.b16 %v4100
        %v4181 = vunpack.c.l.b16 %v4101
        %v4182 = vunpack.c.l.b16 %v4102
        %v4183 = vunpack.c.l.b16 %v4103
        %v4184 = vunpack.c.l.b16 %v4104
        %v4185 = vunpack.c.l.b16 %v4105
        %v4186 = vunpack.c.l.b16 %v4106
        %v4187 = vunpack.c.l.b16 %v4107
        %v4188 = vunpack.c.l.b16 %v4108
        %v4189 = vunpack.c.l.b16 %v4109
        %v4190 = vunpack.c.l.b16 %v4110
        %v4191 = vunpack.c.l.b16 %v4111
        %v4192 = vunpack.c.l.b16 %v4112
        %v4193 = vunpack.c.l.b16 %v4113
        %v4194 = vunpack.c.l.b16 %v4114
        %v4195 = vpack.c.b16 %v4180, %v4179
        %v4196 = vpack.c.b16 %v4182, %v4181
        %v4197 = vpack.c.b16 %v4184, %v4183
        %v4198 = vpack.c.b16 %v4186, %v4185
        %v4199 = vpack.c.b16 %v4188, %v4187
        %v4200 = vpack.c.b16 %v4190, %v4189
        %v4201 = vpack.c.b16 %v4192, %v4191
        %v4202 = vpack.c.b16 %v4194, %v4193
        %4211 = vmatpush.bf16.msra.mxu0 %v4202
        %4212 = vmatpush.bf16.msra.mxu0 %v4201
        %4213 = vmatpush.bf16.msra.mxu0 %v4200
        %4214 = vmatpush.bf16.msra.mxu0 %v4199
        %4215 = vmatpush.bf16.msra.mxu0 %v4198
        %4216 = vmatpush.bf16.msra.mxu0 %v4197
        %4217 = vmatpush.bf16.msra.mxu0 %v4196
        %4218 = vmatpush.bf16.msra.mxu0 %v4195
        %4219 = vmatmul.bf16.gmra.mxu0 %v4147
        %v4220 = vpop.f32.mrf.mxu0
        %v4221 = vadd.f32 0.0, %v4220
        %v4222 = vpop.f32.mrf.mxu0
        %v4223 = vadd.f32 0.0, %v4222
        %4224 = vmatmul.bf16.gmra.mxu0 %v4148
        %v4225 = vpop.f32.mrf.mxu0
        %v4226 = vadd.f32 0.0, %v4225
        %v4227 = vpop.f32.mrf.mxu0
        %v4228 = vadd.f32 0.0, %v4227
        %4229 = vmatmul.bf16.gmra.mxu0 %v4149
        %v4230 = vpop.f32.mrf.mxu0
        %v4231 = vadd.f32 0.0, %v4230
        %v4232 = vpop.f32.mrf.mxu0
        %v4233 = vadd.f32 0.0, %v4232
        %4234 = vmatmul.bf16.gmra.mxu0 %v4150
        %v4235 = vpop.f32.mrf.mxu0
        %v4236 = vadd.f32 0.0, %v4235
        %v4237 = vpop.f32.mrf.mxu0
        %v4238 = vadd.f32 0.0, %v4237
        %4239 = vmatmul.bf16.gmra.mxu0 %v4151
        %v4240 = vpop.f32.mrf.mxu0
        %v4241 = vadd.f32 0.0, %v4240
        %v4242 = vpop.f32.mrf.mxu0
        %v4243 = vadd.f32 0.0, %v4242
        %4244 = vmatmul.bf16.gmra.mxu0 %v4152
        %v4245 = vpop.f32.mrf.mxu0
        %v4246 = vadd.f32 0.0, %v4245
        %v4247 = vpop.f32.mrf.mxu0
        %v4248 = vadd.f32 0.0, %v4247
        %4249 = vmatmul.bf16.gmra.mxu0 %v4153
        %v4250 = vpop.f32.mrf.mxu0
        %v4251 = vadd.f32 0.0, %v4250
        %v4252 = vpop.f32.mrf.mxu0
        %v4253 = vadd.f32 0.0, %v4252
        %4254 = vmatmul.bf16.gmra.mxu0 %v4154
        %v4255 = vpop.f32.mrf.mxu0
        %v4256 = vadd.f32 0.0, %v4255
        %v4257 = vpop.f32.mrf.mxu0
        %v4258 = vadd.f32 0.0, %v4257
        %4259 = vdwg.mxu0
        %v4262 = vunpack.c.l.b16 %v4062
        %v4263 = vunpack.c.l.b16 %v4063
        %v4264 = vpack.c.b16 %v4263, %v4262
        %v4282 = vunpack.c.l.b16 %v4082
        %v4283 = vunpack.c.l.b16 %v4083
        %v4284 = vunpack.c.l.b16 %v4084
        %v4285 = vunpack.c.l.b16 %v4085
        %v4286 = vunpack.c.l.b16 %v4086
        %v4287 = vunpack.c.l.b16 %v4087
        %v4288 = vunpack.c.l.b16 %v4088
        %v4289 = vunpack.c.l.b16 %v4089
        %v4290 = vunpack.c.l.b16 %v4090
        %v4291 = vunpack.c.l.b16 %v4091
        %v4292 = vunpack.c.l.b16 %v4092
        %v4293 = vunpack.c.l.b16 %v4093
        %v4294 = vunpack.c.l.b16 %v4094
        %v4295 = vunpack.c.l.b16 %v4095
        %v4296 = vunpack.c.l.b16 %v4096
        %v4297 = vunpack.c.l.b16 %v4097
        %v4298 = vpack.c.b16 %v4283, %v4282
        %v4299 = vpack.c.b16 %v4285, %v4284
        %v4300 = vpack.c.b16 %v4287, %v4286
        %v4301 = vpack.c.b16 %v4289, %v4288
        %v4302 = vpack.c.b16 %v4291, %v4290
        %v4303 = vpack.c.b16 %v4293, %v4292
        %v4304 = vpack.c.b16 %v4295, %v4294
        %v4305 = vpack.c.b16 %v4297, %v4296
        %4314 = vmatpush.bf16.msra.mxu0 %v4305
        %4315 = vmatpush.bf16.msra.mxu0 %v4304
        %4316 = vmatpush.bf16.msra.mxu0 %v4303
        %4317 = vmatpush.bf16.msra.mxu0 %v4302
        %4318 = vmatpush.bf16.msra.mxu0 %v4301
        %4319 = vmatpush.bf16.msra.mxu0 %v4300
        %4320 = vmatpush.bf16.msra.mxu0 %v4299
        %4321 = vmatpush.bf16.msra.mxu0 %v4298
        %4322 = vmatmul.bf16.gmra.mxu0 %v4264
        %v4323 = vpop.f32.mrf.mxu0
        %v4324 = vadd.f32 %v4221, %v4323
        %v4325 = vpop.f32.mrf.mxu0
        %v4326 = vadd.f32 %v4223, %v4325
        %4327 = vmatmul.bf16.gmra.mxu0 %v4147
        %v4328 = vpop.f32.mrf.mxu0
        %v4329 = vadd.f32 %v4226, %v4328
        %v4330 = vpop.f32.mrf.mxu0
        %v4331 = vadd.f32 %v4228, %v4330
        %4332 = vmatmul.bf16.gmra.mxu0 %v4148
        %v4333 = vpop.f32.mrf.mxu0
        %v4334 = vadd.f32 %v4231, %v4333
        %v4335 = vpop.f32.mrf.mxu0
        %v4336 = vadd.f32 %v4233, %v4335
        %4337 = vmatmul.bf16.gmra.mxu0 %v4149
        %v4338 = vpop.f32.mrf.mxu0
        %v4339 = vadd.f32 %v4236, %v4338
        %v4340 = vpop.f32.mrf.mxu0
        %v4341 = vadd.f32 %v4238, %v4340
        %4342 = vmatmul.bf16.gmra.mxu0 %v4150
        %v4343 = vpop.f32.mrf.mxu0
        %v4344 = vadd.f32 %v4241, %v4343
        %v4345 = vpop.f32.mrf.mxu0
        %v4346 = vadd.f32 %v4243, %v4345
        %4347 = vmatmul.bf16.gmra.mxu0 %v4151
        %v4348 = vpop.f32.mrf.mxu0
        %v4349 = vadd.f32 %v4246, %v4348
        %v4350 = vpop.f32.mrf.mxu0
        %v4351 = vadd.f32 %v4248, %v4350
        %4352 = vmatmul.bf16.gmra.mxu0 %v4152
        %v4353 = vpop.f32.mrf.mxu0
        %v4354 = vadd.f32 %v4251, %v4353
        %v4355 = vpop.f32.mrf.mxu0
        %v4356 = vadd.f32 %v4253, %v4355
        %4357 = vmatmul.bf16.gmra.mxu0 %v4153
        %v4358 = vpop.f32.mrf.mxu0
        %v4359 = vadd.f32 %v4256, %v4358
        %v4360 = vpop.f32.mrf.mxu0
        %v4361 = vadd.f32 %v4258, %v4360
        %4362 = vdwg.mxu0
        %s4363 = scalar_lea.vmem [#allocation13], 384
        %v4364 = vld [vmem:[%s4363] sm:$0xf]
        %v4365 = vld [vmem:[%s4363 + $0x4] sm:$0xf]
        %v4366 = vld [vmem:[%s4363 + $0x8] sm:$0xf]
        %v4367 = vld [vmem:[%s4363 + $0xc] sm:$0xf]
        %v4368 = vld [vmem:[%s4363 + $0x10] sm:$0xf]
        %v4369 = vld [vmem:[%s4363 + $0x14] sm:$0xf]
        %v4370 = vld [vmem:[%s4363 + $0x18] sm:$0xf]
        %v4371 = vld [vmem:[%s4363 + $0x1c] sm:$0xf]
        %v4372 = vld [vmem:[%s4363 + $0x20] sm:$0xf]
        %v4373 = vld [vmem:[%s4363 + $0x24] sm:$0xf]
        %v4374 = vld [vmem:[%s4363 + $0x28] sm:$0xf]
        %v4375 = vld [vmem:[%s4363 + $0x2c] sm:$0xf]
        %v4376 = vld [vmem:[%s4363 + $0x30] sm:$0xf]
        %v4377 = vld [vmem:[%s4363 + $0x34] sm:$0xf]
        %v4378 = vld [vmem:[%s4363 + $0x38] sm:$0xf]
        %v4379 = vld [vmem:[%s4363 + $0x3c] sm:$0xf]
        %v4382 = vunpack.c.l.b16 %v4080
        %v4383 = vunpack.c.l.b16 %v4081
        %v4384 = vpack.c.b16 %v4383, %v4382
        %v4402 = vunpack.c.l.b16 %v4364
        %v4403 = vunpack.c.l.b16 %v4365
        %v4404 = vunpack.c.l.b16 %v4366
        %v4405 = vunpack.c.l.b16 %v4367
        %v4406 = vunpack.c.l.b16 %v4368
        %v4407 = vunpack.c.l.b16 %v4369
        %v4408 = vunpack.c.l.b16 %v4370
        %v4409 = vunpack.c.l.b16 %v4371
        %v4410 = vunpack.c.l.b16 %v4372
        %v4411 = vunpack.c.l.b16 %v4373
        %v4412 = vunpack.c.l.b16 %v4374
        %v4413 = vunpack.c.l.b16 %v4375
        %v4414 = vunpack.c.l.b16 %v4376
        %v4415 = vunpack.c.l.b16 %v4377
        %v4416 = vunpack.c.l.b16 %v4378
        %v4417 = vunpack.c.l.b16 %v4379
        %v4418 = vpack.c.b16 %v4403, %v4402
        %v4419 = vpack.c.b16 %v4405, %v4404
        %v4420 = vpack.c.b16 %v4407, %v4406
        %v4421 = vpack.c.b16 %v4409, %v4408
        %v4422 = vpack.c.b16 %v4411, %v4410
        %v4423 = vpack.c.b16 %v4413, %v4412
        %v4424 = vpack.c.b16 %v4415, %v4414
        %v4425 = vpack.c.b16 %v4417, %v4416
        %4434 = vmatpush.bf16.msra.mxu0 %v4425
        %4435 = vmatpush.bf16.msra.mxu0 %v4424
        %4436 = vmatpush.bf16.msra.mxu0 %v4423
        %4437 = vmatpush.bf16.msra.mxu0 %v4422
        %4438 = vmatpush.bf16.msra.mxu0 %v4421
        %4439 = vmatpush.bf16.msra.mxu0 %v4420
        %4440 = vmatpush.bf16.msra.mxu0 %v4419
        %4441 = vmatpush.bf16.msra.mxu0 %v4418
        %4442 = vmatmul.bf16.gmra.mxu0 %v4148
        %v4443 = vpop.f32.mrf.mxu0
        %v4444 = vadd.f32 0.0, %v4443
        %v4445 = vpop.f32.mrf.mxu0
        %v4446 = vadd.f32 0.0, %v4445
        %4447 = vmatmul.bf16.gmra.mxu0 %v4149
        %v4448 = vpop.f32.mrf.mxu0
        %v4449 = vadd.f32 0.0, %v4448
        %v4450 = vpop.f32.mrf.mxu0
        %v4451 = vadd.f32 0.0, %v4450
        %4452 = vmatmul.bf16.gmra.mxu0 %v4150
        %v4453 = vpop.f32.mrf.mxu0
        %v4454 = vadd.f32 0.0, %v4453
        %v4455 = vpop.f32.mrf.mxu0
        %v4456 = vadd.f32 0.0, %v4455
        %4457 = vmatmul.bf16.gmra.mxu0 %v4151
        %v4458 = vpop.f32.mrf.mxu0
        %v4459 = vadd.f32 0.0, %v4458
        %v4460 = vpop.f32.mrf.mxu0
        %v4461 = vadd.f32 0.0, %v4460
        %4462 = vmatmul.bf16.gmra.mxu0 %v4152
        %v4463 = vpop.f32.mrf.mxu0
        %v4464 = vadd.f32 0.0, %v4463
        %v4465 = vpop.f32.mrf.mxu0
        %v4466 = vadd.f32 0.0, %v4465
        %4467 = vmatmul.bf16.gmra.mxu0 %v4153
        %v4468 = vpop.f32.mrf.mxu0
        %v4469 = vadd.f32 0.0, %v4468
        %v4470 = vpop.f32.mrf.mxu0
        %v4471 = vadd.f32 0.0, %v4470
        %4472 = vmatmul.bf16.gmra.mxu0 %v4154
        %v4473 = vpop.f32.mrf.mxu0
        %v4474 = vadd.f32 0.0, %v4473
        %v4475 = vpop.f32.mrf.mxu0
        %v4476 = vadd.f32 0.0, %v4475
        %4477 = vmatmul.bf16.gmra.mxu0 %v4384
        %v4478 = vpop.f32.mrf.mxu0
        %v4479 = vadd.f32 0.0, %v4478
        %v4480 = vpop.f32.mrf.mxu0
        %v4481 = vadd.f32 0.0, %v4480
        %4482 = vdwg.mxu0
        %v4483 = vadd.f32 %v4324, %v4444
        %v4484 = vadd.f32 %v4326, %v4446
        %v4485 = vadd.f32 %v4329, %v4449
        %v4486 = vadd.f32 %v4331, %v4451
        %v4487 = vadd.f32 %v4334, %v4454
        %v4488 = vadd.f32 %v4336, %v4456
        %v4489 = vadd.f32 %v4339, %v4459
        %v4490 = vadd.f32 %v4341, %v4461
        %v4491 = vadd.f32 %v4344, %v4464
        %v4492 = vadd.f32 %v4346, %v4466
        %v4493 = vadd.f32 %v4349, %v4469
        %v4494 = vadd.f32 %v4351, %v4471
        %v4495 = vadd.f32 %v4354, %v4474
        %v4496 = vadd.f32 %v4356, %v4476
        %v4497 = vadd.f32 %v4359, %v4479
        %v4498 = vadd.f32 %v4361, %v4481
        %v4499 = vpack.c.bf16 %v4002, %v4002
        %v4500 = vpack.c.bf16 %v4003, %v4003
        %v4501 = vpack.c.bf16 %v4004, %v4004
        %v4502 = vpack.c.bf16 %v4005, %v4005
        %v4503 = vpack.c.bf16 %v4006, %v4006
        %v4504 = vpack.c.bf16 %v4007, %v4007
        %v4505 = vpack.c.bf16 %v4008, %v4008
        %v4506 = vpack.c.bf16 %v4009, %v4009
        %v4507 = vpack.c.bf16 %v4010, %v4010
        %v4508 = vpack.c.bf16 %v4011, %v4011
        %v4509 = vpack.c.bf16 %v4012, %v4012
        %v4510 = vpack.c.bf16 %v4013, %v4013
        %v4511 = vpack.c.bf16 %v4014, %v4014
        %v4512 = vpack.c.bf16 %v4015, %v4015
        %v4513 = vpack.c.bf16 %v4016, %v4016
        %v4514 = vpack.c.bf16 %v4017, %v4017
        %v4515 = vpack.c.bf16 %v4018, %v4018
        %v4516 = vpack.c.bf16 %v4019, %v4019
        %v4517 = vpack.c.bf16 %v4020, %v4020
        %v4518 = vpack.c.bf16 %v4021, %v4021
        %s4519 = scalar_lea.vmem [#allocation13], 64
        %v4520 = vld [vmem:[%s4519] sm:$0xf]
        %v4521 = vld [vmem:[%s4519 + $0x4] sm:$0xf]
        %v4522 = vld [vmem:[%s4519 + $0x8] sm:$0xf]
        %v4523 = vld [vmem:[%s4519 + $0xc] sm:$0xf]
        %v4524 = vld [vmem:[%s4519 + $0x10] sm:$0xf]
        %v4525 = vld [vmem:[%s4519 + $0x14] sm:$0xf]
        %v4526 = vld [vmem:[%s4519 + $0x18] sm:$0xf]
        %v4527 = vld [vmem:[%s4519 + $0x1c] sm:$0xf]
        %v4528 = vld [vmem:[%s4519 + $0x20] sm:$0xf]
        %v4529 = vld [vmem:[%s4519 + $0x24] sm:$0xf]
        %v4530 = vld [vmem:[%s4519 + $0x28] sm:$0xf]
        %v4531 = vld [vmem:[%s4519 + $0x2c] sm:$0xf]
        %v4532 = vld [vmem:[%s4519 + $0x30] sm:$0xf]
        %v4533 = vld [vmem:[%s4519 + $0x34] sm:$0xf]
        %v4534 = vld [vmem:[%s4519 + $0x38] sm:$0xf]
        %v4535 = vld [vmem:[%s4519 + $0x3c] sm:$0xf]
        %v4552 = vunpack.c.l.b16 %v4499
        %v4553 = vunpack.c.l.b16 %v4500
        %v4554 = vunpack.c.l.b16 %v4501
        %v4555 = vunpack.c.l.b16 %v4502
        %v4556 = vunpack.c.l.b16 %v4503
        %v4557 = vunpack.c.l.b16 %v4504
        %v4558 = vunpack.c.l.b16 %v4505
        %v4559 = vunpack.c.l.b16 %v4506
        %v4560 = vunpack.c.l.b16 %v4507
        %v4561 = vunpack.c.l.b16 %v4508
        %v4562 = vunpack.c.l.b16 %v4509
        %v4563 = vunpack.c.l.b16 %v4510
        %v4564 = vunpack.c.l.b16 %v4511
        %v4565 = vunpack.c.l.b16 %v4512
        %v4566 = vunpack.c.l.b16 %v4513
        %v4567 = vunpack.c.l.b16 %v4514
        %v4568 = vpack.c.b16 %v4553, %v4552
        %v4569 = vpack.c.b16 %v4555, %v4554
        %v4570 = vpack.c.b16 %v4557, %v4556
        %v4571 = vpack.c.b16 %v4559, %v4558
        %v4572 = vpack.c.b16 %v4561, %v4560
        %v4573 = vpack.c.b16 %v4563, %v4562
        %v4574 = vpack.c.b16 %v4565, %v4564
        %v4575 = vpack.c.b16 %v4567, %v4566
        %v4600 = vunpack.c.l.b16 %v4520
        %v4601 = vunpack.c.l.b16 %v4521
        %v4602 = vunpack.c.l.b16 %v4522
        %v4603 = vunpack.c.l.b16 %v4523
        %v4604 = vunpack.c.l.b16 %v4524
        %v4605 = vunpack.c.l.b16 %v4525
        %v4606 = vunpack.c.l.b16 %v4526
        %v4607 = vunpack.c.l.b16 %v4527
        %v4608 = vunpack.c.l.b16 %v4528
        %v4609 = vunpack.c.l.b16 %v4529
        %v4610 = vunpack.c.l.b16 %v4530
        %v4611 = vunpack.c.l.b16 %v4531
        %v4612 = vunpack.c.l.b16 %v4532
        %v4613 = vunpack.c.l.b16 %v4533
        %v4614 = vunpack.c.l.b16 %v4534
        %v4615 = vunpack.c.l.b16 %v4535
        %v4616 = vpack.c.b16 %v4601, %v4600
        %v4617 = vpack.c.b16 %v4603, %v4602
        %v4618 = vpack.c.b16 %v4605, %v4604
        %v4619 = vpack.c.b16 %v4607, %v4606
        %v4620 = vpack.c.b16 %v4609, %v4608
        %v4621 = vpack.c.b16 %v4611, %v4610
        %v4622 = vpack.c.b16 %v4613, %v4612
        %v4623 = vpack.c.b16 %v4615, %v4614
        %4632 = vmatpush.bf16.msra.mxu0 %v4623
        %4633 = vmatpush.bf16.msra.mxu0 %v4622
        %4634 = vmatpush.bf16.msra.mxu0 %v4621
        %4635 = vmatpush.bf16.msra.mxu0 %v4620
        %4636 = vmatpush.bf16.msra.mxu0 %v4619
        %4637 = vmatpush.bf16.msra.mxu0 %v4618
        %4638 = vmatpush.bf16.msra.mxu0 %v4617
        %4639 = vmatpush.bf16.msra.mxu0 %v4616
        %4640 = vmatmul.bf16.gmra.mxu0 %v4568
        %v4641 = vpop.f32.mrf.mxu0
        %v4642 = vadd.f32 0.0, %v4641
        %v4643 = vpop.f32.mrf.mxu0
        %v4644 = vadd.f32 0.0, %v4643
        %4645 = vmatmul.bf16.gmra.mxu0 %v4569
        %v4646 = vpop.f32.mrf.mxu0
        %v4647 = vadd.f32 0.0, %v4646
        %v4648 = vpop.f32.mrf.mxu0
        %v4649 = vadd.f32 0.0, %v4648
        %4650 = vmatmul.bf16.gmra.mxu0 %v4570
        %v4651 = vpop.f32.mrf.mxu0
        %v4652 = vadd.f32 0.0, %v4651
        %v4653 = vpop.f32.mrf.mxu0
        %v4654 = vadd.f32 0.0, %v4653
        %4655 = vmatmul.bf16.gmra.mxu0 %v4571
        %v4656 = vpop.f32.mrf.mxu0
        %v4657 = vadd.f32 0.0, %v4656
        %v4658 = vpop.f32.mrf.mxu0
        %v4659 = vadd.f32 0.0, %v4658
        %4660 = vmatmul.bf16.gmra.mxu0 %v4572
        %v4661 = vpop.f32.mrf.mxu0
        %v4662 = vadd.f32 0.0, %v4661
        %v4663 = vpop.f32.mrf.mxu0
        %v4664 = vadd.f32 0.0, %v4663
        %4665 = vmatmul.bf16.gmra.mxu0 %v4573
        %v4666 = vpop.f32.mrf.mxu0
        %v4667 = vadd.f32 0.0, %v4666
        %v4668 = vpop.f32.mrf.mxu0
        %v4669 = vadd.f32 0.0, %v4668
        %4670 = vmatmul.bf16.gmra.mxu0 %v4574
        %v4671 = vpop.f32.mrf.mxu0
        %v4672 = vadd.f32 0.0, %v4671
        %v4673 = vpop.f32.mrf.mxu0
        %v4674 = vadd.f32 0.0, %v4673
        %4675 = vmatmul.bf16.gmra.mxu0 %v4575
        %v4676 = vpop.f32.mrf.mxu0
        %v4677 = vadd.f32 0.0, %v4676
        %v4678 = vpop.f32.mrf.mxu0
        %v4679 = vadd.f32 0.0, %v4678
        %4680 = vdwg.mxu0
        %v4681 = vadd.f32 %v4483, %v4642
        %v4682 = vadd.f32 %v4484, %v4644
        %v4683 = vadd.f32 %v4485, %v4647
        %v4684 = vadd.f32 %v4486, %v4649
        %v4685 = vadd.f32 %v4487, %v4652
        %v4686 = vadd.f32 %v4488, %v4654
        %v4687 = vadd.f32 %v4489, %v4657
        %v4688 = vadd.f32 %v4490, %v4659
        %v4689 = vadd.f32 %v4491, %v4662
        %v4690 = vadd.f32 %v4492, %v4664
        %v4691 = vadd.f32 %v4493, %v4667
        %v4692 = vadd.f32 %v4494, %v4669
        %v4693 = vadd.f32 %v4495, %v4672
        %v4694 = vadd.f32 %v4496, %v4674
        %v4695 = vadd.f32 %v4497, %v4677
        %v4696 = vadd.f32 %v4498, %v4679
        %s4697 = scalar_lea.vmem [#allocation13], 256
        %v4698 = vld [vmem:[%s4697] sm:$0xf]
        %v4699 = vld [vmem:[%s4697 + $0x4] sm:$0xf]
        %v4700 = vld [vmem:[%s4697 + $0x8] sm:$0xf]
        %v4701 = vld [vmem:[%s4697 + $0xc] sm:$0xf]
        %v4702 = vld [vmem:[%s4697 + $0x10] sm:$0xf]
        %v4703 = vld [vmem:[%s4697 + $0x14] sm:$0xf]
        %v4704 = vld [vmem:[%s4697 + $0x18] sm:$0xf]
        %v4705 = vld [vmem:[%s4697 + $0x1c] sm:$0xf]
        %v4706 = vld [vmem:[%s4697 + $0x20] sm:$0xf]
        %v4707 = vld [vmem:[%s4697 + $0x24] sm:$0xf]
        %v4708 = vld [vmem:[%s4697 + $0x28] sm:$0xf]
        %v4709 = vld [vmem:[%s4697 + $0x2c] sm:$0xf]
        %v4710 = vld [vmem:[%s4697 + $0x30] sm:$0xf]
        %v4711 = vld [vmem:[%s4697 + $0x34] sm:$0xf]
        %v4712 = vld [vmem:[%s4697 + $0x38] sm:$0xf]
        %v4713 = vld [vmem:[%s4697 + $0x3c] sm:$0xf]
        %v4716 = vunpack.c.l.b16 %v4515
        %v4717 = vunpack.c.l.b16 %v4516
        %v4718 = vpack.c.b16 %v4717, %v4716
        %v4736 = vunpack.c.l.b16 %v4698
        %v4737 = vunpack.c.l.b16 %v4699
        %v4738 = vunpack.c.l.b16 %v4700
        %v4739 = vunpack.c.l.b16 %v4701
        %v4740 = vunpack.c.l.b16 %v4702
        %v4741 = vunpack.c.l.b16 %v4703
        %v4742 = vunpack.c.l.b16 %v4704
        %v4743 = vunpack.c.l.b16 %v4705
        %v4744 = vunpack.c.l.b16 %v4706
        %v4745 = vunpack.c.l.b16 %v4707
        %v4746 = vunpack.c.l.b16 %v4708
        %v4747 = vunpack.c.l.b16 %v4709
        %v4748 = vunpack.c.l.b16 %v4710
        %v4749 = vunpack.c.l.b16 %v4711
        %v4750 = vunpack.c.l.b16 %v4712
        %v4751 = vunpack.c.l.b16 %v4713
        %v4752 = vpack.c.b16 %v4737, %v4736
        %v4753 = vpack.c.b16 %v4739, %v4738
        %v4754 = vpack.c.b16 %v4741, %v4740
        %v4755 = vpack.c.b16 %v4743, %v4742
        %v4756 = vpack.c.b16 %v4745, %v4744
        %v4757 = vpack.c.b16 %v4747, %v4746
        %v4758 = vpack.c.b16 %v4749, %v4748
        %v4759 = vpack.c.b16 %v4751, %v4750
        %4768 = vmatpush.bf16.msra.mxu0 %v4759
        %4769 = vmatpush.bf16.msra.mxu0 %v4758
        %4770 = vmatpush.bf16.msra.mxu0 %v4757
        %4771 = vmatpush.bf16.msra.mxu0 %v4756
        %4772 = vmatpush.bf16.msra.mxu0 %v4755
        %4773 = vmatpush.bf16.msra.mxu0 %v4754
        %4774 = vmatpush.bf16.msra.mxu0 %v4753
        %4775 = vmatpush.bf16.msra.mxu0 %v4752
        %4776 = vmatmul.bf16.gmra.mxu0 %v4569
        %v4777 = vpop.f32.mrf.mxu0
        %v4778 = vadd.f32 0.0, %v4777
        %v4779 = vpop.f32.mrf.mxu0
        %v4780 = vadd.f32 0.0, %v4779
        %4781 = vmatmul.bf16.gmra.mxu0 %v4570
        %v4782 = vpop.f32.mrf.mxu0
        %v4783 = vadd.f32 0.0, %v4782
        %v4784 = vpop.f32.mrf.mxu0
        %v4785 = vadd.f32 0.0, %v4784
        %4786 = vmatmul.bf16.gmra.mxu0 %v4571
        %v4787 = vpop.f32.mrf.mxu0
        %v4788 = vadd.f32 0.0, %v4787
        %v4789 = vpop.f32.mrf.mxu0
        %v4790 = vadd.f32 0.0, %v4789
        %4791 = vmatmul.bf16.gmra.mxu0 %v4572
        %v4792 = vpop.f32.mrf.mxu0
        %v4793 = vadd.f32 0.0, %v4792
        %v4794 = vpop.f32.mrf.mxu0
        %v4795 = vadd.f32 0.0, %v4794
        %4796 = vmatmul.bf16.gmra.mxu0 %v4573
        %v4797 = vpop.f32.mrf.mxu0
        %v4798 = vadd.f32 0.0, %v4797
        %v4799 = vpop.f32.mrf.mxu0
        %v4800 = vadd.f32 0.0, %v4799
        %4801 = vmatmul.bf16.gmra.mxu0 %v4574
        %v4802 = vpop.f32.mrf.mxu0
        %v4803 = vadd.f32 0.0, %v4802
        %v4804 = vpop.f32.mrf.mxu0
        %v4805 = vadd.f32 0.0, %v4804
        %4806 = vmatmul.bf16.gmra.mxu0 %v4575
        %v4807 = vpop.f32.mrf.mxu0
        %v4808 = vadd.f32 0.0, %v4807
        %v4809 = vpop.f32.mrf.mxu0
        %v4810 = vadd.f32 0.0, %v4809
        %4811 = vmatmul.bf16.gmra.mxu0 %v4718
        %v4812 = vpop.f32.mrf.mxu0
        %v4813 = vadd.f32 0.0, %v4812
        %v4814 = vpop.f32.mrf.mxu0
        %v4815 = vadd.f32 0.0, %v4814
        %4816 = vdwg.mxu0
        %v4817 = vadd.f32 %v4681, %v4778
        %v4818 = vadd.f32 %v4682, %v4780
        %v4819 = vadd.f32 %v4683, %v4783
        %v4820 = vadd.f32 %v4684, %v4785
        %v4821 = vadd.f32 %v4685, %v4788
        %v4822 = vadd.f32 %v4686, %v4790
        %v4823 = vadd.f32 %v4687, %v4793
        %v4824 = vadd.f32 %v4688, %v4795
        %v4825 = vadd.f32 %v4689, %v4798
        %v4826 = vadd.f32 %v4690, %v4800
        %v4827 = vadd.f32 %v4691, %v4803
        %v4828 = vadd.f32 %v4692, %v4805
        %v4829 = vadd.f32 %v4693, %v4808
        %v4830 = vadd.f32 %v4694, %v4810
        %v4831 = vadd.f32 %v4695, %v4813
        %v4832 = vadd.f32 %v4696, %v4815
        %s4833 = scalar_lea.vmem [#allocation13], 448
        %v4834 = vld [vmem:[%s4833] sm:$0xf]
        %v4835 = vld [vmem:[%s4833 + $0x4] sm:$0xf]
        %v4836 = vld [vmem:[%s4833 + $0x8] sm:$0xf]
        %v4837 = vld [vmem:[%s4833 + $0xc] sm:$0xf]
        %v4838 = vld [vmem:[%s4833 + $0x10] sm:$0xf]
        %v4839 = vld [vmem:[%s4833 + $0x14] sm:$0xf]
        %v4840 = vld [vmem:[%s4833 + $0x18] sm:$0xf]
        %v4841 = vld [vmem:[%s4833 + $0x1c] sm:$0xf]
        %v4842 = vld [vmem:[%s4833 + $0x20] sm:$0xf]
        %v4843 = vld [vmem:[%s4833 + $0x24] sm:$0xf]
        %v4844 = vld [vmem:[%s4833 + $0x28] sm:$0xf]
        %v4845 = vld [vmem:[%s4833 + $0x2c] sm:$0xf]
        %v4846 = vld [vmem:[%s4833 + $0x30] sm:$0xf]
        %v4847 = vld [vmem:[%s4833 + $0x34] sm:$0xf]
        %v4848 = vld [vmem:[%s4833 + $0x38] sm:$0xf]
        %v4849 = vld [vmem:[%s4833 + $0x3c] sm:$0xf]
        %v4852 = vunpack.c.l.b16 %v4517
        %v4853 = vunpack.c.l.b16 %v4518
        %v4854 = vpack.c.b16 %v4853, %v4852
        %v4872 = vunpack.c.l.b16 %v4834
        %v4873 = vunpack.c.l.b16 %v4835
        %v4874 = vunpack.c.l.b16 %v4836
        %v4875 = vunpack.c.l.b16 %v4837
        %v4876 = vunpack.c.l.b16 %v4838
        %v4877 = vunpack.c.l.b16 %v4839
        %v4878 = vunpack.c.l.b16 %v4840
        %v4879 = vunpack.c.l.b16 %v4841
        %v4880 = vunpack.c.l.b16 %v4842
        %v4881 = vunpack.c.l.b16 %v4843
        %v4882 = vunpack.c.l.b16 %v4844
        %v4883 = vunpack.c.l.b16 %v4845
        %v4884 = vunpack.c.l.b16 %v4846
        %v4885 = vunpack.c.l.b16 %v4847
        %v4886 = vunpack.c.l.b16 %v4848
        %v4887 = vunpack.c.l.b16 %v4849
        %v4888 = vpack.c.b16 %v4873, %v4872
        %v4889 = vpack.c.b16 %v4875, %v4874
        %v4890 = vpack.c.b16 %v4877, %v4876
        %v4891 = vpack.c.b16 %v4879, %v4878
        %v4892 = vpack.c.b16 %v4881, %v4880
        %v4893 = vpack.c.b16 %v4883, %v4882
        %v4894 = vpack.c.b16 %v4885, %v4884
        %v4895 = vpack.c.b16 %v4887, %v4886
        %4904 = vmatpush.bf16.msra.mxu0 %v4895
        %4905 = vmatpush.bf16.msra.mxu0 %v4894
        %4906 = vmatpush.bf16.msra.mxu0 %v4893
        %4907 = vmatpush.bf16.msra.mxu0 %v4892
        %4908 = vmatpush.bf16.msra.mxu0 %v4891
        %4909 = vmatpush.bf16.msra.mxu0 %v4890
        %4910 = vmatpush.bf16.msra.mxu0 %v4889
        %4911 = vmatpush.bf16.msra.mxu0 %v4888
        %4912 = vmatmul.bf16.gmra.mxu0 %v4570
        %v4913 = vpop.f32.mrf.mxu0
        %v4914 = vadd.f32 0.0, %v4913
        %v4915 = vpop.f32.mrf.mxu0
        %v4916 = vadd.f32 0.0, %v4915
        %4917 = vmatmul.bf16.gmra.mxu0 %v4571
        %v4918 = vpop.f32.mrf.mxu0
        %v4919 = vadd.f32 0.0, %v4918
        %v4920 = vpop.f32.mrf.mxu0
        %v4921 = vadd.f32 0.0, %v4920
        %4922 = vmatmul.bf16.gmra.mxu0 %v4572
        %v4923 = vpop.f32.mrf.mxu0
        %v4924 = vadd.f32 0.0, %v4923
        %v4925 = vpop.f32.mrf.mxu0
        %v4926 = vadd.f32 0.0, %v4925
        %4927 = vmatmul.bf16.gmra.mxu0 %v4573
        %v4928 = vpop.f32.mrf.mxu0
        %v4929 = vadd.f32 0.0, %v4928
        %v4930 = vpop.f32.mrf.mxu0
        %v4931 = vadd.f32 0.0, %v4930
        %4932 = vmatmul.bf16.gmra.mxu0 %v4574
        %v4933 = vpop.f32.mrf.mxu0
        %v4934 = vadd.f32 0.0, %v4933
        %v4935 = vpop.f32.mrf.mxu0
        %v4936 = vadd.f32 0.0, %v4935
        %4937 = vmatmul.bf16.gmra.mxu0 %v4575
        %v4938 = vpop.f32.mrf.mxu0
        %v4939 = vadd.f32 0.0, %v4938
        %v4940 = vpop.f32.mrf.mxu0
        %v4941 = vadd.f32 0.0, %v4940
        %4942 = vmatmul.bf16.gmra.mxu0 %v4718
        %v4943 = vpop.f32.mrf.mxu0
        %v4944 = vadd.f32 0.0, %v4943
        %v4945 = vpop.f32.mrf.mxu0
        %v4946 = vadd.f32 0.0, %v4945
        %4947 = vmatmul.bf16.gmra.mxu0 %v4854
        %v4948 = vpop.f32.mrf.mxu0
        %v4949 = vadd.f32 0.0, %v4948
        %v4950 = vpop.f32.mrf.mxu0
        %v4951 = vadd.f32 0.0, %v4950
        %4952 = vdwg.mxu0
        %v4953 = vadd.f32 %v4817, %v4914
        %v4954 = vadd.f32 %v4818, %v4916
        %v4955 = vadd.f32 %v4819, %v4919
        %v4956 = vadd.f32 %v4820, %v4921
        %v4957 = vadd.f32 %v4821, %v4924
        %v4958 = vadd.f32 %v4822, %v4926
        %v4959 = vadd.f32 %v4823, %v4929
        %v4960 = vadd.f32 %v4824, %v4931
        %v4961 = vadd.f32 %v4825, %v4934
        %v4962 = vadd.f32 %v4826, %v4936
        %v4963 = vadd.f32 %v4827, %v4939
        %v4964 = vadd.f32 %v4828, %v4941
        %v4965 = vadd.f32 %v4829, %v4944
        %v4966 = vadd.f32 %v4830, %v4946
        %v4967 = vadd.f32 %v4831, %v4949
        %v4968 = vadd.f32 %v4832, %v4951
        %v4969 = vrot.slane %v4002, 1
        %v4970 = vrot.slane %v4003, 1
        %v4971 = vrot.slane %v4004, 1
        %v4972 = vrot.slane %v4005, 1
        %v4973 = vrot.slane %v4006, 1
        %v4974 = vrot.slane %v4007, 1
        %v4975 = vrot.slane %v4008, 1
        %v4976 = vrot.slane %v4009, 1
        %v4977 = vrot.slane %v4010, 1
        %v4978 = vrot.slane %v4011, 1
        %v4979 = vrot.slane %v4012, 1
        %v4980 = vrot.slane %v4013, 1
        %v4981 = vrot.slane %v4014, 1
        %v4982 = vrot.slane %v4015, 1
        %v4983 = vrot.slane %v4016, 1
        %v4984 = vrot.slane %v4017, 1
        %v4985 = vrot.slane %v4018, 1
        %v4986 = vrot.slane %v4019, 1
        %v4987 = vrot.slane %v4020, 1
        %v4988 = vrot.slane %v4021, 1
        %v4989 = vsel %vm1741, %v4987, %v4988
        %v4990 = vsel %vm1741, %v4986, %v4987
        %v4991 = vsel %vm1741, %v4985, %v4986
        %v4992 = vsel %vm1741, %v4984, %v4985
        %v4993 = vsel %vm1741, %v4983, %v4984
        %v4994 = vsel %vm1741, %v4982, %v4983
        %v4995 = vsel %vm1741, %v4981, %v4982
        %v4996 = vsel %vm1741, %v4980, %v4981
        %v4997 = vsel %vm1741, %v4979, %v4980
        %v4998 = vsel %vm1741, %v4978, %v4979
        %v4999 = vsel %vm1741, %v4977, %v4978
        %v5000 = vsel %vm1741, %v4976, %v4977
        %v5001 = vsel %vm1741, %v4975, %v4976
        %v5002 = vsel %vm1741, %v4974, %v4975
        %v5003 = vsel %vm1741, %v4973, %v4974
        %v5004 = vsel %vm1741, %v4972, %v4973
        %v5005 = vsel %vm1741, %v4971, %v4972
        %v5006 = vsel %vm1741, %v4970, %v4971
        %v5007 = vsel %vm1741, %v4969, %v4970
        %v5008 = vsel %vm1741, %v4988, %v4969
        %v5009 = vpack.c.bf16 %v5007, %v5007
        %v5010 = vpack.c.bf16 %v5006, %v5006
        %v5011 = vpack.c.bf16 %v5005, %v5005
        %v5012 = vpack.c.bf16 %v5004, %v5004
        %v5013 = vpack.c.bf16 %v5003, %v5003
        %v5014 = vpack.c.bf16 %v5002, %v5002
        %v5015 = vpack.c.bf16 %v5001, %v5001
        %v5016 = vpack.c.bf16 %v5000, %v5000
        %v5017 = vpack.c.bf16 %v4999, %v4999
        %v5018 = vpack.c.bf16 %v4998, %v4998
        %v5019 = vpack.c.bf16 %v4997, %v4997
        %v5020 = vpack.c.bf16 %v4996, %v4996
        %v5021 = vpack.c.bf16 %v4995, %v4995
        %v5022 = vpack.c.bf16 %v4994, %v4994
        %v5023 = vpack.c.bf16 %v4993, %v4993
        %v5024 = vpack.c.bf16 %v4992, %v4992
        %v5025 = vpack.c.bf16 %v4991, %v4991
        %v5026 = vpack.c.bf16 %v4990, %v4990
        %v5027 = vpack.c.bf16 %v4989, %v4989
        %v5028 = vpack.c.bf16 %v5008, %v5008
        %s5029 = scalar_lea.vmem [#allocation13], 128
        %v5030 = vld [vmem:[%s5029] sm:$0xf]
        %v5031 = vld [vmem:[%s5029 + $0x4] sm:$0xf]
        %v5032 = vld [vmem:[%s5029 + $0x8] sm:$0xf]
        %v5033 = vld [vmem:[%s5029 + $0xc] sm:$0xf]
        %v5034 = vld [vmem:[%s5029 + $0x10] sm:$0xf]
        %v5035 = vld [vmem:[%s5029 + $0x14] sm:$0xf]
        %v5036 = vld [vmem:[%s5029 + $0x18] sm:$0xf]
        %v5037 = vld [vmem:[%s5029 + $0x1c] sm:$0xf]
        %v5038 = vld [vmem:[%s5029 + $0x20] sm:$0xf]
        %v5039 = vld [vmem:[%s5029 + $0x24] sm:$0xf]
        %v5040 = vld [vmem:[%s5029 + $0x28] sm:$0xf]
        %v5041 = vld [vmem:[%s5029 + $0x2c] sm:$0xf]
        %v5042 = vld [vmem:[%s5029 + $0x30] sm:$0xf]
        %v5043 = vld [vmem:[%s5029 + $0x34] sm:$0xf]
        %v5044 = vld [vmem:[%s5029 + $0x38] sm:$0xf]
        %v5045 = vld [vmem:[%s5029 + $0x3c] sm:$0xf]
        %v5062 = vunpack.c.l.b16 %v5009
        %v5063 = vunpack.c.l.b16 %v5010
        %v5064 = vunpack.c.l.b16 %v5011
        %v5065 = vunpack.c.l.b16 %v5012
        %v5066 = vunpack.c.l.b16 %v5013
        %v5067 = vunpack.c.l.b16 %v5014
        %v5068 = vunpack.c.l.b16 %v5015
        %v5069 = vunpack.c.l.b16 %v5016
        %v5070 = vunpack.c.l.b16 %v5017
        %v5071 = vunpack.c.l.b16 %v5018
        %v5072 = vunpack.c.l.b16 %v5019
        %v5073 = vunpack.c.l.b16 %v5020
        %v5074 = vunpack.c.l.b16 %v5021
        %v5075 = vunpack.c.l.b16 %v5022
        %v5076 = vunpack.c.l.b16 %v5023
        %v5077 = vunpack.c.l.b16 %v5024
        %v5078 = vpack.c.b16 %v5063, %v5062
        %v5079 = vpack.c.b16 %v5065, %v5064
        %v5080 = vpack.c.b16 %v5067, %v5066
        %v5081 = vpack.c.b16 %v5069, %v5068
        %v5082 = vpack.c.b16 %v5071, %v5070
        %v5083 = vpack.c.b16 %v5073, %v5072
        %v5084 = vpack.c.b16 %v5075, %v5074
        %v5085 = vpack.c.b16 %v5077, %v5076
        %v5110 = vunpack.c.l.b16 %v5030
        %v5111 = vunpack.c.l.b16 %v5031
        %v5112 = vunpack.c.l.b16 %v5032
        %v5113 = vunpack.c.l.b16 %v5033
        %v5114 = vunpack.c.l.b16 %v5034
        %v5115 = vunpack.c.l.b16 %v5035
        %v5116 = vunpack.c.l.b16 %v5036
        %v5117 = vunpack.c.l.b16 %v5037
        %v5118 = vunpack.c.l.b16 %v5038
        %v5119 = vunpack.c.l.b16 %v5039
        %v5120 = vunpack.c.l.b16 %v5040
        %v5121 = vunpack.c.l.b16 %v5041
        %v5122 = vunpack.c.l.b16 %v5042
        %v5123 = vunpack.c.l.b16 %v5043
        %v5124 = vunpack.c.l.b16 %v5044
        %v5125 = vunpack.c.l.b16 %v5045
        %v5126 = vpack.c.b16 %v5111, %v5110
        %v5127 = vpack.c.b16 %v5113, %v5112
        %v5128 = vpack.c.b16 %v5115, %v5114
        %v5129 = vpack.c.b16 %v5117, %v5116
        %v5130 = vpack.c.b16 %v5119, %v5118
        %v5131 = vpack.c.b16 %v5121, %v5120
        %v5132 = vpack.c.b16 %v5123, %v5122
        %v5133 = vpack.c.b16 %v5125, %v5124
        %5142 = vmatpush.bf16.msra.mxu0 %v5133
        %5143 = vmatpush.bf16.msra.mxu0 %v5132
        %5144 = vmatpush.bf16.msra.mxu0 %v5131
        %5145 = vmatpush.bf16.msra.mxu0 %v5130
        %5146 = vmatpush.bf16.msra.mxu0 %v5129
        %5147 = vmatpush.bf16.msra.mxu0 %v5128
        %5148 = vmatpush.bf16.msra.mxu0 %v5127
        %5149 = vmatpush.bf16.msra.mxu0 %v5126
        %5150 = vmatmul.bf16.gmra.mxu0 %v5078
        %v5151 = vpop.f32.mrf.mxu0
        %v5152 = vadd.f32 0.0, %v5151
        %v5153 = vpop.f32.mrf.mxu0
        %v5154 = vadd.f32 0.0, %v5153
        %5155 = vmatmul.bf16.gmra.mxu0 %v5079
        %v5156 = vpop.f32.mrf.mxu0
        %v5157 = vadd.f32 0.0, %v5156
        %v5158 = vpop.f32.mrf.mxu0
        %v5159 = vadd.f32 0.0, %v5158
        %5160 = vmatmul.bf16.gmra.mxu0 %v5080
        %v5161 = vpop.f32.mrf.mxu0
        %v5162 = vadd.f32 0.0, %v5161
        %v5163 = vpop.f32.mrf.mxu0
        %v5164 = vadd.f32 0.0, %v5163
        %5165 = vmatmul.bf16.gmra.mxu0 %v5081
        %v5166 = vpop.f32.mrf.mxu0
        %v5167 = vadd.f32 0.0, %v5166
        %v5168 = vpop.f32.mrf.mxu0
        %v5169 = vadd.f32 0.0, %v5168
        %5170 = vmatmul.bf16.gmra.mxu0 %v5082
        %v5171 = vpop.f32.mrf.mxu0
        %v5172 = vadd.f32 0.0, %v5171
        %v5173 = vpop.f32.mrf.mxu0
        %v5174 = vadd.f32 0.0, %v5173
        %5175 = vmatmul.bf16.gmra.mxu0 %v5083
        %v5176 = vpop.f32.mrf.mxu0
        %v5177 = vadd.f32 0.0, %v5176
        %v5178 = vpop.f32.mrf.mxu0
        %v5179 = vadd.f32 0.0, %v5178
        %5180 = vmatmul.bf16.gmra.mxu0 %v5084
        %v5181 = vpop.f32.mrf.mxu0
        %v5182 = vadd.f32 0.0, %v5181
        %v5183 = vpop.f32.mrf.mxu0
        %v5184 = vadd.f32 0.0, %v5183
        %5185 = vmatmul.bf16.gmra.mxu0 %v5085
        %v5186 = vpop.f32.mrf.mxu0
        %v5187 = vadd.f32 0.0, %v5186
        %v5188 = vpop.f32.mrf.mxu0
        %v5189 = vadd.f32 0.0, %v5188
        %5190 = vdwg.mxu0
        %v5191 = vadd.f32 %v4953, %v5152
        %v5192 = vadd.f32 %v4954, %v5154
        %v5193 = vadd.f32 %v4955, %v5157
        %v5194 = vadd.f32 %v4956, %v5159
        %v5195 = vadd.f32 %v4957, %v5162
        %v5196 = vadd.f32 %v4958, %v5164
        %v5197 = vadd.f32 %v4959, %v5167
        %v5198 = vadd.f32 %v4960, %v5169
        %v5199 = vadd.f32 %v4961, %v5172
        %v5200 = vadd.f32 %v4962, %v5174
        %v5201 = vadd.f32 %v4963, %v5177
        %v5202 = vadd.f32 %v4964, %v5179
        %v5203 = vadd.f32 %v4965, %v5182
        %v5204 = vadd.f32 %v4966, %v5184
        %v5205 = vadd.f32 %v4967, %v5187
        %v5206 = vadd.f32 %v4968, %v5189
        %s5207 = scalar_lea.vmem [#allocation13], 320
        %v5208 = vld [vmem:[%s5207] sm:$0xf]
        %v5209 = vld [vmem:[%s5207 + $0x4] sm:$0xf]
        %v5210 = vld [vmem:[%s5207 + $0x8] sm:$0xf]
        %v5211 = vld [vmem:[%s5207 + $0xc] sm:$0xf]
        %v5212 = vld [vmem:[%s5207 + $0x10] sm:$0xf]
        %v5213 = vld [vmem:[%s5207 + $0x14] sm:$0xf]
        %v5214 = vld [vmem:[%s5207 + $0x18] sm:$0xf]
        %v5215 = vld [vmem:[%s5207 + $0x1c] sm:$0xf]
        %v5216 = vld [vmem:[%s5207 + $0x20] sm:$0xf]
        %v5217 = vld [vmem:[%s5207 + $0x24] sm:$0xf]
        %v5218 = vld [vmem:[%s5207 + $0x28] sm:$0xf]
        %v5219 = vld [vmem:[%s5207 + $0x2c] sm:$0xf]
        %v5220 = vld [vmem:[%s5207 + $0x30] sm:$0xf]
        %v5221 = vld [vmem:[%s5207 + $0x34] sm:$0xf]
        %v5222 = vld [vmem:[%s5207 + $0x38] sm:$0xf]
        %v5223 = vld [vmem:[%s5207 + $0x3c] sm:$0xf]
        %v5226 = vunpack.c.l.b16 %v5025
        %v5227 = vunpack.c.l.b16 %v5026
        %v5228 = vpack.c.b16 %v5227, %v5226
        %v5246 = vunpack.c.l.b16 %v5208
        %v5247 = vunpack.c.l.b16 %v5209
        %v5248 = vunpack.c.l.b16 %v5210
        %v5249 = vunpack.c.l.b16 %v5211
        %v5250 = vunpack.c.l.b16 %v5212
        %v5251 = vunpack.c.l.b16 %v5213
        %v5252 = vunpack.c.l.b16 %v5214
        %v5253 = vunpack.c.l.b16 %v5215
        %v5254 = vunpack.c.l.b16 %v5216
        %v5255 = vunpack.c.l.b16 %v5217
        %v5256 = vunpack.c.l.b16 %v5218
        %v5257 = vunpack.c.l.b16 %v5219
        %v5258 = vunpack.c.l.b16 %v5220
        %v5259 = vunpack.c.l.b16 %v5221
        %v5260 = vunpack.c.l.b16 %v5222
        %v5261 = vunpack.c.l.b16 %v5223
        %v5262 = vpack.c.b16 %v5247, %v5246
        %v5263 = vpack.c.b16 %v5249, %v5248
        %v5264 = vpack.c.b16 %v5251, %v5250
        %v5265 = vpack.c.b16 %v5253, %v5252
        %v5266 = vpack.c.b16 %v5255, %v5254
        %v5267 = vpack.c.b16 %v5257, %v5256
        %v5268 = vpack.c.b16 %v5259, %v5258
        %v5269 = vpack.c.b16 %v5261, %v5260
        %5278 = vmatpush.bf16.msra.mxu0 %v5269
        %5279 = vmatpush.bf16.msra.mxu0 %v5268
        %5280 = vmatpush.bf16.msra.mxu0 %v5267
        %5281 = vmatpush.bf16.msra.mxu0 %v5266
        %5282 = vmatpush.bf16.msra.mxu0 %v5265
        %5283 = vmatpush.bf16.msra.mxu0 %v5264
        %5284 = vmatpush.bf16.msra.mxu0 %v5263
        %5285 = vmatpush.bf16.msra.mxu0 %v5262
        %5286 = vmatmul.bf16.gmra.mxu0 %v5079
        %v5287 = vpop.f32.mrf.mxu0
        %v5288 = vadd.f32 0.0, %v5287
        %v5289 = vpop.f32.mrf.mxu0
        %v5290 = vadd.f32 0.0, %v5289
        %5291 = vmatmul.bf16.gmra.mxu0 %v5080
        %v5292 = vpop.f32.mrf.mxu0
        %v5293 = vadd.f32 0.0, %v5292
        %v5294 = vpop.f32.mrf.mxu0
        %v5295 = vadd.f32 0.0, %v5294
        %5296 = vmatmul.bf16.gmra.mxu0 %v5081
        %v5297 = vpop.f32.mrf.mxu0
        %v5298 = vadd.f32 0.0, %v5297
        %v5299 = vpop.f32.mrf.mxu0
        %v5300 = vadd.f32 0.0, %v5299
        %5301 = vmatmul.bf16.gmra.mxu0 %v5082
        %v5302 = vpop.f32.mrf.mxu0
        %v5303 = vadd.f32 0.0, %v5302
        %v5304 = vpop.f32.mrf.mxu0
        %v5305 = vadd.f32 0.0, %v5304
        %5306 = vmatmul.bf16.gmra.mxu0 %v5083
        %v5307 = vpop.f32.mrf.mxu0
        %v5308 = vadd.f32 0.0, %v5307
        %v5309 = vpop.f32.mrf.mxu0
        %v5310 = vadd.f32 0.0, %v5309
        %5311 = vmatmul.bf16.gmra.mxu0 %v5084
        %v5312 = vpop.f32.mrf.mxu0
        %v5313 = vadd.f32 0.0, %v5312
        %v5314 = vpop.f32.mrf.mxu0
        %v5315 = vadd.f32 0.0, %v5314
        %5316 = vmatmul.bf16.gmra.mxu0 %v5085
        %v5317 = vpop.f32.mrf.mxu0
        %v5318 = vadd.f32 0.0, %v5317
        %v5319 = vpop.f32.mrf.mxu0
        %v5320 = vadd.f32 0.0, %v5319
        %5321 = vmatmul.bf16.gmra.mxu0 %v5228
        %v5322 = vpop.f32.mrf.mxu0
        %v5323 = vadd.f32 0.0, %v5322
        %v5324 = vpop.f32.mrf.mxu0
        %v5325 = vadd.f32 0.0, %v5324
        %5326 = vdwg.mxu0
        %v5327 = vadd.f32 %v5191, %v5288
        %v5328 = vadd.f32 %v5192, %v5290
        %v5329 = vadd.f32 %v5193, %v5293
        %v5330 = vadd.f32 %v5194, %v5295
        %v5331 = vadd.f32 %v5195, %v5298
        %v5332 = vadd.f32 %v5196, %v5300
        %v5333 = vadd.f32 %v5197, %v5303
        %v5334 = vadd.f32 %v5198, %v5305
        %v5335 = vadd.f32 %v5199, %v5308
        %v5336 = vadd.f32 %v5200, %v5310
        %v5337 = vadd.f32 %v5201, %v5313
        %v5338 = vadd.f32 %v5202, %v5315
        %v5339 = vadd.f32 %v5203, %v5318
        %v5340 = vadd.f32 %v5204, %v5320
        %v5341 = vadd.f32 %v5205, %v5323
        %v5342 = vadd.f32 %v5206, %v5325
        %s5343 = scalar_lea.vmem [#allocation13], 512
        %v5344 = vld [vmem:[%s5343] sm:$0xf]
        %v5345 = vld [vmem:[%s5343 + $0x4] sm:$0xf]
        %v5346 = vld [vmem:[%s5343 + $0x8] sm:$0xf]
        %v5347 = vld [vmem:[%s5343 + $0xc] sm:$0xf]
        %v5348 = vld [vmem:[%s5343 + $0x10] sm:$0xf]
        %v5349 = vld [vmem:[%s5343 + $0x14] sm:$0xf]
        %v5350 = vld [vmem:[%s5343 + $0x18] sm:$0xf]
        %v5351 = vld [vmem:[%s5343 + $0x1c] sm:$0xf]
        %v5352 = vld [vmem:[%s5343 + $0x20] sm:$0xf]
        %v5353 = vld [vmem:[%s5343 + $0x24] sm:$0xf]
        %v5354 = vld [vmem:[%s5343 + $0x28] sm:$0xf]
        %v5355 = vld [vmem:[%s5343 + $0x2c] sm:$0xf]
        %v5356 = vld [vmem:[%s5343 + $0x30] sm:$0xf]
        %v5357 = vld [vmem:[%s5343 + $0x34] sm:$0xf]
        %v5358 = vld [vmem:[%s5343 + $0x38] sm:$0xf]
        %v5359 = vld [vmem:[%s5343 + $0x3c] sm:$0xf]
        %v5362 = vunpack.c.l.b16 %v5027
        %v5363 = vunpack.c.l.b16 %v5028
        %v5364 = vpack.c.b16 %v5363, %v5362
        %v5382 = vunpack.c.l.b16 %v5344
        %v5383 = vunpack.c.l.b16 %v5345
        %v5384 = vunpack.c.l.b16 %v5346
        %v5385 = vunpack.c.l.b16 %v5347
        %v5386 = vunpack.c.l.b16 %v5348
        %v5387 = vunpack.c.l.b16 %v5349
        %v5388 = vunpack.c.l.b16 %v5350
        %v5389 = vunpack.c.l.b16 %v5351
        %v5390 = vunpack.c.l.b16 %v5352
        %v5391 = vunpack.c.l.b16 %v5353
        %v5392 = vunpack.c.l.b16 %v5354
        %v5393 = vunpack.c.l.b16 %v5355
        %v5394 = vunpack.c.l.b16 %v5356
        %v5395 = vunpack.c.l.b16 %v5357
        %v5396 = vunpack.c.l.b16 %v5358
        %v5397 = vunpack.c.l.b16 %v5359
        %v5398 = vpack.c.b16 %v5383, %v5382
        %v5399 = vpack.c.b16 %v5385, %v5384
        %v5400 = vpack.c.b16 %v5387, %v5386
        %v5401 = vpack.c.b16 %v5389, %v5388
        %v5402 = vpack.c.b16 %v5391, %v5390
        %v5403 = vpack.c.b16 %v5393, %v5392
        %v5404 = vpack.c.b16 %v5395, %v5394
        %v5405 = vpack.c.b16 %v5397, %v5396
        %5414 = vmatpush.bf16.msra.mxu0 %v5405
        %5415 = vmatpush.bf16.msra.mxu0 %v5404
        %5416 = vmatpush.bf16.msra.mxu0 %v5403
        %5417 = vmatpush.bf16.msra.mxu0 %v5402
        %5418 = vmatpush.bf16.msra.mxu0 %v5401
        %5419 = vmatpush.bf16.msra.mxu0 %v5400
        %5420 = vmatpush.bf16.msra.mxu0 %v5399
        %5421 = vmatpush.bf16.msra.mxu0 %v5398
        %5422 = vmatmul.bf16.gmra.mxu0 %v5080
        %v5423 = vpop.f32.mrf.mxu0
        %v5424 = vadd.f32 0.0, %v5423
        %v5425 = vpop.f32.mrf.mxu0
        %v5426 = vadd.f32 0.0, %v5425
        %5427 = vmatmul.bf16.gmra.mxu0 %v5081
        %v5428 = vpop.f32.mrf.mxu0
        %v5429 = vadd.f32 0.0, %v5428
        %v5430 = vpop.f32.mrf.mxu0
        %v5431 = vadd.f32 0.0, %v5430
        %5432 = vmatmul.bf16.gmra.mxu0 %v5082
        %v5433 = vpop.f32.mrf.mxu0
        %v5434 = vadd.f32 0.0, %v5433
        %v5435 = vpop.f32.mrf.mxu0
        %v5436 = vadd.f32 0.0, %v5435
        %5437 = vmatmul.bf16.gmra.mxu0 %v5083
        %v5438 = vpop.f32.mrf.mxu0
        %v5439 = vadd.f32 0.0, %v5438
        %v5440 = vpop.f32.mrf.mxu0
        %v5441 = vadd.f32 0.0, %v5440
        %5442 = vmatmul.bf16.gmra.mxu0 %v5084
        %v5443 = vpop.f32.mrf.mxu0
        %v5444 = vadd.f32 0.0, %v5443
        %v5445 = vpop.f32.mrf.mxu0
        %v5446 = vadd.f32 0.0, %v5445
        %5447 = vmatmul.bf16.gmra.mxu0 %v5085
        %v5448 = vpop.f32.mrf.mxu0
        %v5449 = vadd.f32 0.0, %v5448
        %v5450 = vpop.f32.mrf.mxu0
        %v5451 = vadd.f32 0.0, %v5450
        %5452 = vmatmul.bf16.gmra.mxu0 %v5228
        %v5453 = vpop.f32.mrf.mxu0
        %v5454 = vadd.f32 0.0, %v5453
        %v5455 = vpop.f32.mrf.mxu0
        %v5456 = vadd.f32 0.0, %v5455
        %5457 = vmatmul.bf16.gmra.mxu0 %v5364
        %v5458 = vpop.f32.mrf.mxu0
        %v5459 = vadd.f32 0.0, %v5458
        %v5460 = vpop.f32.mrf.mxu0
        %v5461 = vadd.f32 0.0, %v5460
        %5462 = vdwg.mxu0
        %v5463 = vadd.f32 %v5327, %v5424
        %v5464 = vadd.f32 %v5328, %v5426
        %v5465 = vadd.f32 %v5329, %v5429
        %v5466 = vadd.f32 %v5330, %v5431
        %v5467 = vadd.f32 %v5331, %v5434
        %v5468 = vadd.f32 %v5332, %v5436
        %v5469 = vadd.f32 %v5333, %v5439
        %v5470 = vadd.f32 %v5334, %v5441
        %v5471 = vadd.f32 %v5335, %v5444
        %v5472 = vadd.f32 %v5336, %v5446
        %v5473 = vadd.f32 %v5337, %v5449
        %v5474 = vadd.f32 %v5338, %v5451
        %v5475 = vadd.f32 %v5339, %v5454
        %v5476 = vadd.f32 %v5340, %v5456
        %v5477 = vadd.f32 %v5341, %v5459
        %v5478 = vadd.f32 %v5342, %v5461
        %v5479 = vld [vmem:[#allocation14] sm:$0x1]
        %v5481 = vperm.slane %v5479, 0
        %v5483 = vadd.f32 %v5463, %v5481
        %v5484 = vadd.f32 %v5464, %v5481
        %v5485 = vadd.f32 %v5465, %v5481
        %v5486 = vadd.f32 %v5466, %v5481
        %v5487 = vadd.f32 %v5467, %v5481
        %v5488 = vadd.f32 %v5468, %v5481
        %v5489 = vadd.f32 %v5469, %v5481
        %v5490 = vadd.f32 %v5470, %v5481
        %v5491 = vadd.f32 %v5471, %v5481
        %v5492 = vadd.f32 %v5472, %v5481
        %v5493 = vadd.f32 %v5473, %v5481
        %v5494 = vadd.f32 %v5474, %v5481
        %v5495 = vadd.f32 %v5475, %v5481
        %v5496 = vadd.f32 %v5476, %v5481
        %v5497 = vadd.f32 %v5477, %v5481
        %v5498 = vadd.f32 %v5478, %v5481
        %v5499 = vmax.f32 %v5483, 0.0
        %v5500 = vmax.f32 %v5484, 0.0
        %v5501 = vmax.f32 %v5485, 0.0
        %v5502 = vmax.f32 %v5486, 0.0
        %v5503 = vmax.f32 %v5487, 0.0
        %v5504 = vmax.f32 %v5488, 0.0
        %v5505 = vmax.f32 %v5489, 0.0
        %v5506 = vmax.f32 %v5490, 0.0
        %v5507 = vmax.f32 %v5491, 0.0
        %v5508 = vmax.f32 %v5492, 0.0
        %v5509 = vmax.f32 %v5493, 0.0
        %v5510 = vmax.f32 %v5494, 0.0
        %v5511 = vmax.f32 %v5495, 0.0
        %v5512 = vmax.f32 %v5496, 0.0
        %v5513 = vmax.f32 %v5497, 0.0
        %v5514 = vmax.f32 %v5498, 0.0
        %v5515 = vpack.c.bf16 %v5500, %v5499
        %v5516 = vpack.c.bf16 %v5502, %v5501
        %v5517 = vpack.c.bf16 %v5504, %v5503
        %v5518 = vpack.c.bf16 %v5506, %v5505
        %v5519 = vpack.c.bf16 %v5508, %v5507
        %v5520 = vpack.c.bf16 %v5510, %v5509
        %v5521 = vpack.c.bf16 %v5512, %v5511
        %v5522 = vpack.c.bf16 %v5514, %v5513
        %v5523 = vld [vmem:[#allocation16] sm:$0xf]
        %v5524 = vld [vmem:[#allocation16 + $0x4] sm:$0xf]
        %v5525 = vld [vmem:[#allocation16 + $0x8] sm:$0xf]
        %v5526 = vld [vmem:[#allocation16 + $0xc] sm:$0xf]
        %v5527 = vld [vmem:[#allocation16 + $0x10] sm:$0xf]
        %v5528 = vld [vmem:[#allocation16 + $0x14] sm:$0xf]
        %v5529 = vld [vmem:[#allocation16 + $0x18] sm:$0xf]
        %v5530 = vld [vmem:[#allocation16 + $0x1c] sm:$0xf]
        %v5531 = vld [vmem:[#allocation16 + $0x20] sm:$0xf]
        %v5532 = vld [vmem:[#allocation16 + $0x24] sm:$0xf]
        %v5533 = vld [vmem:[#allocation16 + $0x28] sm:$0xf]
        %v5534 = vld [vmem:[#allocation16 + $0x2c] sm:$0xf]
        %v5535 = vld [vmem:[#allocation16 + $0x30] sm:$0xf]
        %v5536 = vld [vmem:[#allocation16 + $0x34] sm:$0xf]
        %v5537 = vld [vmem:[#allocation16 + $0x38] sm:$0xf]
        %v5538 = vld [vmem:[#allocation16 + $0x3c] sm:$0xf]
        %v5539 = vld [vmem:[#allocation17] sm:$0x1]
        %v5541 = vperm.slane %v5539, 0
        %v5559 = vunpack.c.l.b16 %v5523
        %v5560 = vunpack.c.l.b16 %v5524
        %v5561 = vunpack.c.l.b16 %v5525
        %v5562 = vunpack.c.l.b16 %v5526
        %v5563 = vunpack.c.l.b16 %v5527
        %v5564 = vunpack.c.l.b16 %v5528
        %v5565 = vunpack.c.l.b16 %v5529
        %v5566 = vunpack.c.l.b16 %v5530
        %v5567 = vunpack.c.l.b16 %v5531
        %v5568 = vunpack.c.l.b16 %v5532
        %v5569 = vunpack.c.l.b16 %v5533
        %v5570 = vunpack.c.l.b16 %v5534
        %v5571 = vunpack.c.l.b16 %v5535
        %v5572 = vunpack.c.l.b16 %v5536
        %v5573 = vunpack.c.l.b16 %v5537
        %v5574 = vunpack.c.l.b16 %v5538
        %v5575 = vpack.c.b16 %v5560, %v5559
        %v5576 = vpack.c.b16 %v5562, %v5561
        %v5577 = vpack.c.b16 %v5564, %v5563
        %v5578 = vpack.c.b16 %v5566, %v5565
        %v5579 = vpack.c.b16 %v5568, %v5567
        %v5580 = vpack.c.b16 %v5570, %v5569
        %v5581 = vpack.c.b16 %v5572, %v5571
        %v5582 = vpack.c.b16 %v5574, %v5573
        %5591 = vmatpush.bf16.msra.mxu0 %v5582
        %5592 = vmatpush.bf16.msra.mxu0 %v5581
        %5593 = vmatpush.bf16.msra.mxu0 %v5580
        %5594 = vmatpush.bf16.msra.mxu0 %v5579
        %5595 = vmatpush.bf16.msra.mxu0 %v5578
        %5596 = vmatpush.bf16.msra.mxu0 %v5577
        %5597 = vmatpush.bf16.msra.mxu0 %v5576
        %5598 = vmatpush.bf16.msra.mxu0 %v5575
        %5599 = vmatmul.bf16.gmra.mxu0 %v5515
        %v5600 = vpop.f32.mrf.mxu0
        %v5601 = vadd.f32 %v5541, %v5600
        %v5602 = vpop.f32.mrf.mxu0
        %v5603 = vadd.f32 %v5541, %v5602
        %5604 = vmatmul.bf16.gmra.mxu0 %v5516
        %v5605 = vpop.f32.mrf.mxu0
        %v5606 = vadd.f32 %v5541, %v5605
        %v5607 = vpop.f32.mrf.mxu0
        %v5608 = vadd.f32 %v5541, %v5607
        %5609 = vmatmul.bf16.gmra.mxu0 %v5517
        %v5610 = vpop.f32.mrf.mxu0
        %v5611 = vadd.f32 %v5541, %v5610
        %v5612 = vpop.f32.mrf.mxu0
        %v5613 = vadd.f32 %v5541, %v5612
        %5614 = vmatmul.bf16.gmra.mxu0 %v5518
        %v5615 = vpop.f32.mrf.mxu0
        %v5616 = vadd.f32 %v5541, %v5615
        %v5617 = vpop.f32.mrf.mxu0
        %v5618 = vadd.f32 %v5541, %v5617
        %5619 = vmatmul.bf16.gmra.mxu0 %v5519
        %v5620 = vpop.f32.mrf.mxu0
        %v5621 = vadd.f32 %v5541, %v5620
        %v5622 = vpop.f32.mrf.mxu0
        %v5623 = vadd.f32 %v5541, %v5622
        %5624 = vmatmul.bf16.gmra.mxu0 %v5520
        %v5625 = vpop.f32.mrf.mxu0
        %v5626 = vadd.f32 %v5541, %v5625
        %v5627 = vpop.f32.mrf.mxu0
        %v5628 = vadd.f32 %v5541, %v5627
        %5629 = vmatmul.bf16.gmra.mxu0 %v5521
        %v5630 = vpop.f32.mrf.mxu0
        %v5631 = vadd.f32 %v5541, %v5630
        %v5632 = vpop.f32.mrf.mxu0
        %v5633 = vadd.f32 %v5541, %v5632
        %5634 = vmatmul.bf16.gmra.mxu0 %v5522
        %v5635 = vpop.f32.mrf.mxu0
        %v5636 = vadd.f32 %v5541, %v5635
        %v5637 = vpop.f32.mrf.mxu0
        %v5638 = vadd.f32 %v5541, %v5637
        %5639 = vdwg.mxu0
        %v5640 = vadd.f32 %v3938, %v5601
        %v5641 = vadd.f32 %v3939, %v5603
        %v5642 = vadd.f32 %v3940, %v5606
        %v5643 = vadd.f32 %v3941, %v5608
        %v5644 = vadd.f32 %v3942, %v5611
        %v5645 = vadd.f32 %v3943, %v5613
        %v5646 = vadd.f32 %v3944, %v5616
        %v5647 = vadd.f32 %v3945, %v5618
        %v5648 = vadd.f32 %v3946, %v5621
        %v5649 = vadd.f32 %v3947, %v5623
        %v5650 = vadd.f32 %v3948, %v5626
        %v5651 = vadd.f32 %v3949, %v5628
        %v5652 = vadd.f32 %v3950, %v5631
        %v5653 = vadd.f32 %v3951, %v5633
        %v5654 = vadd.f32 %v3952, %v5636
        %v5655 = vadd.f32 %v3953, %v5638
        %v5656 = vmax.f32 %v5640, 0.0
        %v5657 = vmax.f32 %v5641, 0.0
        %v5658 = vmax.f32 %v5642, 0.0
        %v5659 = vmax.f32 %v5643, 0.0
        %v5660 = vmax.f32 %v5644, 0.0
        %v5661 = vmax.f32 %v5645, 0.0
        %v5662 = vmax.f32 %v5646, 0.0
        %v5663 = vmax.f32 %v5647, 0.0
        %v5664 = vmax.f32 %v5648, 0.0
        %v5665 = vmax.f32 %v5649, 0.0
        %v5666 = vmax.f32 %v5650, 0.0
        %v5667 = vmax.f32 %v5651, 0.0
        %v5668 = vmax.f32 %v5652, 0.0
        %v5669 = vmax.f32 %v5653, 0.0
        %v5670 = vmax.f32 %v5654, 0.0
        %v5671 = vmax.f32 %v5655, 0.0
        %5672 = vst [vmem:[%s734] sm:$0xff] %v5656
        %5673 = vst [vmem:[%s734 + $0x8] sm:$0xff] %v5657
        %5674 = vst [vmem:[%s734 + $0x10] sm:$0xff] %v5658
        %5675 = vst [vmem:[%s734 + $0x18] sm:$0xff] %v5659
        %5676 = vst [vmem:[%s734 + $0x20] sm:$0xff] %v5660
        %5677 = vst [vmem:[%s734 + $0x28] sm:$0xff] %v5661
        %5678 = vst [vmem:[%s734 + $0x30] sm:$0xff] %v5662
        %5679 = vst [vmem:[%s734 + $0x38] sm:$0xff] %v5663
        %5680 = vst [vmem:[%s734 + $0x40] sm:$0xff] %v5664
        %5681 = vst [vmem:[%s734 + $0x48] sm:$0xff] %v5665
        %5682 = vst [vmem:[%s734 + $0x50] sm:$0xff] %v5666
        %5683 = vst [vmem:[%s734 + $0x58] sm:$0xff] %v5667
        %5684 = vst [vmem:[%s734 + $0x60] sm:$0xff] %v5668
        %5685 = vst [vmem:[%s734 + $0x68] sm:$0xff] %v5669
        %5686 = vst [vmem:[%s734 + $0x70] sm:$0xff] %v5670
        %5687 = vst [vmem:[%s734 + $0x78] sm:$0xff] %v5671
        %5688 = vst [vmem:[%s734] sm:$0x1] 0.0
        %5689 = vst [vmem:[%s734 + $0x10] sm:$0x1] 0.0
        %5690 = vst [vmem:[%s734 + $0x20] sm:$0x1] 0.0
        %5691 = vst [vmem:[%s734 + $0x30] sm:$0x1] 0.0
        %5692 = vst [vmem:[%s734 + $0x40] sm:$0x1] 0.0
        %5693 = vst [vmem:[%s734 + $0x50] sm:$0x1] 0.0
        %5694 = vst [vmem:[%s734 + $0x60] sm:$0x1] 0.0
        %5695 = vst [vmem:[%s734 + $0x70] sm:$0x1] 0.0
        %5696 = vst [vmem:[%s734 + $0x9] sm:$0x1] 0.0
        %5697 = vst [vmem:[%s734 + $0x19] sm:$0x1] 0.0
        %5698 = vst [vmem:[%s734 + $0x29] sm:$0x1] 0.0
        %5699 = vst [vmem:[%s734 + $0x39] sm:$0x1] 0.0
        %5700 = vst [vmem:[%s734 + $0x49] sm:$0x1] 0.0
        %5701 = vst [vmem:[%s734 + $0x59] sm:$0x1] 0.0
        %5702 = vst [vmem:[%s734 + $0x69] sm:$0x1] 0.0
        %5703 = vst [vmem:[%s734 + $0x79] sm:$0x1] 0.0
        %v5704 = vld [vmem:[#allocation2] sm:$0xff]
        %v5705 = vld [vmem:[#allocation2 + $0x8] sm:$0xff]
        %v5706 = vld [vmem:[#allocation2 + $0x10] sm:$0xff]
        %v5707 = vld [vmem:[#allocation2 + $0x18] sm:$0xff]
        %v5708 = vld [vmem:[#allocation2 + $0x20] sm:$0xff]
        %v5709 = vld [vmem:[#allocation2 + $0x28] sm:$0xff]
        %v5710 = vld [vmem:[#allocation2 + $0x30] sm:$0xff]
        %v5711 = vld [vmem:[#allocation2 + $0x38] sm:$0xff]
        %v5712 = vld [vmem:[#allocation2 + $0x40] sm:$0xff]
        %v5713 = vld [vmem:[#allocation2 + $0x48] sm:$0xff]
        %v5714 = vld [vmem:[#allocation2 + $0x50] sm:$0xff]
        %v5715 = vld [vmem:[#allocation2 + $0x58] sm:$0xff]
        %v5716 = vld [vmem:[#allocation2 + $0x60] sm:$0xff]
        %v5717 = vld [vmem:[#allocation2 + $0x68] sm:$0xff]
        %v5718 = vld [vmem:[#allocation2 + $0x70] sm:$0xff]
        %v5719 = vld [vmem:[#allocation2 + $0x78] sm:$0xff]
        %v5720 = vld [vmem:[#allocation2 + $0x80] sm:$0xff]
        %v5721 = vld [vmem:[#allocation2 + $0x88] sm:$0xff]
        %v5722 = vld [vmem:[#allocation2 + $0x90] sm:$0xff]
        %v5723 = vld [vmem:[#allocation2 + $0x98] sm:$0xff]
        %v5724 = vrot.slane %v5704, 7
        %v5725 = vrot.slane %v5705, 7
        %v5726 = vrot.slane %v5706, 7
        %v5727 = vrot.slane %v5707, 7
        %v5728 = vrot.slane %v5708, 7
        %v5729 = vrot.slane %v5709, 7
        %v5730 = vrot.slane %v5710, 7
        %v5731 = vrot.slane %v5711, 7
        %v5732 = vrot.slane %v5712, 7
        %v5733 = vrot.slane %v5713, 7
        %v5734 = vrot.slane %v5714, 7
        %v5735 = vrot.slane %v5715, 7
        %v5736 = vrot.slane %v5716, 7
        %v5737 = vrot.slane %v5717, 7
        %v5738 = vrot.slane %v5718, 7
        %v5739 = vrot.slane %v5719, 7
        %v5740 = vrot.slane %v5720, 7
        %v5741 = vrot.slane %v5721, 7
        %v5742 = vrot.slane %v5722, 7
        %v5743 = vrot.slane %v5723, 7
        %v5744 = vsel %vm793, %v5742, %v5743
        %v5745 = vsel %vm793, %v5741, %v5742
        %v5746 = vsel %vm793, %v5740, %v5741
        %v5747 = vsel %vm793, %v5739, %v5740
        %v5748 = vsel %vm793, %v5738, %v5739
        %v5749 = vsel %vm793, %v5737, %v5738
        %v5750 = vsel %vm793, %v5736, %v5737
        %v5751 = vsel %vm793, %v5735, %v5736
        %v5752 = vsel %vm793, %v5734, %v5735
        %v5753 = vsel %vm793, %v5733, %v5734
        %v5754 = vsel %vm793, %v5732, %v5733
        %v5755 = vsel %vm793, %v5731, %v5732
        %v5756 = vsel %vm793, %v5730, %v5731
        %v5757 = vsel %vm793, %v5729, %v5730
        %v5758 = vsel %vm793, %v5728, %v5729
        %v5759 = vsel %vm793, %v5727, %v5728
        %v5760 = vsel %vm793, %v5726, %v5727
        %v5761 = vsel %vm793, %v5725, %v5726
        %v5762 = vsel %vm793, %v5724, %v5725
        %v5763 = vsel %vm793, %v5743, %v5724
        %v5764 = vpack.c.bf16 %v5763, %v5763
        %v5765 = vpack.c.bf16 %v5762, %v5762
        %v5766 = vpack.c.bf16 %v5761, %v5761
        %v5767 = vpack.c.bf16 %v5760, %v5760
        %v5768 = vpack.c.bf16 %v5759, %v5759
        %v5769 = vpack.c.bf16 %v5758, %v5758
        %v5770 = vpack.c.bf16 %v5757, %v5757
        %v5771 = vpack.c.bf16 %v5756, %v5756
        %v5772 = vpack.c.bf16 %v5755, %v5755
        %v5773 = vpack.c.bf16 %v5754, %v5754
        %v5774 = vpack.c.bf16 %v5753, %v5753
        %v5775 = vpack.c.bf16 %v5752, %v5752
        %v5776 = vpack.c.bf16 %v5751, %v5751
        %v5777 = vpack.c.bf16 %v5750, %v5750
        %v5778 = vpack.c.bf16 %v5749, %v5749
        %v5779 = vpack.c.bf16 %v5748, %v5748
        %v5780 = vpack.c.bf16 %v5747, %v5747
        %v5781 = vpack.c.bf16 %v5746, %v5746
        %v5782 = vpack.c.bf16 %v5745, %v5745
        %v5783 = vpack.c.bf16 %v5744, %v5744
        %v5784 = vld [vmem:[#allocation19] sm:$0xf]
        %v5785 = vld [vmem:[#allocation19 + $0x4] sm:$0xf]
        %v5786 = vld [vmem:[#allocation19 + $0x8] sm:$0xf]
        %v5787 = vld [vmem:[#allocation19 + $0xc] sm:$0xf]
        %v5788 = vld [vmem:[#allocation19 + $0x10] sm:$0xf]
        %v5789 = vld [vmem:[#allocation19 + $0x14] sm:$0xf]
        %v5790 = vld [vmem:[#allocation19 + $0x18] sm:$0xf]
        %v5791 = vld [vmem:[#allocation19 + $0x1c] sm:$0xf]
        %v5792 = vld [vmem:[#allocation19 + $0x20] sm:$0xf]
        %v5793 = vld [vmem:[#allocation19 + $0x24] sm:$0xf]
        %v5794 = vld [vmem:[#allocation19 + $0x28] sm:$0xf]
        %v5795 = vld [vmem:[#allocation19 + $0x2c] sm:$0xf]
        %v5796 = vld [vmem:[#allocation19 + $0x30] sm:$0xf]
        %v5797 = vld [vmem:[#allocation19 + $0x34] sm:$0xf]
        %v5798 = vld [vmem:[#allocation19 + $0x38] sm:$0xf]
        %v5799 = vld [vmem:[#allocation19 + $0x3c] sm:$0xf]
        %s5800 = scalar_lea.vmem [#allocation19], 192
        %v5801 = vld [vmem:[%s5800] sm:$0xf]
        %v5802 = vld [vmem:[%s5800 + $0x4] sm:$0xf]
        %v5803 = vld [vmem:[%s5800 + $0x8] sm:$0xf]
        %v5804 = vld [vmem:[%s5800 + $0xc] sm:$0xf]
        %v5805 = vld [vmem:[%s5800 + $0x10] sm:$0xf]
        %v5806 = vld [vmem:[%s5800 + $0x14] sm:$0xf]
        %v5807 = vld [vmem:[%s5800 + $0x18] sm:$0xf]
        %v5808 = vld [vmem:[%s5800 + $0x1c] sm:$0xf]
        %v5809 = vld [vmem:[%s5800 + $0x20] sm:$0xf]
        %v5810 = vld [vmem:[%s5800 + $0x24] sm:$0xf]
        %v5811 = vld [vmem:[%s5800 + $0x28] sm:$0xf]
        %v5812 = vld [vmem:[%s5800 + $0x2c] sm:$0xf]
        %v5813 = vld [vmem:[%s5800 + $0x30] sm:$0xf]
        %v5814 = vld [vmem:[%s5800 + $0x34] sm:$0xf]
        %v5815 = vld [vmem:[%s5800 + $0x38] sm:$0xf]
        %v5816 = vld [vmem:[%s5800 + $0x3c] sm:$0xf]
        %v5833 = vunpack.c.l.b16 %v5766
        %v5834 = vunpack.c.l.b16 %v5767
        %v5835 = vunpack.c.l.b16 %v5768
        %v5836 = vunpack.c.l.b16 %v5769
        %v5837 = vunpack.c.l.b16 %v5770
        %v5838 = vunpack.c.l.b16 %v5771
        %v5839 = vunpack.c.l.b16 %v5772
        %v5840 = vunpack.c.l.b16 %v5773
        %v5841 = vunpack.c.l.b16 %v5774
        %v5842 = vunpack.c.l.b16 %v5775
        %v5843 = vunpack.c.l.b16 %v5776
        %v5844 = vunpack.c.l.b16 %v5777
        %v5845 = vunpack.c.l.b16 %v5778
        %v5846 = vunpack.c.l.b16 %v5779
        %v5847 = vunpack.c.l.b16 %v5780
        %v5848 = vunpack.c.l.b16 %v5781
        %v5849 = vpack.c.b16 %v5834, %v5833
        %v5850 = vpack.c.b16 %v5836, %v5835
        %v5851 = vpack.c.b16 %v5838, %v5837
        %v5852 = vpack.c.b16 %v5840, %v5839
        %v5853 = vpack.c.b16 %v5842, %v5841
        %v5854 = vpack.c.b16 %v5844, %v5843
        %v5855 = vpack.c.b16 %v5846, %v5845
        %v5856 = vpack.c.b16 %v5848, %v5847
        %v5881 = vunpack.c.l.b16 %v5801
        %v5882 = vunpack.c.l.b16 %v5802
        %v5883 = vunpack.c.l.b16 %v5803
        %v5884 = vunpack.c.l.b16 %v5804
        %v5885 = vunpack.c.l.b16 %v5805
        %v5886 = vunpack.c.l.b16 %v5806
        %v5887 = vunpack.c.l.b16 %v5807
        %v5888 = vunpack.c.l.b16 %v5808
        %v5889 = vunpack.c.l.b16 %v5809
        %v5890 = vunpack.c.l.b16 %v5810
        %v5891 = vunpack.c.l.b16 %v5811
        %v5892 = vunpack.c.l.b16 %v5812
        %v5893 = vunpack.c.l.b16 %v5813
        %v5894 = vunpack.c.l.b16 %v5814
        %v5895 = vunpack.c.l.b16 %v5815
        %v5896 = vunpack.c.l.b16 %v5816
        %v5897 = vpack.c.b16 %v5882, %v5881
        %v5898 = vpack.c.b16 %v5884, %v5883
        %v5899 = vpack.c.b16 %v5886, %v5885
        %v5900 = vpack.c.b16 %v5888, %v5887
        %v5901 = vpack.c.b16 %v5890, %v5889
        %v5902 = vpack.c.b16 %v5892, %v5891
        %v5903 = vpack.c.b16 %v5894, %v5893
        %v5904 = vpack.c.b16 %v5896, %v5895
        %5913 = vmatpush.bf16.msra.mxu0 %v5904
        %5914 = vmatpush.bf16.msra.mxu0 %v5903
        %5915 = vmatpush.bf16.msra.mxu0 %v5902
        %5916 = vmatpush.bf16.msra.mxu0 %v5901
        %5917 = vmatpush.bf16.msra.mxu0 %v5900
        %5918 = vmatpush.bf16.msra.mxu0 %v5899
        %5919 = vmatpush.bf16.msra.mxu0 %v5898
        %5920 = vmatpush.bf16.msra.mxu0 %v5897
        %5921 = vmatmul.bf16.gmra.mxu0 %v5849
        %v5922 = vpop.f32.mrf.mxu0
        %v5923 = vadd.f32 0.0, %v5922
        %v5924 = vpop.f32.mrf.mxu0
        %v5925 = vadd.f32 0.0, %v5924
        %5926 = vmatmul.bf16.gmra.mxu0 %v5850
        %v5927 = vpop.f32.mrf.mxu0
        %v5928 = vadd.f32 0.0, %v5927
        %v5929 = vpop.f32.mrf.mxu0
        %v5930 = vadd.f32 0.0, %v5929
        %5931 = vmatmul.bf16.gmra.mxu0 %v5851
        %v5932 = vpop.f32.mrf.mxu0
        %v5933 = vadd.f32 0.0, %v5932
        %v5934 = vpop.f32.mrf.mxu0
        %v5935 = vadd.f32 0.0, %v5934
        %5936 = vmatmul.bf16.gmra.mxu0 %v5852
        %v5937 = vpop.f32.mrf.mxu0
        %v5938 = vadd.f32 0.0, %v5937
        %v5939 = vpop.f32.mrf.mxu0
        %v5940 = vadd.f32 0.0, %v5939
        %5941 = vmatmul.bf16.gmra.mxu0 %v5853
        %v5942 = vpop.f32.mrf.mxu0
        %v5943 = vadd.f32 0.0, %v5942
        %v5944 = vpop.f32.mrf.mxu0
        %v5945 = vadd.f32 0.0, %v5944
        %5946 = vmatmul.bf16.gmra.mxu0 %v5854
        %v5947 = vpop.f32.mrf.mxu0
        %v5948 = vadd.f32 0.0, %v5947
        %v5949 = vpop.f32.mrf.mxu0
        %v5950 = vadd.f32 0.0, %v5949
        %5951 = vmatmul.bf16.gmra.mxu0 %v5855
        %v5952 = vpop.f32.mrf.mxu0
        %v5953 = vadd.f32 0.0, %v5952
        %v5954 = vpop.f32.mrf.mxu0
        %v5955 = vadd.f32 0.0, %v5954
        %5956 = vmatmul.bf16.gmra.mxu0 %v5856
        %v5957 = vpop.f32.mrf.mxu0
        %v5958 = vadd.f32 0.0, %v5957
        %v5959 = vpop.f32.mrf.mxu0
        %v5960 = vadd.f32 0.0, %v5959
        %5961 = vdwg.mxu0
        %v5964 = vunpack.c.l.b16 %v5764
        %v5965 = vunpack.c.l.b16 %v5765
        %v5966 = vpack.c.b16 %v5965, %v5964
        %v5984 = vunpack.c.l.b16 %v5784
        %v5985 = vunpack.c.l.b16 %v5785
        %v5986 = vunpack.c.l.b16 %v5786
        %v5987 = vunpack.c.l.b16 %v5787
        %v5988 = vunpack.c.l.b16 %v5788
        %v5989 = vunpack.c.l.b16 %v5789
        %v5990 = vunpack.c.l.b16 %v5790
        %v5991 = vunpack.c.l.b16 %v5791
        %v5992 = vunpack.c.l.b16 %v5792
        %v5993 = vunpack.c.l.b16 %v5793
        %v5994 = vunpack.c.l.b16 %v5794
        %v5995 = vunpack.c.l.b16 %v5795
        %v5996 = vunpack.c.l.b16 %v5796
        %v5997 = vunpack.c.l.b16 %v5797
        %v5998 = vunpack.c.l.b16 %v5798
        %v5999 = vunpack.c.l.b16 %v5799
        %v6000 = vpack.c.b16 %v5985, %v5984
        %v6001 = vpack.c.b16 %v5987, %v5986
        %v6002 = vpack.c.b16 %v5989, %v5988
        %v6003 = vpack.c.b16 %v5991, %v5990
        %v6004 = vpack.c.b16 %v5993, %v5992
        %v6005 = vpack.c.b16 %v5995, %v5994
        %v6006 = vpack.c.b16 %v5997, %v5996
        %v6007 = vpack.c.b16 %v5999, %v5998
        %6016 = vmatpush.bf16.msra.mxu0 %v6007
        %6017 = vmatpush.bf16.msra.mxu0 %v6006
        %6018 = vmatpush.bf16.msra.mxu0 %v6005
        %6019 = vmatpush.bf16.msra.mxu0 %v6004
        %6020 = vmatpush.bf16.msra.mxu0 %v6003
        %6021 = vmatpush.bf16.msra.mxu0 %v6002
        %6022 = vmatpush.bf16.msra.mxu0 %v6001
        %6023 = vmatpush.bf16.msra.mxu0 %v6000
        %6024 = vmatmul.bf16.gmra.mxu0 %v5966
        %v6025 = vpop.f32.mrf.mxu0
        %v6026 = vadd.f32 %v5923, %v6025
        %v6027 = vpop.f32.mrf.mxu0
        %v6028 = vadd.f32 %v5925, %v6027
        %6029 = vmatmul.bf16.gmra.mxu0 %v5849
        %v6030 = vpop.f32.mrf.mxu0
        %v6031 = vadd.f32 %v5928, %v6030
        %v6032 = vpop.f32.mrf.mxu0
        %v6033 = vadd.f32 %v5930, %v6032
        %6034 = vmatmul.bf16.gmra.mxu0 %v5850
        %v6035 = vpop.f32.mrf.mxu0
        %v6036 = vadd.f32 %v5933, %v6035
        %v6037 = vpop.f32.mrf.mxu0
        %v6038 = vadd.f32 %v5935, %v6037
        %6039 = vmatmul.bf16.gmra.mxu0 %v5851
        %v6040 = vpop.f32.mrf.mxu0
        %v6041 = vadd.f32 %v5938, %v6040
        %v6042 = vpop.f32.mrf.mxu0
        %v6043 = vadd.f32 %v5940, %v6042
        %6044 = vmatmul.bf16.gmra.mxu0 %v5852
        %v6045 = vpop.f32.mrf.mxu0
        %v6046 = vadd.f32 %v5943, %v6045
        %v6047 = vpop.f32.mrf.mxu0
        %v6048 = vadd.f32 %v5945, %v6047
        %6049 = vmatmul.bf16.gmra.mxu0 %v5853
        %v6050 = vpop.f32.mrf.mxu0
        %v6051 = vadd.f32 %v5948, %v6050
        %v6052 = vpop.f32.mrf.mxu0
        %v6053 = vadd.f32 %v5950, %v6052
        %6054 = vmatmul.bf16.gmra.mxu0 %v5854
        %v6055 = vpop.f32.mrf.mxu0
        %v6056 = vadd.f32 %v5953, %v6055
        %v6057 = vpop.f32.mrf.mxu0
        %v6058 = vadd.f32 %v5955, %v6057
        %6059 = vmatmul.bf16.gmra.mxu0 %v5855
        %v6060 = vpop.f32.mrf.mxu0
        %v6061 = vadd.f32 %v5958, %v6060
        %v6062 = vpop.f32.mrf.mxu0
        %v6063 = vadd.f32 %v5960, %v6062
        %6064 = vdwg.mxu0
        %s6065 = scalar_lea.vmem [#allocation19], 384
        %v6066 = vld [vmem:[%s6065] sm:$0xf]
        %v6067 = vld [vmem:[%s6065 + $0x4] sm:$0xf]
        %v6068 = vld [vmem:[%s6065 + $0x8] sm:$0xf]
        %v6069 = vld [vmem:[%s6065 + $0xc] sm:$0xf]
        %v6070 = vld [vmem:[%s6065 + $0x10] sm:$0xf]
        %v6071 = vld [vmem:[%s6065 + $0x14] sm:$0xf]
        %v6072 = vld [vmem:[%s6065 + $0x18] sm:$0xf]
        %v6073 = vld [vmem:[%s6065 + $0x1c] sm:$0xf]
        %v6074 = vld [vmem:[%s6065 + $0x20] sm:$0xf]
        %v6075 = vld [vmem:[%s6065 + $0x24] sm:$0xf]
        %v6076 = vld [vmem:[%s6065 + $0x28] sm:$0xf]
        %v6077 = vld [vmem:[%s6065 + $0x2c] sm:$0xf]
        %v6078 = vld [vmem:[%s6065 + $0x30] sm:$0xf]
        %v6079 = vld [vmem:[%s6065 + $0x34] sm:$0xf]
        %v6080 = vld [vmem:[%s6065 + $0x38] sm:$0xf]
        %v6081 = vld [vmem:[%s6065 + $0x3c] sm:$0xf]
        %v6084 = vunpack.c.l.b16 %v5782
        %v6085 = vunpack.c.l.b16 %v5783
        %v6086 = vpack.c.b16 %v6085, %v6084
        %v6104 = vunpack.c.l.b16 %v6066
        %v6105 = vunpack.c.l.b16 %v6067
        %v6106 = vunpack.c.l.b16 %v6068
        %v6107 = vunpack.c.l.b16 %v6069
        %v6108 = vunpack.c.l.b16 %v6070
        %v6109 = vunpack.c.l.b16 %v6071
        %v6110 = vunpack.c.l.b16 %v6072
        %v6111 = vunpack.c.l.b16 %v6073
        %v6112 = vunpack.c.l.b16 %v6074
        %v6113 = vunpack.c.l.b16 %v6075
        %v6114 = vunpack.c.l.b16 %v6076
        %v6115 = vunpack.c.l.b16 %v6077
        %v6116 = vunpack.c.l.b16 %v6078
        %v6117 = vunpack.c.l.b16 %v6079
        %v6118 = vunpack.c.l.b16 %v6080
        %v6119 = vunpack.c.l.b16 %v6081
        %v6120 = vpack.c.b16 %v6105, %v6104
        %v6121 = vpack.c.b16 %v6107, %v6106
        %v6122 = vpack.c.b16 %v6109, %v6108
        %v6123 = vpack.c.b16 %v6111, %v6110
        %v6124 = vpack.c.b16 %v6113, %v6112
        %v6125 = vpack.c.b16 %v6115, %v6114
        %v6126 = vpack.c.b16 %v6117, %v6116
        %v6127 = vpack.c.b16 %v6119, %v6118
        %6136 = vmatpush.bf16.msra.mxu0 %v6127
        %6137 = vmatpush.bf16.msra.mxu0 %v6126
        %6138 = vmatpush.bf16.msra.mxu0 %v6125
        %6139 = vmatpush.bf16.msra.mxu0 %v6124
        %6140 = vmatpush.bf16.msra.mxu0 %v6123
        %6141 = vmatpush.bf16.msra.mxu0 %v6122
        %6142 = vmatpush.bf16.msra.mxu0 %v6121
        %6143 = vmatpush.bf16.msra.mxu0 %v6120
        %6144 = vmatmul.bf16.gmra.mxu0 %v5850
        %v6145 = vpop.f32.mrf.mxu0
        %v6146 = vadd.f32 0.0, %v6145
        %v6147 = vpop.f32.mrf.mxu0
        %v6148 = vadd.f32 0.0, %v6147
        %6149 = vmatmul.bf16.gmra.mxu0 %v5851
        %v6150 = vpop.f32.mrf.mxu0
        %v6151 = vadd.f32 0.0, %v6150
        %v6152 = vpop.f32.mrf.mxu0
        %v6153 = vadd.f32 0.0, %v6152
        %6154 = vmatmul.bf16.gmra.mxu0 %v5852
        %v6155 = vpop.f32.mrf.mxu0
        %v6156 = vadd.f32 0.0, %v6155
        %v6157 = vpop.f32.mrf.mxu0
        %v6158 = vadd.f32 0.0, %v6157
        %6159 = vmatmul.bf16.gmra.mxu0 %v5853
        %v6160 = vpop.f32.mrf.mxu0
        %v6161 = vadd.f32 0.0, %v6160
        %v6162 = vpop.f32.mrf.mxu0
        %v6163 = vadd.f32 0.0, %v6162
        %6164 = vmatmul.bf16.gmra.mxu0 %v5854
        %v6165 = vpop.f32.mrf.mxu0
        %v6166 = vadd.f32 0.0, %v6165
        %v6167 = vpop.f32.mrf.mxu0
        %v6168 = vadd.f32 0.0, %v6167
        %6169 = vmatmul.bf16.gmra.mxu0 %v5855
        %v6170 = vpop.f32.mrf.mxu0
        %v6171 = vadd.f32 0.0, %v6170
        %v6172 = vpop.f32.mrf.mxu0
        %v6173 = vadd.f32 0.0, %v6172
        %6174 = vmatmul.bf16.gmra.mxu0 %v5856
        %v6175 = vpop.f32.mrf.mxu0
        %v6176 = vadd.f32 0.0, %v6175
        %v6177 = vpop.f32.mrf.mxu0
        %v6178 = vadd.f32 0.0, %v6177
        %6179 = vmatmul.bf16.gmra.mxu0 %v6086
        %v6180 = vpop.f32.mrf.mxu0
        %v6181 = vadd.f32 0.0, %v6180
        %v6182 = vpop.f32.mrf.mxu0
        %v6183 = vadd.f32 0.0, %v6182
        %6184 = vdwg.mxu0
        %v6185 = vadd.f32 %v6026, %v6146
        %v6186 = vadd.f32 %v6028, %v6148
        %v6187 = vadd.f32 %v6031, %v6151
        %v6188 = vadd.f32 %v6033, %v6153
        %v6189 = vadd.f32 %v6036, %v6156
        %v6190 = vadd.f32 %v6038, %v6158
        %v6191 = vadd.f32 %v6041, %v6161
        %v6192 = vadd.f32 %v6043, %v6163
        %v6193 = vadd.f32 %v6046, %v6166
        %v6194 = vadd.f32 %v6048, %v6168
        %v6195 = vadd.f32 %v6051, %v6171
        %v6196 = vadd.f32 %v6053, %v6173
        %v6197 = vadd.f32 %v6056, %v6176
        %v6198 = vadd.f32 %v6058, %v6178
        %v6199 = vadd.f32 %v6061, %v6181
        %v6200 = vadd.f32 %v6063, %v6183
        %v6201 = vpack.c.bf16 %v5704, %v5704
        %v6202 = vpack.c.bf16 %v5705, %v5705
        %v6203 = vpack.c.bf16 %v5706, %v5706
        %v6204 = vpack.c.bf16 %v5707, %v5707
        %v6205 = vpack.c.bf16 %v5708, %v5708
        %v6206 = vpack.c.bf16 %v5709, %v5709
        %v6207 = vpack.c.bf16 %v5710, %v5710
        %v6208 = vpack.c.bf16 %v5711, %v5711
        %v6209 = vpack.c.bf16 %v5712, %v5712
        %v6210 = vpack.c.bf16 %v5713, %v5713
        %v6211 = vpack.c.bf16 %v5714, %v5714
        %v6212 = vpack.c.bf16 %v5715, %v5715
        %v6213 = vpack.c.bf16 %v5716, %v5716
        %v6214 = vpack.c.bf16 %v5717, %v5717
        %v6215 = vpack.c.bf16 %v5718, %v5718
        %v6216 = vpack.c.bf16 %v5719, %v5719
        %v6217 = vpack.c.bf16 %v5720, %v5720
        %v6218 = vpack.c.bf16 %v5721, %v5721
        %v6219 = vpack.c.bf16 %v5722, %v5722
        %v6220 = vpack.c.bf16 %v5723, %v5723
        %s6221 = scalar_lea.vmem [#allocation19], 64
        %v6222 = vld [vmem:[%s6221] sm:$0xf]
        %v6223 = vld [vmem:[%s6221 + $0x4] sm:$0xf]
        %v6224 = vld [vmem:[%s6221 + $0x8] sm:$0xf]
        %v6225 = vld [vmem:[%s6221 + $0xc] sm:$0xf]
        %v6226 = vld [vmem:[%s6221 + $0x10] sm:$0xf]
        %v6227 = vld [vmem:[%s6221 + $0x14] sm:$0xf]
        %v6228 = vld [vmem:[%s6221 + $0x18] sm:$0xf]
        %v6229 = vld [vmem:[%s6221 + $0x1c] sm:$0xf]
        %v6230 = vld [vmem:[%s6221 + $0x20] sm:$0xf]
        %v6231 = vld [vmem:[%s6221 + $0x24] sm:$0xf]
        %v6232 = vld [vmem:[%s6221 + $0x28] sm:$0xf]
        %v6233 = vld [vmem:[%s6221 + $0x2c] sm:$0xf]
        %v6234 = vld [vmem:[%s6221 + $0x30] sm:$0xf]
        %v6235 = vld [vmem:[%s6221 + $0x34] sm:$0xf]
        %v6236 = vld [vmem:[%s6221 + $0x38] sm:$0xf]
        %v6237 = vld [vmem:[%s6221 + $0x3c] sm:$0xf]
        %v6254 = vunpack.c.l.b16 %v6201
        %v6255 = vunpack.c.l.b16 %v6202
        %v6256 = vunpack.c.l.b16 %v6203
        %v6257 = vunpack.c.l.b16 %v6204
        %v6258 = vunpack.c.l.b16 %v6205
        %v6259 = vunpack.c.l.b16 %v6206
        %v6260 = vunpack.c.l.b16 %v6207
        %v6261 = vunpack.c.l.b16 %v6208
        %v6262 = vunpack.c.l.b16 %v6209
        %v6263 = vunpack.c.l.b16 %v6210
        %v6264 = vunpack.c.l.b16 %v6211
        %v6265 = vunpack.c.l.b16 %v6212
        %v6266 = vunpack.c.l.b16 %v6213
        %v6267 = vunpack.c.l.b16 %v6214
        %v6268 = vunpack.c.l.b16 %v6215
        %v6269 = vunpack.c.l.b16 %v6216
        %v6270 = vpack.c.b16 %v6255, %v6254
        %v6271 = vpack.c.b16 %v6257, %v6256
        %v6272 = vpack.c.b16 %v6259, %v6258
        %v6273 = vpack.c.b16 %v6261, %v6260
        %v6274 = vpack.c.b16 %v6263, %v6262
        %v6275 = vpack.c.b16 %v6265, %v6264
        %v6276 = vpack.c.b16 %v6267, %v6266
        %v6277 = vpack.c.b16 %v6269, %v6268
        %v6302 = vunpack.c.l.b16 %v6222
        %v6303 = vunpack.c.l.b16 %v6223
        %v6304 = vunpack.c.l.b16 %v6224
        %v6305 = vunpack.c.l.b16 %v6225
        %v6306 = vunpack.c.l.b16 %v6226
        %v6307 = vunpack.c.l.b16 %v6227
        %v6308 = vunpack.c.l.b16 %v6228
        %v6309 = vunpack.c.l.b16 %v6229
        %v6310 = vunpack.c.l.b16 %v6230
        %v6311 = vunpack.c.l.b16 %v6231
        %v6312 = vunpack.c.l.b16 %v6232
        %v6313 = vunpack.c.l.b16 %v6233
        %v6314 = vunpack.c.l.b16 %v6234
        %v6315 = vunpack.c.l.b16 %v6235
        %v6316 = vunpack.c.l.b16 %v6236
        %v6317 = vunpack.c.l.b16 %v6237
        %v6318 = vpack.c.b16 %v6303, %v6302
        %v6319 = vpack.c.b16 %v6305, %v6304
        %v6320 = vpack.c.b16 %v6307, %v6306
        %v6321 = vpack.c.b16 %v6309, %v6308
        %v6322 = vpack.c.b16 %v6311, %v6310
        %v6323 = vpack.c.b16 %v6313, %v6312
        %v6324 = vpack.c.b16 %v6315, %v6314
        %v6325 = vpack.c.b16 %v6317, %v6316
        %6334 = vmatpush.bf16.msra.mxu0 %v6325
        %6335 = vmatpush.bf16.msra.mxu0 %v6324
        %6336 = vmatpush.bf16.msra.mxu0 %v6323
        %6337 = vmatpush.bf16.msra.mxu0 %v6322
        %6338 = vmatpush.bf16.msra.mxu0 %v6321
        %6339 = vmatpush.bf16.msra.mxu0 %v6320
        %6340 = vmatpush.bf16.msra.mxu0 %v6319
        %6341 = vmatpush.bf16.msra.mxu0 %v6318
        %6342 = vmatmul.bf16.gmra.mxu0 %v6270
        %v6343 = vpop.f32.mrf.mxu0
        %v6344 = vadd.f32 0.0, %v6343
        %v6345 = vpop.f32.mrf.mxu0
        %v6346 = vadd.f32 0.0, %v6345
        %6347 = vmatmul.bf16.gmra.mxu0 %v6271
        %v6348 = vpop.f32.mrf.mxu0
        %v6349 = vadd.f32 0.0, %v6348
        %v6350 = vpop.f32.mrf.mxu0
        %v6351 = vadd.f32 0.0, %v6350
        %6352 = vmatmul.bf16.gmra.mxu0 %v6272
        %v6353 = vpop.f32.mrf.mxu0
        %v6354 = vadd.f32 0.0, %v6353
        %v6355 = vpop.f32.mrf.mxu0
        %v6356 = vadd.f32 0.0, %v6355
        %6357 = vmatmul.bf16.gmra.mxu0 %v6273
        %v6358 = vpop.f32.mrf.mxu0
        %v6359 = vadd.f32 0.0, %v6358
        %v6360 = vpop.f32.mrf.mxu0
        %v6361 = vadd.f32 0.0, %v6360
        %6362 = vmatmul.bf16.gmra.mxu0 %v6274
        %v6363 = vpop.f32.mrf.mxu0
        %v6364 = vadd.f32 0.0, %v6363
        %v6365 = vpop.f32.mrf.mxu0
        %v6366 = vadd.f32 0.0, %v6365
        %6367 = vmatmul.bf16.gmra.mxu0 %v6275
        %v6368 = vpop.f32.mrf.mxu0
        %v6369 = vadd.f32 0.0, %v6368
        %v6370 = vpop.f32.mrf.mxu0
        %v6371 = vadd.f32 0.0, %v6370
        %6372 = vmatmul.bf16.gmra.mxu0 %v6276
        %v6373 = vpop.f32.mrf.mxu0
        %v6374 = vadd.f32 0.0, %v6373
        %v6375 = vpop.f32.mrf.mxu0
        %v6376 = vadd.f32 0.0, %v6375
        %6377 = vmatmul.bf16.gmra.mxu0 %v6277
        %v6378 = vpop.f32.mrf.mxu0
        %v6379 = vadd.f32 0.0, %v6378
        %v6380 = vpop.f32.mrf.mxu0
        %v6381 = vadd.f32 0.0, %v6380
        %6382 = vdwg.mxu0
        %v6383 = vadd.f32 %v6185, %v6344
        %v6384 = vadd.f32 %v6186, %v6346
        %v6385 = vadd.f32 %v6187, %v6349
        %v6386 = vadd.f32 %v6188, %v6351
        %v6387 = vadd.f32 %v6189, %v6354
        %v6388 = vadd.f32 %v6190, %v6356
        %v6389 = vadd.f32 %v6191, %v6359
        %v6390 = vadd.f32 %v6192, %v6361
        %v6391 = vadd.f32 %v6193, %v6364
        %v6392 = vadd.f32 %v6194, %v6366
        %v6393 = vadd.f32 %v6195, %v6369
        %v6394 = vadd.f32 %v6196, %v6371
        %v6395 = vadd.f32 %v6197, %v6374
        %v6396 = vadd.f32 %v6198, %v6376
        %v6397 = vadd.f32 %v6199, %v6379
        %v6398 = vadd.f32 %v6200, %v6381
        %s6399 = scalar_lea.vmem [#allocation19], 256
        %v6400 = vld [vmem:[%s6399] sm:$0xf]
        %v6401 = vld [vmem:[%s6399 + $0x4] sm:$0xf]
        %v6402 = vld [vmem:[%s6399 + $0x8] sm:$0xf]
        %v6403 = vld [vmem:[%s6399 + $0xc] sm:$0xf]
        %v6404 = vld [vmem:[%s6399 + $0x10] sm:$0xf]
        %v6405 = vld [vmem:[%s6399 + $0x14] sm:$0xf]
        %v6406 = vld [vmem:[%s6399 + $0x18] sm:$0xf]
        %v6407 = vld [vmem:[%s6399 + $0x1c] sm:$0xf]
        %v6408 = vld [vmem:[%s6399 + $0x20] sm:$0xf]
        %v6409 = vld [vmem:[%s6399 + $0x24] sm:$0xf]
        %v6410 = vld [vmem:[%s6399 + $0x28] sm:$0xf]
        %v6411 = vld [vmem:[%s6399 + $0x2c] sm:$0xf]
        %v6412 = vld [vmem:[%s6399 + $0x30] sm:$0xf]
        %v6413 = vld [vmem:[%s6399 + $0x34] sm:$0xf]
        %v6414 = vld [vmem:[%s6399 + $0x38] sm:$0xf]
        %v6415 = vld [vmem:[%s6399 + $0x3c] sm:$0xf]
        %v6418 = vunpack.c.l.b16 %v6217
        %v6419 = vunpack.c.l.b16 %v6218
        %v6420 = vpack.c.b16 %v6419, %v6418
        %v6438 = vunpack.c.l.b16 %v6400
        %v6439 = vunpack.c.l.b16 %v6401
        %v6440 = vunpack.c.l.b16 %v6402
        %v6441 = vunpack.c.l.b16 %v6403
        %v6442 = vunpack.c.l.b16 %v6404
        %v6443 = vunpack.c.l.b16 %v6405
        %v6444 = vunpack.c.l.b16 %v6406
        %v6445 = vunpack.c.l.b16 %v6407
        %v6446 = vunpack.c.l.b16 %v6408
        %v6447 = vunpack.c.l.b16 %v6409
        %v6448 = vunpack.c.l.b16 %v6410
        %v6449 = vunpack.c.l.b16 %v6411
        %v6450 = vunpack.c.l.b16 %v6412
        %v6451 = vunpack.c.l.b16 %v6413
        %v6452 = vunpack.c.l.b16 %v6414
        %v6453 = vunpack.c.l.b16 %v6415
        %v6454 = vpack.c.b16 %v6439, %v6438
        %v6455 = vpack.c.b16 %v6441, %v6440
        %v6456 = vpack.c.b16 %v6443, %v6442
        %v6457 = vpack.c.b16 %v6445, %v6444
        %v6458 = vpack.c.b16 %v6447, %v6446
        %v6459 = vpack.c.b16 %v6449, %v6448
        %v6460 = vpack.c.b16 %v6451, %v6450
        %v6461 = vpack.c.b16 %v6453, %v6452
        %6470 = vmatpush.bf16.msra.mxu0 %v6461
        %6471 = vmatpush.bf16.msra.mxu0 %v6460
        %6472 = vmatpush.bf16.msra.mxu0 %v6459
        %6473 = vmatpush.bf16.msra.mxu0 %v6458
        %6474 = vmatpush.bf16.msra.mxu0 %v6457
        %6475 = vmatpush.bf16.msra.mxu0 %v6456
        %6476 = vmatpush.bf16.msra.mxu0 %v6455
        %6477 = vmatpush.bf16.msra.mxu0 %v6454
        %6478 = vmatmul.bf16.gmra.mxu0 %v6271
        %v6479 = vpop.f32.mrf.mxu0
        %v6480 = vadd.f32 0.0, %v6479
        %v6481 = vpop.f32.mrf.mxu0
        %v6482 = vadd.f32 0.0, %v6481
        %6483 = vmatmul.bf16.gmra.mxu0 %v6272
        %v6484 = vpop.f32.mrf.mxu0
        %v6485 = vadd.f32 0.0, %v6484
        %v6486 = vpop.f32.mrf.mxu0
        %v6487 = vadd.f32 0.0, %v6486
        %6488 = vmatmul.bf16.gmra.mxu0 %v6273
        %v6489 = vpop.f32.mrf.mxu0
        %v6490 = vadd.f32 0.0, %v6489
        %v6491 = vpop.f32.mrf.mxu0
        %v6492 = vadd.f32 0.0, %v6491
        %6493 = vmatmul.bf16.gmra.mxu0 %v6274
        %v6494 = vpop.f32.mrf.mxu0
        %v6495 = vadd.f32 0.0, %v6494
        %v6496 = vpop.f32.mrf.mxu0
        %v6497 = vadd.f32 0.0, %v6496
        %6498 = vmatmul.bf16.gmra.mxu0 %v6275
        %v6499 = vpop.f32.mrf.mxu0
        %v6500 = vadd.f32 0.0, %v6499
        %v6501 = vpop.f32.mrf.mxu0
        %v6502 = vadd.f32 0.0, %v6501
        %6503 = vmatmul.bf16.gmra.mxu0 %v6276
        %v6504 = vpop.f32.mrf.mxu0
        %v6505 = vadd.f32 0.0, %v6504
        %v6506 = vpop.f32.mrf.mxu0
        %v6507 = vadd.f32 0.0, %v6506
        %6508 = vmatmul.bf16.gmra.mxu0 %v6277
        %v6509 = vpop.f32.mrf.mxu0
        %v6510 = vadd.f32 0.0, %v6509
        %v6511 = vpop.f32.mrf.mxu0
        %v6512 = vadd.f32 0.0, %v6511
        %6513 = vmatmul.bf16.gmra.mxu0 %v6420
        %v6514 = vpop.f32.mrf.mxu0
        %v6515 = vadd.f32 0.0, %v6514
        %v6516 = vpop.f32.mrf.mxu0
        %v6517 = vadd.f32 0.0, %v6516
        %6518 = vdwg.mxu0
        %v6519 = vadd.f32 %v6383, %v6480
        %v6520 = vadd.f32 %v6384, %v6482
        %v6521 = vadd.f32 %v6385, %v6485
        %v6522 = vadd.f32 %v6386, %v6487
        %v6523 = vadd.f32 %v6387, %v6490
        %v6524 = vadd.f32 %v6388, %v6492
        %v6525 = vadd.f32 %v6389, %v6495
        %v6526 = vadd.f32 %v6390, %v6497
        %v6527 = vadd.f32 %v6391, %v6500
        %v6528 = vadd.f32 %v6392, %v6502
        %v6529 = vadd.f32 %v6393, %v6505
        %v6530 = vadd.f32 %v6394, %v6507
        %v6531 = vadd.f32 %v6395, %v6510
        %v6532 = vadd.f32 %v6396, %v6512
        %v6533 = vadd.f32 %v6397, %v6515
        %v6534 = vadd.f32 %v6398, %v6517
        %s6535 = scalar_lea.vmem [#allocation19], 448
        %v6536 = vld [vmem:[%s6535] sm:$0xf]
        %v6537 = vld [vmem:[%s6535 + $0x4] sm:$0xf]
        %v6538 = vld [vmem:[%s6535 + $0x8] sm:$0xf]
        %v6539 = vld [vmem:[%s6535 + $0xc] sm:$0xf]
        %v6540 = vld [vmem:[%s6535 + $0x10] sm:$0xf]
        %v6541 = vld [vmem:[%s6535 + $0x14] sm:$0xf]
        %v6542 = vld [vmem:[%s6535 + $0x18] sm:$0xf]
        %v6543 = vld [vmem:[%s6535 + $0x1c] sm:$0xf]
        %v6544 = vld [vmem:[%s6535 + $0x20] sm:$0xf]
        %v6545 = vld [vmem:[%s6535 + $0x24] sm:$0xf]
        %v6546 = vld [vmem:[%s6535 + $0x28] sm:$0xf]
        %v6547 = vld [vmem:[%s6535 + $0x2c] sm:$0xf]
        %v6548 = vld [vmem:[%s6535 + $0x30] sm:$0xf]
        %v6549 = vld [vmem:[%s6535 + $0x34] sm:$0xf]
        %v6550 = vld [vmem:[%s6535 + $0x38] sm:$0xf]
        %v6551 = vld [vmem:[%s6535 + $0x3c] sm:$0xf]
        %v6554 = vunpack.c.l.b16 %v6219
        %v6555 = vunpack.c.l.b16 %v6220
        %v6556 = vpack.c.b16 %v6555, %v6554
        %v6574 = vunpack.c.l.b16 %v6536
        %v6575 = vunpack.c.l.b16 %v6537
        %v6576 = vunpack.c.l.b16 %v6538
        %v6577 = vunpack.c.l.b16 %v6539
        %v6578 = vunpack.c.l.b16 %v6540
        %v6579 = vunpack.c.l.b16 %v6541
        %v6580 = vunpack.c.l.b16 %v6542
        %v6581 = vunpack.c.l.b16 %v6543
        %v6582 = vunpack.c.l.b16 %v6544
        %v6583 = vunpack.c.l.b16 %v6545
        %v6584 = vunpack.c.l.b16 %v6546
        %v6585 = vunpack.c.l.b16 %v6547
        %v6586 = vunpack.c.l.b16 %v6548
        %v6587 = vunpack.c.l.b16 %v6549
        %v6588 = vunpack.c.l.b16 %v6550
        %v6589 = vunpack.c.l.b16 %v6551
        %v6590 = vpack.c.b16 %v6575, %v6574
        %v6591 = vpack.c.b16 %v6577, %v6576
        %v6592 = vpack.c.b16 %v6579, %v6578
        %v6593 = vpack.c.b16 %v6581, %v6580
        %v6594 = vpack.c.b16 %v6583, %v6582
        %v6595 = vpack.c.b16 %v6585, %v6584
        %v6596 = vpack.c.b16 %v6587, %v6586
        %v6597 = vpack.c.b16 %v6589, %v6588
        %6606 = vmatpush.bf16.msra.mxu0 %v6597
        %6607 = vmatpush.bf16.msra.mxu0 %v6596
        %6608 = vmatpush.bf16.msra.mxu0 %v6595
        %6609 = vmatpush.bf16.msra.mxu0 %v6594
        %6610 = vmatpush.bf16.msra.mxu0 %v6593
        %6611 = vmatpush.bf16.msra.mxu0 %v6592
        %6612 = vmatpush.bf16.msra.mxu0 %v6591
        %6613 = vmatpush.bf16.msra.mxu0 %v6590
        %6614 = vmatmul.bf16.gmra.mxu0 %v6272
        %v6615 = vpop.f32.mrf.mxu0
        %v6616 = vadd.f32 0.0, %v6615
        %v6617 = vpop.f32.mrf.mxu0
        %v6618 = vadd.f32 0.0, %v6617
        %6619 = vmatmul.bf16.gmra.mxu0 %v6273
        %v6620 = vpop.f32.mrf.mxu0
        %v6621 = vadd.f32 0.0, %v6620
        %v6622 = vpop.f32.mrf.mxu0
        %v6623 = vadd.f32 0.0, %v6622
        %6624 = vmatmul.bf16.gmra.mxu0 %v6274
        %v6625 = vpop.f32.mrf.mxu0
        %v6626 = vadd.f32 0.0, %v6625
        %v6627 = vpop.f32.mrf.mxu0
        %v6628 = vadd.f32 0.0, %v6627
        %6629 = vmatmul.bf16.gmra.mxu0 %v6275
        %v6630 = vpop.f32.mrf.mxu0
        %v6631 = vadd.f32 0.0, %v6630
        %v6632 = vpop.f32.mrf.mxu0
        %v6633 = vadd.f32 0.0, %v6632
        %6634 = vmatmul.bf16.gmra.mxu0 %v6276
        %v6635 = vpop.f32.mrf.mxu0
        %v6636 = vadd.f32 0.0, %v6635
        %v6637 = vpop.f32.mrf.mxu0
        %v6638 = vadd.f32 0.0, %v6637
        %6639 = vmatmul.bf16.gmra.mxu0 %v6277
        %v6640 = vpop.f32.mrf.mxu0
        %v6641 = vadd.f32 0.0, %v6640
        %v6642 = vpop.f32.mrf.mxu0
        %v6643 = vadd.f32 0.0, %v6642
        %6644 = vmatmul.bf16.gmra.mxu0 %v6420
        %v6645 = vpop.f32.mrf.mxu0
        %v6646 = vadd.f32 0.0, %v6645
        %v6647 = vpop.f32.mrf.mxu0
        %v6648 = vadd.f32 0.0, %v6647
        %6649 = vmatmul.bf16.gmra.mxu0 %v6556
        %v6650 = vpop.f32.mrf.mxu0
        %v6651 = vadd.f32 0.0, %v6650
        %v6652 = vpop.f32.mrf.mxu0
        %v6653 = vadd.f32 0.0, %v6652
        %6654 = vdwg.mxu0
        %v6655 = vadd.f32 %v6519, %v6616
        %v6656 = vadd.f32 %v6520, %v6618
        %v6657 = vadd.f32 %v6521, %v6621
        %v6658 = vadd.f32 %v6522, %v6623
        %v6659 = vadd.f32 %v6523, %v6626
        %v6660 = vadd.f32 %v6524, %v6628
        %v6661 = vadd.f32 %v6525, %v6631
        %v6662 = vadd.f32 %v6526, %v6633
        %v6663 = vadd.f32 %v6527, %v6636
        %v6664 = vadd.f32 %v6528, %v6638
        %v6665 = vadd.f32 %v6529, %v6641
        %v6666 = vadd.f32 %v6530, %v6643
        %v6667 = vadd.f32 %v6531, %v6646
        %v6668 = vadd.f32 %v6532, %v6648
        %v6669 = vadd.f32 %v6533, %v6651
        %v6670 = vadd.f32 %v6534, %v6653
        %v6671 = vrot.slane %v5704, 1
        %v6672 = vrot.slane %v5705, 1
        %v6673 = vrot.slane %v5706, 1
        %v6674 = vrot.slane %v5707, 1
        %v6675 = vrot.slane %v5708, 1
        %v6676 = vrot.slane %v5709, 1
        %v6677 = vrot.slane %v5710, 1
        %v6678 = vrot.slane %v5711, 1
        %v6679 = vrot.slane %v5712, 1
        %v6680 = vrot.slane %v5713, 1
        %v6681 = vrot.slane %v5714, 1
        %v6682 = vrot.slane %v5715, 1
        %v6683 = vrot.slane %v5716, 1
        %v6684 = vrot.slane %v5717, 1
        %v6685 = vrot.slane %v5718, 1
        %v6686 = vrot.slane %v5719, 1
        %v6687 = vrot.slane %v5720, 1
        %v6688 = vrot.slane %v5721, 1
        %v6689 = vrot.slane %v5722, 1
        %v6690 = vrot.slane %v5723, 1
        %v6691 = vsel %vm1741, %v6689, %v6690
        %v6692 = vsel %vm1741, %v6688, %v6689
        %v6693 = vsel %vm1741, %v6687, %v6688
        %v6694 = vsel %vm1741, %v6686, %v6687
        %v6695 = vsel %vm1741, %v6685, %v6686
        %v6696 = vsel %vm1741, %v6684, %v6685
        %v6697 = vsel %vm1741, %v6683, %v6684
        %v6698 = vsel %vm1741, %v6682, %v6683
        %v6699 = vsel %vm1741, %v6681, %v6682
        %v6700 = vsel %vm1741, %v6680, %v6681
        %v6701 = vsel %vm1741, %v6679, %v6680
        %v6702 = vsel %vm1741, %v6678, %v6679
        %v6703 = vsel %vm1741, %v6677, %v6678
        %v6704 = vsel %vm1741, %v6676, %v6677
        %v6705 = vsel %vm1741, %v6675, %v6676
        %v6706 = vsel %vm1741, %v6674, %v6675
        %v6707 = vsel %vm1741, %v6673, %v6674
        %v6708 = vsel %vm1741, %v6672, %v6673
        %v6709 = vsel %vm1741, %v6671, %v6672
        %v6710 = vsel %vm1741, %v6690, %v6671
        %v6711 = vpack.c.bf16 %v6709, %v6709
        %v6712 = vpack.c.bf16 %v6708, %v6708
        %v6713 = vpack.c.bf16 %v6707, %v6707
        %v6714 = vpack.c.bf16 %v6706, %v6706
        %v6715 = vpack.c.bf16 %v6705, %v6705
        %v6716 = vpack.c.bf16 %v6704, %v6704
        %v6717 = vpack.c.bf16 %v6703, %v6703
        %v6718 = vpack.c.bf16 %v6702, %v6702
        %v6719 = vpack.c.bf16 %v6701, %v6701
        %v6720 = vpack.c.bf16 %v6700, %v6700
        %v6721 = vpack.c.bf16 %v6699, %v6699
        %v6722 = vpack.c.bf16 %v6698, %v6698
        %v6723 = vpack.c.bf16 %v6697, %v6697
        %v6724 = vpack.c.bf16 %v6696, %v6696
        %v6725 = vpack.c.bf16 %v6695, %v6695
        %v6726 = vpack.c.bf16 %v6694, %v6694
        %v6727 = vpack.c.bf16 %v6693, %v6693
        %v6728 = vpack.c.bf16 %v6692, %v6692
        %v6729 = vpack.c.bf16 %v6691, %v6691
        %v6730 = vpack.c.bf16 %v6710, %v6710
        %s6731 = scalar_lea.vmem [#allocation19], 128
        %v6732 = vld [vmem:[%s6731] sm:$0xf]
        %v6733 = vld [vmem:[%s6731 + $0x4] sm:$0xf]
        %v6734 = vld [vmem:[%s6731 + $0x8] sm:$0xf]
        %v6735 = vld [vmem:[%s6731 + $0xc] sm:$0xf]
        %v6736 = vld [vmem:[%s6731 + $0x10] sm:$0xf]
        %v6737 = vld [vmem:[%s6731 + $0x14] sm:$0xf]
        %v6738 = vld [vmem:[%s6731 + $0x18] sm:$0xf]
        %v6739 = vld [vmem:[%s6731 + $0x1c] sm:$0xf]
        %v6740 = vld [vmem:[%s6731 + $0x20] sm:$0xf]
        %v6741 = vld [vmem:[%s6731 + $0x24] sm:$0xf]
        %v6742 = vld [vmem:[%s6731 + $0x28] sm:$0xf]
        %v6743 = vld [vmem:[%s6731 + $0x2c] sm:$0xf]
        %v6744 = vld [vmem:[%s6731 + $0x30] sm:$0xf]
        %v6745 = vld [vmem:[%s6731 + $0x34] sm:$0xf]
        %v6746 = vld [vmem:[%s6731 + $0x38] sm:$0xf]
        %v6747 = vld [vmem:[%s6731 + $0x3c] sm:$0xf]
        %v6764 = vunpack.c.l.b16 %v6711
        %v6765 = vunpack.c.l.b16 %v6712
        %v6766 = vunpack.c.l.b16 %v6713
        %v6767 = vunpack.c.l.b16 %v6714
        %v6768 = vunpack.c.l.b16 %v6715
        %v6769 = vunpack.c.l.b16 %v6716
        %v6770 = vunpack.c.l.b16 %v6717
        %v6771 = vunpack.c.l.b16 %v6718
        %v6772 = vunpack.c.l.b16 %v6719
        %v6773 = vunpack.c.l.b16 %v6720
        %v6774 = vunpack.c.l.b16 %v6721
        %v6775 = vunpack.c.l.b16 %v6722
        %v6776 = vunpack.c.l.b16 %v6723
        %v6777 = vunpack.c.l.b16 %v6724
        %v6778 = vunpack.c.l.b16 %v6725
        %v6779 = vunpack.c.l.b16 %v6726
        %v6780 = vpack.c.b16 %v6765, %v6764
        %v6781 = vpack.c.b16 %v6767, %v6766
        %v6782 = vpack.c.b16 %v6769, %v6768
        %v6783 = vpack.c.b16 %v6771, %v6770
        %v6784 = vpack.c.b16 %v6773, %v6772
        %v6785 = vpack.c.b16 %v6775, %v6774
        %v6786 = vpack.c.b16 %v6777, %v6776
        %v6787 = vpack.c.b16 %v6779, %v6778
        %v6812 = vunpack.c.l.b16 %v6732
        %v6813 = vunpack.c.l.b16 %v6733
        %v6814 = vunpack.c.l.b16 %v6734
        %v6815 = vunpack.c.l.b16 %v6735
        %v6816 = vunpack.c.l.b16 %v6736
        %v6817 = vunpack.c.l.b16 %v6737
        %v6818 = vunpack.c.l.b16 %v6738
        %v6819 = vunpack.c.l.b16 %v6739
        %v6820 = vunpack.c.l.b16 %v6740
        %v6821 = vunpack.c.l.b16 %v6741
        %v6822 = vunpack.c.l.b16 %v6742
        %v6823 = vunpack.c.l.b16 %v6743
        %v6824 = vunpack.c.l.b16 %v6744
        %v6825 = vunpack.c.l.b16 %v6745
        %v6826 = vunpack.c.l.b16 %v6746
        %v6827 = vunpack.c.l.b16 %v6747
        %v6828 = vpack.c.b16 %v6813, %v6812
        %v6829 = vpack.c.b16 %v6815, %v6814
        %v6830 = vpack.c.b16 %v6817, %v6816
        %v6831 = vpack.c.b16 %v6819, %v6818
        %v6832 = vpack.c.b16 %v6821, %v6820
        %v6833 = vpack.c.b16 %v6823, %v6822
        %v6834 = vpack.c.b16 %v6825, %v6824
        %v6835 = vpack.c.b16 %v6827, %v6826
        %6844 = vmatpush.bf16.msra.mxu0 %v6835
        %6845 = vmatpush.bf16.msra.mxu0 %v6834
        %6846 = vmatpush.bf16.msra.mxu0 %v6833
        %6847 = vmatpush.bf16.msra.mxu0 %v6832
        %6848 = vmatpush.bf16.msra.mxu0 %v6831
        %6849 = vmatpush.bf16.msra.mxu0 %v6830
        %6850 = vmatpush.bf16.msra.mxu0 %v6829
        %6851 = vmatpush.bf16.msra.mxu0 %v6828
        %6852 = vmatmul.bf16.gmra.mxu0 %v6780
        %v6853 = vpop.f32.mrf.mxu0
        %v6854 = vadd.f32 0.0, %v6853
        %v6855 = vpop.f32.mrf.mxu0
        %v6856 = vadd.f32 0.0, %v6855
        %6857 = vmatmul.bf16.gmra.mxu0 %v6781
        %v6858 = vpop.f32.mrf.mxu0
        %v6859 = vadd.f32 0.0, %v6858
        %v6860 = vpop.f32.mrf.mxu0
        %v6861 = vadd.f32 0.0, %v6860
        %6862 = vmatmul.bf16.gmra.mxu0 %v6782
        %v6863 = vpop.f32.mrf.mxu0
        %v6864 = vadd.f32 0.0, %v6863
        %v6865 = vpop.f32.mrf.mxu0
        %v6866 = vadd.f32 0.0, %v6865
        %6867 = vmatmul.bf16.gmra.mxu0 %v6783
        %v6868 = vpop.f32.mrf.mxu0
        %v6869 = vadd.f32 0.0, %v6868
        %v6870 = vpop.f32.mrf.mxu0
        %v6871 = vadd.f32 0.0, %v6870
        %6872 = vmatmul.bf16.gmra.mxu0 %v6784
        %v6873 = vpop.f32.mrf.mxu0
        %v6874 = vadd.f32 0.0, %v6873
        %v6875 = vpop.f32.mrf.mxu0
        %v6876 = vadd.f32 0.0, %v6875
        %6877 = vmatmul.bf16.gmra.mxu0 %v6785
        %v6878 = vpop.f32.mrf.mxu0
        %v6879 = vadd.f32 0.0, %v6878
        %v6880 = vpop.f32.mrf.mxu0
        %v6881 = vadd.f32 0.0, %v6880
        %6882 = vmatmul.bf16.gmra.mxu0 %v6786
        %v6883 = vpop.f32.mrf.mxu0
        %v6884 = vadd.f32 0.0, %v6883
        %v6885 = vpop.f32.mrf.mxu0
        %v6886 = vadd.f32 0.0, %v6885
        %6887 = vmatmul.bf16.gmra.mxu0 %v6787
        %v6888 = vpop.f32.mrf.mxu0
        %v6889 = vadd.f32 0.0, %v6888
        %v6890 = vpop.f32.mrf.mxu0
        %v6891 = vadd.f32 0.0, %v6890
        %6892 = vdwg.mxu0
        %v6893 = vadd.f32 %v6655, %v6854
        %v6894 = vadd.f32 %v6656, %v6856
        %v6895 = vadd.f32 %v6657, %v6859
        %v6896 = vadd.f32 %v6658, %v6861
        %v6897 = vadd.f32 %v6659, %v6864
        %v6898 = vadd.f32 %v6660, %v6866
        %v6899 = vadd.f32 %v6661, %v6869
        %v6900 = vadd.f32 %v6662, %v6871
        %v6901 = vadd.f32 %v6663, %v6874
        %v6902 = vadd.f32 %v6664, %v6876
        %v6903 = vadd.f32 %v6665, %v6879
        %v6904 = vadd.f32 %v6666, %v6881
        %v6905 = vadd.f32 %v6667, %v6884
        %v6906 = vadd.f32 %v6668, %v6886
        %v6907 = vadd.f32 %v6669, %v6889
        %v6908 = vadd.f32 %v6670, %v6891
        %s6909 = scalar_lea.vmem [#allocation19], 320
        %v6910 = vld [vmem:[%s6909] sm:$0xf]
        %v6911 = vld [vmem:[%s6909 + $0x4] sm:$0xf]
        %v6912 = vld [vmem:[%s6909 + $0x8] sm:$0xf]
        %v6913 = vld [vmem:[%s6909 + $0xc] sm:$0xf]
        %v6914 = vld [vmem:[%s6909 + $0x10] sm:$0xf]
        %v6915 = vld [vmem:[%s6909 + $0x14] sm:$0xf]
        %v6916 = vld [vmem:[%s6909 + $0x18] sm:$0xf]
        %v6917 = vld [vmem:[%s6909 + $0x1c] sm:$0xf]
        %v6918 = vld [vmem:[%s6909 + $0x20] sm:$0xf]
        %v6919 = vld [vmem:[%s6909 + $0x24] sm:$0xf]
        %v6920 = vld [vmem:[%s6909 + $0x28] sm:$0xf]
        %v6921 = vld [vmem:[%s6909 + $0x2c] sm:$0xf]
        %v6922 = vld [vmem:[%s6909 + $0x30] sm:$0xf]
        %v6923 = vld [vmem:[%s6909 + $0x34] sm:$0xf]
        %v6924 = vld [vmem:[%s6909 + $0x38] sm:$0xf]
        %v6925 = vld [vmem:[%s6909 + $0x3c] sm:$0xf]
        %v6928 = vunpack.c.l.b16 %v6727
        %v6929 = vunpack.c.l.b16 %v6728
        %v6930 = vpack.c.b16 %v6929, %v6928
        %v6948 = vunpack.c.l.b16 %v6910
        %v6949 = vunpack.c.l.b16 %v6911
        %v6950 = vunpack.c.l.b16 %v6912
        %v6951 = vunpack.c.l.b16 %v6913
        %v6952 = vunpack.c.l.b16 %v6914
        %v6953 = vunpack.c.l.b16 %v6915
        %v6954 = vunpack.c.l.b16 %v6916
        %v6955 = vunpack.c.l.b16 %v6917
        %v6956 = vunpack.c.l.b16 %v6918
        %v6957 = vunpack.c.l.b16 %v6919
        %v6958 = vunpack.c.l.b16 %v6920
        %v6959 = vunpack.c.l.b16 %v6921
        %v6960 = vunpack.c.l.b16 %v6922
        %v6961 = vunpack.c.l.b16 %v6923
        %v6962 = vunpack.c.l.b16 %v6924
        %v6963 = vunpack.c.l.b16 %v6925
        %v6964 = vpack.c.b16 %v6949, %v6948
        %v6965 = vpack.c.b16 %v6951, %v6950
        %v6966 = vpack.c.b16 %v6953, %v6952
        %v6967 = vpack.c.b16 %v6955, %v6954
        %v6968 = vpack.c.b16 %v6957, %v6956
        %v6969 = vpack.c.b16 %v6959, %v6958
        %v6970 = vpack.c.b16 %v6961, %v6960
        %v6971 = vpack.c.b16 %v6963, %v6962
        %6980 = vmatpush.bf16.msra.mxu0 %v6971
        %6981 = vmatpush.bf16.msra.mxu0 %v6970
        %6982 = vmatpush.bf16.msra.mxu0 %v6969
        %6983 = vmatpush.bf16.msra.mxu0 %v6968
        %6984 = vmatpush.bf16.msra.mxu0 %v6967
        %6985 = vmatpush.bf16.msra.mxu0 %v6966
        %6986 = vmatpush.bf16.msra.mxu0 %v6965
        %6987 = vmatpush.bf16.msra.mxu0 %v6964
        %6988 = vmatmul.bf16.gmra.mxu0 %v6781
        %v6989 = vpop.f32.mrf.mxu0
        %v6990 = vadd.f32 0.0, %v6989
        %v6991 = vpop.f32.mrf.mxu0
        %v6992 = vadd.f32 0.0, %v6991
        %6993 = vmatmul.bf16.gmra.mxu0 %v6782
        %v6994 = vpop.f32.mrf.mxu0
        %v6995 = vadd.f32 0.0, %v6994
        %v6996 = vpop.f32.mrf.mxu0
        %v6997 = vadd.f32 0.0, %v6996
        %6998 = vmatmul.bf16.gmra.mxu0 %v6783
        %v6999 = vpop.f32.mrf.mxu0
        %v7000 = vadd.f32 0.0, %v6999
        %v7001 = vpop.f32.mrf.mxu0
        %v7002 = vadd.f32 0.0, %v7001
        %7003 = vmatmul.bf16.gmra.mxu0 %v6784
        %v7004 = vpop.f32.mrf.mxu0
        %v7005 = vadd.f32 0.0, %v7004
        %v7006 = vpop.f32.mrf.mxu0
        %v7007 = vadd.f32 0.0, %v7006
        %7008 = vmatmul.bf16.gmra.mxu0 %v6785
        %v7009 = vpop.f32.mrf.mxu0
        %v7010 = vadd.f32 0.0, %v7009
        %v7011 = vpop.f32.mrf.mxu0
        %v7012 = vadd.f32 0.0, %v7011
        %7013 = vmatmul.bf16.gmra.mxu0 %v6786
        %v7014 = vpop.f32.mrf.mxu0
        %v7015 = vadd.f32 0.0, %v7014
        %v7016 = vpop.f32.mrf.mxu0
        %v7017 = vadd.f32 0.0, %v7016
        %7018 = vmatmul.bf16.gmra.mxu0 %v6787
        %v7019 = vpop.f32.mrf.mxu0
        %v7020 = vadd.f32 0.0, %v7019
        %v7021 = vpop.f32.mrf.mxu0
        %v7022 = vadd.f32 0.0, %v7021
        %7023 = vmatmul.bf16.gmra.mxu0 %v6930
        %v7024 = vpop.f32.mrf.mxu0
        %v7025 = vadd.f32 0.0, %v7024
        %v7026 = vpop.f32.mrf.mxu0
        %v7027 = vadd.f32 0.0, %v7026
        %7028 = vdwg.mxu0
        %v7029 = vadd.f32 %v6893, %v6990
        %v7030 = vadd.f32 %v6894, %v6992
        %v7031 = vadd.f32 %v6895, %v6995
        %v7032 = vadd.f32 %v6896, %v6997
        %v7033 = vadd.f32 %v6897, %v7000
        %v7034 = vadd.f32 %v6898, %v7002
        %v7035 = vadd.f32 %v6899, %v7005
        %v7036 = vadd.f32 %v6900, %v7007
        %v7037 = vadd.f32 %v6901, %v7010
        %v7038 = vadd.f32 %v6902, %v7012
        %v7039 = vadd.f32 %v6903, %v7015
        %v7040 = vadd.f32 %v6904, %v7017
        %v7041 = vadd.f32 %v6905, %v7020
        %v7042 = vadd.f32 %v6906, %v7022
        %v7043 = vadd.f32 %v6907, %v7025
        %v7044 = vadd.f32 %v6908, %v7027
        %s7045 = scalar_lea.vmem [#allocation19], 512
        %v7046 = vld [vmem:[%s7045] sm:$0xf]
        %v7047 = vld [vmem:[%s7045 + $0x4] sm:$0xf]
        %v7048 = vld [vmem:[%s7045 + $0x8] sm:$0xf]
        %v7049 = vld [vmem:[%s7045 + $0xc] sm:$0xf]
        %v7050 = vld [vmem:[%s7045 + $0x10] sm:$0xf]
        %v7051 = vld [vmem:[%s7045 + $0x14] sm:$0xf]
        %v7052 = vld [vmem:[%s7045 + $0x18] sm:$0xf]
        %v7053 = vld [vmem:[%s7045 + $0x1c] sm:$0xf]
        %v7054 = vld [vmem:[%s7045 + $0x20] sm:$0xf]
        %v7055 = vld [vmem:[%s7045 + $0x24] sm:$0xf]
        %v7056 = vld [vmem:[%s7045 + $0x28] sm:$0xf]
        %v7057 = vld [vmem:[%s7045 + $0x2c] sm:$0xf]
        %v7058 = vld [vmem:[%s7045 + $0x30] sm:$0xf]
        %v7059 = vld [vmem:[%s7045 + $0x34] sm:$0xf]
        %v7060 = vld [vmem:[%s7045 + $0x38] sm:$0xf]
        %v7061 = vld [vmem:[%s7045 + $0x3c] sm:$0xf]
        %v7064 = vunpack.c.l.b16 %v6729
        %v7065 = vunpack.c.l.b16 %v6730
        %v7066 = vpack.c.b16 %v7065, %v7064
        %v7084 = vunpack.c.l.b16 %v7046
        %v7085 = vunpack.c.l.b16 %v7047
        %v7086 = vunpack.c.l.b16 %v7048
        %v7087 = vunpack.c.l.b16 %v7049
        %v7088 = vunpack.c.l.b16 %v7050
        %v7089 = vunpack.c.l.b16 %v7051
        %v7090 = vunpack.c.l.b16 %v7052
        %v7091 = vunpack.c.l.b16 %v7053
        %v7092 = vunpack.c.l.b16 %v7054
        %v7093 = vunpack.c.l.b16 %v7055
        %v7094 = vunpack.c.l.b16 %v7056
        %v7095 = vunpack.c.l.b16 %v7057
        %v7096 = vunpack.c.l.b16 %v7058
        %v7097 = vunpack.c.l.b16 %v7059
        %v7098 = vunpack.c.l.b16 %v7060
        %v7099 = vunpack.c.l.b16 %v7061
        %v7100 = vpack.c.b16 %v7085, %v7084
        %v7101 = vpack.c.b16 %v7087, %v7086
        %v7102 = vpack.c.b16 %v7089, %v7088
        %v7103 = vpack.c.b16 %v7091, %v7090
        %v7104 = vpack.c.b16 %v7093, %v7092
        %v7105 = vpack.c.b16 %v7095, %v7094
        %v7106 = vpack.c.b16 %v7097, %v7096
        %v7107 = vpack.c.b16 %v7099, %v7098
        %7116 = vmatpush.bf16.msra.mxu0 %v7107
        %7117 = vmatpush.bf16.msra.mxu0 %v7106
        %7118 = vmatpush.bf16.msra.mxu0 %v7105
        %7119 = vmatpush.bf16.msra.mxu0 %v7104
        %7120 = vmatpush.bf16.msra.mxu0 %v7103
        %7121 = vmatpush.bf16.msra.mxu0 %v7102
        %7122 = vmatpush.bf16.msra.mxu0 %v7101
        %7123 = vmatpush.bf16.msra.mxu0 %v7100
        %7124 = vmatmul.bf16.gmra.mxu0 %v6782
        %v7125 = vpop.f32.mrf.mxu0
        %v7126 = vadd.f32 0.0, %v7125
        %v7127 = vpop.f32.mrf.mxu0
        %v7128 = vadd.f32 0.0, %v7127
        %7129 = vmatmul.bf16.gmra.mxu0 %v6783
        %v7130 = vpop.f32.mrf.mxu0
        %v7131 = vadd.f32 0.0, %v7130
        %v7132 = vpop.f32.mrf.mxu0
        %v7133 = vadd.f32 0.0, %v7132
        %7134 = vmatmul.bf16.gmra.mxu0 %v6784
        %v7135 = vpop.f32.mrf.mxu0
        %v7136 = vadd.f32 0.0, %v7135
        %v7137 = vpop.f32.mrf.mxu0
        %v7138 = vadd.f32 0.0, %v7137
        %7139 = vmatmul.bf16.gmra.mxu0 %v6785
        %v7140 = vpop.f32.mrf.mxu0
        %v7141 = vadd.f32 0.0, %v7140
        %v7142 = vpop.f32.mrf.mxu0
        %v7143 = vadd.f32 0.0, %v7142
        %7144 = vmatmul.bf16.gmra.mxu0 %v6786
        %v7145 = vpop.f32.mrf.mxu0
        %v7146 = vadd.f32 0.0, %v7145
        %v7147 = vpop.f32.mrf.mxu0
        %v7148 = vadd.f32 0.0, %v7147
        %7149 = vmatmul.bf16.gmra.mxu0 %v6787
        %v7150 = vpop.f32.mrf.mxu0
        %v7151 = vadd.f32 0.0, %v7150
        %v7152 = vpop.f32.mrf.mxu0
        %v7153 = vadd.f32 0.0, %v7152
        %7154 = vmatmul.bf16.gmra.mxu0 %v6930
        %v7155 = vpop.f32.mrf.mxu0
        %v7156 = vadd.f32 0.0, %v7155
        %v7157 = vpop.f32.mrf.mxu0
        %v7158 = vadd.f32 0.0, %v7157
        %7159 = vmatmul.bf16.gmra.mxu0 %v7066
        %v7160 = vpop.f32.mrf.mxu0
        %v7161 = vadd.f32 0.0, %v7160
        %v7162 = vpop.f32.mrf.mxu0
        %v7163 = vadd.f32 0.0, %v7162
        %7164 = vdwg.mxu0
        %v7165 = vadd.f32 %v7029, %v7126
        %v7166 = vadd.f32 %v7030, %v7128
        %v7167 = vadd.f32 %v7031, %v7131
        %v7168 = vadd.f32 %v7032, %v7133
        %v7169 = vadd.f32 %v7033, %v7136
        %v7170 = vadd.f32 %v7034, %v7138
        %v7171 = vadd.f32 %v7035, %v7141
        %v7172 = vadd.f32 %v7036, %v7143
        %v7173 = vadd.f32 %v7037, %v7146
        %v7174 = vadd.f32 %v7038, %v7148
        %v7175 = vadd.f32 %v7039, %v7151
        %v7176 = vadd.f32 %v7040, %v7153
        %v7177 = vadd.f32 %v7041, %v7156
        %v7178 = vadd.f32 %v7042, %v7158
        %v7179 = vadd.f32 %v7043, %v7161
        %v7180 = vadd.f32 %v7044, %v7163
        %v7181 = vld [vmem:[#allocation20] sm:$0x1]
        %v7183 = vperm.slane %v7181, 0
        %v7185 = vadd.f32 %v7165, %v7183
        %v7186 = vadd.f32 %v7166, %v7183
        %v7187 = vadd.f32 %v7167, %v7183
        %v7188 = vadd.f32 %v7168, %v7183
        %v7189 = vadd.f32 %v7169, %v7183
        %v7190 = vadd.f32 %v7170, %v7183
        %v7191 = vadd.f32 %v7171, %v7183
        %v7192 = vadd.f32 %v7172, %v7183
        %v7193 = vadd.f32 %v7173, %v7183
        %v7194 = vadd.f32 %v7174, %v7183
        %v7195 = vadd.f32 %v7175, %v7183
        %v7196 = vadd.f32 %v7176, %v7183
        %v7197 = vadd.f32 %v7177, %v7183
        %v7198 = vadd.f32 %v7178, %v7183
        %v7199 = vadd.f32 %v7179, %v7183
        %v7200 = vadd.f32 %v7180, %v7183
        %v7201 = vmax.f32 %v7185, 0.0
        %v7202 = vmax.f32 %v7186, 0.0
        %v7203 = vmax.f32 %v7187, 0.0
        %v7204 = vmax.f32 %v7188, 0.0
        %v7205 = vmax.f32 %v7189, 0.0
        %v7206 = vmax.f32 %v7190, 0.0
        %v7207 = vmax.f32 %v7191, 0.0
        %v7208 = vmax.f32 %v7192, 0.0
        %v7209 = vmax.f32 %v7193, 0.0
        %v7210 = vmax.f32 %v7194, 0.0
        %v7211 = vmax.f32 %v7195, 0.0
        %v7212 = vmax.f32 %v7196, 0.0
        %v7213 = vmax.f32 %v7197, 0.0
        %v7214 = vmax.f32 %v7198, 0.0
        %v7215 = vmax.f32 %v7199, 0.0
        %v7216 = vmax.f32 %v7200, 0.0
        %7217 = vst [vmem:[%s734] sm:$0xff] %v7201
        %7218 = vst [vmem:[%s734 + $0x8] sm:$0xff] %v7202
        %7219 = vst [vmem:[%s734 + $0x10] sm:$0xff] %v7203
        %7220 = vst [vmem:[%s734 + $0x18] sm:$0xff] %v7204
        %7221 = vst [vmem:[%s734 + $0x20] sm:$0xff] %v7205
        %7222 = vst [vmem:[%s734 + $0x28] sm:$0xff] %v7206
        %7223 = vst [vmem:[%s734 + $0x30] sm:$0xff] %v7207
        %7224 = vst [vmem:[%s734 + $0x38] sm:$0xff] %v7208
        %7225 = vst [vmem:[%s734 + $0x40] sm:$0xff] %v7209
        %7226 = vst [vmem:[%s734 + $0x48] sm:$0xff] %v7210
        %7227 = vst [vmem:[%s734 + $0x50] sm:$0xff] %v7211
        %7228 = vst [vmem:[%s734 + $0x58] sm:$0xff] %v7212
        %7229 = vst [vmem:[%s734 + $0x60] sm:$0xff] %v7213
        %7230 = vst [vmem:[%s734 + $0x68] sm:$0xff] %v7214
        %7231 = vst [vmem:[%s734 + $0x70] sm:$0xff] %v7215
        %7232 = vst [vmem:[%s734 + $0x78] sm:$0xff] %v7216
        %7233 = vst [vmem:[%s734] sm:$0x1] 0.0
        %7234 = vst [vmem:[%s734 + $0x10] sm:$0x1] 0.0
        %7235 = vst [vmem:[%s734 + $0x20] sm:$0x1] 0.0
        %7236 = vst [vmem:[%s734 + $0x30] sm:$0x1] 0.0
        %7237 = vst [vmem:[%s734 + $0x40] sm:$0x1] 0.0
        %7238 = vst [vmem:[%s734 + $0x50] sm:$0x1] 0.0
        %7239 = vst [vmem:[%s734 + $0x60] sm:$0x1] 0.0
        %7240 = vst [vmem:[%s734 + $0x70] sm:$0x1] 0.0
        %7241 = vst [vmem:[%s734 + $0x9] sm:$0x1] 0.0
        %7242 = vst [vmem:[%s734 + $0x19] sm:$0x1] 0.0
        %7243 = vst [vmem:[%s734 + $0x29] sm:$0x1] 0.0
        %7244 = vst [vmem:[%s734 + $0x39] sm:$0x1] 0.0
        %7245 = vst [vmem:[%s734 + $0x49] sm:$0x1] 0.0
        %7246 = vst [vmem:[%s734 + $0x59] sm:$0x1] 0.0
        %7247 = vst [vmem:[%s734 + $0x69] sm:$0x1] 0.0
        %7248 = vst [vmem:[%s734 + $0x79] sm:$0x1] 0.0
        %v7249 = vld [vmem:[#allocation2] sm:$0xff]
        %v7250 = vld [vmem:[#allocation2 + $0x8] sm:$0xff]
        %v7251 = vld [vmem:[#allocation2 + $0x10] sm:$0xff]
        %v7252 = vld [vmem:[#allocation2 + $0x18] sm:$0xff]
        %v7253 = vld [vmem:[#allocation2 + $0x20] sm:$0xff]
        %v7254 = vld [vmem:[#allocation2 + $0x28] sm:$0xff]
        %v7255 = vld [vmem:[#allocation2 + $0x30] sm:$0xff]
        %v7256 = vld [vmem:[#allocation2 + $0x38] sm:$0xff]
        %v7257 = vld [vmem:[#allocation2 + $0x40] sm:$0xff]
        %v7258 = vld [vmem:[#allocation2 + $0x48] sm:$0xff]
        %v7259 = vld [vmem:[#allocation2 + $0x50] sm:$0xff]
        %v7260 = vld [vmem:[#allocation2 + $0x58] sm:$0xff]
        %v7261 = vld [vmem:[#allocation2 + $0x60] sm:$0xff]
        %v7262 = vld [vmem:[#allocation2 + $0x68] sm:$0xff]
        %v7263 = vld [vmem:[#allocation2 + $0x70] sm:$0xff]
        %v7264 = vld [vmem:[#allocation2 + $0x78] sm:$0xff]
        %v7265 = vld [vmem:[#allocation2 + $0x80] sm:$0xff]
        %v7266 = vld [vmem:[#allocation2 + $0x88] sm:$0xff]
        %v7267 = vld [vmem:[#allocation2 + $0x90] sm:$0xff]
        %v7268 = vld [vmem:[#allocation2 + $0x98] sm:$0xff]
        %v7269 = vrot.slane %v7249, 7
        %v7270 = vrot.slane %v7250, 7
        %v7271 = vrot.slane %v7251, 7
        %v7272 = vrot.slane %v7252, 7
        %v7273 = vrot.slane %v7253, 7
        %v7274 = vrot.slane %v7254, 7
        %v7275 = vrot.slane %v7255, 7
        %v7276 = vrot.slane %v7256, 7
        %v7277 = vrot.slane %v7257, 7
        %v7278 = vrot.slane %v7258, 7
        %v7279 = vrot.slane %v7259, 7
        %v7280 = vrot.slane %v7260, 7
        %v7281 = vrot.slane %v7261, 7
        %v7282 = vrot.slane %v7262, 7
        %v7283 = vrot.slane %v7263, 7
        %v7284 = vrot.slane %v7264, 7
        %v7285 = vrot.slane %v7265, 7
        %v7286 = vrot.slane %v7266, 7
        %v7287 = vrot.slane %v7267, 7
        %v7288 = vrot.slane %v7268, 7
        %v7289 = vsel %vm793, %v7287, %v7288
        %v7290 = vsel %vm793, %v7286, %v7287
        %v7291 = vsel %vm793, %v7285, %v7286
        %v7292 = vsel %vm793, %v7284, %v7285
        %v7293 = vsel %vm793, %v7283, %v7284
        %v7294 = vsel %vm793, %v7282, %v7283
        %v7295 = vsel %vm793, %v7281, %v7282
        %v7296 = vsel %vm793, %v7280, %v7281
        %v7297 = vsel %vm793, %v7279, %v7280
        %v7298 = vsel %vm793, %v7278, %v7279
        %v7299 = vsel %vm793, %v7277, %v7278
        %v7300 = vsel %vm793, %v7276, %v7277
        %v7301 = vsel %vm793, %v7275, %v7276
        %v7302 = vsel %vm793, %v7274, %v7275
        %v7303 = vsel %vm793, %v7273, %v7274
        %v7304 = vsel %vm793, %v7272, %v7273
        %v7305 = vsel %vm793, %v7271, %v7272
        %v7306 = vsel %vm793, %v7270, %v7271
        %v7307 = vsel %vm793, %v7269, %v7270
        %v7308 = vsel %vm793, %v7288, %v7269
        %v7309 = vpack.c.bf16 %v7308, %v7308
        %v7310 = vpack.c.bf16 %v7307, %v7307
        %v7311 = vpack.c.bf16 %v7306, %v7306
        %v7312 = vpack.c.bf16 %v7305, %v7305
        %v7313 = vpack.c.bf16 %v7304, %v7304
        %v7314 = vpack.c.bf16 %v7303, %v7303
        %v7315 = vpack.c.bf16 %v7302, %v7302
        %v7316 = vpack.c.bf16 %v7301, %v7301
        %v7317 = vpack.c.bf16 %v7300, %v7300
        %v7318 = vpack.c.bf16 %v7299, %v7299
        %v7319 = vpack.c.bf16 %v7298, %v7298
        %v7320 = vpack.c.bf16 %v7297, %v7297
        %v7321 = vpack.c.bf16 %v7296, %v7296
        %v7322 = vpack.c.bf16 %v7295, %v7295
        %v7323 = vpack.c.bf16 %v7294, %v7294
        %v7324 = vpack.c.bf16 %v7293, %v7293
        %v7325 = vpack.c.bf16 %v7292, %v7292
        %v7326 = vpack.c.bf16 %v7291, %v7291
        %v7327 = vpack.c.bf16 %v7290, %v7290
        %v7328 = vpack.c.bf16 %v7289, %v7289
        %v7329 = vld [vmem:[#allocation22] sm:$0xf]
        %v7330 = vld [vmem:[#allocation22 + $0x4] sm:$0xf]
        %v7331 = vld [vmem:[#allocation22 + $0x8] sm:$0xf]
        %v7332 = vld [vmem:[#allocation22 + $0xc] sm:$0xf]
        %v7333 = vld [vmem:[#allocation22 + $0x10] sm:$0xf]
        %v7334 = vld [vmem:[#allocation22 + $0x14] sm:$0xf]
        %v7335 = vld [vmem:[#allocation22 + $0x18] sm:$0xf]
        %v7336 = vld [vmem:[#allocation22 + $0x1c] sm:$0xf]
        %v7337 = vld [vmem:[#allocation22 + $0x20] sm:$0xf]
        %v7338 = vld [vmem:[#allocation22 + $0x24] sm:$0xf]
        %v7339 = vld [vmem:[#allocation22 + $0x28] sm:$0xf]
        %v7340 = vld [vmem:[#allocation22 + $0x2c] sm:$0xf]
        %v7341 = vld [vmem:[#allocation22 + $0x30] sm:$0xf]
        %v7342 = vld [vmem:[#allocation22 + $0x34] sm:$0xf]
        %v7343 = vld [vmem:[#allocation22 + $0x38] sm:$0xf]
        %v7344 = vld [vmem:[#allocation22 + $0x3c] sm:$0xf]
        %s7345 = scalar_lea.vmem [#allocation22], 192
        %v7346 = vld [vmem:[%s7345] sm:$0xf]
        %v7347 = vld [vmem:[%s7345 + $0x4] sm:$0xf]
        %v7348 = vld [vmem:[%s7345 + $0x8] sm:$0xf]
        %v7349 = vld [vmem:[%s7345 + $0xc] sm:$0xf]
        %v7350 = vld [vmem:[%s7345 + $0x10] sm:$0xf]
        %v7351 = vld [vmem:[%s7345 + $0x14] sm:$0xf]
        %v7352 = vld [vmem:[%s7345 + $0x18] sm:$0xf]
        %v7353 = vld [vmem:[%s7345 + $0x1c] sm:$0xf]
        %v7354 = vld [vmem:[%s7345 + $0x20] sm:$0xf]
        %v7355 = vld [vmem:[%s7345 + $0x24] sm:$0xf]
        %v7356 = vld [vmem:[%s7345 + $0x28] sm:$0xf]
        %v7357 = vld [vmem:[%s7345 + $0x2c] sm:$0xf]
        %v7358 = vld [vmem:[%s7345 + $0x30] sm:$0xf]
        %v7359 = vld [vmem:[%s7345 + $0x34] sm:$0xf]
        %v7360 = vld [vmem:[%s7345 + $0x38] sm:$0xf]
        %v7361 = vld [vmem:[%s7345 + $0x3c] sm:$0xf]
        %v7378 = vunpack.c.l.b16 %v7311
        %v7379 = vunpack.c.l.b16 %v7312
        %v7380 = vunpack.c.l.b16 %v7313
        %v7381 = vunpack.c.l.b16 %v7314
        %v7382 = vunpack.c.l.b16 %v7315
        %v7383 = vunpack.c.l.b16 %v7316
        %v7384 = vunpack.c.l.b16 %v7317
        %v7385 = vunpack.c.l.b16 %v7318
        %v7386 = vunpack.c.l.b16 %v7319
        %v7387 = vunpack.c.l.b16 %v7320
        %v7388 = vunpack.c.l.b16 %v7321
        %v7389 = vunpack.c.l.b16 %v7322
        %v7390 = vunpack.c.l.b16 %v7323
        %v7391 = vunpack.c.l.b16 %v7324
        %v7392 = vunpack.c.l.b16 %v7325
        %v7393 = vunpack.c.l.b16 %v7326
        %v7394 = vpack.c.b16 %v7379, %v7378
        %v7395 = vpack.c.b16 %v7381, %v7380
        %v7396 = vpack.c.b16 %v7383, %v7382
        %v7397 = vpack.c.b16 %v7385, %v7384
        %v7398 = vpack.c.b16 %v7387, %v7386
        %v7399 = vpack.c.b16 %v7389, %v7388
        %v7400 = vpack.c.b16 %v7391, %v7390
        %v7401 = vpack.c.b16 %v7393, %v7392
        %v7426 = vunpack.c.l.b16 %v7346
        %v7427 = vunpack.c.l.b16 %v7347
        %v7428 = vunpack.c.l.b16 %v7348
        %v7429 = vunpack.c.l.b16 %v7349
        %v7430 = vunpack.c.l.b16 %v7350
        %v7431 = vunpack.c.l.b16 %v7351
        %v7432 = vunpack.c.l.b16 %v7352
        %v7433 = vunpack.c.l.b16 %v7353
        %v7434 = vunpack.c.l.b16 %v7354
        %v7435 = vunpack.c.l.b16 %v7355
        %v7436 = vunpack.c.l.b16 %v7356
        %v7437 = vunpack.c.l.b16 %v7357
        %v7438 = vunpack.c.l.b16 %v7358
        %v7439 = vunpack.c.l.b16 %v7359
        %v7440 = vunpack.c.l.b16 %v7360
        %v7441 = vunpack.c.l.b16 %v7361
        %v7442 = vpack.c.b16 %v7427, %v7426
        %v7443 = vpack.c.b16 %v7429, %v7428
        %v7444 = vpack.c.b16 %v7431, %v7430
        %v7445 = vpack.c.b16 %v7433, %v7432
        %v7446 = vpack.c.b16 %v7435, %v7434
        %v7447 = vpack.c.b16 %v7437, %v7436
        %v7448 = vpack.c.b16 %v7439, %v7438
        %v7449 = vpack.c.b16 %v7441, %v7440
        %7458 = vmatpush.bf16.msra.mxu0 %v7449
        %7459 = vmatpush.bf16.msra.mxu0 %v7448
        %7460 = vmatpush.bf16.msra.mxu0 %v7447
        %7461 = vmatpush.bf16.msra.mxu0 %v7446
        %7462 = vmatpush.bf16.msra.mxu0 %v7445
        %7463 = vmatpush.bf16.msra.mxu0 %v7444
        %7464 = vmatpush.bf16.msra.mxu0 %v7443
        %7465 = vmatpush.bf16.msra.mxu0 %v7442
        %7466 = vmatmul.bf16.gmra.mxu0 %v7394
        %v7467 = vpop.f32.mrf.mxu0
        %v7468 = vadd.f32 0.0, %v7467
        %v7469 = vpop.f32.mrf.mxu0
        %v7470 = vadd.f32 0.0, %v7469
        %7471 = vmatmul.bf16.gmra.mxu0 %v7395
        %v7472 = vpop.f32.mrf.mxu0
        %v7473 = vadd.f32 0.0, %v7472
        %v7474 = vpop.f32.mrf.mxu0
        %v7475 = vadd.f32 0.0, %v7474
        %7476 = vmatmul.bf16.gmra.mxu0 %v7396
        %v7477 = vpop.f32.mrf.mxu0
        %v7478 = vadd.f32 0.0, %v7477
        %v7479 = vpop.f32.mrf.mxu0
        %v7480 = vadd.f32 0.0, %v7479
        %7481 = vmatmul.bf16.gmra.mxu0 %v7397
        %v7482 = vpop.f32.mrf.mxu0
        %v7483 = vadd.f32 0.0, %v7482
        %v7484 = vpop.f32.mrf.mxu0
        %v7485 = vadd.f32 0.0, %v7484
        %7486 = vmatmul.bf16.gmra.mxu0 %v7398
        %v7487 = vpop.f32.mrf.mxu0
        %v7488 = vadd.f32 0.0, %v7487
        %v7489 = vpop.f32.mrf.mxu0
        %v7490 = vadd.f32 0.0, %v7489
        %7491 = vmatmul.bf16.gmra.mxu0 %v7399
        %v7492 = vpop.f32.mrf.mxu0
        %v7493 = vadd.f32 0.0, %v7492
        %v7494 = vpop.f32.mrf.mxu0
        %v7495 = vadd.f32 0.0, %v7494
        %7496 = vmatmul.bf16.gmra.mxu0 %v7400
        %v7497 = vpop.f32.mrf.mxu0
        %v7498 = vadd.f32 0.0, %v7497
        %v7499 = vpop.f32.mrf.mxu0
        %v7500 = vadd.f32 0.0, %v7499
        %7501 = vmatmul.bf16.gmra.mxu0 %v7401
        %v7502 = vpop.f32.mrf.mxu0
        %v7503 = vadd.f32 0.0, %v7502
        %v7504 = vpop.f32.mrf.mxu0
        %v7505 = vadd.f32 0.0, %v7504
        %7506 = vdwg.mxu0
        %v7509 = vunpack.c.l.b16 %v7309
        %v7510 = vunpack.c.l.b16 %v7310
        %v7511 = vpack.c.b16 %v7510, %v7509
        %v7529 = vunpack.c.l.b16 %v7329
        %v7530 = vunpack.c.l.b16 %v7330
        %v7531 = vunpack.c.l.b16 %v7331
        %v7532 = vunpack.c.l.b16 %v7332
        %v7533 = vunpack.c.l.b16 %v7333
        %v7534 = vunpack.c.l.b16 %v7334
        %v7535 = vunpack.c.l.b16 %v7335
        %v7536 = vunpack.c.l.b16 %v7336
        %v7537 = vunpack.c.l.b16 %v7337
        %v7538 = vunpack.c.l.b16 %v7338
        %v7539 = vunpack.c.l.b16 %v7339
        %v7540 = vunpack.c.l.b16 %v7340
        %v7541 = vunpack.c.l.b16 %v7341
        %v7542 = vunpack.c.l.b16 %v7342
        %v7543 = vunpack.c.l.b16 %v7343
        %v7544 = vunpack.c.l.b16 %v7344
        %v7545 = vpack.c.b16 %v7530, %v7529
        %v7546 = vpack.c.b16 %v7532, %v7531
        %v7547 = vpack.c.b16 %v7534, %v7533
        %v7548 = vpack.c.b16 %v7536, %v7535
        %v7549 = vpack.c.b16 %v7538, %v7537
        %v7550 = vpack.c.b16 %v7540, %v7539
        %v7551 = vpack.c.b16 %v7542, %v7541
        %v7552 = vpack.c.b16 %v7544, %v7543
        %7561 = vmatpush.bf16.msra.mxu0 %v7552
        %7562 = vmatpush.bf16.msra.mxu0 %v7551
        %7563 = vmatpush.bf16.msra.mxu0 %v7550
        %7564 = vmatpush.bf16.msra.mxu0 %v7549
        %7565 = vmatpush.bf16.msra.mxu0 %v7548
        %7566 = vmatpush.bf16.msra.mxu0 %v7547
        %7567 = vmatpush.bf16.msra.mxu0 %v7546
        %7568 = vmatpush.bf16.msra.mxu0 %v7545
        %7569 = vmatmul.bf16.gmra.mxu0 %v7511
        %v7570 = vpop.f32.mrf.mxu0
        %v7571 = vadd.f32 %v7468, %v7570
        %v7572 = vpop.f32.mrf.mxu0
        %v7573 = vadd.f32 %v7470, %v7572
        %7574 = vmatmul.bf16.gmra.mxu0 %v7394
        %v7575 = vpop.f32.mrf.mxu0
        %v7576 = vadd.f32 %v7473, %v7575
        %v7577 = vpop.f32.mrf.mxu0
        %v7578 = vadd.f32 %v7475, %v7577
        %7579 = vmatmul.bf16.gmra.mxu0 %v7395
        %v7580 = vpop.f32.mrf.mxu0
        %v7581 = vadd.f32 %v7478, %v7580
        %v7582 = vpop.f32.mrf.mxu0
        %v7583 = vadd.f32 %v7480, %v7582
        %7584 = vmatmul.bf16.gmra.mxu0 %v7396
        %v7585 = vpop.f32.mrf.mxu0
        %v7586 = vadd.f32 %v7483, %v7585
        %v7587 = vpop.f32.mrf.mxu0
        %v7588 = vadd.f32 %v7485, %v7587
        %7589 = vmatmul.bf16.gmra.mxu0 %v7397
        %v7590 = vpop.f32.mrf.mxu0
        %v7591 = vadd.f32 %v7488, %v7590
        %v7592 = vpop.f32.mrf.mxu0
        %v7593 = vadd.f32 %v7490, %v7592
        %7594 = vmatmul.bf16.gmra.mxu0 %v7398
        %v7595 = vpop.f32.mrf.mxu0
        %v7596 = vadd.f32 %v7493, %v7595
        %v7597 = vpop.f32.mrf.mxu0
        %v7598 = vadd.f32 %v7495, %v7597
        %7599 = vmatmul.bf16.gmra.mxu0 %v7399
        %v7600 = vpop.f32.mrf.mxu0
        %v7601 = vadd.f32 %v7498, %v7600
        %v7602 = vpop.f32.mrf.mxu0
        %v7603 = vadd.f32 %v7500, %v7602
        %7604 = vmatmul.bf16.gmra.mxu0 %v7400
        %v7605 = vpop.f32.mrf.mxu0
        %v7606 = vadd.f32 %v7503, %v7605
        %v7607 = vpop.f32.mrf.mxu0
        %v7608 = vadd.f32 %v7505, %v7607
        %7609 = vdwg.mxu0
        %s7610 = scalar_lea.vmem [#allocation22], 384
        %v7611 = vld [vmem:[%s7610] sm:$0xf]
        %v7612 = vld [vmem:[%s7610 + $0x4] sm:$0xf]
        %v7613 = vld [vmem:[%s7610 + $0x8] sm:$0xf]
        %v7614 = vld [vmem:[%s7610 + $0xc] sm:$0xf]
        %v7615 = vld [vmem:[%s7610 + $0x10] sm:$0xf]
        %v7616 = vld [vmem:[%s7610 + $0x14] sm:$0xf]
        %v7617 = vld [vmem:[%s7610 + $0x18] sm:$0xf]
        %v7618 = vld [vmem:[%s7610 + $0x1c] sm:$0xf]
        %v7619 = vld [vmem:[%s7610 + $0x20] sm:$0xf]
        %v7620 = vld [vmem:[%s7610 + $0x24] sm:$0xf]
        %v7621 = vld [vmem:[%s7610 + $0x28] sm:$0xf]
        %v7622 = vld [vmem:[%s7610 + $0x2c] sm:$0xf]
        %v7623 = vld [vmem:[%s7610 + $0x30] sm:$0xf]
        %v7624 = vld [vmem:[%s7610 + $0x34] sm:$0xf]
        %v7625 = vld [vmem:[%s7610 + $0x38] sm:$0xf]
        %v7626 = vld [vmem:[%s7610 + $0x3c] sm:$0xf]
        %v7629 = vunpack.c.l.b16 %v7327
        %v7630 = vunpack.c.l.b16 %v7328
        %v7631 = vpack.c.b16 %v7630, %v7629
        %v7649 = vunpack.c.l.b16 %v7611
        %v7650 = vunpack.c.l.b16 %v7612
        %v7651 = vunpack.c.l.b16 %v7613
        %v7652 = vunpack.c.l.b16 %v7614
        %v7653 = vunpack.c.l.b16 %v7615
        %v7654 = vunpack.c.l.b16 %v7616
        %v7655 = vunpack.c.l.b16 %v7617
        %v7656 = vunpack.c.l.b16 %v7618
        %v7657 = vunpack.c.l.b16 %v7619
        %v7658 = vunpack.c.l.b16 %v7620
        %v7659 = vunpack.c.l.b16 %v7621
        %v7660 = vunpack.c.l.b16 %v7622
        %v7661 = vunpack.c.l.b16 %v7623
        %v7662 = vunpack.c.l.b16 %v7624
        %v7663 = vunpack.c.l.b16 %v7625
        %v7664 = vunpack.c.l.b16 %v7626
        %v7665 = vpack.c.b16 %v7650, %v7649
        %v7666 = vpack.c.b16 %v7652, %v7651
        %v7667 = vpack.c.b16 %v7654, %v7653
        %v7668 = vpack.c.b16 %v7656, %v7655
        %v7669 = vpack.c.b16 %v7658, %v7657
        %v7670 = vpack.c.b16 %v7660, %v7659
        %v7671 = vpack.c.b16 %v7662, %v7661
        %v7672 = vpack.c.b16 %v7664, %v7663
        %7681 = vmatpush.bf16.msra.mxu0 %v7672
        %7682 = vmatpush.bf16.msra.mxu0 %v7671
        %7683 = vmatpush.bf16.msra.mxu0 %v7670
        %7684 = vmatpush.bf16.msra.mxu0 %v7669
        %7685 = vmatpush.bf16.msra.mxu0 %v7668
        %7686 = vmatpush.bf16.msra.mxu0 %v7667
        %7687 = vmatpush.bf16.msra.mxu0 %v7666
        %7688 = vmatpush.bf16.msra.mxu0 %v7665
        %7689 = vmatmul.bf16.gmra.mxu0 %v7395
        %v7690 = vpop.f32.mrf.mxu0
        %v7691 = vadd.f32 0.0, %v7690
        %v7692 = vpop.f32.mrf.mxu0
        %v7693 = vadd.f32 0.0, %v7692
        %7694 = vmatmul.bf16.gmra.mxu0 %v7396
        %v7695 = vpop.f32.mrf.mxu0
        %v7696 = vadd.f32 0.0, %v7695
        %v7697 = vpop.f32.mrf.mxu0
        %v7698 = vadd.f32 0.0, %v7697
        %7699 = vmatmul.bf16.gmra.mxu0 %v7397
        %v7700 = vpop.f32.mrf.mxu0
        %v7701 = vadd.f32 0.0, %v7700
        %v7702 = vpop.f32.mrf.mxu0
        %v7703 = vadd.f32 0.0, %v7702
        %7704 = vmatmul.bf16.gmra.mxu0 %v7398
        %v7705 = vpop.f32.mrf.mxu0
        %v7706 = vadd.f32 0.0, %v7705
        %v7707 = vpop.f32.mrf.mxu0
        %v7708 = vadd.f32 0.0, %v7707
        %7709 = vmatmul.bf16.gmra.mxu0 %v7399
        %v7710 = vpop.f32.mrf.mxu0
        %v7711 = vadd.f32 0.0, %v7710
        %v7712 = vpop.f32.mrf.mxu0
        %v7713 = vadd.f32 0.0, %v7712
        %7714 = vmatmul.bf16.gmra.mxu0 %v7400
        %v7715 = vpop.f32.mrf.mxu0
        %v7716 = vadd.f32 0.0, %v7715
        %v7717 = vpop.f32.mrf.mxu0
        %v7718 = vadd.f32 0.0, %v7717
        %7719 = vmatmul.bf16.gmra.mxu0 %v7401
        %v7720 = vpop.f32.mrf.mxu0
        %v7721 = vadd.f32 0.0, %v7720
        %v7722 = vpop.f32.mrf.mxu0
        %v7723 = vadd.f32 0.0, %v7722
        %7724 = vmatmul.bf16.gmra.mxu0 %v7631
        %v7725 = vpop.f32.mrf.mxu0
        %v7726 = vadd.f32 0.0, %v7725
        %v7727 = vpop.f32.mrf.mxu0
        %v7728 = vadd.f32 0.0, %v7727
        %7729 = vdwg.mxu0
        %v7730 = vadd.f32 %v7571, %v7691
        %v7731 = vadd.f32 %v7573, %v7693
        %v7732 = vadd.f32 %v7576, %v7696
        %v7733 = vadd.f32 %v7578, %v7698
        %v7734 = vadd.f32 %v7581, %v7701
        %v7735 = vadd.f32 %v7583, %v7703
        %v7736 = vadd.f32 %v7586, %v7706
        %v7737 = vadd.f32 %v7588, %v7708
        %v7738 = vadd.f32 %v7591, %v7711
        %v7739 = vadd.f32 %v7593, %v7713
        %v7740 = vadd.f32 %v7596, %v7716
        %v7741 = vadd.f32 %v7598, %v7718
        %v7742 = vadd.f32 %v7601, %v7721
        %v7743 = vadd.f32 %v7603, %v7723
        %v7744 = vadd.f32 %v7606, %v7726
        %v7745 = vadd.f32 %v7608, %v7728
        %v7746 = vpack.c.bf16 %v7249, %v7249
        %v7747 = vpack.c.bf16 %v7250, %v7250
        %v7748 = vpack.c.bf16 %v7251, %v7251
        %v7749 = vpack.c.bf16 %v7252, %v7252
        %v7750 = vpack.c.bf16 %v7253, %v7253
        %v7751 = vpack.c.bf16 %v7254, %v7254
        %v7752 = vpack.c.bf16 %v7255, %v7255
        %v7753 = vpack.c.bf16 %v7256, %v7256
        %v7754 = vpack.c.bf16 %v7257, %v7257
        %v7755 = vpack.c.bf16 %v7258, %v7258
        %v7756 = vpack.c.bf16 %v7259, %v7259
        %v7757 = vpack.c.bf16 %v7260, %v7260
        %v7758 = vpack.c.bf16 %v7261, %v7261
        %v7759 = vpack.c.bf16 %v7262, %v7262
        %v7760 = vpack.c.bf16 %v7263, %v7263
        %v7761 = vpack.c.bf16 %v7264, %v7264
        %v7762 = vpack.c.bf16 %v7265, %v7265
        %v7763 = vpack.c.bf16 %v7266, %v7266
        %v7764 = vpack.c.bf16 %v7267, %v7267
        %v7765 = vpack.c.bf16 %v7268, %v7268
        %s7766 = scalar_lea.vmem [#allocation22], 64
        %v7767 = vld [vmem:[%s7766] sm:$0xf]
        %v7768 = vld [vmem:[%s7766 + $0x4] sm:$0xf]
        %v7769 = vld [vmem:[%s7766 + $0x8] sm:$0xf]
        %v7770 = vld [vmem:[%s7766 + $0xc] sm:$0xf]
        %v7771 = vld [vmem:[%s7766 + $0x10] sm:$0xf]
        %v7772 = vld [vmem:[%s7766 + $0x14] sm:$0xf]
        %v7773 = vld [vmem:[%s7766 + $0x18] sm:$0xf]
        %v7774 = vld [vmem:[%s7766 + $0x1c] sm:$0xf]
        %v7775 = vld [vmem:[%s7766 + $0x20] sm:$0xf]
        %v7776 = vld [vmem:[%s7766 + $0x24] sm:$0xf]
        %v7777 = vld [vmem:[%s7766 + $0x28] sm:$0xf]
        %v7778 = vld [vmem:[%s7766 + $0x2c] sm:$0xf]
        %v7779 = vld [vmem:[%s7766 + $0x30] sm:$0xf]
        %v7780 = vld [vmem:[%s7766 + $0x34] sm:$0xf]
        %v7781 = vld [vmem:[%s7766 + $0x38] sm:$0xf]
        %v7782 = vld [vmem:[%s7766 + $0x3c] sm:$0xf]
        %v7799 = vunpack.c.l.b16 %v7746
        %v7800 = vunpack.c.l.b16 %v7747
        %v7801 = vunpack.c.l.b16 %v7748
        %v7802 = vunpack.c.l.b16 %v7749
        %v7803 = vunpack.c.l.b16 %v7750
        %v7804 = vunpack.c.l.b16 %v7751
        %v7805 = vunpack.c.l.b16 %v7752
        %v7806 = vunpack.c.l.b16 %v7753
        %v7807 = vunpack.c.l.b16 %v7754
        %v7808 = vunpack.c.l.b16 %v7755
        %v7809 = vunpack.c.l.b16 %v7756
        %v7810 = vunpack.c.l.b16 %v7757
        %v7811 = vunpack.c.l.b16 %v7758
        %v7812 = vunpack.c.l.b16 %v7759
        %v7813 = vunpack.c.l.b16 %v7760
        %v7814 = vunpack.c.l.b16 %v7761
        %v7815 = vpack.c.b16 %v7800, %v7799
        %v7816 = vpack.c.b16 %v7802, %v7801
        %v7817 = vpack.c.b16 %v7804, %v7803
        %v7818 = vpack.c.b16 %v7806, %v7805
        %v7819 = vpack.c.b16 %v7808, %v7807
        %v7820 = vpack.c.b16 %v7810, %v7809
        %v7821 = vpack.c.b16 %v7812, %v7811
        %v7822 = vpack.c.b16 %v7814, %v7813
        %v7847 = vunpack.c.l.b16 %v7767
        %v7848 = vunpack.c.l.b16 %v7768
        %v7849 = vunpack.c.l.b16 %v7769
        %v7850 = vunpack.c.l.b16 %v7770
        %v7851 = vunpack.c.l.b16 %v7771
        %v7852 = vunpack.c.l.b16 %v7772
        %v7853 = vunpack.c.l.b16 %v7773
        %v7854 = vunpack.c.l.b16 %v7774
        %v7855 = vunpack.c.l.b16 %v7775
        %v7856 = vunpack.c.l.b16 %v7776
        %v7857 = vunpack.c.l.b16 %v7777
        %v7858 = vunpack.c.l.b16 %v7778
        %v7859 = vunpack.c.l.b16 %v7779
        %v7860 = vunpack.c.l.b16 %v7780
        %v7861 = vunpack.c.l.b16 %v7781
        %v7862 = vunpack.c.l.b16 %v7782
        %v7863 = vpack.c.b16 %v7848, %v7847
        %v7864 = vpack.c.b16 %v7850, %v7849
        %v7865 = vpack.c.b16 %v7852, %v7851
        %v7866 = vpack.c.b16 %v7854, %v7853
        %v7867 = vpack.c.b16 %v7856, %v7855
        %v7868 = vpack.c.b16 %v7858, %v7857
        %v7869 = vpack.c.b16 %v7860, %v7859
        %v7870 = vpack.c.b16 %v7862, %v7861
        %7879 = vmatpush.bf16.msra.mxu0 %v7870
        %7880 = vmatpush.bf16.msra.mxu0 %v7869
        %7881 = vmatpush.bf16.msra.mxu0 %v7868
        %7882 = vmatpush.bf16.msra.mxu0 %v7867
        %7883 = vmatpush.bf16.msra.mxu0 %v7866
        %7884 = vmatpush.bf16.msra.mxu0 %v7865
        %7885 = vmatpush.bf16.msra.mxu0 %v7864
        %7886 = vmatpush.bf16.msra.mxu0 %v7863
        %7887 = vmatmul.bf16.gmra.mxu0 %v7815
        %v7888 = vpop.f32.mrf.mxu0
        %v7889 = vadd.f32 0.0, %v7888
        %v7890 = vpop.f32.mrf.mxu0
        %v7891 = vadd.f32 0.0, %v7890
        %7892 = vmatmul.bf16.gmra.mxu0 %v7816
        %v7893 = vpop.f32.mrf.mxu0
        %v7894 = vadd.f32 0.0, %v7893
        %v7895 = vpop.f32.mrf.mxu0
        %v7896 = vadd.f32 0.0, %v7895
        %7897 = vmatmul.bf16.gmra.mxu0 %v7817
        %v7898 = vpop.f32.mrf.mxu0
        %v7899 = vadd.f32 0.0, %v7898
        %v7900 = vpop.f32.mrf.mxu0
        %v7901 = vadd.f32 0.0, %v7900
        %7902 = vmatmul.bf16.gmra.mxu0 %v7818
        %v7903 = vpop.f32.mrf.mxu0
        %v7904 = vadd.f32 0.0, %v7903
        %v7905 = vpop.f32.mrf.mxu0
        %v7906 = vadd.f32 0.0, %v7905
        %7907 = vmatmul.bf16.gmra.mxu0 %v7819
        %v7908 = vpop.f32.mrf.mxu0
        %v7909 = vadd.f32 0.0, %v7908
        %v7910 = vpop.f32.mrf.mxu0
        %v7911 = vadd.f32 0.0, %v7910
        %7912 = vmatmul.bf16.gmra.mxu0 %v7820
        %v7913 = vpop.f32.mrf.mxu0
        %v7914 = vadd.f32 0.0, %v7913
        %v7915 = vpop.f32.mrf.mxu0
        %v7916 = vadd.f32 0.0, %v7915
        %7917 = vmatmul.bf16.gmra.mxu0 %v7821
        %v7918 = vpop.f32.mrf.mxu0
        %v7919 = vadd.f32 0.0, %v7918
        %v7920 = vpop.f32.mrf.mxu0
        %v7921 = vadd.f32 0.0, %v7920
        %7922 = vmatmul.bf16.gmra.mxu0 %v7822
        %v7923 = vpop.f32.mrf.mxu0
        %v7924 = vadd.f32 0.0, %v7923
        %v7925 = vpop.f32.mrf.mxu0
        %v7926 = vadd.f32 0.0, %v7925
        %7927 = vdwg.mxu0
        %v7928 = vadd.f32 %v7730, %v7889
        %v7929 = vadd.f32 %v7731, %v7891
        %v7930 = vadd.f32 %v7732, %v7894
        %v7931 = vadd.f32 %v7733, %v7896
        %v7932 = vadd.f32 %v7734, %v7899
        %v7933 = vadd.f32 %v7735, %v7901
        %v7934 = vadd.f32 %v7736, %v7904
        %v7935 = vadd.f32 %v7737, %v7906
        %v7936 = vadd.f32 %v7738, %v7909
        %v7937 = vadd.f32 %v7739, %v7911
        %v7938 = vadd.f32 %v7740, %v7914
        %v7939 = vadd.f32 %v7741, %v7916
        %v7940 = vadd.f32 %v7742, %v7919
        %v7941 = vadd.f32 %v7743, %v7921
        %v7942 = vadd.f32 %v7744, %v7924
        %v7943 = vadd.f32 %v7745, %v7926
        %s7944 = scalar_lea.vmem [#allocation22], 256
        %v7945 = vld [vmem:[%s7944] sm:$0xf]
        %v7946 = vld [vmem:[%s7944 + $0x4] sm:$0xf]
        %v7947 = vld [vmem:[%s7944 + $0x8] sm:$0xf]
        %v7948 = vld [vmem:[%s7944 + $0xc] sm:$0xf]
        %v7949 = vld [vmem:[%s7944 + $0x10] sm:$0xf]
        %v7950 = vld [vmem:[%s7944 + $0x14] sm:$0xf]
        %v7951 = vld [vmem:[%s7944 + $0x18] sm:$0xf]
        %v7952 = vld [vmem:[%s7944 + $0x1c] sm:$0xf]
        %v7953 = vld [vmem:[%s7944 + $0x20] sm:$0xf]
        %v7954 = vld [vmem:[%s7944 + $0x24] sm:$0xf]
        %v7955 = vld [vmem:[%s7944 + $0x28] sm:$0xf]
        %v7956 = vld [vmem:[%s7944 + $0x2c] sm:$0xf]
        %v7957 = vld [vmem:[%s7944 + $0x30] sm:$0xf]
        %v7958 = vld [vmem:[%s7944 + $0x34] sm:$0xf]
        %v7959 = vld [vmem:[%s7944 + $0x38] sm:$0xf]
        %v7960 = vld [vmem:[%s7944 + $0x3c] sm:$0xf]
        %v7963 = vunpack.c.l.b16 %v7762
        %v7964 = vunpack.c.l.b16 %v7763
        %v7965 = vpack.c.b16 %v7964, %v7963
        %v7983 = vunpack.c.l.b16 %v7945
        %v7984 = vunpack.c.l.b16 %v7946
        %v7985 = vunpack.c.l.b16 %v7947
        %v7986 = vunpack.c.l.b16 %v7948
        %v7987 = vunpack.c.l.b16 %v7949
        %v7988 = vunpack.c.l.b16 %v7950
        %v7989 = vunpack.c.l.b16 %v7951
        %v7990 = vunpack.c.l.b16 %v7952
        %v7991 = vunpack.c.l.b16 %v7953
        %v7992 = vunpack.c.l.b16 %v7954
        %v7993 = vunpack.c.l.b16 %v7955
        %v7994 = vunpack.c.l.b16 %v7956
        %v7995 = vunpack.c.l.b16 %v7957
        %v7996 = vunpack.c.l.b16 %v7958
        %v7997 = vunpack.c.l.b16 %v7959
        %v7998 = vunpack.c.l.b16 %v7960
        %v7999 = vpack.c.b16 %v7984, %v7983
        %v8000 = vpack.c.b16 %v7986, %v7985
        %v8001 = vpack.c.b16 %v7988, %v7987
        %v8002 = vpack.c.b16 %v7990, %v7989
        %v8003 = vpack.c.b16 %v7992, %v7991
        %v8004 = vpack.c.b16 %v7994, %v7993
        %v8005 = vpack.c.b16 %v7996, %v7995
        %v8006 = vpack.c.b16 %v7998, %v7997
        %8015 = vmatpush.bf16.msra.mxu0 %v8006
        %8016 = vmatpush.bf16.msra.mxu0 %v8005
        %8017 = vmatpush.bf16.msra.mxu0 %v8004
        %8018 = vmatpush.bf16.msra.mxu0 %v8003
        %8019 = vmatpush.bf16.msra.mxu0 %v8002
        %8020 = vmatpush.bf16.msra.mxu0 %v8001
        %8021 = vmatpush.bf16.msra.mxu0 %v8000
        %8022 = vmatpush.bf16.msra.mxu0 %v7999
        %8023 = vmatmul.bf16.gmra.mxu0 %v7816
        %v8024 = vpop.f32.mrf.mxu0
        %v8025 = vadd.f32 0.0, %v8024
        %v8026 = vpop.f32.mrf.mxu0
        %v8027 = vadd.f32 0.0, %v8026
        %8028 = vmatmul.bf16.gmra.mxu0 %v7817
        %v8029 = vpop.f32.mrf.mxu0
        %v8030 = vadd.f32 0.0, %v8029
        %v8031 = vpop.f32.mrf.mxu0
        %v8032 = vadd.f32 0.0, %v8031
        %8033 = vmatmul.bf16.gmra.mxu0 %v7818
        %v8034 = vpop.f32.mrf.mxu0
        %v8035 = vadd.f32 0.0, %v8034
        %v8036 = vpop.f32.mrf.mxu0
        %v8037 = vadd.f32 0.0, %v8036
        %8038 = vmatmul.bf16.gmra.mxu0 %v7819
        %v8039 = vpop.f32.mrf.mxu0
        %v8040 = vadd.f32 0.0, %v8039
        %v8041 = vpop.f32.mrf.mxu0
        %v8042 = vadd.f32 0.0, %v8041
        %8043 = vmatmul.bf16.gmra.mxu0 %v7820
        %v8044 = vpop.f32.mrf.mxu0
        %v8045 = vadd.f32 0.0, %v8044
        %v8046 = vpop.f32.mrf.mxu0
        %v8047 = vadd.f32 0.0, %v8046
        %8048 = vmatmul.bf16.gmra.mxu0 %v7821
        %v8049 = vpop.f32.mrf.mxu0
        %v8050 = vadd.f32 0.0, %v8049
        %v8051 = vpop.f32.mrf.mxu0
        %v8052 = vadd.f32 0.0, %v8051
        %8053 = vmatmul.bf16.gmra.mxu0 %v7822
        %v8054 = vpop.f32.mrf.mxu0
        %v8055 = vadd.f32 0.0, %v8054
        %v8056 = vpop.f32.mrf.mxu0
        %v8057 = vadd.f32 0.0, %v8056
        %8058 = vmatmul.bf16.gmra.mxu0 %v7965
        %v8059 = vpop.f32.mrf.mxu0
        %v8060 = vadd.f32 0.0, %v8059
        %v8061 = vpop.f32.mrf.mxu0
        %v8062 = vadd.f32 0.0, %v8061
        %8063 = vdwg.mxu0
        %v8064 = vadd.f32 %v7928, %v8025
        %v8065 = vadd.f32 %v7929, %v8027
        %v8066 = vadd.f32 %v7930, %v8030
        %v8067 = vadd.f32 %v7931, %v8032
        %v8068 = vadd.f32 %v7932, %v8035
        %v8069 = vadd.f32 %v7933, %v8037
        %v8070 = vadd.f32 %v7934, %v8040
        %v8071 = vadd.f32 %v7935, %v8042
        %v8072 = vadd.f32 %v7936, %v8045
        %v8073 = vadd.f32 %v7937, %v8047
        %v8074 = vadd.f32 %v7938, %v8050
        %v8075 = vadd.f32 %v7939, %v8052
        %v8076 = vadd.f32 %v7940, %v8055
        %v8077 = vadd.f32 %v7941, %v8057
        %v8078 = vadd.f32 %v7942, %v8060
        %v8079 = vadd.f32 %v7943, %v8062
        %s8080 = scalar_lea.vmem [#allocation22], 448
        %v8081 = vld [vmem:[%s8080] sm:$0xf]
        %v8082 = vld [vmem:[%s8080 + $0x4] sm:$0xf]
        %v8083 = vld [vmem:[%s8080 + $0x8] sm:$0xf]
        %v8084 = vld [vmem:[%s8080 + $0xc] sm:$0xf]
        %v8085 = vld [vmem:[%s8080 + $0x10] sm:$0xf]
        %v8086 = vld [vmem:[%s8080 + $0x14] sm:$0xf]
        %v8087 = vld [vmem:[%s8080 + $0x18] sm:$0xf]
        %v8088 = vld [vmem:[%s8080 + $0x1c] sm:$0xf]
        %v8089 = vld [vmem:[%s8080 + $0x20] sm:$0xf]
        %v8090 = vld [vmem:[%s8080 + $0x24] sm:$0xf]
        %v8091 = vld [vmem:[%s8080 + $0x28] sm:$0xf]
        %v8092 = vld [vmem:[%s8080 + $0x2c] sm:$0xf]
        %v8093 = vld [vmem:[%s8080 + $0x30] sm:$0xf]
        %v8094 = vld [vmem:[%s8080 + $0x34] sm:$0xf]
        %v8095 = vld [vmem:[%s8080 + $0x38] sm:$0xf]
        %v8096 = vld [vmem:[%s8080 + $0x3c] sm:$0xf]
        %v8099 = vunpack.c.l.b16 %v7764
        %v8100 = vunpack.c.l.b16 %v7765
        %v8101 = vpack.c.b16 %v8100, %v8099
        %v8119 = vunpack.c.l.b16 %v8081
        %v8120 = vunpack.c.l.b16 %v8082
        %v8121 = vunpack.c.l.b16 %v8083
        %v8122 = vunpack.c.l.b16 %v8084
        %v8123 = vunpack.c.l.b16 %v8085
        %v8124 = vunpack.c.l.b16 %v8086
        %v8125 = vunpack.c.l.b16 %v8087
        %v8126 = vunpack.c.l.b16 %v8088
        %v8127 = vunpack.c.l.b16 %v8089
        %v8128 = vunpack.c.l.b16 %v8090
        %v8129 = vunpack.c.l.b16 %v8091
        %v8130 = vunpack.c.l.b16 %v8092
        %v8131 = vunpack.c.l.b16 %v8093
        %v8132 = vunpack.c.l.b16 %v8094
        %v8133 = vunpack.c.l.b16 %v8095
        %v8134 = vunpack.c.l.b16 %v8096
        %v8135 = vpack.c.b16 %v8120, %v8119
        %v8136 = vpack.c.b16 %v8122, %v8121
        %v8137 = vpack.c.b16 %v8124, %v8123
        %v8138 = vpack.c.b16 %v8126, %v8125
        %v8139 = vpack.c.b16 %v8128, %v8127
        %v8140 = vpack.c.b16 %v8130, %v8129
        %v8141 = vpack.c.b16 %v8132, %v8131
        %v8142 = vpack.c.b16 %v8134, %v8133
        %8151 = vmatpush.bf16.msra.mxu0 %v8142
        %8152 = vmatpush.bf16.msra.mxu0 %v8141
        %8153 = vmatpush.bf16.msra.mxu0 %v8140
        %8154 = vmatpush.bf16.msra.mxu0 %v8139
        %8155 = vmatpush.bf16.msra.mxu0 %v8138
        %8156 = vmatpush.bf16.msra.mxu0 %v8137
        %8157 = vmatpush.bf16.msra.mxu0 %v8136
        %8158 = vmatpush.bf16.msra.mxu0 %v8135
        %8159 = vmatmul.bf16.gmra.mxu0 %v7817
        %v8160 = vpop.f32.mrf.mxu0
        %v8161 = vadd.f32 0.0, %v8160
        %v8162 = vpop.f32.mrf.mxu0
        %v8163 = vadd.f32 0.0, %v8162
        %8164 = vmatmul.bf16.gmra.mxu0 %v7818
        %v8165 = vpop.f32.mrf.mxu0
        %v8166 = vadd.f32 0.0, %v8165
        %v8167 = vpop.f32.mrf.mxu0
        %v8168 = vadd.f32 0.0, %v8167
        %8169 = vmatmul.bf16.gmra.mxu0 %v7819
        %v8170 = vpop.f32.mrf.mxu0
        %v8171 = vadd.f32 0.0, %v8170
        %v8172 = vpop.f32.mrf.mxu0
        %v8173 = vadd.f32 0.0, %v8172
        %8174 = vmatmul.bf16.gmra.mxu0 %v7820
        %v8175 = vpop.f32.mrf.mxu0
        %v8176 = vadd.f32 0.0, %v8175
        %v8177 = vpop.f32.mrf.mxu0
        %v8178 = vadd.f32 0.0, %v8177
        %8179 = vmatmul.bf16.gmra.mxu0 %v7821
        %v8180 = vpop.f32.mrf.mxu0
        %v8181 = vadd.f32 0.0, %v8180
        %v8182 = vpop.f32.mrf.mxu0
        %v8183 = vadd.f32 0.0, %v8182
        %8184 = vmatmul.bf16.gmra.mxu0 %v7822
        %v8185 = vpop.f32.mrf.mxu0
        %v8186 = vadd.f32 0.0, %v8185
        %v8187 = vpop.f32.mrf.mxu0
        %v8188 = vadd.f32 0.0, %v8187
        %8189 = vmatmul.bf16.gmra.mxu0 %v7965
        %v8190 = vpop.f32.mrf.mxu0
        %v8191 = vadd.f32 0.0, %v8190
        %v8192 = vpop.f32.mrf.mxu0
        %v8193 = vadd.f32 0.0, %v8192
        %8194 = vmatmul.bf16.gmra.mxu0 %v8101
        %v8195 = vpop.f32.mrf.mxu0
        %v8196 = vadd.f32 0.0, %v8195
        %v8197 = vpop.f32.mrf.mxu0
        %v8198 = vadd.f32 0.0, %v8197
        %8199 = vdwg.mxu0
        %v8200 = vadd.f32 %v8064, %v8161
        %v8201 = vadd.f32 %v8065, %v8163
        %v8202 = vadd.f32 %v8066, %v8166
        %v8203 = vadd.f32 %v8067, %v8168
        %v8204 = vadd.f32 %v8068, %v8171
        %v8205 = vadd.f32 %v8069, %v8173
        %v8206 = vadd.f32 %v8070, %v8176
        %v8207 = vadd.f32 %v8071, %v8178
        %v8208 = vadd.f32 %v8072, %v8181
        %v8209 = vadd.f32 %v8073, %v8183
        %v8210 = vadd.f32 %v8074, %v8186
        %v8211 = vadd.f32 %v8075, %v8188
        %v8212 = vadd.f32 %v8076, %v8191
        %v8213 = vadd.f32 %v8077, %v8193
        %v8214 = vadd.f32 %v8078, %v8196
        %v8215 = vadd.f32 %v8079, %v8198
        %v8216 = vrot.slane %v7249, 1
        %v8217 = vrot.slane %v7250, 1
        %v8218 = vrot.slane %v7251, 1
        %v8219 = vrot.slane %v7252, 1
        %v8220 = vrot.slane %v7253, 1
        %v8221 = vrot.slane %v7254, 1
        %v8222 = vrot.slane %v7255, 1
        %v8223 = vrot.slane %v7256, 1
        %v8224 = vrot.slane %v7257, 1
        %v8225 = vrot.slane %v7258, 1
        %v8226 = vrot.slane %v7259, 1
        %v8227 = vrot.slane %v7260, 1
        %v8228 = vrot.slane %v7261, 1
        %v8229 = vrot.slane %v7262, 1
        %v8230 = vrot.slane %v7263, 1
        %v8231 = vrot.slane %v7264, 1
        %v8232 = vrot.slane %v7265, 1
        %v8233 = vrot.slane %v7266, 1
        %v8234 = vrot.slane %v7267, 1
        %v8235 = vrot.slane %v7268, 1
        %v8236 = vsel %vm1741, %v8234, %v8235
        %v8237 = vsel %vm1741, %v8233, %v8234
        %v8238 = vsel %vm1741, %v8232, %v8233
        %v8239 = vsel %vm1741, %v8231, %v8232
        %v8240 = vsel %vm1741, %v8230, %v8231
        %v8241 = vsel %vm1741, %v8229, %v8230
        %v8242 = vsel %vm1741, %v8228, %v8229
        %v8243 = vsel %vm1741, %v8227, %v8228
        %v8244 = vsel %vm1741, %v8226, %v8227
        %v8245 = vsel %vm1741, %v8225, %v8226
        %v8246 = vsel %vm1741, %v8224, %v8225
        %v8247 = vsel %vm1741, %v8223, %v8224
        %v8248 = vsel %vm1741, %v8222, %v8223
        %v8249 = vsel %vm1741, %v8221, %v8222
        %v8250 = vsel %vm1741, %v8220, %v8221
        %v8251 = vsel %vm1741, %v8219, %v8220
        %v8252 = vsel %vm1741, %v8218, %v8219
        %v8253 = vsel %vm1741, %v8217, %v8218
        %v8254 = vsel %vm1741, %v8216, %v8217
        %v8255 = vsel %vm1741, %v8235, %v8216
        %v8256 = vpack.c.bf16 %v8254, %v8254
        %v8257 = vpack.c.bf16 %v8253, %v8253
        %v8258 = vpack.c.bf16 %v8252, %v8252
        %v8259 = vpack.c.bf16 %v8251, %v8251
        %v8260 = vpack.c.bf16 %v8250, %v8250
        %v8261 = vpack.c.bf16 %v8249, %v8249
        %v8262 = vpack.c.bf16 %v8248, %v8248
        %v8263 = vpack.c.bf16 %v8247, %v8247
        %v8264 = vpack.c.bf16 %v8246, %v8246
        %v8265 = vpack.c.bf16 %v8245, %v8245
        %v8266 = vpack.c.bf16 %v8244, %v8244
        %v8267 = vpack.c.bf16 %v8243, %v8243
        %v8268 = vpack.c.bf16 %v8242, %v8242
        %v8269 = vpack.c.bf16 %v8241, %v8241
        %v8270 = vpack.c.bf16 %v8240, %v8240
        %v8271 = vpack.c.bf16 %v8239, %v8239
        %v8272 = vpack.c.bf16 %v8238, %v8238
        %v8273 = vpack.c.bf16 %v8237, %v8237
        %v8274 = vpack.c.bf16 %v8236, %v8236
        %v8275 = vpack.c.bf16 %v8255, %v8255
        %s8276 = scalar_lea.vmem [#allocation22], 128
        %v8277 = vld [vmem:[%s8276] sm:$0xf]
        %v8278 = vld [vmem:[%s8276 + $0x4] sm:$0xf]
        %v8279 = vld [vmem:[%s8276 + $0x8] sm:$0xf]
        %v8280 = vld [vmem:[%s8276 + $0xc] sm:$0xf]
        %v8281 = vld [vmem:[%s8276 + $0x10] sm:$0xf]
        %v8282 = vld [vmem:[%s8276 + $0x14] sm:$0xf]
        %v8283 = vld [vmem:[%s8276 + $0x18] sm:$0xf]
        %v8284 = vld [vmem:[%s8276 + $0x1c] sm:$0xf]
        %v8285 = vld [vmem:[%s8276 + $0x20] sm:$0xf]
        %v8286 = vld [vmem:[%s8276 + $0x24] sm:$0xf]
        %v8287 = vld [vmem:[%s8276 + $0x28] sm:$0xf]
        %v8288 = vld [vmem:[%s8276 + $0x2c] sm:$0xf]
        %v8289 = vld [vmem:[%s8276 + $0x30] sm:$0xf]
        %v8290 = vld [vmem:[%s8276 + $0x34] sm:$0xf]
        %v8291 = vld [vmem:[%s8276 + $0x38] sm:$0xf]
        %v8292 = vld [vmem:[%s8276 + $0x3c] sm:$0xf]
        %v8309 = vunpack.c.l.b16 %v8256
        %v8310 = vunpack.c.l.b16 %v8257
        %v8311 = vunpack.c.l.b16 %v8258
        %v8312 = vunpack.c.l.b16 %v8259
        %v8313 = vunpack.c.l.b16 %v8260
        %v8314 = vunpack.c.l.b16 %v8261
        %v8315 = vunpack.c.l.b16 %v8262
        %v8316 = vunpack.c.l.b16 %v8263
        %v8317 = vunpack.c.l.b16 %v8264
        %v8318 = vunpack.c.l.b16 %v8265
        %v8319 = vunpack.c.l.b16 %v8266
        %v8320 = vunpack.c.l.b16 %v8267
        %v8321 = vunpack.c.l.b16 %v8268
        %v8322 = vunpack.c.l.b16 %v8269
        %v8323 = vunpack.c.l.b16 %v8270
        %v8324 = vunpack.c.l.b16 %v8271
        %v8325 = vpack.c.b16 %v8310, %v8309
        %v8326 = vpack.c.b16 %v8312, %v8311
        %v8327 = vpack.c.b16 %v8314, %v8313
        %v8328 = vpack.c.b16 %v8316, %v8315
        %v8329 = vpack.c.b16 %v8318, %v8317
        %v8330 = vpack.c.b16 %v8320, %v8319
        %v8331 = vpack.c.b16 %v8322, %v8321
        %v8332 = vpack.c.b16 %v8324, %v8323
        %v8357 = vunpack.c.l.b16 %v8277
        %v8358 = vunpack.c.l.b16 %v8278
        %v8359 = vunpack.c.l.b16 %v8279
        %v8360 = vunpack.c.l.b16 %v8280
        %v8361 = vunpack.c.l.b16 %v8281
        %v8362 = vunpack.c.l.b16 %v8282
        %v8363 = vunpack.c.l.b16 %v8283
        %v8364 = vunpack.c.l.b16 %v8284
        %v8365 = vunpack.c.l.b16 %v8285
        %v8366 = vunpack.c.l.b16 %v8286
        %v8367 = vunpack.c.l.b16 %v8287
        %v8368 = vunpack.c.l.b16 %v8288
        %v8369 = vunpack.c.l.b16 %v8289
        %v8370 = vunpack.c.l.b16 %v8290
        %v8371 = vunpack.c.l.b16 %v8291
        %v8372 = vunpack.c.l.b16 %v8292
        %v8373 = vpack.c.b16 %v8358, %v8357
        %v8374 = vpack.c.b16 %v8360, %v8359
        %v8375 = vpack.c.b16 %v8362, %v8361
        %v8376 = vpack.c.b16 %v8364, %v8363
        %v8377 = vpack.c.b16 %v8366, %v8365
        %v8378 = vpack.c.b16 %v8368, %v8367
        %v8379 = vpack.c.b16 %v8370, %v8369
        %v8380 = vpack.c.b16 %v8372, %v8371
        %8389 = vmatpush.bf16.msra.mxu0 %v8380
        %8390 = vmatpush.bf16.msra.mxu0 %v8379
        %8391 = vmatpush.bf16.msra.mxu0 %v8378
        %8392 = vmatpush.bf16.msra.mxu0 %v8377
        %8393 = vmatpush.bf16.msra.mxu0 %v8376
        %8394 = vmatpush.bf16.msra.mxu0 %v8375
        %8395 = vmatpush.bf16.msra.mxu0 %v8374
        %8396 = vmatpush.bf16.msra.mxu0 %v8373
        %8397 = vmatmul.bf16.gmra.mxu0 %v8325
        %v8398 = vpop.f32.mrf.mxu0
        %v8399 = vadd.f32 0.0, %v8398
        %v8400 = vpop.f32.mrf.mxu0
        %v8401 = vadd.f32 0.0, %v8400
        %8402 = vmatmul.bf16.gmra.mxu0 %v8326
        %v8403 = vpop.f32.mrf.mxu0
        %v8404 = vadd.f32 0.0, %v8403
        %v8405 = vpop.f32.mrf.mxu0
        %v8406 = vadd.f32 0.0, %v8405
        %8407 = vmatmul.bf16.gmra.mxu0 %v8327
        %v8408 = vpop.f32.mrf.mxu0
        %v8409 = vadd.f32 0.0, %v8408
        %v8410 = vpop.f32.mrf.mxu0
        %v8411 = vadd.f32 0.0, %v8410
        %8412 = vmatmul.bf16.gmra.mxu0 %v8328
        %v8413 = vpop.f32.mrf.mxu0
        %v8414 = vadd.f32 0.0, %v8413
        %v8415 = vpop.f32.mrf.mxu0
        %v8416 = vadd.f32 0.0, %v8415
        %8417 = vmatmul.bf16.gmra.mxu0 %v8329
        %v8418 = vpop.f32.mrf.mxu0
        %v8419 = vadd.f32 0.0, %v8418
        %v8420 = vpop.f32.mrf.mxu0
        %v8421 = vadd.f32 0.0, %v8420
        %8422 = vmatmul.bf16.gmra.mxu0 %v8330
        %v8423 = vpop.f32.mrf.mxu0
        %v8424 = vadd.f32 0.0, %v8423
        %v8425 = vpop.f32.mrf.mxu0
        %v8426 = vadd.f32 0.0, %v8425
        %8427 = vmatmul.bf16.gmra.mxu0 %v8331
        %v8428 = vpop.f32.mrf.mxu0
        %v8429 = vadd.f32 0.0, %v8428
        %v8430 = vpop.f32.mrf.mxu0
        %v8431 = vadd.f32 0.0, %v8430
        %8432 = vmatmul.bf16.gmra.mxu0 %v8332
        %v8433 = vpop.f32.mrf.mxu0
        %v8434 = vadd.f32 0.0, %v8433
        %v8435 = vpop.f32.mrf.mxu0
        %v8436 = vadd.f32 0.0, %v8435
        %8437 = vdwg.mxu0
        %v8438 = vadd.f32 %v8200, %v8399
        %v8439 = vadd.f32 %v8201, %v8401
        %v8440 = vadd.f32 %v8202, %v8404
        %v8441 = vadd.f32 %v8203, %v8406
        %v8442 = vadd.f32 %v8204, %v8409
        %v8443 = vadd.f32 %v8205, %v8411
        %v8444 = vadd.f32 %v8206, %v8414
        %v8445 = vadd.f32 %v8207, %v8416
        %v8446 = vadd.f32 %v8208, %v8419
        %v8447 = vadd.f32 %v8209, %v8421
        %v8448 = vadd.f32 %v8210, %v8424
        %v8449 = vadd.f32 %v8211, %v8426
        %v8450 = vadd.f32 %v8212, %v8429
        %v8451 = vadd.f32 %v8213, %v8431
        %v8452 = vadd.f32 %v8214, %v8434
        %v8453 = vadd.f32 %v8215, %v8436
        %s8454 = scalar_lea.vmem [#allocation22], 320
        %v8455 = vld [vmem:[%s8454] sm:$0xf]
        %v8456 = vld [vmem:[%s8454 + $0x4] sm:$0xf]
        %v8457 = vld [vmem:[%s8454 + $0x8] sm:$0xf]
        %v8458 = vld [vmem:[%s8454 + $0xc] sm:$0xf]
        %v8459 = vld [vmem:[%s8454 + $0x10] sm:$0xf]
        %v8460 = vld [vmem:[%s8454 + $0x14] sm:$0xf]
        %v8461 = vld [vmem:[%s8454 + $0x18] sm:$0xf]
        %v8462 = vld [vmem:[%s8454 + $0x1c] sm:$0xf]
        %v8463 = vld [vmem:[%s8454 + $0x20] sm:$0xf]
        %v8464 = vld [vmem:[%s8454 + $0x24] sm:$0xf]
        %v8465 = vld [vmem:[%s8454 + $0x28] sm:$0xf]
        %v8466 = vld [vmem:[%s8454 + $0x2c] sm:$0xf]
        %v8467 = vld [vmem:[%s8454 + $0x30] sm:$0xf]
        %v8468 = vld [vmem:[%s8454 + $0x34] sm:$0xf]
        %v8469 = vld [vmem:[%s8454 + $0x38] sm:$0xf]
        %v8470 = vld [vmem:[%s8454 + $0x3c] sm:$0xf]
        %v8473 = vunpack.c.l.b16 %v8272
        %v8474 = vunpack.c.l.b16 %v8273
        %v8475 = vpack.c.b16 %v8474, %v8473
        %v8493 = vunpack.c.l.b16 %v8455
        %v8494 = vunpack.c.l.b16 %v8456
        %v8495 = vunpack.c.l.b16 %v8457
        %v8496 = vunpack.c.l.b16 %v8458
        %v8497 = vunpack.c.l.b16 %v8459
        %v8498 = vunpack.c.l.b16 %v8460
        %v8499 = vunpack.c.l.b16 %v8461
        %v8500 = vunpack.c.l.b16 %v8462
        %v8501 = vunpack.c.l.b16 %v8463
        %v8502 = vunpack.c.l.b16 %v8464
        %v8503 = vunpack.c.l.b16 %v8465
        %v8504 = vunpack.c.l.b16 %v8466
        %v8505 = vunpack.c.l.b16 %v8467
        %v8506 = vunpack.c.l.b16 %v8468
        %v8507 = vunpack.c.l.b16 %v8469
        %v8508 = vunpack.c.l.b16 %v8470
        %v8509 = vpack.c.b16 %v8494, %v8493
        %v8510 = vpack.c.b16 %v8496, %v8495
        %v8511 = vpack.c.b16 %v8498, %v8497
        %v8512 = vpack.c.b16 %v8500, %v8499
        %v8513 = vpack.c.b16 %v8502, %v8501
        %v8514 = vpack.c.b16 %v8504, %v8503
        %v8515 = vpack.c.b16 %v8506, %v8505
        %v8516 = vpack.c.b16 %v8508, %v8507
        %8525 = vmatpush.bf16.msra.mxu0 %v8516
        %8526 = vmatpush.bf16.msra.mxu0 %v8515
        %8527 = vmatpush.bf16.msra.mxu0 %v8514
        %8528 = vmatpush.bf16.msra.mxu0 %v8513
        %8529 = vmatpush.bf16.msra.mxu0 %v8512
        %8530 = vmatpush.bf16.msra.mxu0 %v8511
        %8531 = vmatpush.bf16.msra.mxu0 %v8510
        %8532 = vmatpush.bf16.msra.mxu0 %v8509
        %8533 = vmatmul.bf16.gmra.mxu0 %v8326
        %v8534 = vpop.f32.mrf.mxu0
        %v8535 = vadd.f32 0.0, %v8534
        %v8536 = vpop.f32.mrf.mxu0
        %v8537 = vadd.f32 0.0, %v8536
        %8538 = vmatmul.bf16.gmra.mxu0 %v8327
        %v8539 = vpop.f32.mrf.mxu0
        %v8540 = vadd.f32 0.0, %v8539
        %v8541 = vpop.f32.mrf.mxu0
        %v8542 = vadd.f32 0.0, %v8541
        %8543 = vmatmul.bf16.gmra.mxu0 %v8328
        %v8544 = vpop.f32.mrf.mxu0
        %v8545 = vadd.f32 0.0, %v8544
        %v8546 = vpop.f32.mrf.mxu0
        %v8547 = vadd.f32 0.0, %v8546
        %8548 = vmatmul.bf16.gmra.mxu0 %v8329
        %v8549 = vpop.f32.mrf.mxu0
        %v8550 = vadd.f32 0.0, %v8549
        %v8551 = vpop.f32.mrf.mxu0
        %v8552 = vadd.f32 0.0, %v8551
        %8553 = vmatmul.bf16.gmra.mxu0 %v8330
        %v8554 = vpop.f32.mrf.mxu0
        %v8555 = vadd.f32 0.0, %v8554
        %v8556 = vpop.f32.mrf.mxu0
        %v8557 = vadd.f32 0.0, %v8556
        %8558 = vmatmul.bf16.gmra.mxu0 %v8331
        %v8559 = vpop.f32.mrf.mxu0
        %v8560 = vadd.f32 0.0, %v8559
        %v8561 = vpop.f32.mrf.mxu0
        %v8562 = vadd.f32 0.0, %v8561
        %8563 = vmatmul.bf16.gmra.mxu0 %v8332
        %v8564 = vpop.f32.mrf.mxu0
        %v8565 = vadd.f32 0.0, %v8564
        %v8566 = vpop.f32.mrf.mxu0
        %v8567 = vadd.f32 0.0, %v8566
        %8568 = vmatmul.bf16.gmra.mxu0 %v8475
        %v8569 = vpop.f32.mrf.mxu0
        %v8570 = vadd.f32 0.0, %v8569
        %v8571 = vpop.f32.mrf.mxu0
        %v8572 = vadd.f32 0.0, %v8571
        %8573 = vdwg.mxu0
        %v8574 = vadd.f32 %v8438, %v8535
        %v8575 = vadd.f32 %v8439, %v8537
        %v8576 = vadd.f32 %v8440, %v8540
        %v8577 = vadd.f32 %v8441, %v8542
        %v8578 = vadd.f32 %v8442, %v8545
        %v8579 = vadd.f32 %v8443, %v8547
        %v8580 = vadd.f32 %v8444, %v8550
        %v8581 = vadd.f32 %v8445, %v8552
        %v8582 = vadd.f32 %v8446, %v8555
        %v8583 = vadd.f32 %v8447, %v8557
        %v8584 = vadd.f32 %v8448, %v8560
        %v8585 = vadd.f32 %v8449, %v8562
        %v8586 = vadd.f32 %v8450, %v8565
        %v8587 = vadd.f32 %v8451, %v8567
        %v8588 = vadd.f32 %v8452, %v8570
        %v8589 = vadd.f32 %v8453, %v8572
        %s8590 = scalar_lea.vmem [#allocation22], 512
        %v8591 = vld [vmem:[%s8590] sm:$0xf]
        %v8592 = vld [vmem:[%s8590 + $0x4] sm:$0xf]
        %v8593 = vld [vmem:[%s8590 + $0x8] sm:$0xf]
        %v8594 = vld [vmem:[%s8590 + $0xc] sm:$0xf]
        %v8595 = vld [vmem:[%s8590 + $0x10] sm:$0xf]
        %v8596 = vld [vmem:[%s8590 + $0x14] sm:$0xf]
        %v8597 = vld [vmem:[%s8590 + $0x18] sm:$0xf]
        %v8598 = vld [vmem:[%s8590 + $0x1c] sm:$0xf]
        %v8599 = vld [vmem:[%s8590 + $0x20] sm:$0xf]
        %v8600 = vld [vmem:[%s8590 + $0x24] sm:$0xf]
        %v8601 = vld [vmem:[%s8590 + $0x28] sm:$0xf]
        %v8602 = vld [vmem:[%s8590 + $0x2c] sm:$0xf]
        %v8603 = vld [vmem:[%s8590 + $0x30] sm:$0xf]
        %v8604 = vld [vmem:[%s8590 + $0x34] sm:$0xf]
        %v8605 = vld [vmem:[%s8590 + $0x38] sm:$0xf]
        %v8606 = vld [vmem:[%s8590 + $0x3c] sm:$0xf]
        %v8609 = vunpack.c.l.b16 %v8274
        %v8610 = vunpack.c.l.b16 %v8275
        %v8611 = vpack.c.b16 %v8610, %v8609
        %v8629 = vunpack.c.l.b16 %v8591
        %v8630 = vunpack.c.l.b16 %v8592
        %v8631 = vunpack.c.l.b16 %v8593
        %v8632 = vunpack.c.l.b16 %v8594
        %v8633 = vunpack.c.l.b16 %v8595
        %v8634 = vunpack.c.l.b16 %v8596
        %v8635 = vunpack.c.l.b16 %v8597
        %v8636 = vunpack.c.l.b16 %v8598
        %v8637 = vunpack.c.l.b16 %v8599
        %v8638 = vunpack.c.l.b16 %v8600
        %v8639 = vunpack.c.l.b16 %v8601
        %v8640 = vunpack.c.l.b16 %v8602
        %v8641 = vunpack.c.l.b16 %v8603
        %v8642 = vunpack.c.l.b16 %v8604
        %v8643 = vunpack.c.l.b16 %v8605
        %v8644 = vunpack.c.l.b16 %v8606
        %v8645 = vpack.c.b16 %v8630, %v8629
        %v8646 = vpack.c.b16 %v8632, %v8631
        %v8647 = vpack.c.b16 %v8634, %v8633
        %v8648 = vpack.c.b16 %v8636, %v8635
        %v8649 = vpack.c.b16 %v8638, %v8637
        %v8650 = vpack.c.b16 %v8640, %v8639
        %v8651 = vpack.c.b16 %v8642, %v8641
        %v8652 = vpack.c.b16 %v8644, %v8643
        %8661 = vmatpush.bf16.msra.mxu0 %v8652
        %8662 = vmatpush.bf16.msra.mxu0 %v8651
        %8663 = vmatpush.bf16.msra.mxu0 %v8650
        %8664 = vmatpush.bf16.msra.mxu0 %v8649
        %8665 = vmatpush.bf16.msra.mxu0 %v8648
        %8666 = vmatpush.bf16.msra.mxu0 %v8647
        %8667 = vmatpush.bf16.msra.mxu0 %v8646
        %8668 = vmatpush.bf16.msra.mxu0 %v8645
        %8669 = vmatmul.bf16.gmra.mxu0 %v8327
        %v8670 = vpop.f32.mrf.mxu0
        %v8671 = vadd.f32 0.0, %v8670
        %v8672 = vpop.f32.mrf.mxu0
        %v8673 = vadd.f32 0.0, %v8672
        %8674 = vmatmul.bf16.gmra.mxu0 %v8328
        %v8675 = vpop.f32.mrf.mxu0
        %v8676 = vadd.f32 0.0, %v8675
        %v8677 = vpop.f32.mrf.mxu0
        %v8678 = vadd.f32 0.0, %v8677
        %8679 = vmatmul.bf16.gmra.mxu0 %v8329
        %v8680 = vpop.f32.mrf.mxu0
        %v8681 = vadd.f32 0.0, %v8680
        %v8682 = vpop.f32.mrf.mxu0
        %v8683 = vadd.f32 0.0, %v8682
        %8684 = vmatmul.bf16.gmra.mxu0 %v8330
        %v8685 = vpop.f32.mrf.mxu0
        %v8686 = vadd.f32 0.0, %v8685
        %v8687 = vpop.f32.mrf.mxu0
        %v8688 = vadd.f32 0.0, %v8687
        %8689 = vmatmul.bf16.gmra.mxu0 %v8331
        %v8690 = vpop.f32.mrf.mxu0
        %v8691 = vadd.f32 0.0, %v8690
        %v8692 = vpop.f32.mrf.mxu0
        %v8693 = vadd.f32 0.0, %v8692
        %8694 = vmatmul.bf16.gmra.mxu0 %v8332
        %v8695 = vpop.f32.mrf.mxu0
        %v8696 = vadd.f32 0.0, %v8695
        %v8697 = vpop.f32.mrf.mxu0
        %v8698 = vadd.f32 0.0, %v8697
        %8699 = vmatmul.bf16.gmra.mxu0 %v8475
        %v8700 = vpop.f32.mrf.mxu0
        %v8701 = vadd.f32 0.0, %v8700
        %v8702 = vpop.f32.mrf.mxu0
        %v8703 = vadd.f32 0.0, %v8702
        %8704 = vmatmul.bf16.gmra.mxu0 %v8611
        %v8705 = vpop.f32.mrf.mxu0
        %v8706 = vadd.f32 0.0, %v8705
        %v8707 = vpop.f32.mrf.mxu0
        %v8708 = vadd.f32 0.0, %v8707
        %8709 = vdwg.mxu0
        %v8710 = vadd.f32 %v8574, %v8671
        %v8711 = vadd.f32 %v8575, %v8673
        %v8712 = vadd.f32 %v8576, %v8676
        %v8713 = vadd.f32 %v8577, %v8678
        %v8714 = vadd.f32 %v8578, %v8681
        %v8715 = vadd.f32 %v8579, %v8683
        %v8716 = vadd.f32 %v8580, %v8686
        %v8717 = vadd.f32 %v8581, %v8688
        %v8718 = vadd.f32 %v8582, %v8691
        %v8719 = vadd.f32 %v8583, %v8693
        %v8720 = vadd.f32 %v8584, %v8696
        %v8721 = vadd.f32 %v8585, %v8698
        %v8722 = vadd.f32 %v8586, %v8701
        %v8723 = vadd.f32 %v8587, %v8703
        %v8724 = vadd.f32 %v8588, %v8706
        %v8725 = vadd.f32 %v8589, %v8708
        %v8726 = vld [vmem:[#allocation23] sm:$0x1]
        %v8728 = vperm.slane %v8726, 0
        %v8730 = vadd.f32 %v8710, %v8728
        %v8731 = vadd.f32 %v8711, %v8728
        %v8732 = vadd.f32 %v8712, %v8728
        %v8733 = vadd.f32 %v8713, %v8728
        %v8734 = vadd.f32 %v8714, %v8728
        %v8735 = vadd.f32 %v8715, %v8728
        %v8736 = vadd.f32 %v8716, %v8728
        %v8737 = vadd.f32 %v8717, %v8728
        %v8738 = vadd.f32 %v8718, %v8728
        %v8739 = vadd.f32 %v8719, %v8728
        %v8740 = vadd.f32 %v8720, %v8728
        %v8741 = vadd.f32 %v8721, %v8728
        %v8742 = vadd.f32 %v8722, %v8728
        %v8743 = vadd.f32 %v8723, %v8728
        %v8744 = vadd.f32 %v8724, %v8728
        %v8745 = vadd.f32 %v8725, %v8728
        %8746 = vst [vmem:[%s712] sm:$0xff] %v8730
        %8747 = vst [vmem:[%s712 + $0x8] sm:$0xff] %v8731
        %8748 = vst [vmem:[%s712 + $0x10] sm:$0xff] %v8732
        %8749 = vst [vmem:[%s712 + $0x18] sm:$0xff] %v8733
        %8750 = vst [vmem:[%s712 + $0x20] sm:$0xff] %v8734
        %8751 = vst [vmem:[%s712 + $0x28] sm:$0xff] %v8735
        %8752 = vst [vmem:[%s712 + $0x30] sm:$0xff] %v8736
        %8753 = vst [vmem:[%s712 + $0x38] sm:$0xff] %v8737
        %8754 = vst [vmem:[%s712 + $0x40] sm:$0xff] %v8738
        %8755 = vst [vmem:[%s712 + $0x48] sm:$0xff] %v8739
        %8756 = vst [vmem:[%s712 + $0x50] sm:$0xff] %v8740
        %8757 = vst [vmem:[%s712 + $0x58] sm:$0xff] %v8741
        %8758 = vst [vmem:[%s712 + $0x60] sm:$0xff] %v8742
        %8759 = vst [vmem:[%s712 + $0x68] sm:$0xff] %v8743
        %8760 = vst [vmem:[%s712 + $0x70] sm:$0xff] %v8744
        %8761 = vst [vmem:[%s712 + $0x78] sm:$0xff] %v8745
        %p8762 = scmp.lt.s32.totalorder %s34, 1
        %s8763 = scalar_select %p8762, %s34, 1
        %s8764 = smul.addr %s8763, 16
        %s8765 = smul.addr %s8764, 8
        %s8766 = scalar_lea.vmem %s15, %s8765
        // Predicated region
        $region137: #{forward.1} parent=79 // pred_check
          %p8767 = pneg %p372
        $region138: #{forward.1} parent=79 // pred_check_branch
          %8769 = sbr.rel (%p8767) target = $region140
        $region139: #{forward.1} parent=79 // pred_region
          _
        $region140: #{forward.1} parent=79 // pred_fallthru
          _
      $region80: #{forward.1} parent=5 // pred_fallthru
        _
      %p8770 = scmp.le.s32.totalorder 2, %s29
      // Predicated region
      $region141: #{forward.1} parent=5 // pred_check
        %p8771 = pneg %p8770
      $region142: #{forward.1} parent=5 // pred_check_branch
        %8773 = sbr.rel (%p8771) target = $region144
      $region143: #{forward.1} parent=5 // pred_region
        %s8774 = ssub.s32 %s29, 2
        // Predicated region
        $region145: #{forward.1} parent=143 // pred_check
          %p8775 = pneg %p378
        $region146: #{forward.1} parent=143 // pred_check_branch
          %8777 = sbr.rel (%p8775) target = $region148
        $region147: #{forward.1} parent=143 // pred_region
          %p8778 = scmp.lt.s32.totalorder %s35, 1
          %s8779 = scalar_select %p8778, %s35, 1
          %s8780 = smul.addr %s8779, 16
          %s8781 = smul.addr %s8780, 8
          %s8782 = scalar_lea.vmem %s15, %s8781
        $region148: #{forward.1} parent=143 // pred_fallthru
          _
      $region144: #{forward.1} parent=5 // pred_fallthru
        _
    $region6: #{forward.1} parent=1 // loop_footer
      %s33 = sadd.s32 1, %s29
    $region7: #{forward.1} parent=1 // loop_footer_branch
      %28 = sbr.rel target = $region3
    $region8: #{forward.1} parent=1 // loop_exit
      _
    %8783 = vsyncpa [#allocation4], 1
    %s8784 = scalar_lea.sflag [#allocation4], 1
    %8785 = vsyncpa %s8784, 1
    %8786 = vsyncpa [#allocation6], 1
    %8787 = vsyncpa [#allocation9], 1
    %8788 = vsyncpa [#allocation12], 1
    %8789 = vsyncpa [#allocation15], 1
    %8790 = vsyncpa [#allocation18], 1
    %8791 = vsyncpa [#allocation21], 1
    %8792 = vsyncpa [#allocation24], 1

</llo_original>
